<compile_context>
chip_gen: v7x
topology: tpu7x:2x2x1
jax: 0.10.0
libtpu: 0.0.40
codegen_flags: <defaults>
</compile_context>

<pallas_src>
import jax
import jax.numpy as jnp
from jax import lax
from jax.experimental import pallas as pl
from jax.experimental.pallas import tpu as pltpu

BN_EPS = 1e-5


def _round_up(a, b):
    return (a + b - 1) // b * b


def _vmem_limit_bytes():
    # Per-generation VMEM budget: ~16 MiB headroom below physical capacity,
    # capped at 100 MiB (v5e/v6e: 128 MiB -> 100 MiB, v7x: 64 MiB -> 48 MiB).
    try:
        cap = int(pltpu.get_tpu_info().vmem_capacity_bytes)
    except Exception:
        cap = 64 * 1024 * 1024
    return int(min(max(cap - 16 * 1024 * 1024, 32 * 1024 * 1024),
                   100 * 1024 * 1024))


# ----------------------------------------------------------------------------
# Kernel 1: halo 3x3x3 conv (+ fused input BN/ReLU) + per-tile BN partials
# ----------------------------------------------------------------------------
def _make_conv_kernel(H, W, C_in, apply_input_act):
    def kernel(xm_ref, x0_ref, xp_ref, w_ref, scale_ref, shift_ref,
               y_ref, stats_ref):
        d = pl.program_id(1)
        ndep = pl.num_programs(1)

        def plane(ref, valid):
            p = ref[0, 0]                                   # (H, W, C_in) bf16
            if apply_input_act:
                # previous block's BatchNorm + ReLU, f32 math, cast at the end
                a = jnp.maximum(
                    p.astype(jnp.float32) * scale_ref[...] + shift_ref[...],
                    0.0)
                if valid is not None:                       # depth border -> 0
                    a = a * valid.astype(jnp.float32)
                return a.astype(jnp.bfloat16)
            if valid is not None:
                p = p * valid.astype(p.dtype)
            return p

        p3 = (plane(xm_ref, d > 0),
              plane(x0_ref, None),
              plane(xp_ref, d < ndep - 1))

        CP = y_ref.shape[-1]
        zrow = jnp.zeros((1, W, C_in), jnp.bfloat16)
        zcol = jnp.zeros((H + 2, 1, C_in), jnp.bfloat16)
        acc = None
        for kd in range(3):
            padded = jnp.concatenate([zrow, p3[kd], zrow], axis=0)
            padded = jnp.concatenate([zcol, padded, zcol], axis=1)  # (H+2,W+2,C)
            for kw in range(3):
                flat = padded[:, kw:kw + W, :].reshape((H + 2) * W, C_in)
                for kh in range(3):
                    tap = flat[kh * W:kh * W + H * W, :]            # (H*W, C)
                    part = jnp.dot(tap, w_ref[(kd * 3 + kh) * 3 + kw],
                                   preferred_element_type=jnp.float32)
                    acc = part if acc is None else acc + part       # (H*W, CP)

        # Per-tile BatchNorm partials from the f32 accumulator (single store,
        # no read-modify-write; reduced hierarchically in f32 by XLA).
        stats_ref[0, 0] = jnp.concatenate(
            [jnp.sum(acc, axis=0, keepdims=True),
             jnp.sum(acc * acc, axis=0, keepdims=True)], axis=0)
        # Pre-BN conv output stored bf16, lane-dense.
        y_ref[0, 0] = acc.reshape(H, W, CP).astype(y_ref.dtype)

    return kernel


def conv3x3x3_block(x5, w_oikkk, gamma, beta, *, in_scale=None, in_shift=None,
                    compute_dtype=jnp.bfloat16, vmem_limit=None):
    """Conv3d(k=3, pad=1) with the PREVIOUS block's BN+ReLU fused on the input.

    x5: (N, D, H, W, Cs) bf16 (Cs possibly lane-padded).
    w : (Cout, Cin, 3, 3, 3) PyTorch Conv3d layout, Cin <= Cs.
    Returns (y5, scale, shift): pre-BN output (N, D, H, W, CP) bf16 and THIS
    block's BatchNorm scale/shift (f32), to be fused into the next consumer.
    The conv bias is intentionally dropped: train-mode BatchNorm's mean
    subtraction cancels it exactly.
    """
    N, D, H, W, Cs = x5.shape
    Cout, Cin = w_oikkk.shape[0], w_oikkk.shape[1]
    CP = _round_up(Cout, 128)                     # lane-dense output channels
    R = N * D * H * W

    # (Cout,Cin,3,3,3) -> (3,3,3,Cin,Cout) -> pad channels -> (27, Cs, CP) bf16
    wt = jnp.transpose(w_oikkk, (2, 3, 4, 1, 0))
    wt = jnp.pad(wt, ((0, 0), (0, 0), (0, 0), (0, Cs - Cin), (0, CP - Cout)))
    wt = wt.reshape(27, Cs, CP).astype(compute_dtype)

    apply_act = in_scale is not None
    if not apply_act:
        in_scale = jnp.zeros((1, Cs), jnp.float32)
        in_shift = jnp.zeros((1, Cs), jnp.float32)

    kernel = _make_conv_kernel(H, W, Cs, apply_act)
    y, stats = pl.pallas_call(
        kernel,
        out_shape=(jax.ShapeDtypeStruct((N, D, H, W, CP), jnp.bfloat16),
                   jax.ShapeDtypeStruct((N, D, 2, CP), jnp.float32)),
        grid_spec=pltpu.PrefetchScalarGridSpec(
            num_scalar_prefetch=0,
            grid=(N, D),
            in_specs=[
                # the same volume passed 3x: depth planes d-1, d, d+1 (clamped;
                # out-of-range taps are zero-masked in the kernel).
                pl.BlockSpec((1, 1, H, W, Cs),
                             lambda n, d: (n, jnp.maximum(d - 1, 0), 0, 0, 0)),
                pl.BlockSpec((1, 1, H, W, Cs),
                             lambda n, d: (n, d, 0, 0, 0)),
                pl.BlockSpec((1, 1, H, W, Cs),
                             lambda n, d: (n, jnp.minimum(d + 1, D - 1),
                                           0, 0, 0)),
                pl.BlockSpec((27, Cs, CP), lambda n, d: (0, 0, 0)),  # resident
                pl.BlockSpec((1, Cs), lambda n, d: (0, 0)),          # resident
                pl.BlockSpec((1, Cs), lambda n, d: (0, 0)),          # resident
            ],
            out_specs=(
                pl.BlockSpec((1, 1, H, W, CP), lambda n, d: (n, d, 0, 0, 0)),
                pl.BlockSpec((1, 1, 2, CP), lambda n, d: (n, d, 0, 0)),
            ),
        ),
        compiler_params=pltpu.CompilerParams(
            dimension_semantics=("parallel", "parallel"),
            vmem_limit_bytes=vmem_limit),
    )(x5, x5, x5, wt, in_scale, in_shift)

    # Finalize train-mode BatchNorm statistics (tiny, f32, in XLA).
    # TODO(synk): Welford/shifted combine for very large volumes.
    s = jnp.sum(stats, axis=(0, 1))                          # (2, CP)
    mean = s[0] / R
    var = jnp.maximum(s[1] / R - mean * mean, 0.0)           # biased (training)
    inv = lax.rsqrt(var + BN_EPS)
    gpad = jnp.pad(gamma.astype(jnp.float32), (0, CP - Cout))
    bpad = jnp.pad(beta.astype(jnp.float32), (0, CP - Cout))
    scale = (gpad * inv).reshape(1, CP)
    shift = (bpad - mean * gpad * inv).reshape(1, CP)
    return y, scale, shift


# ----------------------------------------------------------------------------
# Kernel 2: fused BN-apply + ReLU + ConvTranspose3d(k=2, s=2) (8 taps / matmul)
# ----------------------------------------------------------------------------
def _bn_relu_deconv_kernel(x_ref, scale_ref, shift_ref, w_ref, b_ref, o_ref):
    a = jnp.maximum(
        x_ref[...].astype(jnp.float32) * scale_ref[...] + shift_ref[...], 0.0)
    y = jnp.dot(a.astype(w_ref.dtype), w_ref[...],
                preferred_element_type=jnp.float32) + b_ref[...]
    o_ref[...] = y.astype(o_ref.dtype)


def bn_relu_deconv2x2x2(y5, scale, shift, w_iokkk, bias, *,
                        compute_dtype=jnp.bfloat16, vmem_limit=None,
                        target_rows=1024):
    """relu(BN(y)) followed by ConvTranspose3d(k=2, s=2), one fused kernel.

    y5: (N, D, H, W, CP) pre-BN bf16.  w: (Cin, Co, 2, 2, 2) PyTorch layout.
    """
    N, D, H, W, CP = y5.shape
    Cin, Co = w_iokkk.shape[0], w_iokkk.shape[1]
    Cop = _round_up(Co, 16)                 # 8*Cop is a multiple of 128
    R = N * D * H * W

    # (Cin,Co,2,2,2) -> (Cin,2,2,2,Co) -> pad -> (CP, 8*Cop), bf16
    wt = jnp.transpose(w_iokkk, (0, 2, 3, 4, 1))
    wt = jnp.pad(wt, ((0, CP - Cin), (0, 0), (0, 0), (0, 0), (0, Cop - Co)))
    wt = wt.reshape(CP, 8 * Cop).astype(compute_dtype)
    b = jnp.tile(jnp.pad(bias.astype(jnp.float32), (0, Cop - Co)), 8)
    b = b.reshape(1, 8 * Cop)

    # Row tile = whole depth planes (so it divides R exactly -> no padded rows),
    # sized against the per-generation VMEM budget.
    hw = H * W
    budget = vmem_limit if vmem_limit is not None else _vmem_limit_bytes()
    per_row = 2 * 2 * CP + 2 * 2 * 8 * Cop + 4 * (CP + 8 * Cop)
    planes = min(N * D, max(1, target_rows // hw),
                 max(1, (budget // 2) // max(per_row * hw, 1)))
    planes = max(planes, 1)
    while (N * D) % planes:
        planes -= 1
    TR = planes * hw

    xflat = y5.reshape(R, CP)
    out = pl.pallas_call(
        _bn_relu_deconv_kernel,
        out_shape=jax.ShapeDtypeStruct((R, 8 * Cop), jnp.bfloat16),
        grid_spec=pltpu.PrefetchScalarGridSpec(
            num_scalar_prefetch=0,
            grid=(R // TR,),
            in_specs=[
                pl.BlockSpec((TR, CP), lambda i: (i, 0)),
                pl.BlockSpec((1, CP), lambda i: (0, 0)),        # resident
                pl.BlockSpec((1, CP), lambda i: (0, 0)),        # resident
                pl.BlockSpec((CP, 8 * Cop), lambda i: (0, 0)),  # resident
                pl.BlockSpec((1, 8 * Cop), lambda i: (0, 0)),   # resident
            ],
            out_specs=pl.BlockSpec((TR, 8 * Cop), lambda i: (i, 0)),
        ),
        compiler_params=pltpu.CompilerParams(
            dimension_semantics=("parallel",),
            vmem_limit_bytes=vmem_limit),
    )(xflat, scale, shift, wt, b)

    # XLA glue: interleave the (2,2,2) sub-grids -> (N, 2D, 2H, 2W, Co), bf16.
    out = out.reshape(N, D, H, W, 2, 2, 2, Cop)
    out = jnp.transpose(out, (0, 1, 4, 2, 5, 3, 6, 7))
    return out.reshape(N, 2 * D, 2 * H, 2 * W, Cop)[..., :Co]


# ----------------------------------------------------------------------------
# Decoder3D forward (NCDHW in / NCDHW out, matching PyTorch; train-mode BN)
# ----------------------------------------------------------------------------
def decoder3d_forward(x_ncdhw, p, *, compute_dtype=jnp.bfloat16):
    vmem_limit = _vmem_limit_bytes()
    x = jnp.transpose(x_ncdhw, (0, 2, 3, 4, 1)).astype(compute_dtype)  # NDHWC
    # Conv biases (p["b1"], p["b2"]) are not applied: train-mode BatchNorm's
    # mean subtraction cancels them exactly.
    y1, sc1, sh1 = conv3x3x3_block(x, p["w1"], p["g1"], p["be1"],
                                   compute_dtype=compute_dtype,
                                   vmem_limit=vmem_limit)
    y2, sc2, sh2 = conv3x3x3_block(y1, p["w2"], p["g2"], p["be2"],
                                   in_scale=sc1, in_shift=sh1,
                                   compute_dtype=compute_dtype,
                                   vmem_limit=vmem_limit)
    out = bn_relu_deconv2x2x2(y2, sc2, sh2, p["wd"], p["bd"],
                              compute_dtype=compute_dtype,
                              vmem_limit=vmem_limit)
    return jnp.transpose(out, (0, 4, 1, 2, 3))                          # NCDHW


# ----------------------------------------------------------------------------
# Pure-JAX reference (same bf16-on-MXU / f32-accumulate / bf16-store policy)
# ----------------------------------------------------------------------------
def reference_forward(x_ncdhw, p, *, compute_dtype=jnp.bfloat16):
    x = jnp.transpose(x_ncdhw, (0, 2, 3, 4, 1)).astype(jnp.float32)

    def conv_bn_relu(h, w, g, be):
        w_dhwio = jnp.transpose(w, (2, 3, 4, 1, 0)).astype(compute_dtype)
        y = lax.conv_general_dilated(
            h.astype(compute_dtype), w_dhwio, window_strides=(1, 1, 1),
            padding="SAME", dimension_numbers=("NDHWC", "DHWIO", "NDHWC"),
            preferred_element_type=jnp.float32)
        mean = y.mean(axis=(0, 1, 2, 3))
        var = ((y - mean) ** 2).mean(axis=(0, 1, 2, 3))
        scale = g.astype(jnp.float32) / jnp.sqrt(var + BN_EPS)
        shift = be.astype(jnp.float32) - mean * scale
        y_q = y.astype(compute_dtype).astype(jnp.float32)   # bf16 intermediate
        return jnp.maximum(y_q * scale + shift, 0.0)

    h = conv_bn_relu(x, p["w1"], p["g1"], p["be1"])
    h = conv_bn_relu(h, p["w2"], p["g2"], p["be2"])
    y = jnp.einsum("ndhwc,cfijk->ndihjwkf",
                   h.astype(compute_dtype), p["wd"].astype(compute_dtype),
                   preferred_element_type=jnp.float32)
    N, D, _, H, _, W, _, F = y.shape
    y = y.reshape(N, 2 * D, 2 * H, 2 * W, F) + p["bd"]
    return jnp.transpose(y, (0, 4, 1, 2, 3))


if __name__ == "__main__":
    N, Cin, D, H, W = 2, 4, 8, 8, 8
    Cmid, Cout, Cde = 8, 8, 4

    ks = jax.random.split(jax.random.PRNGKey(0), 11)
    p = {
        "w1": 0.1 * jax.random.normal(ks[0], (Cmid, Cin, 3, 3, 3), jnp.float32),
        "b1": 0.1 * jax.random.normal(ks[1], (Cmid,), jnp.float32),
        "g1": 1.0 + 0.1 * jax.random.normal(ks[2], (Cmid,), jnp.float32),
        "be1": 0.1 * jax.random.normal(ks[3], (Cmid,), jnp.float32),
        "w2": 0.1 * jax.random.normal(ks[4], (Cout, Cmid, 3, 3, 3), jnp.float32),
        "b2": 0.1 * jax.random.normal(ks[5], (Cout,), jnp.float32),
        "g2": 1.0 + 0.1 * jax.random.normal(ks[6], (Cout,), jnp.float32),
        "be2": 0.1 * jax.random.normal(ks[7], (Cout,), jnp.float32),
        "wd": 0.1 * jax.random.normal(ks[8], (Cout, Cde, 2, 2, 2), jnp.float32),
        "bd": 0.1 * jax.random.normal(ks[9], (Cde,), jnp.float32),
    }
    x = jax.random.normal(ks[10], (N, Cin, D, H, W), jnp.float32)

    out = jax.jit(decoder3d_forward)(x, p)
    out = jax.block_until_ready(out)
    assert out.shape == (N, Cde, 2 * D, 2 * H, 2 * W), out.shape

    ref = reference_forward(x, p)
    err = float(jnp.max(jnp.abs(out.astype(jnp.float32) - ref)))
    assert err < 2e-2, f"max abs err {err}"
    print("KERNEL_OK")
</pallas_src>

<mosaic_0001>
module attributes {stable_mosaic.version = 11 : i64} {
  func.func @kernel(%arg0: i32, %arg1: i32, %arg2: memref<1x1x8x8x4xbf16, #tpu.memory_space<vmem>>, %arg3: memref<1x1x8x8x4xbf16, #tpu.memory_space<vmem>>, %arg4: memref<1x1x8x8x4xbf16, #tpu.memory_space<vmem>>, %arg5: memref<27x4x128xbf16, #tpu.memory_space<vmem>>, %arg6: memref<1x4xf32, #tpu.memory_space<vmem>>, %arg7: memref<1x4xf32, #tpu.memory_space<vmem>>, %arg8: memref<1x1x8x8x128xbf16, #tpu.memory_space<vmem>>, %arg9: memref<1x1x2x128xf32, #tpu.memory_space<vmem>>) attributes {dimension_semantics = [#tpu.dimension_semantics<parallel>, #tpu.dimension_semantics<parallel>], iteration_bounds = array<i64: 2, 8>, scalar_prefetch = 0 : i64, scratch_operands = 0 : i64, tpu.core_type = #tpu.core_type<tc>, window_params = [{transform_indices = @transform_0, window_bounds = array<i64: 1, 1, 8, 8, 4>}, {transform_indices = @transform_1, window_bounds = array<i64: 1, 1, 8, 8, 4>}, {transform_indices = @transform_2, window_bounds = array<i64: 1, 1, 8, 8, 4>}, {pipeline_mode = #tpu.pipeline_mode<synchronous>, transform_indices = @transform_3, window_bounds = array<i64: 27, 4, 128>}, {pipeline_mode = #tpu.pipeline_mode<synchronous>, transform_indices = @transform_4, window_bounds = array<i64: 1, 4>}, {pipeline_mode = #tpu.pipeline_mode<synchronous>, transform_indices = @transform_5, window_bounds = array<i64: 1, 4>}, {transform_indices = @transform_6, window_bounds = array<i64: 1, 1, 8, 8, 128>}, {transform_indices = @transform_7, window_bounds = array<i64: 1, 1, 2, 128>}]} {
    %c0_i32 = arith.constant 0 : i32
    %0 = arith.cmpi sgt, %arg1, %c0_i32 : i32
    %c0 = arith.constant 0 : index
    %c0_0 = arith.constant 0 : index
    %c0_1 = arith.constant 0 : index
    %c0_2 = arith.constant 0 : index
    %c0_3 = arith.constant 0 : index
    %1 = vector.load %arg2[%c0, %c0_0, %c0_1, %c0_2, %c0_3] : memref<1x1x8x8x4xbf16, #tpu.memory_space<vmem>>, vector<1x1x8x8x4xbf16>
    %2 = vector.shape_cast %1 : vector<1x1x8x8x4xbf16> to vector<8x8x4xbf16>
    %3 = arith.extui %0 : i1 to i32
    %4 = arith.sitofp %3 : i32 to f32
    %5 = arith.truncf %4 : f32 to bf16
    %6 = vector.broadcast %5 : bf16 to vector<8x8x4xbf16>
    %7 = arith.mulf %2, %6 : vector<8x8x4xbf16>
    %c0_4 = arith.constant 0 : index
    %c0_5 = arith.constant 0 : index
    %c0_6 = arith.constant 0 : index
    %c0_7 = arith.constant 0 : index
    %c0_8 = arith.constant 0 : index
    %8 = vector.load %arg3[%c0_4, %c0_5, %c0_6, %c0_7, %c0_8] : memref<1x1x8x8x4xbf16, #tpu.memory_space<vmem>>, vector<1x1x8x8x4xbf16>
    %9 = vector.shape_cast %8 : vector<1x1x8x8x4xbf16> to vector<8x8x4xbf16>
    %c7_i32 = arith.constant 7 : i32
    %10 = arith.cmpi slt, %arg1, %c7_i32 : i32
    %c0_9 = arith.constant 0 : index
    %c0_10 = arith.constant 0 : index
    %c0_11 = arith.constant 0 : index
    %c0_12 = arith.constant 0 : index
    %c0_13 = arith.constant 0 : index
    %11 = vector.load %arg4[%c0_9, %c0_10, %c0_11, %c0_12, %c0_13] : memref<1x1x8x8x4xbf16, #tpu.memory_space<vmem>>, vector<1x1x8x8x4xbf16>
    %12 = vector.shape_cast %11 : vector<1x1x8x8x4xbf16> to vector<8x8x4xbf16>
    %13 = arith.extui %10 : i1 to i32
    %14 = arith.sitofp %13 : i32 to f32
    %15 = arith.truncf %14 : f32 to bf16
    %16 = vector.broadcast %15 : bf16 to vector<8x8x4xbf16>
    %17 = arith.mulf %12, %16 : vector<8x8x4xbf16>
    %cst = arith.constant 0.000000e+00 : bf16
    %18 = vector.broadcast %cst : bf16 to vector<1x8x4xbf16>
    %cst_14 = arith.constant 0.000000e+00 : bf16
    %19 = vector.broadcast %cst_14 : bf16 to vector<10x1x4xbf16>
    %20 = tpu.concatenate %18, %7, %18 in 0 : vector<1x8x4xbf16>, vector<8x8x4xbf16>, vector<1x8x4xbf16> -> vector<10x8x4xbf16>
    %21 = tpu.concatenate %19, %20, %19 in 1 : vector<10x1x4xbf16>, vector<10x8x4xbf16>, vector<10x1x4xbf16> -> vector<10x10x4xbf16>
    %22 = vector.extract_strided_slice %21 {offsets = [0, 0, 0], sizes = [10, 8, 4], strides = [1, 1, 1]} : vector<10x10x4xbf16> to vector<10x8x4xbf16>
    %23 = vector.shape_cast %22 : vector<10x8x4xbf16> to vector<80x4xbf16>
    %24 = vector.extract_strided_slice %23 {offsets = [0, 0], sizes = [64, 4], strides = [1, 1]} : vector<80x4xbf16> to vector<64x4xbf16>
    %c0_15 = arith.constant 0 : index
    %c0_16 = arith.constant 0 : index
    %c0_17 = arith.constant 0 : index
    %25 = vector.load %arg5[%c0_15, %c0_16, %c0_17] : memref<27x4x128xbf16, #tpu.memory_space<vmem>>, vector<1x4x128xbf16>
    %26 = vector.shape_cast %25 : vector<1x4x128xbf16> to vector<4x128xbf16>
    %cst_18 = arith.constant dense<0.000000e+00> : vector<64x128xf32>
    %27 = tpu.matmul %24, %26, %cst_18 {dimension_numbers = #tpu.dot_dimension_numbers<[1], [0], [0], [1], [0, 0, 1, 1], [], []>} : vector<64x4xbf16>, vector<4x128xbf16>, vector<64x128xf32> -> vector<64x128xf32>
    %28 = vector.extract_strided_slice %23 {offsets = [8, 0], sizes = [64, 4], strides = [1, 1]} : vector<80x4xbf16> to vector<64x4xbf16>
    %c3 = arith.constant 3 : index
    %c0_19 = arith.constant 0 : index
    %c0_20 = arith.constant 0 : index
    %29 = vector.load %arg5[%c3, %c0_19, %c0_20] : memref<27x4x128xbf16, #tpu.memory_space<vmem>>, vector<1x4x128xbf16>
    %30 = vector.shape_cast %29 : vector<1x4x128xbf16> to vector<4x128xbf16>
    %cst_21 = arith.constant dense<0.000000e+00> : vector<64x128xf32>
    %31 = tpu.matmul %28, %30, %cst_21 {dimension_numbers = #tpu.dot_dimension_numbers<[1], [0], [0], [1], [0, 0, 1, 1], [], []>} : vector<64x4xbf16>, vector<4x128xbf16>, vector<64x128xf32> -> vector<64x128xf32>
    %32 = arith.addf %27, %31 : vector<64x128xf32>
    %33 = vector.extract_strided_slice %23 {offsets = [16, 0], sizes = [64, 4], strides = [1, 1]} : vector<80x4xbf16> to vector<64x4xbf16>
    %c6 = arith.constant 6 : index
    %c0_22 = arith.constant 0 : index
    %c0_23 = arith.constant 0 : index
    %34 = vector.load %arg5[%c6, %c0_22, %c0_23] : memref<27x4x128xbf16, #tpu.memory_space<vmem>>, vector<1x4x128xbf16>
    %35 = vector.shape_cast %34 : vector<1x4x128xbf16> to vector<4x128xbf16>
    %cst_24 = arith.constant dense<0.000000e+00> : vector<64x128xf32>
    %36 = tpu.matmul %33, %35, %cst_24 {dimension_numbers = #tpu.dot_dimension_numbers<[1], [0], [0], [1], [0, 0, 1, 1], [], []>} : vector<64x4xbf16>, vector<4x128xbf16>, vector<64x128xf32> -> vector<64x128xf32>
    %37 = arith.addf %32, %36 : vector<64x128xf32>
    %38 = vector.extract_strided_slice %21 {offsets = [0, 1, 0], sizes = [10, 8, 4], strides = [1, 1, 1]} : vector<10x10x4xbf16> to vector<10x8x4xbf16>
    %39 = vector.shape_cast %38 : vector<10x8x4xbf16> to vector<80x4xbf16>
    %40 = vector.extract_strided_slice %39 {offsets = [0, 0], sizes = [64, 4], strides = [1, 1]} : vector<80x4xbf16> to vector<64x4xbf16>
    %c1 = arith.constant 1 : index
    %c0_25 = arith.constant 0 : index
    %c0_26 = arith.constant 0 : index
    %41 = vector.load %arg5[%c1, %c0_25, %c0_26] : memref<27x4x128xbf16, #tpu.memory_space<vmem>>, vector<1x4x128xbf16>
    %42 = vector.shape_cast %41 : vector<1x4x128xbf16> to vector<4x128xbf16>
    %cst_27 = arith.constant dense<0.000000e+00> : vector<64x128xf32>
    %43 = tpu.matmul %40, %42, %cst_27 {dimension_numbers = #tpu.dot_dimension_numbers<[1], [0], [0], [1], [0, 0, 1, 1], [], []>} : vector<64x4xbf16>, vector<4x128xbf16>, vector<64x128xf32> -> vector<64x128xf32>
    %44 = arith.addf %37, %43 : vector<64x128xf32>
    %45 = vector.extract_strided_slice %39 {offsets = [8, 0], sizes = [64, 4], strides = [1, 1]} : vector<80x4xbf16> to vector<64x4xbf16>
    %c4 = arith.constant 4 : index
    %c0_28 = arith.constant 0 : index
    %c0_29 = arith.constant 0 : index
    %46 = vector.load %arg5[%c4, %c0_28, %c0_29] : memref<27x4x128xbf16, #tpu.memory_space<vmem>>, vector<1x4x128xbf16>
    %47 = vector.shape_cast %46 : vector<1x4x128xbf16> to vector<4x128xbf16>
    %cst_30 = arith.constant dense<0.000000e+00> : vector<64x128xf32>
    %48 = tpu.matmul %45, %47, %cst_30 {dimension_numbers = #tpu.dot_dimension_numbers<[1], [0], [0], [1], [0, 0, 1, 1], [], []>} : vector<64x4xbf16>, vector<4x128xbf16>, vector<64x128xf32> -> vector<64x128xf32>
    %49 = arith.addf %44, %48 : vector<64x128xf32>
    %50 = vector.extract_strided_slice %39 {offsets = [16, 0], sizes = [64, 4], strides = [1, 1]} : vector<80x4xbf16> to vector<64x4xbf16>
    %c7 = arith.constant 7 : index
    %c0_31 = arith.constant 0 : index
    %c0_32 = arith.constant 0 : index
    %51 = vector.load %arg5[%c7, %c0_31, %c0_32] : memref<27x4x128xbf16, #tpu.memory_space<vmem>>, vector<1x4x128xbf16>
    %52 = vector.shape_cast %51 : vector<1x4x128xbf16> to vector<4x128xbf16>
    %cst_33 = arith.constant dense<0.000000e+00> : vector<64x128xf32>
    %53 = tpu.matmul %50, %52, %cst_33 {dimension_numbers = #tpu.dot_dimension_numbers<[1], [0], [0], [1], [0, 0, 1, 1], [], []>} : vector<64x4xbf16>, vector<4x128xbf16>, vector<64x128xf32> -> vector<64x128xf32>
    %54 = arith.addf %49, %53 : vector<64x128xf32>
    %55 = vector.extract_strided_slice %21 {offsets = [0, 2, 0], sizes = [10, 8, 4], strides = [1, 1, 1]} : vector<10x10x4xbf16> to vector<10x8x4xbf16>
    %56 = vector.shape_cast %55 : vector<10x8x4xbf16> to vector<80x4xbf16>
    %57 = vector.extract_strided_slice %56 {offsets = [0, 0], sizes = [64, 4], strides = [1, 1]} : vector<80x4xbf16> to vector<64x4xbf16>
    %c2 = arith.constant 2 : index
    %c0_34 = arith.constant 0 : index
    %c0_35 = arith.constant 0 : index
    %58 = vector.load %arg5[%c2, %c0_34, %c0_35] : memref<27x4x128xbf16, #tpu.memory_space<vmem>>, vector<1x4x128xbf16>
    %59 = vector.shape_cast %58 : vector<1x4x128xbf16> to vector<4x128xbf16>
    %cst_36 = arith.constant dense<0.000000e+00> : vector<64x128xf32>
    %60 = tpu.matmul %57, %59, %cst_36 {dimension_numbers = #tpu.dot_dimension_numbers<[1], [0], [0], [1], [0, 0, 1, 1], [], []>} : vector<64x4xbf16>, vector<4x128xbf16>, vector<64x128xf32> -> vector<64x128xf32>
    %61 = arith.addf %54, %60 : vector<64x128xf32>
    %62 = vector.extract_strided_slice %56 {offsets = [8, 0], sizes = [64, 4], strides = [1, 1]} : vector<80x4xbf16> to vector<64x4xbf16>
    %c5 = arith.constant 5 : index
    %c0_37 = arith.constant 0 : index
    %c0_38 = arith.constant 0 : index
    %63 = vector.load %arg5[%c5, %c0_37, %c0_38] : memref<27x4x128xbf16, #tpu.memory_space<vmem>>, vector<1x4x128xbf16>
    %64 = vector.shape_cast %63 : vector<1x4x128xbf16> to vector<4x128xbf16>
    %cst_39 = arith.constant dense<0.000000e+00> : vector<64x128xf32>
    %65 = tpu.matmul %62, %64, %cst_39 {dimension_numbers = #tpu.dot_dimension_numbers<[1], [0], [0], [1], [0, 0, 1, 1], [], []>} : vector<64x4xbf16>, vector<4x128xbf16>, vector<64x128xf32> -> vector<64x128xf32>
    %66 = arith.addf %61, %65 : vector<64x128xf32>
    %67 = vector.extract_strided_slice %56 {offsets = [16, 0], sizes = [64, 4], strides = [1, 1]} : vector<80x4xbf16> to vector<64x4xbf16>
    %c8 = arith.constant 8 : index
    %c0_40 = arith.constant 0 : index
    %c0_41 = arith.constant 0 : index
    %68 = vector.load %arg5[%c8, %c0_40, %c0_41] : memref<27x4x128xbf16, #tpu.memory_space<vmem>>, vector<1x4x128xbf16>
    %69 = vector.shape_cast %68 : vector<1x4x128xbf16> to vector<4x128xbf16>
    %cst_42 = arith.constant dense<0.000000e+00> : vector<64x128xf32>
    %70 = tpu.matmul %67, %69, %cst_42 {dimension_numbers = #tpu.dot_dimension_numbers<[1], [0], [0], [1], [0, 0, 1, 1], [], []>} : vector<64x4xbf16>, vector<4x128xbf16>, vector<64x128xf32> -> vector<64x128xf32>
    %71 = arith.addf %66, %70 : vector<64x128xf32>
    %72 = tpu.concatenate %18, %9, %18 in 0 : vector<1x8x4xbf16>, vector<8x8x4xbf16>, vector<1x8x4xbf16> -> vector<10x8x4xbf16>
    %73 = tpu.concatenate %19, %72, %19 in 1 : vector<10x1x4xbf16>, vector<10x8x4xbf16>, vector<10x1x4xbf16> -> vector<10x10x4xbf16>
    %74 = vector.extract_strided_slice %73 {offsets = [0, 0, 0], sizes = [10, 8, 4], strides = [1, 1, 1]} : vector<10x10x4xbf16> to vector<10x8x4xbf16>
    %75 = vector.shape_cast %74 : vector<10x8x4xbf16> to vector<80x4xbf16>
    %76 = vector.extract_strided_slice %75 {offsets = [0, 0], sizes = [64, 4], strides = [1, 1]} : vector<80x4xbf16> to vector<64x4xbf16>
    %c9 = arith.constant 9 : index
    %c0_43 = arith.constant 0 : index
    %c0_44 = arith.constant 0 : index
    %77 = vector.load %arg5[%c9, %c0_43, %c0_44] : memref<27x4x128xbf16, #tpu.memory_space<vmem>>, vector<1x4x128xbf16>
    %78 = vector.shape_cast %77 : vector<1x4x128xbf16> to vector<4x128xbf16>
    %cst_45 = arith.constant dense<0.000000e+00> : vector<64x128xf32>
    %79 = tpu.matmul %76, %78, %cst_45 {dimension_numbers = #tpu.dot_dimension_numbers<[1], [0], [0], [1], [0, 0, 1, 1], [], []>} : vector<64x4xbf16>, vector<4x128xbf16>, vector<64x128xf32> -> vector<64x128xf32>
    %80 = arith.addf %71, %79 : vector<64x128xf32>
    %81 = vector.extract_strided_slice %75 {offsets = [8, 0], sizes = [64, 4], strides = [1, 1]} : vector<80x4xbf16> to vector<64x4xbf16>
    %c12 = arith.constant 12 : index
    %c0_46 = arith.constant 0 : index
    %c0_47 = arith.constant 0 : index
    %82 = vector.load %arg5[%c12, %c0_46, %c0_47] : memref<27x4x128xbf16, #tpu.memory_space<vmem>>, vector<1x4x128xbf16>
    %83 = vector.shape_cast %82 : vector<1x4x128xbf16> to vector<4x128xbf16>
    %cst_48 = arith.constant dense<0.000000e+00> : vector<64x128xf32>
    %84 = tpu.matmul %81, %83, %cst_48 {dimension_numbers = #tpu.dot_dimension_numbers<[1], [0], [0], [1], [0, 0, 1, 1], [], []>} : vector<64x4xbf16>, vector<4x128xbf16>, vector<64x128xf32> -> vector<64x128xf32>
    %85 = arith.addf %80, %84 : vector<64x128xf32>
    %86 = vector.extract_strided_slice %75 {offsets = [16, 0], sizes = [64, 4], strides = [1, 1]} : vector<80x4xbf16> to vector<64x4xbf16>
    %c15 = arith.constant 15 : index
    %c0_49 = arith.constant 0 : index
    %c0_50 = arith.constant 0 : index
    %87 = vector.load %arg5[%c15, %c0_49, %c0_50] : memref<27x4x128xbf16, #tpu.memory_space<vmem>>, vector<1x4x128xbf16>
    %88 = vector.shape_cast %87 : vector<1x4x128xbf16> to vector<4x128xbf16>
    %cst_51 = arith.constant dense<0.000000e+00> : vector<64x128xf32>
    %89 = tpu.matmul %86, %88, %cst_51 {dimension_numbers = #tpu.dot_dimension_numbers<[1], [0], [0], [1], [0, 0, 1, 1], [], []>} : vector<64x4xbf16>, vector<4x128xbf16>, vector<64x128xf32> -> vector<64x128xf32>
    %90 = arith.addf %85, %89 : vector<64x128xf32>
    %91 = vector.extract_strided_slice %73 {offsets = [0, 1, 0], sizes = [10, 8, 4], strides = [1, 1, 1]} : vector<10x10x4xbf16> to vector<10x8x4xbf16>
    %92 = vector.shape_cast %91 : vector<10x8x4xbf16> to vector<80x4xbf16>
    %93 = vector.extract_strided_slice %92 {offsets = [0, 0], sizes = [64, 4], strides = [1, 1]} : vector<80x4xbf16> to vector<64x4xbf16>
    %c10 = arith.constant 10 : index
    %c0_52 = arith.constant 0 : index
    %c0_53 = arith.constant 0 : index
    %94 = vector.load %arg5[%c10, %c0_52, %c0_53] : memref<27x4x128xbf16, #tpu.memory_space<vmem>>, vector<1x4x128xbf16>
    %95 = vector.shape_cast %94 : vector<1x4x128xbf16> to vector<4x128xbf16>
    %cst_54 = arith.constant dense<0.000000e+00> : vector<64x128xf32>
    %96 = tpu.matmul %93, %95, %cst_54 {dimension_numbers = #tpu.dot_dimension_numbers<[1], [0], [0], [1], [0, 0, 1, 1], [], []>} : vector<64x4xbf16>, vector<4x128xbf16>, vector<64x128xf32> -> vector<64x128xf32>
    %97 = arith.addf %90, %96 : vector<64x128xf32>
    %98 = vector.extract_strided_slice %92 {offsets = [8, 0], sizes = [64, 4], strides = [1, 1]} : vector<80x4xbf16> to vector<64x4xbf16>
    %c13 = arith.constant 13 : index
    %c0_55 = arith.constant 0 : index
    %c0_56 = arith.constant 0 : index
    %99 = vector.load %arg5[%c13, %c0_55, %c0_56] : memref<27x4x128xbf16, #tpu.memory_space<vmem>>, vector<1x4x128xbf16>
    %100 = vector.shape_cast %99 : vector<1x4x128xbf16> to vector<4x128xbf16>
    %cst_57 = arith.constant dense<0.000000e+00> : vector<64x128xf32>
    %101 = tpu.matmul %98, %100, %cst_57 {dimension_numbers = #tpu.dot_dimension_numbers<[1], [0], [0], [1], [0, 0, 1, 1], [], []>} : vector<64x4xbf16>, vector<4x128xbf16>, vector<64x128xf32> -> vector<64x128xf32>
    %102 = arith.addf %97, %101 : vector<64x128xf32>
    %103 = vector.extract_strided_slice %92 {offsets = [16, 0], sizes = [64, 4], strides = [1, 1]} : vector<80x4xbf16> to vector<64x4xbf16>
    %c16 = arith.constant 16 : index
    %c0_58 = arith.constant 0 : index
    %c0_59 = arith.constant 0 : index
    %104 = vector.load %arg5[%c16, %c0_58, %c0_59] : memref<27x4x128xbf16, #tpu.memory_space<vmem>>, vector<1x4x128xbf16>
    %105 = vector.shape_cast %104 : vector<1x4x128xbf16> to vector<4x128xbf16>
    %cst_60 = arith.constant dense<0.000000e+00> : vector<64x128xf32>
    %106 = tpu.matmul %103, %105, %cst_60 {dimension_numbers = #tpu.dot_dimension_numbers<[1], [0], [0], [1], [0, 0, 1, 1], [], []>} : vector<64x4xbf16>, vector<4x128xbf16>, vector<64x128xf32> -> vector<64x128xf32>
    %107 = arith.addf %102, %106 : vector<64x128xf32>
    %108 = vector.extract_strided_slice %73 {offsets = [0, 2, 0], sizes = [10, 8, 4], strides = [1, 1, 1]} : vector<10x10x4xbf16> to vector<10x8x4xbf16>
    %109 = vector.shape_cast %108 : vector<10x8x4xbf16> to vector<80x4xbf16>
    %110 = vector.extract_strided_slice %109 {offsets = [0, 0], sizes = [64, 4], strides = [1, 1]} : vector<80x4xbf16> to vector<64x4xbf16>
    %c11 = arith.constant 11 : index
    %c0_61 = arith.constant 0 : index
    %c0_62 = arith.constant 0 : index
    %111 = vector.load %arg5[%c11, %c0_61, %c0_62] : memref<27x4x128xbf16, #tpu.memory_space<vmem>>, vector<1x4x128xbf16>
    %112 = vector.shape_cast %111 : vector<1x4x128xbf16> to vector<4x128xbf16>
    %cst_63 = arith.constant dense<0.000000e+00> : vector<64x128xf32>
    %113 = tpu.matmul %110, %112, %cst_63 {dimension_numbers = #tpu.dot_dimension_numbers<[1], [0], [0], [1], [0, 0, 1, 1], [], []>} : vector<64x4xbf16>, vector<4x128xbf16>, vector<64x128xf32> -> vector<64x128xf32>
    %114 = arith.addf %107, %113 : vector<64x128xf32>
    %115 = vector.extract_strided_slice %109 {offsets = [8, 0], sizes = [64, 4], strides = [1, 1]} : vector<80x4xbf16> to vector<64x4xbf16>
    %c14 = arith.constant 14 : index
    %c0_64 = arith.constant 0 : index
    %c0_65 = arith.constant 0 : index
    %116 = vector.load %arg5[%c14, %c0_64, %c0_65] : memref<27x4x128xbf16, #tpu.memory_space<vmem>>, vector<1x4x128xbf16>
    %117 = vector.shape_cast %116 : vector<1x4x128xbf16> to vector<4x128xbf16>
    %cst_66 = arith.constant dense<0.000000e+00> : vector<64x128xf32>
    %118 = tpu.matmul %115, %117, %cst_66 {dimension_numbers = #tpu.dot_dimension_numbers<[1], [0], [0], [1], [0, 0, 1, 1], [], []>} : vector<64x4xbf16>, vector<4x128xbf16>, vector<64x128xf32> -> vector<64x128xf32>
    %119 = arith.addf %114, %118 : vector<64x128xf32>
    %120 = vector.extract_strided_slice %109 {offsets = [16, 0], sizes = [64, 4], strides = [1, 1]} : vector<80x4xbf16> to vector<64x4xbf16>
    %c17 = arith.constant 17 : index
    %c0_67 = arith.constant 0 : index
    %c0_68 = arith.constant 0 : index
    %121 = vector.load %arg5[%c17, %c0_67, %c0_68] : memref<27x4x128xbf16, #tpu.memory_space<vmem>>, vector<1x4x128xbf16>
    %122 = vector.shape_cast %121 : vector<1x4x128xbf16> to vector<4x128xbf16>
    %cst_69 = arith.constant dense<0.000000e+00> : vector<64x128xf32>
    %123 = tpu.matmul %120, %122, %cst_69 {dimension_numbers = #tpu.dot_dimension_numbers<[1], [0], [0], [1], [0, 0, 1, 1], [], []>} : vector<64x4xbf16>, vector<4x128xbf16>, vector<64x128xf32> -> vector<64x128xf32>
    %124 = arith.addf %119, %123 : vector<64x128xf32>
    %125 = tpu.concatenate %18, %17, %18 in 0 : vector<1x8x4xbf16>, vector<8x8x4xbf16>, vector<1x8x4xbf16> -> vector<10x8x4xbf16>
    %126 = tpu.concatenate %19, %125, %19 in 1 : vector<10x1x4xbf16>, vector<10x8x4xbf16>, vector<10x1x4xbf16> -> vector<10x10x4xbf16>
    %127 = vector.extract_strided_slice %126 {offsets = [0, 0, 0], sizes = [10, 8, 4], strides = [1, 1, 1]} : vector<10x10x4xbf16> to vector<10x8x4xbf16>
    %128 = vector.shape_cast %127 : vector<10x8x4xbf16> to vector<80x4xbf16>
    %129 = vector.extract_strided_slice %128 {offsets = [0, 0], sizes = [64, 4], strides = [1, 1]} : vector<80x4xbf16> to vector<64x4xbf16>
    %c18 = arith.constant 18 : index
    %c0_70 = arith.constant 0 : index
    %c0_71 = arith.constant 0 : index
    %130 = vector.load %arg5[%c18, %c0_70, %c0_71] : memref<27x4x128xbf16, #tpu.memory_space<vmem>>, vector<1x4x128xbf16>
    %131 = vector.shape_cast %130 : vector<1x4x128xbf16> to vector<4x128xbf16>
    %cst_72 = arith.constant dense<0.000000e+00> : vector<64x128xf32>
    %132 = tpu.matmul %129, %131, %cst_72 {dimension_numbers = #tpu.dot_dimension_numbers<[1], [0], [0], [1], [0, 0, 1, 1], [], []>} : vector<64x4xbf16>, vector<4x128xbf16>, vector<64x128xf32> -> vector<64x128xf32>
    %133 = arith.addf %124, %132 : vector<64x128xf32>
    %134 = vector.extract_strided_slice %128 {offsets = [8, 0], sizes = [64, 4], strides = [1, 1]} : vector<80x4xbf16> to vector<64x4xbf16>
    %c21 = arith.constant 21 : index
    %c0_73 = arith.constant 0 : index
    %c0_74 = arith.constant 0 : index
    %135 = vector.load %arg5[%c21, %c0_73, %c0_74] : memref<27x4x128xbf16, #tpu.memory_space<vmem>>, vector<1x4x128xbf16>
    %136 = vector.shape_cast %135 : vector<1x4x128xbf16> to vector<4x128xbf16>
    %cst_75 = arith.constant dense<0.000000e+00> : vector<64x128xf32>
    %137 = tpu.matmul %134, %136, %cst_75 {dimension_numbers = #tpu.dot_dimension_numbers<[1], [0], [0], [1], [0, 0, 1, 1], [], []>} : vector<64x4xbf16>, vector<4x128xbf16>, vector<64x128xf32> -> vector<64x128xf32>
    %138 = arith.addf %133, %137 : vector<64x128xf32>
    %139 = vector.extract_strided_slice %128 {offsets = [16, 0], sizes = [64, 4], strides = [1, 1]} : vector<80x4xbf16> to vector<64x4xbf16>
    %c24 = arith.constant 24 : index
    %c0_76 = arith.constant 0 : index
    %c0_77 = arith.constant 0 : index
    %140 = vector.load %arg5[%c24, %c0_76, %c0_77] : memref<27x4x128xbf16, #tpu.memory_space<vmem>>, vector<1x4x128xbf16>
    %141 = vector.shape_cast %140 : vector<1x4x128xbf16> to vector<4x128xbf16>
    %cst_78 = arith.constant dense<0.000000e+00> : vector<64x128xf32>
    %142 = tpu.matmul %139, %141, %cst_78 {dimension_numbers = #tpu.dot_dimension_numbers<[1], [0], [0], [1], [0, 0, 1, 1], [], []>} : vector<64x4xbf16>, vector<4x128xbf16>, vector<64x128xf32> -> vector<64x128xf32>
    %143 = arith.addf %138, %142 : vector<64x128xf32>
    %144 = vector.extract_strided_slice %126 {offsets = [0, 1, 0], sizes = [10, 8, 4], strides = [1, 1, 1]} : vector<10x10x4xbf16> to vector<10x8x4xbf16>
    %145 = vector.shape_cast %144 : vector<10x8x4xbf16> to vector<80x4xbf16>
    %146 = vector.extract_strided_slice %145 {offsets = [0, 0], sizes = [64, 4], strides = [1, 1]} : vector<80x4xbf16> to vector<64x4xbf16>
    %c19 = arith.constant 19 : index
    %c0_79 = arith.constant 0 : index
    %c0_80 = arith.constant 0 : index
    %147 = vector.load %arg5[%c19, %c0_79, %c0_80] : memref<27x4x128xbf16, #tpu.memory_space<vmem>>, vector<1x4x128xbf16>
    %148 = vector.shape_cast %147 : vector<1x4x128xbf16> to vector<4x128xbf16>
    %cst_81 = arith.constant dense<0.000000e+00> : vector<64x128xf32>
    %149 = tpu.matmul %146, %148, %cst_81 {dimension_numbers = #tpu.dot_dimension_numbers<[1], [0], [0], [1], [0, 0, 1, 1], [], []>} : vector<64x4xbf16>, vector<4x128xbf16>, vector<64x128xf32> -> vector<64x128xf32>
    %150 = arith.addf %143, %149 : vector<64x128xf32>
    %151 = vector.extract_strided_slice %145 {offsets = [8, 0], sizes = [64, 4], strides = [1, 1]} : vector<80x4xbf16> to vector<64x4xbf16>
    %c22 = arith.constant 22 : index
    %c0_82 = arith.constant 0 : index
    %c0_83 = arith.constant 0 : index
    %152 = vector.load %arg5[%c22, %c0_82, %c0_83] : memref<27x4x128xbf16, #tpu.memory_space<vmem>>, vector<1x4x128xbf16>
    %153 = vector.shape_cast %152 : vector<1x4x128xbf16> to vector<4x128xbf16>
    %cst_84 = arith.constant dense<0.000000e+00> : vector<64x128xf32>
    %154 = tpu.matmul %151, %153, %cst_84 {dimension_numbers = #tpu.dot_dimension_numbers<[1], [0], [0], [1], [0, 0, 1, 1], [], []>} : vector<64x4xbf16>, vector<4x128xbf16>, vector<64x128xf32> -> vector<64x128xf32>
    %155 = arith.addf %150, %154 : vector<64x128xf32>
    %156 = vector.extract_strided_slice %145 {offsets = [16, 0], sizes = [64, 4], strides = [1, 1]} : vector<80x4xbf16> to vector<64x4xbf16>
    %c25 = arith.constant 25 : index
    %c0_85 = arith.constant 0 : index
    %c0_86 = arith.constant 0 : index
    %157 = vector.load %arg5[%c25, %c0_85, %c0_86] : memref<27x4x128xbf16, #tpu.memory_space<vmem>>, vector<1x4x128xbf16>
    %158 = vector.shape_cast %157 : vector<1x4x128xbf16> to vector<4x128xbf16>
    %cst_87 = arith.constant dense<0.000000e+00> : vector<64x128xf32>
    %159 = tpu.matmul %156, %158, %cst_87 {dimension_numbers = #tpu.dot_dimension_numbers<[1], [0], [0], [1], [0, 0, 1, 1], [], []>} : vector<64x4xbf16>, vector<4x128xbf16>, vector<64x128xf32> -> vector<64x128xf32>
    %160 = arith.addf %155, %159 : vector<64x128xf32>
    %161 = vector.extract_strided_slice %126 {offsets = [0, 2, 0], sizes = [10, 8, 4], strides = [1, 1, 1]} : vector<10x10x4xbf16> to vector<10x8x4xbf16>
    %162 = vector.shape_cast %161 : vector<10x8x4xbf16> to vector<80x4xbf16>
    %163 = vector.extract_strided_slice %162 {offsets = [0, 0], sizes = [64, 4], strides = [1, 1]} : vector<80x4xbf16> to vector<64x4xbf16>
    %c20 = arith.constant 20 : index
    %c0_88 = arith.constant 0 : index
    %c0_89 = arith.constant 0 : index
    %164 = vector.load %arg5[%c20, %c0_88, %c0_89] : memref<27x4x128xbf16, #tpu.memory_space<vmem>>, vector<1x4x128xbf16>
    %165 = vector.shape_cast %164 : vector<1x4x128xbf16> to vector<4x128xbf16>
    %cst_90 = arith.constant dense<0.000000e+00> : vector<64x128xf32>
    %166 = tpu.matmul %163, %165, %cst_90 {dimension_numbers = #tpu.dot_dimension_numbers<[1], [0], [0], [1], [0, 0, 1, 1], [], []>} : vector<64x4xbf16>, vector<4x128xbf16>, vector<64x128xf32> -> vector<64x128xf32>
    %167 = arith.addf %160, %166 : vector<64x128xf32>
    %168 = vector.extract_strided_slice %162 {offsets = [8, 0], sizes = [64, 4], strides = [1, 1]} : vector<80x4xbf16> to vector<64x4xbf16>
    %c23 = arith.constant 23 : index
    %c0_91 = arith.constant 0 : index
    %c0_92 = arith.constant 0 : index
    %169 = vector.load %arg5[%c23, %c0_91, %c0_92] : memref<27x4x128xbf16, #tpu.memory_space<vmem>>, vector<1x4x128xbf16>
    %170 = vector.shape_cast %169 : vector<1x4x128xbf16> to vector<4x128xbf16>
    %cst_93 = arith.constant dense<0.000000e+00> : vector<64x128xf32>
    %171 = tpu.matmul %168, %170, %cst_93 {dimension_numbers = #tpu.dot_dimension_numbers<[1], [0], [0], [1], [0, 0, 1, 1], [], []>} : vector<64x4xbf16>, vector<4x128xbf16>, vector<64x128xf32> -> vector<64x128xf32>
    %172 = arith.addf %167, %171 : vector<64x128xf32>
    %173 = vector.extract_strided_slice %162 {offsets = [16, 0], sizes = [64, 4], strides = [1, 1]} : vector<80x4xbf16> to vector<64x4xbf16>
    %c26 = arith.constant 26 : index
    %c0_94 = arith.constant 0 : index
    %c0_95 = arith.constant 0 : index
    %174 = vector.load %arg5[%c26, %c0_94, %c0_95] : memref<27x4x128xbf16, #tpu.memory_space<vmem>>, vector<1x4x128xbf16>
    %175 = vector.shape_cast %174 : vector<1x4x128xbf16> to vector<4x128xbf16>
    %cst_96 = arith.constant dense<0.000000e+00> : vector<64x128xf32>
    %176 = tpu.matmul %173, %175, %cst_96 {dimension_numbers = #tpu.dot_dimension_numbers<[1], [0], [0], [1], [0, 0, 1, 1], [], []>} : vector<64x4xbf16>, vector<4x128xbf16>, vector<64x128xf32> -> vector<64x128xf32>
    %177 = arith.addf %172, %176 : vector<64x128xf32>
    %cst_97 = arith.constant dense<0.000000e+00> : vector<128xf32>
    %178 = vector.multi_reduction <add>, %177, %cst_97 [0] : vector<64x128xf32> to vector<128xf32>
    %179 = vector.shape_cast %178 : vector<128xf32> to vector<1x128xf32>
    %180 = arith.mulf %177, %177 : vector<64x128xf32>
    %cst_98 = arith.constant dense<0.000000e+00> : vector<128xf32>
    %181 = vector.multi_reduction <add>, %180, %cst_98 [0] : vector<64x128xf32> to vector<128xf32>
    %182 = vector.shape_cast %181 : vector<128xf32> to vector<1x128xf32>
    %183 = tpu.concatenate %179, %182 in 0 : vector<1x128xf32>, vector<1x128xf32> -> vector<2x128xf32>
    %c0_99 = arith.constant 0 : index
    %c0_100 = arith.constant 0 : index
    %c0_101 = arith.constant 0 : index
    %c0_102 = arith.constant 0 : index
    %184 = vector.load %arg9[%c0_99, %c0_100, %c0_101, %c0_102] : memref<1x1x2x128xf32, #tpu.memory_space<vmem>>, vector<1x1x2x128xf32>
    %185 = vector.shape_cast %184 : vector<1x1x2x128xf32> to vector<2x128xf32>
    %186 = vector.shape_cast %183 : vector<2x128xf32> to vector<1x1x2x128xf32>
    tpu.vector_store %arg9[%c0_99, %c0_100, %c0_101, %c0_102], %186 {strides = array<i32>} : memref<1x1x2x128xf32, #tpu.memory_space<vmem>>, vector<1x1x2x128xf32>,
    %187 = vector.shape_cast %177 : vector<64x128xf32> to vector<8x8x128xf32>
    %188 = arith.truncf %187 : vector<8x8x128xf32> to vector<8x8x128xbf16>
    %c0_103 = arith.constant 0 : index
    %c0_104 = arith.constant 0 : index
    %c0_105 = arith.constant 0 : index
    %c0_106 = arith.constant 0 : index
    %c0_107 = arith.constant 0 : index
    %189 = vector.load %arg8[%c0_103, %c0_104, %c0_105, %c0_106, %c0_107] : memref<1x1x8x8x128xbf16, #tpu.memory_space<vmem>>, vector<1x1x8x8x128xbf16>
    %190 = vector.shape_cast %189 : vector<1x1x8x8x128xbf16> to vector<8x8x128xbf16>
    %191 = vector.shape_cast %188 : vector<8x8x128xbf16> to vector<1x1x8x8x128xbf16>
    tpu.vector_store %arg8[%c0_103, %c0_104, %c0_105, %c0_106, %c0_107], %191 {strides = array<i32>} : memref<1x1x8x8x128xbf16, #tpu.memory_space<vmem>>, vector<1x1x8x8x128xbf16>,
    return
  }
  func.func @transform_0(%arg0: i32, %arg1: i32) -> (i32, i32, i32, i32, i32) {
    %c1_i32 = arith.constant 1 : i32
    %0 = arith.subi %arg1, %c1_i32 : i32
    %c0_i32 = arith.constant 0 : i32
    %1 = arith.maxsi %0, %c0_i32 : i32
    %c0_i32_0 = arith.constant 0 : i32
    %c0_i32_1 = arith.constant 0 : i32
    %c0_i32_2 = arith.constant 0 : i32
    %c0_i32_3 = arith.constant 0 : i32
    return %arg0, %1, %c0_i32_0, %c0_i32_1, %c0_i32_2 : i32, i32, i32, i32, i32
  }
  func.func @transform_1(%arg0: i32, %arg1: i32) -> (i32, i32, i32, i32, i32) {
    %c0_i32 = arith.constant 0 : i32
    %c0_i32_0 = arith.constant 0 : i32
    %c0_i32_1 = arith.constant 0 : i32
    %c0_i32_2 = arith.constant 0 : i32
    return %arg0, %arg1, %c0_i32, %c0_i32_0, %c0_i32_1 : i32, i32, i32, i32, i32
  }
  func.func @transform_2(%arg0: i32, %arg1: i32) -> (i32, i32, i32, i32, i32) {
    %c1_i32 = arith.constant 1 : i32
    %0 = arith.addi %arg1, %c1_i32 : i32
    %c7_i32 = arith.constant 7 : i32
    %1 = arith.minsi %0, %c7_i32 : i32
    %c0_i32 = arith.constant 0 : i32
    %c0_i32_0 = arith.constant 0 : i32
    %c0_i32_1 = arith.constant 0 : i32
    %c0_i32_2 = arith.constant 0 : i32
    return %arg0, %1, %c0_i32, %c0_i32_0, %c0_i32_1 : i32, i32, i32, i32, i32
  }
  func.func @transform_3(%arg0: i32, %arg1: i32) -> (i32, i32, i32) {
    %c0_i32 = arith.constant 0 : i32
    %c0_i32_0 = arith.constant 0 : i32
    %c0_i32_1 = arith.constant 0 : i32
    %c0_i32_2 = arith.constant 0 : i32
    return %c0_i32, %c0_i32_0, %c0_i32_1 : i32, i32, i32
  }
  func.func @transform_4(%arg0: i32, %arg1: i32) -> (i32, i32) {
    %c0_i32 = arith.constant 0 : i32
    %c0_i32_0 = arith.constant 0 : i32
    %c0_i32_1 = arith.constant 0 : i32
    return %c0_i32, %c0_i32_0 : i32, i32
  }
  func.func @transform_5(%arg0: i32, %arg1: i32) -> (i32, i32) {
    %c0_i32 = arith.constant 0 : i32
    %c0_i32_0 = arith.constant 0 : i32
    %c0_i32_1 = arith.constant 0 : i32
    return %c0_i32, %c0_i32_0 : i32, i32
  }
  func.func @transform_6(%arg0: i32, %arg1: i32) -> (i32, i32, i32, i32, i32) {
    %c0_i32 = arith.constant 0 : i32
    %c0_i32_0 = arith.constant 0 : i32
    %c0_i32_1 = arith.constant 0 : i32
    %c0_i32_2 = arith.constant 0 : i32
    return %arg0, %arg1, %c0_i32, %c0_i32_0, %c0_i32_1 : i32, i32, i32, i32, i32
  }
  func.func @transform_7(%arg0: i32, %arg1: i32) -> (i32, i32, i32, i32) {
    %c0_i32 = arith.constant 0 : i32
    %c0_i32_0 = arith.constant 0 : i32
    %c0_i32_1 = arith.constant 0 : i32
    return %arg0, %arg1, %c0_i32, %c0_i32_0 : i32, i32, i32, i32
  }
}

module attributes {stable_mosaic.version = 11 : i64} {
  func.func @kernel(%arg0: i32, %arg1: i32, %arg2: memref<1x1x8x8x128xbf16, #tpu.memory_space<vmem>>, %arg3: memref<1x1x8x8x128xbf16, #tpu.memory_space<vmem>>, %arg4: memref<1x1x8x8x128xbf16, #tpu.memory_space<vmem>>, %arg5: memref<27x128x128xbf16, #tpu.memory_space<vmem>>, %arg6: memref<1x128xf32, #tpu.memory_space<vmem>>, %arg7: memref<1x128xf32, #tpu.memory_space<vmem>>, %arg8: memref<1x1x8x8x128xbf16, #tpu.memory_space<vmem>>, %arg9: memref<1x1x2x128xf32, #tpu.memory_space<vmem>>) attributes {dimension_semantics = [#tpu.dimension_semantics<parallel>, #tpu.dimension_semantics<parallel>], iteration_bounds = array<i64: 2, 8>, scalar_prefetch = 0 : i64, scratch_operands = 0 : i64, tpu.core_type = #tpu.core_type<tc>, window_params = [{transform_indices = @transform_0, window_bounds = array<i64: 1, 1, 8, 8, 128>}, {transform_indices = @transform_1, window_bounds = array<i64: 1, 1, 8, 8, 128>}, {transform_indices = @transform_2, window_bounds = array<i64: 1, 1, 8, 8, 128>}, {pipeline_mode = #tpu.pipeline_mode<synchronous>, transform_indices = @transform_3, window_bounds = array<i64: 27, 128, 128>}, {pipeline_mode = #tpu.pipeline_mode<synchronous>, transform_indices = @transform_4, window_bounds = array<i64: 1, 128>}, {pipeline_mode = #tpu.pipeline_mode<synchronous>, transform_indices = @transform_5, window_bounds = array<i64: 1, 128>}, {transform_indices = @transform_6, window_bounds = array<i64: 1, 1, 8, 8, 128>}, {transform_indices = @transform_7, window_bounds = array<i64: 1, 1, 2, 128>}]} {
    %c0_i32 = arith.constant 0 : i32
    %0 = arith.cmpi sgt, %arg1, %c0_i32 : i32
    %c0 = arith.constant 0 : index
    %c0_0 = arith.constant 0 : index
    %c0_1 = arith.constant 0 : index
    %c0_2 = arith.constant 0 : index
    %c0_3 = arith.constant 0 : index
    %1 = vector.load %arg2[%c0, %c0_0, %c0_1, %c0_2, %c0_3] : memref<1x1x8x8x128xbf16, #tpu.memory_space<vmem>>, vector<1x1x8x8x128xbf16>
    %2 = vector.shape_cast %1 : vector<1x1x8x8x128xbf16> to vector<8x8x128xbf16>
    %3 = arith.extf %2 : vector<8x8x128xbf16> to vector<8x8x128xf32>
    %c0_4 = arith.constant 0 : index
    %c0_5 = arith.constant 0 : index
    %4 = vector.load %arg6[%c0_4, %c0_5] : memref<1x128xf32, #tpu.memory_space<vmem>>, vector<1x128xf32>
    %5 = vector.shape_cast %4 : vector<1x128xf32> to vector<1x1x128xf32>
    %6 = vector.broadcast %5 : vector<1x1x128xf32> to vector<8x8x128xf32>
    %7 = arith.mulf %3, %6 : vector<8x8x128xf32>
    %c0_6 = arith.constant 0 : index
    %c0_7 = arith.constant 0 : index
    %8 = vector.load %arg7[%c0_6, %c0_7] : memref<1x128xf32, #tpu.memory_space<vmem>>, vector<1x128xf32>
    %9 = vector.shape_cast %8 : vector<1x128xf32> to vector<1x1x128xf32>
    %10 = vector.broadcast %9 : vector<1x1x128xf32> to vector<8x8x128xf32>
    %11 = arith.addf %7, %10 : vector<8x8x128xf32>
    %cst = arith.constant 0.000000e+00 : f32
    %12 = vector.broadcast %cst : f32 to vector<8x8x128xf32>
    %13 = arith.maximumf %11, %12 : vector<8x8x128xf32>
    %14 = arith.extui %0 : i1 to i32
    %15 = arith.sitofp %14 : i32 to f32
    %16 = vector.broadcast %15 : f32 to vector<8x8x128xf32>
    %17 = arith.mulf %13, %16 : vector<8x8x128xf32>
    %18 = arith.truncf %17 : vector<8x8x128xf32> to vector<8x8x128xbf16>
    %c0_8 = arith.constant 0 : index
    %c0_9 = arith.constant 0 : index
    %c0_10 = arith.constant 0 : index
    %c0_11 = arith.constant 0 : index
    %c0_12 = arith.constant 0 : index
    %19 = vector.load %arg3[%c0_8, %c0_9, %c0_10, %c0_11, %c0_12] : memref<1x1x8x8x128xbf16, #tpu.memory_space<vmem>>, vector<1x1x8x8x128xbf16>
    %20 = vector.shape_cast %19 : vector<1x1x8x8x128xbf16> to vector<8x8x128xbf16>
    %21 = arith.extf %20 : vector<8x8x128xbf16> to vector<8x8x128xf32>
    %c0_13 = arith.constant 0 : index
    %c0_14 = arith.constant 0 : index
    %22 = vector.load %arg6[%c0_13, %c0_14] : memref<1x128xf32, #tpu.memory_space<vmem>>, vector<1x128xf32>
    %23 = vector.shape_cast %22 : vector<1x128xf32> to vector<1x1x128xf32>
    %24 = vector.broadcast %23 : vector<1x1x128xf32> to vector<8x8x128xf32>
    %25 = arith.mulf %21, %24 : vector<8x8x128xf32>
    %c0_15 = arith.constant 0 : index
    %c0_16 = arith.constant 0 : index
    %26 = vector.load %arg7[%c0_15, %c0_16] : memref<1x128xf32, #tpu.memory_space<vmem>>, vector<1x128xf32>
    %27 = vector.shape_cast %26 : vector<1x128xf32> to vector<1x1x128xf32>
    %28 = vector.broadcast %27 : vector<1x1x128xf32> to vector<8x8x128xf32>
    %29 = arith.addf %25, %28 : vector<8x8x128xf32>
    %cst_17 = arith.constant 0.000000e+00 : f32
    %30 = vector.broadcast %cst_17 : f32 to vector<8x8x128xf32>
    %31 = arith.maximumf %29, %30 : vector<8x8x128xf32>
    %32 = arith.truncf %31 : vector<8x8x128xf32> to vector<8x8x128xbf16>
    %c7_i32 = arith.constant 7 : i32
    %33 = arith.cmpi slt, %arg1, %c7_i32 : i32
    %c0_18 = arith.constant 0 : index
    %c0_19 = arith.constant 0 : index
    %c0_20 = arith.constant 0 : index
    %c0_21 = arith.constant 0 : index
    %c0_22 = arith.constant 0 : index
    %34 = vector.load %arg4[%c0_18, %c0_19, %c0_20, %c0_21, %c0_22] : memref<1x1x8x8x128xbf16, #tpu.memory_space<vmem>>, vector<1x1x8x8x128xbf16>
    %35 = vector.shape_cast %34 : vector<1x1x8x8x128xbf16> to vector<8x8x128xbf16>
    %36 = arith.extf %35 : vector<8x8x128xbf16> to vector<8x8x128xf32>
    %c0_23 = arith.constant 0 : index
    %c0_24 = arith.constant 0 : index
    %37 = vector.load %arg6[%c0_23, %c0_24] : memref<1x128xf32, #tpu.memory_space<vmem>>, vector<1x128xf32>
    %38 = vector.shape_cast %37 : vector<1x128xf32> to vector<1x1x128xf32>
    %39 = vector.broadcast %38 : vector<1x1x128xf32> to vector<8x8x128xf32>
    %40 = arith.mulf %36, %39 : vector<8x8x128xf32>
    %c0_25 = arith.constant 0 : index
    %c0_26 = arith.constant 0 : index
    %41 = vector.load %arg7[%c0_25, %c0_26] : memref<1x128xf32, #tpu.memory_space<vmem>>, vector<1x128xf32>
    %42 = vector.shape_cast %41 : vector<1x128xf32> to vector<1x1x128xf32>
    %43 = vector.broadcast %42 : vector<1x1x128xf32> to vector<8x8x128xf32>
    %44 = arith.addf %40, %43 : vector<8x8x128xf32>
    %cst_27 = arith.constant 0.000000e+00 : f32
    %45 = vector.broadcast %cst_27 : f32 to vector<8x8x128xf32>
    %46 = arith.maximumf %44, %45 : vector<8x8x128xf32>
    %47 = arith.extui %33 : i1 to i32
    %48 = arith.sitofp %47 : i32 to f32
    %49 = vector.broadcast %48 : f32 to vector<8x8x128xf32>
    %50 = arith.mulf %46, %49 : vector<8x8x128xf32>
    %51 = arith.truncf %50 : vector<8x8x128xf32> to vector<8x8x128xbf16>
    %cst_28 = arith.constant 0.000000e+00 : bf16
    %52 = vector.broadcast %cst_28 : bf16 to vector<1x8x128xbf16>
    %cst_29 = arith.constant 0.000000e+00 : bf16
    %53 = vector.broadcast %cst_29 : bf16 to vector<10x1x128xbf16>
    %54 = tpu.concatenate %52, %18, %52 in 0 : vector<1x8x128xbf16>, vector<8x8x128xbf16>, vector<1x8x128xbf16> -> vector<10x8x128xbf16>
    %55 = tpu.concatenate %53, %54, %53 in 1 : vector<10x1x128xbf16>, vector<10x8x128xbf16>, vector<10x1x128xbf16> -> vector<10x10x128xbf16>
    %56 = vector.extract_strided_slice %55 {offsets = [0, 0, 0], sizes = [10, 8, 128], strides = [1, 1, 1]} : vector<10x10x128xbf16> to vector<10x8x128xbf16>
    %57 = vector.shape_cast %56 : vector<10x8x128xbf16> to vector<80x128xbf16>
    %58 = vector.extract_strided_slice %57 {offsets = [0, 0], sizes = [64, 128], strides = [1, 1]} : vector<80x128xbf16> to vector<64x128xbf16>
    %c0_30 = arith.constant 0 : index
    %c0_31 = arith.constant 0 : index
    %c0_32 = arith.constant 0 : index
    %59 = vector.load %arg5[%c0_30, %c0_31, %c0_32] : memref<27x128x128xbf16, #tpu.memory_space<vmem>>, vector<1x128x128xbf16>
    %60 = vector.shape_cast %59 : vector<1x128x128xbf16> to vector<128x128xbf16>
    %cst_33 = arith.constant dense<0.000000e+00> : vector<64x128xf32>
    %61 = tpu.matmul %58, %60, %cst_33 {dimension_numbers = #tpu.dot_dimension_numbers<[1], [0], [0], [1], [0, 0, 1, 1], [], []>} : vector<64x128xbf16>, vector<128x128xbf16>, vector<64x128xf32> -> vector<64x128xf32>
    %62 = vector.extract_strided_slice %57 {offsets = [8, 0], sizes = [64, 128], strides = [1, 1]} : vector<80x128xbf16> to vector<64x128xbf16>
    %c3 = arith.constant 3 : index
    %c0_34 = arith.constant 0 : index
    %c0_35 = arith.constant 0 : index
    %63 = vector.load %arg5[%c3, %c0_34, %c0_35] : memref<27x128x128xbf16, #tpu.memory_space<vmem>>, vector<1x128x128xbf16>
    %64 = vector.shape_cast %63 : vector<1x128x128xbf16> to vector<128x128xbf16>
    %cst_36 = arith.constant dense<0.000000e+00> : vector<64x128xf32>
    %65 = tpu.matmul %62, %64, %cst_36 {dimension_numbers = #tpu.dot_dimension_numbers<[1], [0], [0], [1], [0, 0, 1, 1], [], []>} : vector<64x128xbf16>, vector<128x128xbf16>, vector<64x128xf32> -> vector<64x128xf32>
    %66 = arith.addf %61, %65 : vector<64x128xf32>
    %67 = vector.extract_strided_slice %57 {offsets = [16, 0], sizes = [64, 128], strides = [1, 1]} : vector<80x128xbf16> to vector<64x128xbf16>
    %c6 = arith.constant 6 : index
    %c0_37 = arith.constant 0 : index
    %c0_38 = arith.constant 0 : index
    %68 = vector.load %arg5[%c6, %c0_37, %c0_38] : memref<27x128x128xbf16, #tpu.memory_space<vmem>>, vector<1x128x128xbf16>
    %69 = vector.shape_cast %68 : vector<1x128x128xbf16> to vector<128x128xbf16>
    %cst_39 = arith.constant dense<0.000000e+00> : vector<64x128xf32>
    %70 = tpu.matmul %67, %69, %cst_39 {dimension_numbers = #tpu.dot_dimension_numbers<[1], [0], [0], [1], [0, 0, 1, 1], [], []>} : vector<64x128xbf16>, vector<128x128xbf16>, vector<64x128xf32> -> vector<64x128xf32>
    %71 = arith.addf %66, %70 : vector<64x128xf32>
    %72 = vector.extract_strided_slice %55 {offsets = [0, 1, 0], sizes = [10, 8, 128], strides = [1, 1, 1]} : vector<10x10x128xbf16> to vector<10x8x128xbf16>
    %73 = vector.shape_cast %72 : vector<10x8x128xbf16> to vector<80x128xbf16>
    %74 = vector.extract_strided_slice %73 {offsets = [0, 0], sizes = [64, 128], strides = [1, 1]} : vector<80x128xbf16> to vector<64x128xbf16>
    %c1 = arith.constant 1 : index
    %c0_40 = arith.constant 0 : index
    %c0_41 = arith.constant 0 : index
    %75 = vector.load %arg5[%c1, %c0_40, %c0_41] : memref<27x128x128xbf16, #tpu.memory_space<vmem>>, vector<1x128x128xbf16>
    %76 = vector.shape_cast %75 : vector<1x128x128xbf16> to vector<128x128xbf16>
    %cst_42 = arith.constant dense<0.000000e+00> : vector<64x128xf32>
    %77 = tpu.matmul %74, %76, %cst_42 {dimension_numbers = #tpu.dot_dimension_numbers<[1], [0], [0], [1], [0, 0, 1, 1], [], []>} : vector<64x128xbf16>, vector<128x128xbf16>, vector<64x128xf32> -> vector<64x128xf32>
    %78 = arith.addf %71, %77 : vector<64x128xf32>
    %79 = vector.extract_strided_slice %73 {offsets = [8, 0], sizes = [64, 128], strides = [1, 1]} : vector<80x128xbf16> to vector<64x128xbf16>
    %c4 = arith.constant 4 : index
    %c0_43 = arith.constant 0 : index
    %c0_44 = arith.constant 0 : index
    %80 = vector.load %arg5[%c4, %c0_43, %c0_44] : memref<27x128x128xbf16, #tpu.memory_space<vmem>>, vector<1x128x128xbf16>
    %81 = vector.shape_cast %80 : vector<1x128x128xbf16> to vector<128x128xbf16>
    %cst_45 = arith.constant dense<0.000000e+00> : vector<64x128xf32>
    %82 = tpu.matmul %79, %81, %cst_45 {dimension_numbers = #tpu.dot_dimension_numbers<[1], [0], [0], [1], [0, 0, 1, 1], [], []>} : vector<64x128xbf16>, vector<128x128xbf16>, vector<64x128xf32> -> vector<64x128xf32>
    %83 = arith.addf %78, %82 : vector<64x128xf32>
    %84 = vector.extract_strided_slice %73 {offsets = [16, 0], sizes = [64, 128], strides = [1, 1]} : vector<80x128xbf16> to vector<64x128xbf16>
    %c7 = arith.constant 7 : index
    %c0_46 = arith.constant 0 : index
    %c0_47 = arith.constant 0 : index
    %85 = vector.load %arg5[%c7, %c0_46, %c0_47] : memref<27x128x128xbf16, #tpu.memory_space<vmem>>, vector<1x128x128xbf16>
    %86 = vector.shape_cast %85 : vector<1x128x128xbf16> to vector<128x128xbf16>
    %cst_48 = arith.constant dense<0.000000e+00> : vector<64x128xf32>
    %87 = tpu.matmul %84, %86, %cst_48 {dimension_numbers = #tpu.dot_dimension_numbers<[1], [0], [0], [1], [0, 0, 1, 1], [], []>} : vector<64x128xbf16>, vector<128x128xbf16>, vector<64x128xf32> -> vector<64x128xf32>
    %88 = arith.addf %83, %87 : vector<64x128xf32>
    %89 = vector.extract_strided_slice %55 {offsets = [0, 2, 0], sizes = [10, 8, 128], strides = [1, 1, 1]} : vector<10x10x128xbf16> to vector<10x8x128xbf16>
    %90 = vector.shape_cast %89 : vector<10x8x128xbf16> to vector<80x128xbf16>
    %91 = vector.extract_strided_slice %90 {offsets = [0, 0], sizes = [64, 128], strides = [1, 1]} : vector<80x128xbf16> to vector<64x128xbf16>
    %c2 = arith.constant 2 : index
    %c0_49 = arith.constant 0 : index
    %c0_50 = arith.constant 0 : index
    %92 = vector.load %arg5[%c2, %c0_49, %c0_50] : memref<27x128x128xbf16, #tpu.memory_space<vmem>>, vector<1x128x128xbf16>
    %93 = vector.shape_cast %92 : vector<1x128x128xbf16> to vector<128x128xbf16>
    %cst_51 = arith.constant dense<0.000000e+00> : vector<64x128xf32>
    %94 = tpu.matmul %91, %93, %cst_51 {dimension_numbers = #tpu.dot_dimension_numbers<[1], [0], [0], [1], [0, 0, 1, 1], [], []>} : vector<64x128xbf16>, vector<128x128xbf16>, vector<64x128xf32> -> vector<64x128xf32>
    %95 = arith.addf %88, %94 : vector<64x128xf32>
    %96 = vector.extract_strided_slice %90 {offsets = [8, 0], sizes = [64, 128], strides = [1, 1]} : vector<80x128xbf16> to vector<64x128xbf16>
    %c5 = arith.constant 5 : index
    %c0_52 = arith.constant 0 : index
    %c0_53 = arith.constant 0 : index
    %97 = vector.load %arg5[%c5, %c0_52, %c0_53] : memref<27x128x128xbf16, #tpu.memory_space<vmem>>, vector<1x128x128xbf16>
    %98 = vector.shape_cast %97 : vector<1x128x128xbf16> to vector<128x128xbf16>
    %cst_54 = arith.constant dense<0.000000e+00> : vector<64x128xf32>
    %99 = tpu.matmul %96, %98, %cst_54 {dimension_numbers = #tpu.dot_dimension_numbers<[1], [0], [0], [1], [0, 0, 1, 1], [], []>} : vector<64x128xbf16>, vector<128x128xbf16>, vector<64x128xf32> -> vector<64x128xf32>
    %100 = arith.addf %95, %99 : vector<64x128xf32>
    %101 = vector.extract_strided_slice %90 {offsets = [16, 0], sizes = [64, 128], strides = [1, 1]} : vector<80x128xbf16> to vector<64x128xbf16>
    %c8 = arith.constant 8 : index
    %c0_55 = arith.constant 0 : index
    %c0_56 = arith.constant 0 : index
    %102 = vector.load %arg5[%c8, %c0_55, %c0_56] : memref<27x128x128xbf16, #tpu.memory_space<vmem>>, vector<1x128x128xbf16>
    %103 = vector.shape_cast %102 : vector<1x128x128xbf16> to vector<128x128xbf16>
    %cst_57 = arith.constant dense<0.000000e+00> : vector<64x128xf32>
    %104 = tpu.matmul %101, %103, %cst_57 {dimension_numbers = #tpu.dot_dimension_numbers<[1], [0], [0], [1], [0, 0, 1, 1], [], []>} : vector<64x128xbf16>, vector<128x128xbf16>, vector<64x128xf32> -> vector<64x128xf32>
    %105 = arith.addf %100, %104 : vector<64x128xf32>
    %106 = tpu.concatenate %52, %32, %52 in 0 : vector<1x8x128xbf16>, vector<8x8x128xbf16>, vector<1x8x128xbf16> -> vector<10x8x128xbf16>
    %107 = tpu.concatenate %53, %106, %53 in 1 : vector<10x1x128xbf16>, vector<10x8x128xbf16>, vector<10x1x128xbf16> -> vector<10x10x128xbf16>
    %108 = vector.extract_strided_slice %107 {offsets = [0, 0, 0], sizes = [10, 8, 128], strides = [1, 1, 1]} : vector<10x10x128xbf16> to vector<10x8x128xbf16>
    %109 = vector.shape_cast %108 : vector<10x8x128xbf16> to vector<80x128xbf16>
    %110 = vector.extract_strided_slice %109 {offsets = [0, 0], sizes = [64, 128], strides = [1, 1]} : vector<80x128xbf16> to vector<64x128xbf16>
    %c9 = arith.constant 9 : index
    %c0_58 = arith.constant 0 : index
    %c0_59 = arith.constant 0 : index
    %111 = vector.load %arg5[%c9, %c0_58, %c0_59] : memref<27x128x128xbf16, #tpu.memory_space<vmem>>, vector<1x128x128xbf16>
    %112 = vector.shape_cast %111 : vector<1x128x128xbf16> to vector<128x128xbf16>
    %cst_60 = arith.constant dense<0.000000e+00> : vector<64x128xf32>
    %113 = tpu.matmul %110, %112, %cst_60 {dimension_numbers = #tpu.dot_dimension_numbers<[1], [0], [0], [1], [0, 0, 1, 1], [], []>} : vector<64x128xbf16>, vector<128x128xbf16>, vector<64x128xf32> -> vector<64x128xf32>
    %114 = arith.addf %105, %113 : vector<64x128xf32>
    %115 = vector.extract_strided_slice %109 {offsets = [8, 0], sizes = [64, 128], strides = [1, 1]} : vector<80x128xbf16> to vector<64x128xbf16>
    %c12 = arith.constant 12 : index
    %c0_61 = arith.constant 0 : index
    %c0_62 = arith.constant 0 : index
    %116 = vector.load %arg5[%c12, %c0_61, %c0_62] : memref<27x128x128xbf16, #tpu.memory_space<vmem>>, vector<1x128x128xbf16>
    %117 = vector.shape_cast %116 : vector<1x128x128xbf16> to vector<128x128xbf16>
    %cst_63 = arith.constant dense<0.000000e+00> : vector<64x128xf32>
    %118 = tpu.matmul %115, %117, %cst_63 {dimension_numbers = #tpu.dot_dimension_numbers<[1], [0], [0], [1], [0, 0, 1, 1], [], []>} : vector<64x128xbf16>, vector<128x128xbf16>, vector<64x128xf32> -> vector<64x128xf32>
    %119 = arith.addf %114, %118 : vector<64x128xf32>
    %120 = vector.extract_strided_slice %109 {offsets = [16, 0], sizes = [64, 128], strides = [1, 1]} : vector<80x128xbf16> to vector<64x128xbf16>
    %c15 = arith.constant 15 : index
    %c0_64 = arith.constant 0 : index
    %c0_65 = arith.constant 0 : index
    %121 = vector.load %arg5[%c15, %c0_64, %c0_65] : memref<27x128x128xbf16, #tpu.memory_space<vmem>>, vector<1x128x128xbf16>
    %122 = vector.shape_cast %121 : vector<1x128x128xbf16> to vector<128x128xbf16>
    %cst_66 = arith.constant dense<0.000000e+00> : vector<64x128xf32>
    %123 = tpu.matmul %120, %122, %cst_66 {dimension_numbers = #tpu.dot_dimension_numbers<[1], [0], [0], [1], [0, 0, 1, 1], [], []>} : vector<64x128xbf16>, vector<128x128xbf16>, vector<64x128xf32> -> vector<64x128xf32>
    %124 = arith.addf %119, %123 : vector<64x128xf32>
    %125 = vector.extract_strided_slice %107 {offsets = [0, 1, 0], sizes = [10, 8, 128], strides = [1, 1, 1]} : vector<10x10x128xbf16> to vector<10x8x128xbf16>
    %126 = vector.shape_cast %125 : vector<10x8x128xbf16> to vector<80x128xbf16>
    %127 = vector.extract_strided_slice %126 {offsets = [0, 0], sizes = [64, 128], strides = [1, 1]} : vector<80x128xbf16> to vector<64x128xbf16>
    %c10 = arith.constant 10 : index
    %c0_67 = arith.constant 0 : index
    %c0_68 = arith.constant 0 : index
    %128 = vector.load %arg5[%c10, %c0_67, %c0_68] : memref<27x128x128xbf16, #tpu.memory_space<vmem>>, vector<1x128x128xbf16>
    %129 = vector.shape_cast %128 : vector<1x128x128xbf16> to vector<128x128xbf16>
    %cst_69 = arith.constant dense<0.000000e+00> : vector<64x128xf32>
    %130 = tpu.matmul %127, %129, %cst_69 {dimension_numbers = #tpu.dot_dimension_numbers<[1], [0], [0], [1], [0, 0, 1, 1], [], []>} : vector<64x128xbf16>, vector<128x128xbf16>, vector<64x128xf32> -> vector<64x128xf32>
    %131 = arith.addf %124, %130 : vector<64x128xf32>
    %132 = vector.extract_strided_slice %126 {offsets = [8, 0], sizes = [64, 128], strides = [1, 1]} : vector<80x128xbf16> to vector<64x128xbf16>
    %c13 = arith.constant 13 : index
    %c0_70 = arith.constant 0 : index
    %c0_71 = arith.constant 0 : index
    %133 = vector.load %arg5[%c13, %c0_70, %c0_71] : memref<27x128x128xbf16, #tpu.memory_space<vmem>>, vector<1x128x128xbf16>
    %134 = vector.shape_cast %133 : vector<1x128x128xbf16> to vector<128x128xbf16>
    %cst_72 = arith.constant dense<0.000000e+00> : vector<64x128xf32>
    %135 = tpu.matmul %132, %134, %cst_72 {dimension_numbers = #tpu.dot_dimension_numbers<[1], [0], [0], [1], [0, 0, 1, 1], [], []>} : vector<64x128xbf16>, vector<128x128xbf16>, vector<64x128xf32> -> vector<64x128xf32>
    %136 = arith.addf %131, %135 : vector<64x128xf32>
    %137 = vector.extract_strided_slice %126 {offsets = [16, 0], sizes = [64, 128], strides = [1, 1]} : vector<80x128xbf16> to vector<64x128xbf16>
    %c16 = arith.constant 16 : index
    %c0_73 = arith.constant 0 : index
    %c0_74 = arith.constant 0 : index
    %138 = vector.load %arg5[%c16, %c0_73, %c0_74] : memref<27x128x128xbf16, #tpu.memory_space<vmem>>, vector<1x128x128xbf16>
    %139 = vector.shape_cast %138 : vector<1x128x128xbf16> to vector<128x128xbf16>
    %cst_75 = arith.constant dense<0.000000e+00> : vector<64x128xf32>
    %140 = tpu.matmul %137, %139, %cst_75 {dimension_numbers = #tpu.dot_dimension_numbers<[1], [0], [0], [1], [0, 0, 1, 1], [], []>} : vector<64x128xbf16>, vector<128x128xbf16>, vector<64x128xf32> -> vector<64x128xf32>
    %141 = arith.addf %136, %140 : vector<64x128xf32>
    %142 = vector.extract_strided_slice %107 {offsets = [0, 2, 0], sizes = [10, 8, 128], strides = [1, 1, 1]} : vector<10x10x128xbf16> to vector<10x8x128xbf16>
    %143 = vector.shape_cast %142 : vector<10x8x128xbf16> to vector<80x128xbf16>
    %144 = vector.extract_strided_slice %143 {offsets = [0, 0], sizes = [64, 128], strides = [1, 1]} : vector<80x128xbf16> to vector<64x128xbf16>
    %c11 = arith.constant 11 : index
    %c0_76 = arith.constant 0 : index
    %c0_77 = arith.constant 0 : index
    %145 = vector.load %arg5[%c11, %c0_76, %c0_77] : memref<27x128x128xbf16, #tpu.memory_space<vmem>>, vector<1x128x128xbf16>
    %146 = vector.shape_cast %145 : vector<1x128x128xbf16> to vector<128x128xbf16>
    %cst_78 = arith.constant dense<0.000000e+00> : vector<64x128xf32>
    %147 = tpu.matmul %144, %146, %cst_78 {dimension_numbers = #tpu.dot_dimension_numbers<[1], [0], [0], [1], [0, 0, 1, 1], [], []>} : vector<64x128xbf16>, vector<128x128xbf16>, vector<64x128xf32> -> vector<64x128xf32>
    %148 = arith.addf %141, %147 : vector<64x128xf32>
    %149 = vector.extract_strided_slice %143 {offsets = [8, 0], sizes = [64, 128], strides = [1, 1]} : vector<80x128xbf16> to vector<64x128xbf16>
    %c14 = arith.constant 14 : index
    %c0_79 = arith.constant 0 : index
    %c0_80 = arith.constant 0 : index
    %150 = vector.load %arg5[%c14, %c0_79, %c0_80] : memref<27x128x128xbf16, #tpu.memory_space<vmem>>, vector<1x128x128xbf16>
    %151 = vector.shape_cast %150 : vector<1x128x128xbf16> to vector<128x128xbf16>
    %cst_81 = arith.constant dense<0.000000e+00> : vector<64x128xf32>
    %152 = tpu.matmul %149, %151, %cst_81 {dimension_numbers = #tpu.dot_dimension_numbers<[1], [0], [0], [1], [0, 0, 1, 1], [], []>} : vector<64x128xbf16>, vector<128x128xbf16>, vector<64x128xf32> -> vector<64x128xf32>
    %153 = arith.addf %148, %152 : vector<64x128xf32>
    %154 = vector.extract_strided_slice %143 {offsets = [16, 0], sizes = [64, 128], strides = [1, 1]} : vector<80x128xbf16> to vector<64x128xbf16>
    %c17 = arith.constant 17 : index
    %c0_82 = arith.constant 0 : index
    %c0_83 = arith.constant 0 : index
    %155 = vector.load %arg5[%c17, %c0_82, %c0_83] : memref<27x128x128xbf16, #tpu.memory_space<vmem>>, vector<1x128x128xbf16>
    %156 = vector.shape_cast %155 : vector<1x128x128xbf16> to vector<128x128xbf16>
    %cst_84 = arith.constant dense<0.000000e+00> : vector<64x128xf32>
    %157 = tpu.matmul %154, %156, %cst_84 {dimension_numbers = #tpu.dot_dimension_numbers<[1], [0], [0], [1], [0, 0, 1, 1], [], []>} : vector<64x128xbf16>, vector<128x128xbf16>, vector<64x128xf32> -> vector<64x128xf32>
    %158 = arith.addf %153, %157 : vector<64x128xf32>
    %159 = tpu.concatenate %52, %51, %52 in 0 : vector<1x8x128xbf16>, vector<8x8x128xbf16>, vector<1x8x128xbf16> -> vector<10x8x128xbf16>
    %160 = tpu.concatenate %53, %159, %53 in 1 : vector<10x1x128xbf16>, vector<10x8x128xbf16>, vector<10x1x128xbf16> -> vector<10x10x128xbf16>
    %161 = vector.extract_strided_slice %160 {offsets = [0, 0, 0], sizes = [10, 8, 128], strides = [1, 1, 1]} : vector<10x10x128xbf16> to vector<10x8x128xbf16>
    %162 = vector.shape_cast %161 : vector<10x8x128xbf16> to vector<80x128xbf16>
    %163 = vector.extract_strided_slice %162 {offsets = [0, 0], sizes = [64, 128], strides = [1, 1]} : vector<80x128xbf16> to vector<64x128xbf16>
    %c18 = arith.constant 18 : index
    %c0_85 = arith.constant 0 : index
    %c0_86 = arith.constant 0 : index
    %164 = vector.load %arg5[%c18, %c0_85, %c0_86] : memref<27x128x128xbf16, #tpu.memory_space<vmem>>, vector<1x128x128xbf16>
    %165 = vector.shape_cast %164 : vector<1x128x128xbf16> to vector<128x128xbf16>
    %cst_87 = arith.constant dense<0.000000e+00> : vector<64x128xf32>
    %166 = tpu.matmul %163, %165, %cst_87 {dimension_numbers = #tpu.dot_dimension_numbers<[1], [0], [0], [1], [0, 0, 1, 1], [], []>} : vector<64x128xbf16>, vector<128x128xbf16>, vector<64x128xf32> -> vector<64x128xf32>
    %167 = arith.addf %158, %166 : vector<64x128xf32>
    %168 = vector.extract_strided_slice %162 {offsets = [8, 0], sizes = [64, 128], strides = [1, 1]} : vector<80x128xbf16> to vector<64x128xbf16>
    %c21 = arith.constant 21 : index
    %c0_88 = arith.constant 0 : index
    %c0_89 = arith.constant 0 : index
    %169 = vector.load %arg5[%c21, %c0_88, %c0_89] : memref<27x128x128xbf16, #tpu.memory_space<vmem>>, vector<1x128x128xbf16>
    %170 = vector.shape_cast %169 : vector<1x128x128xbf16> to vector<128x128xbf16>
    %cst_90 = arith.constant dense<0.000000e+00> : vector<64x128xf32>
    %171 = tpu.matmul %168, %170, %cst_90 {dimension_numbers = #tpu.dot_dimension_numbers<[1], [0], [0], [1], [0, 0, 1, 1], [], []>} : vector<64x128xbf16>, vector<128x128xbf16>, vector<64x128xf32> -> vector<64x128xf32>
    %172 = arith.addf %167, %171 : vector<64x128xf32>
    %173 = vector.extract_strided_slice %162 {offsets = [16, 0], sizes = [64, 128], strides = [1, 1]} : vector<80x128xbf16> to vector<64x128xbf16>
    %c24 = arith.constant 24 : index
    %c0_91 = arith.constant 0 : index
    %c0_92 = arith.constant 0 : index
    %174 = vector.load %arg5[%c24, %c0_91, %c0_92] : memref<27x128x128xbf16, #tpu.memory_space<vmem>>, vector<1x128x128xbf16>
    %175 = vector.shape_cast %174 : vector<1x128x128xbf16> to vector<128x128xbf16>
    %cst_93 = arith.constant dense<0.000000e+00> : vector<64x128xf32>
    %176 = tpu.matmul %173, %175, %cst_93 {dimension_numbers = #tpu.dot_dimension_numbers<[1], [0], [0], [1], [0, 0, 1, 1], [], []>} : vector<64x128xbf16>, vector<128x128xbf16>, vector<64x128xf32> -> vector<64x128xf32>
    %177 = arith.addf %172, %176 : vector<64x128xf32>
    %178 = vector.extract_strided_slice %160 {offsets = [0, 1, 0], sizes = [10, 8, 128], strides = [1, 1, 1]} : vector<10x10x128xbf16> to vector<10x8x128xbf16>
    %179 = vector.shape_cast %178 : vector<10x8x128xbf16> to vector<80x128xbf16>
    %180 = vector.extract_strided_slice %179 {offsets = [0, 0], sizes = [64, 128], strides = [1, 1]} : vector<80x128xbf16> to vector<64x128xbf16>
    %c19 = arith.constant 19 : index
    %c0_94 = arith.constant 0 : index
    %c0_95 = arith.constant 0 : index
    %181 = vector.load %arg5[%c19, %c0_94, %c0_95] : memref<27x128x128xbf16, #tpu.memory_space<vmem>>, vector<1x128x128xbf16>
    %182 = vector.shape_cast %181 : vector<1x128x128xbf16> to vector<128x128xbf16>
    %cst_96 = arith.constant dense<0.000000e+00> : vector<64x128xf32>
    %183 = tpu.matmul %180, %182, %cst_96 {dimension_numbers = #tpu.dot_dimension_numbers<[1], [0], [0], [1], [0, 0, 1, 1], [], []>} : vector<64x128xbf16>, vector<128x128xbf16>, vector<64x128xf32> -> vector<64x128xf32>
    %184 = arith.addf %177, %183 : vector<64x128xf32>
    %185 = vector.extract_strided_slice %179 {offsets = [8, 0], sizes = [64, 128], strides = [1, 1]} : vector<80x128xbf16> to vector<64x128xbf16>
    %c22 = arith.constant 22 : index
    %c0_97 = arith.constant 0 : index
    %c0_98 = arith.constant 0 : index
    %186 = vector.load %arg5[%c22, %c0_97, %c0_98] : memref<27x128x128xbf16, #tpu.memory_space<vmem>>, vector<1x128x128xbf16>
    %187 = vector.shape_cast %186 : vector<1x128x128xbf16> to vector<128x128xbf16>
    %cst_99 = arith.constant dense<0.000000e+00> : vector<64x128xf32>
    %188 = tpu.matmul %185, %187, %cst_99 {dimension_numbers = #tpu.dot_dimension_numbers<[1], [0], [0], [1], [0, 0, 1, 1], [], []>} : vector<64x128xbf16>, vector<128x128xbf16>, vector<64x128xf32> -> vector<64x128xf32>
    %189 = arith.addf %184, %188 : vector<64x128xf32>
    %190 = vector.extract_strided_slice %179 {offsets = [16, 0], sizes = [64, 128], strides = [1, 1]} : vector<80x128xbf16> to vector<64x128xbf16>
    %c25 = arith.constant 25 : index
    %c0_100 = arith.constant 0 : index
    %c0_101 = arith.constant 0 : index
    %191 = vector.load %arg5[%c25, %c0_100, %c0_101] : memref<27x128x128xbf16, #tpu.memory_space<vmem>>, vector<1x128x128xbf16>
    %192 = vector.shape_cast %191 : vector<1x128x128xbf16> to vector<128x128xbf16>
    %cst_102 = arith.constant dense<0.000000e+00> : vector<64x128xf32>
    %193 = tpu.matmul %190, %192, %cst_102 {dimension_numbers = #tpu.dot_dimension_numbers<[1], [0], [0], [1], [0, 0, 1, 1], [], []>} : vector<64x128xbf16>, vector<128x128xbf16>, vector<64x128xf32> -> vector<64x128xf32>
    %194 = arith.addf %189, %193 : vector<64x128xf32>
    %195 = vector.extract_strided_slice %160 {offsets = [0, 2, 0], sizes = [10, 8, 128], strides = [1, 1, 1]} : vector<10x10x128xbf16> to vector<10x8x128xbf16>
    %196 = vector.shape_cast %195 : vector<10x8x128xbf16> to vector<80x128xbf16>
    %197 = vector.extract_strided_slice %196 {offsets = [0, 0], sizes = [64, 128], strides = [1, 1]} : vector<80x128xbf16> to vector<64x128xbf16>
    %c20 = arith.constant 20 : index
    %c0_103 = arith.constant 0 : index
    %c0_104 = arith.constant 0 : index
    %198 = vector.load %arg5[%c20, %c0_103, %c0_104] : memref<27x128x128xbf16, #tpu.memory_space<vmem>>, vector<1x128x128xbf16>
    %199 = vector.shape_cast %198 : vector<1x128x128xbf16> to vector<128x128xbf16>
    %cst_105 = arith.constant dense<0.000000e+00> : vector<64x128xf32>
    %200 = tpu.matmul %197, %199, %cst_105 {dimension_numbers = #tpu.dot_dimension_numbers<[1], [0], [0], [1], [0, 0, 1, 1], [], []>} : vector<64x128xbf16>, vector<128x128xbf16>, vector<64x128xf32> -> vector<64x128xf32>
    %201 = arith.addf %194, %200 : vector<64x128xf32>
    %202 = vector.extract_strided_slice %196 {offsets = [8, 0], sizes = [64, 128], strides = [1, 1]} : vector<80x128xbf16> to vector<64x128xbf16>
    %c23 = arith.constant 23 : index
    %c0_106 = arith.constant 0 : index
    %c0_107 = arith.constant 0 : index
    %203 = vector.load %arg5[%c23, %c0_106, %c0_107] : memref<27x128x128xbf16, #tpu.memory_space<vmem>>, vector<1x128x128xbf16>
    %204 = vector.shape_cast %203 : vector<1x128x128xbf16> to vector<128x128xbf16>
    %cst_108 = arith.constant dense<0.000000e+00> : vector<64x128xf32>
    %205 = tpu.matmul %202, %204, %cst_108 {dimension_numbers = #tpu.dot_dimension_numbers<[1], [0], [0], [1], [0, 0, 1, 1], [], []>} : vector<64x128xbf16>, vector<128x128xbf16>, vector<64x128xf32> -> vector<64x128xf32>
    %206 = arith.addf %201, %205 : vector<64x128xf32>
    %207 = vector.extract_strided_slice %196 {offsets = [16, 0], sizes = [64, 128], strides = [1, 1]} : vector<80x128xbf16> to vector<64x128xbf16>
    %c26 = arith.constant 26 : index
    %c0_109 = arith.constant 0 : index
    %c0_110 = arith.constant 0 : index
    %208 = vector.load %arg5[%c26, %c0_109, %c0_110] : memref<27x128x128xbf16, #tpu.memory_space<vmem>>, vector<1x128x128xbf16>
    %209 = vector.shape_cast %208 : vector<1x128x128xbf16> to vector<128x128xbf16>
    %cst_111 = arith.constant dense<0.000000e+00> : vector<64x128xf32>
    %210 = tpu.matmul %207, %209, %cst_111 {dimension_numbers = #tpu.dot_dimension_numbers<[1], [0], [0], [1], [0, 0, 1, 1], [], []>} : vector<64x128xbf16>, vector<128x128xbf16>, vector<64x128xf32> -> vector<64x128xf32>
    %211 = arith.addf %206, %210 : vector<64x128xf32>
    %cst_112 = arith.constant dense<0.000000e+00> : vector<128xf32>
    %212 = vector.multi_reduction <add>, %211, %cst_112 [0] : vector<64x128xf32> to vector<128xf32>
    %213 = vector.shape_cast %212 : vector<128xf32> to vector<1x128xf32>
    %214 = arith.mulf %211, %211 : vector<64x128xf32>
    %cst_113 = arith.constant dense<0.000000e+00> : vector<128xf32>
    %215 = vector.multi_reduction <add>, %214, %cst_113 [0] : vector<64x128xf32> to vector<128xf32>
    %216 = vector.shape_cast %215 : vector<128xf32> to vector<1x128xf32>
    %217 = tpu.concatenate %213, %216 in 0 : vector<1x128xf32>, vector<1x128xf32> -> vector<2x128xf32>
    %c0_114 = arith.constant 0 : index
    %c0_115 = arith.constant 0 : index
    %c0_116 = arith.constant 0 : index
    %c0_117 = arith.constant 0 : index
    %218 = vector.load %arg9[%c0_114, %c0_115, %c0_116, %c0_117] : memref<1x1x2x128xf32, #tpu.memory_space<vmem>>, vector<1x1x2x128xf32>
    %219 = vector.shape_cast %218 : vector<1x1x2x128xf32> to vector<2x128xf32>
    %220 = vector.shape_cast %217 : vector<2x128xf32> to vector<1x1x2x128xf32>
    tpu.vector_store %arg9[%c0_114, %c0_115, %c0_116, %c0_117], %220 {strides = array<i32>} : memref<1x1x2x128xf32, #tpu.memory_space<vmem>>, vector<1x1x2x128xf32>,
    %221 = vector.shape_cast %211 : vector<64x128xf32> to vector<8x8x128xf32>
    %222 = arith.truncf %221 : vector<8x8x128xf32> to vector<8x8x128xbf16>
    %c0_118 = arith.constant 0 : index
    %c0_119 = arith.constant 0 : index
    %c0_120 = arith.constant 0 : index
    %c0_121 = arith.constant 0 : index
    %c0_122 = arith.constant 0 : index
    %223 = vector.load %arg8[%c0_118, %c0_119, %c0_120, %c0_121, %c0_122] : memref<1x1x8x8x128xbf16, #tpu.memory_space<vmem>>, vector<1x1x8x8x128xbf16>
    %224 = vector.shape_cast %223 : vector<1x1x8x8x128xbf16> to vector<8x8x128xbf16>
    %225 = vector.shape_cast %222 : vector<8x8x128xbf16> to vector<1x1x8x8x128xbf16>
    tpu.vector_store %arg8[%c0_118, %c0_119, %c0_120, %c0_121, %c0_122], %225 {strides = array<i32>} : memref<1x1x8x8x128xbf16, #tpu.memory_space<vmem>>, vector<1x1x8x8x128xbf16>,
    return
  }
  func.func @transform_0(%arg0: i32, %arg1: i32) -> (i32, i32, i32, i32, i32) {
    %c1_i32 = arith.constant 1 : i32
    %0 = arith.subi %arg1, %c1_i32 : i32
    %c0_i32 = arith.constant 0 : i32
    %1 = arith.maxsi %0, %c0_i32 : i32
    %c0_i32_0 = arith.constant 0 : i32
    %c0_i32_1 = arith.constant 0 : i32
    %c0_i32_2 = arith.constant 0 : i32
    %c0_i32_3 = arith.constant 0 : i32
    return %arg0, %1, %c0_i32_0, %c0_i32_1, %c0_i32_2 : i32, i32, i32, i32, i32
  }
  func.func @transform_1(%arg0: i32, %arg1: i32) -> (i32, i32, i32, i32, i32) {
    %c0_i32 = arith.constant 0 : i32
    %c0_i32_0 = arith.constant 0 : i32
    %c0_i32_1 = arith.constant 0 : i32
    %c0_i32_2 = arith.constant 0 : i32
    return %arg0, %arg1, %c0_i32, %c0_i32_0, %c0_i32_1 : i32, i32, i32, i32, i32
  }
  func.func @transform_2(%arg0: i32, %arg1: i32) -> (i32, i32, i32, i32, i32) {
    %c1_i32 = arith.constant 1 : i32
    %0 = arith.addi %arg1, %c1_i32 : i32
    %c7_i32 = arith.constant 7 : i32
    %1 = arith.minsi %0, %c7_i32 : i32
    %c0_i32 = arith.constant 0 : i32
    %c0_i32_0 = arith.constant 0 : i32
    %c0_i32_1 = arith.constant 0 : i32
    %c0_i32_2 = arith.constant 0 : i32
    return %arg0, %1, %c0_i32, %c0_i32_0, %c0_i32_1 : i32, i32, i32, i32, i32
  }
  func.func @transform_3(%arg0: i32, %arg1: i32) -> (i32, i32, i32) {
    %c0_i32 = arith.constant 0 : i32
    %c0_i32_0 = arith.constant 0 : i32
    %c0_i32_1 = arith.constant 0 : i32
    %c0_i32_2 = arith.constant 0 : i32
    return %c0_i32, %c0_i32_0, %c0_i32_1 : i32, i32, i32
  }
  func.func @transform_4(%arg0: i32, %arg1: i32) -> (i32, i32) {
    %c0_i32 = arith.constant 0 : i32
    %c0_i32_0 = arith.constant 0 : i32
    %c0_i32_1 = arith.constant 0 : i32
    return %c0_i32, %c0_i32_0 : i32, i32
  }
  func.func @transform_5(%arg0: i32, %arg1: i32) -> (i32, i32) {
    %c0_i32 = arith.constant 0 : i32
    %c0_i32_0 = arith.constant 0 : i32
    %c0_i32_1 = arith.constant 0 : i32
    return %c0_i32, %c0_i32_0 : i32, i32
  }
  func.func @transform_6(%arg0: i32, %arg1: i32) -> (i32, i32, i32, i32, i32) {
    %c0_i32 = arith.constant 0 : i32
    %c0_i32_0 = arith.constant 0 : i32
    %c0_i32_1 = arith.constant 0 : i32
    %c0_i32_2 = arith.constant 0 : i32
    return %arg0, %arg1, %c0_i32, %c0_i32_0, %c0_i32_1 : i32, i32, i32, i32, i32
  }
  func.func @transform_7(%arg0: i32, %arg1: i32) -> (i32, i32, i32, i32) {
    %c0_i32 = arith.constant 0 : i32
    %c0_i32_0 = arith.constant 0 : i32
    %c0_i32_1 = arith.constant 0 : i32
    return %arg0, %arg1, %c0_i32, %c0_i32_0 : i32, i32, i32, i32
  }
}

module attributes {stable_mosaic.version = 11 : i64} {
  func.func @_bn_relu_deconv_kernel(%arg0: i32, %arg1: memref<1024x128xbf16, #tpu.memory_space<vmem>>, %arg2: memref<1x128xf32, #tpu.memory_space<vmem>>, %arg3: memref<1x128xf32, #tpu.memory_space<vmem>>, %arg4: memref<128x128xbf16, #tpu.memory_space<vmem>>, %arg5: memref<1x128xf32, #tpu.memory_space<vmem>>, %arg6: memref<1024x128xbf16, #tpu.memory_space<vmem>>) attributes {dimension_semantics = [#tpu.dimension_semantics<parallel>], iteration_bounds = array<i64: 1>, scalar_prefetch = 0 : i64, scratch_operands = 0 : i64, tpu.core_type = #tpu.core_type<tc>, window_params = [{transform_indices = @transform_0, window_bounds = array<i64: 1024, 128>}, {pipeline_mode = #tpu.pipeline_mode<synchronous>, transform_indices = @transform_1, window_bounds = array<i64: 1, 128>}, {pipeline_mode = #tpu.pipeline_mode<synchronous>, transform_indices = @transform_2, window_bounds = array<i64: 1, 128>}, {pipeline_mode = #tpu.pipeline_mode<synchronous>, transform_indices = @transform_3, window_bounds = array<i64: 128, 128>}, {pipeline_mode = #tpu.pipeline_mode<synchronous>, transform_indices = @transform_4, window_bounds = array<i64: 1, 128>}, {transform_indices = @transform_5, window_bounds = array<i64: 1024, 128>}]} {
    %c0 = arith.constant 0 : index
    %c0_0 = arith.constant 0 : index
    %0 = vector.load %arg1[%c0, %c0_0] : memref<1024x128xbf16, #tpu.memory_space<vmem>>, vector<1024x128xbf16>
    %1 = arith.extf %0 : vector<1024x128xbf16> to vector<1024x128xf32>
    %c0_1 = arith.constant 0 : index
    %c0_2 = arith.constant 0 : index
    %2 = vector.load %arg2[%c0_1, %c0_2] : memref<1x128xf32, #tpu.memory_space<vmem>>, vector<1x128xf32>
    %3 = vector.broadcast %2 : vector<1x128xf32> to vector<1024x128xf32>
    %4 = arith.mulf %1, %3 : vector<1024x128xf32>
    %c0_3 = arith.constant 0 : index
    %c0_4 = arith.constant 0 : index
    %5 = vector.load %arg3[%c0_3, %c0_4] : memref<1x128xf32, #tpu.memory_space<vmem>>, vector<1x128xf32>
    %6 = vector.broadcast %5 : vector<1x128xf32> to vector<1024x128xf32>
    %7 = arith.addf %4, %6 : vector<1024x128xf32>
    %cst = arith.constant 0.000000e+00 : f32
    %8 = vector.broadcast %cst : f32 to vector<1024x128xf32>
    %9 = arith.maximumf %7, %8 : vector<1024x128xf32>
    %10 = arith.truncf %9 : vector<1024x128xf32> to vector<1024x128xbf16>
    %c0_5 = arith.constant 0 : index
    %c0_6 = arith.constant 0 : index
    %11 = vector.load %arg4[%c0_5, %c0_6] : memref<128x128xbf16, #tpu.memory_space<vmem>>, vector<128x128xbf16>
    %cst_7 = arith.constant dense<0.000000e+00> : vector<1024x128xf32>
    %12 = tpu.matmul %10, %11, %cst_7 {dimension_numbers = #tpu.dot_dimension_numbers<[1], [0], [0], [1], [0, 0, 1, 1], [], []>} : vector<1024x128xbf16>, vector<128x128xbf16>, vector<1024x128xf32> -> vector<1024x128xf32>
    %c0_8 = arith.constant 0 : index
    %c0_9 = arith.constant 0 : index
    %13 = vector.load %arg5[%c0_8, %c0_9] : memref<1x128xf32, #tpu.memory_space<vmem>>, vector<1x128xf32>
    %14 = vector.broadcast %13 : vector<1x128xf32> to vector<1024x128xf32>
    %15 = arith.addf %12, %14 : vector<1024x128xf32>
    %16 = arith.truncf %15 : vector<1024x128xf32> to vector<1024x128xbf16>
    %c0_10 = arith.constant 0 : index
    %c0_11 = arith.constant 0 : index
    %17 = vector.load %arg6[%c0_10, %c0_11] : memref<1024x128xbf16, #tpu.memory_space<vmem>>, vector<1024x128xbf16>
    tpu.vector_store %arg6[%c0_10, %c0_11], %16 {strides = array<i32>} : memref<1024x128xbf16, #tpu.memory_space<vmem>>, vector<1024x128xbf16>,
    return
  }
  func.func @transform_0(%arg0: i32) -> (i32, i32) {
    %c0_i32 = arith.constant 0 : i32
    %c0_i32_0 = arith.constant 0 : i32
    return %arg0, %c0_i32 : i32, i32
  }
  func.func @transform_1(%arg0: i32) -> (i32, i32) {
    %c0_i32 = arith.constant 0 : i32
    %c0_i32_0 = arith.constant 0 : i32
    %c0_i32_1 = arith.constant 0 : i32
    return %c0_i32, %c0_i32_0 : i32, i32
  }
  func.func @transform_2(%arg0: i32) -> (i32, i32) {
    %c0_i32 = arith.constant 0 : i32
    %c0_i32_0 = arith.constant 0 : i32
    %c0_i32_1 = arith.constant 0 : i32
    return %c0_i32, %c0_i32_0 : i32, i32
  }
  func.func @transform_3(%arg0: i32) -> (i32, i32) {
    %c0_i32 = arith.constant 0 : i32
    %c0_i32_0 = arith.constant 0 : i32
    %c0_i32_1 = arith.constant 0 : i32
    return %c0_i32, %c0_i32_0 : i32, i32
  }
  func.func @transform_4(%arg0: i32) -> (i32, i32) {
    %c0_i32 = arith.constant 0 : i32
    %c0_i32_0 = arith.constant 0 : i32
    %c0_i32_1 = arith.constant 0 : i32
    return %c0_i32, %c0_i32_0 : i32, i32
  }
  func.func @transform_5(%arg0: i32) -> (i32, i32) {
    %c0_i32 = arith.constant 0 : i32
    %c0_i32_0 = arith.constant 0 : i32
    return %arg0, %c0_i32 : i32, i32
  }
}

</mosaic_0001>

<llo_original>
// kernel: tile.8
$region0: #{tile.8}
  #allocation0 [shape = 's32[1]{0}', space=sflag, size = 0x4, scoped, tag = 'scoped memory for tile.8']
  %s0 = inlined_call_operand.vmem [shape: f32[16], index: 0, kind: input, shape index: {}]
  %s1 = inlined_call_operand.vmem [shape: f32[8,16], index: 1, kind: output, shape index: {}]
  // Predicated region
  $region2: #{tile.8} parent=0 // pred_check
    _
  $region3: #{tile.8} parent=0 // pred_check_branch
    %3 = sbr.rel (0) target = $region5
  $region4: #{tile.8} parent=0 // pred_region
    _
  $region5: #{tile.8} parent=0 // pred_fallthru
    _
  %v4 = vld [vmem:[%s0] ss:$0 sm:$0xff]
  %5 = vst [vmem:[%s1] sm:$0xff] %v4

// kernel: tile.9
$region0: #{tile.9}
  %s0 = inlined_call_operand.vmem [shape: f32[8,16], index: 0, kind: input, shape index: {}]
  %s1 = inlined_call_operand.vmem [shape: f32[1,128], index: 1, kind: output, shape index: {}]
  $region1: #{tile.9} parent=0
    #allocation0 [shape = 'u8[4096]{0}', space=vmem, size = 0x1000, scoped, tag = 'scoped mem for output reshape']
    %v2 = vld [vmem:[%s0] sm:$0x1]
    %vm3 = vcmask 130048
    %4 = vst.msk [vmem:[#allocation0] sm:$0x1] %vm3, %v2
    %s5 = scalar_lea.vmem %s0, 7
    %v6 = vld [vmem:[%s5] sm:$0x1]
    %7 = vrot.lane.b32.xlu0 %v6, 112
    %v8 = vpop.permute.xlu0 %7
    %vm9 = vcmask 1048448
    %10 = vst.msk [vmem:[#allocation0] sm:$0x1] %vm9, %v8
    %s11 = scalar_lea.vmem %s0, 6
    %v12 = vld [vmem:[%s11] sm:$0x1]
    %13 = vrot.lane.b32.xlu0 %v12, 96
    %v14 = vpop.permute.xlu0 %13
    %vm15 = vcmask 917248
    %16 = vst.msk [vmem:[#allocation0] sm:$0x1] %vm15, %v14
    %s17 = scalar_lea.vmem %s0, 5
    %v18 = vld [vmem:[%s17] sm:$0x1]
    %19 = vrot.lane.b32.xlu0 %v18, 80
    %v20 = vpop.permute.xlu0 %19
    %vm21 = vcmask 786048
    %22 = vst.msk [vmem:[#allocation0] sm:$0x1] %vm21, %v20
    %s23 = scalar_lea.vmem %s0, 4
    %v24 = vld [vmem:[%s23] sm:$0x1]
    %25 = vrot.lane.b32.xlu0 %v24, 64
    %v26 = vpop.permute.xlu0 %25
    %vm27 = vcmask 654848
    %28 = vst.msk [vmem:[#allocation0] sm:$0x1] %vm27, %v26
    %s29 = scalar_lea.vmem %s0, 3
    %v30 = vld [vmem:[%s29] sm:$0x1]
    %31 = vrot.lane.b32.xlu0 %v30, 48
    %v32 = vpop.permute.xlu0 %31
    %vm33 = vcmask 523648
    %34 = vst.msk [vmem:[#allocation0] sm:$0x1] %vm33, %v32
    %s35 = scalar_lea.vmem %s0, 2
    %v36 = vld [vmem:[%s35] sm:$0x1]
    %37 = vrot.lane.b32.xlu0 %v36, 32
    %v38 = vpop.permute.xlu0 %37
    %vm39 = vcmask 392448
    %40 = vst.msk [vmem:[#allocation0] sm:$0x1] %vm39, %v38
    %s41 = scalar_lea.vmem %s0, 1
    %v42 = vld [vmem:[%s41] sm:$0x1]
    %43 = vrot.lane.b32.xlu0 %v42, 16
    %v44 = vpop.permute.xlu0 %43
    %vm45 = vcmask 261248
    %46 = vst.msk [vmem:[#allocation0] sm:$0x1] %vm45, %v44
    %s48 = sshllo.u32 0, 1
    %v50 = vld [vmem:[#allocation0] sm:%s48]
    %s51 = sshllo.u32 0, 1
    %52 = vst [vmem:[%s1] sm:%s51] %v50

// kernel: decoder3d_forward.5
$region0: #{decoder3d_forward.5}
  #allocation0 [shape = 'u32[]', space=smem, size = 0x4, offset = 0x4, fixed_abs, tag = 'smem constant byte address 0x4 - core index']
  #allocation1 [shape = 'u32[144,128]{1,0:T(1,128)}', space=vmem, size = 0x12000, scoped, tag = 'internal scratch']
  %s0 = inlined_call_operand.vmem [shape: bf16[1024,128], index: 0, kind: input, shape index: {}]
  %s1 = inlined_call_operand.vmem [shape: f32[1,128], index: 1, kind: input, shape index: {}]
  %s2 = inlined_call_operand.vmem [shape: f32[1,128], index: 2, kind: input, shape index: {}]
  %s3 = inlined_call_operand.vmem [shape: bf16[128,128], index: 3, kind: input, shape index: {}]
  %s4 = inlined_call_operand.vmem [shape: f32[1,128], index: 4, kind: input, shape index: {}]
  %s5 = inlined_call_operand.vmem [shape: bf16[1024,128], index: 5, kind: output, shape index: {}]
  %s6 = sld [smem:[#allocation0]]
  $region30: #{decoder3d_forward.5} parent=0
    _
  %s8 = ssub.s32 1, %s6
  %s9 = scalar_select 0, %s8, %s6
  // Predicated region
  $region2: #{decoder3d_forward.5} parent=0 // pred_check
    _
  $region3: #{decoder3d_forward.5} parent=0 // pred_check_branch
    %11 = sbr.rel (0) target = $region5
  $region4: #{decoder3d_forward.5} parent=0 // pred_region
    _
  $region5: #{decoder3d_forward.5} parent=0 // pred_fallthru
    _
  // Predicated region
  $region6: #{decoder3d_forward.5} parent=0 // pred_check
    _
  $region7: #{decoder3d_forward.5} parent=0 // pred_check_branch
    %13 = sbr.rel (0) target = $region9
  $region8: #{decoder3d_forward.5} parent=0 // pred_region
    _
  $region9: #{decoder3d_forward.5} parent=0 // pred_fallthru
    _
  // Predicated region
  $region10: #{decoder3d_forward.5} parent=0 // pred_check
    _
  $region11: #{decoder3d_forward.5} parent=0 // pred_check_branch
    %15 = sbr.rel (0) target = $region13
  $region12: #{decoder3d_forward.5} parent=0 // pred_region
    _
  $region13: #{decoder3d_forward.5} parent=0 // pred_fallthru
    _
  // Predicated region
  $region14: #{decoder3d_forward.5} parent=0 // pred_check
    _
  $region15: #{decoder3d_forward.5} parent=0 // pred_check_branch
    %17 = sbr.rel (0) target = $region17
  $region16: #{decoder3d_forward.5} parent=0 // pred_region
    _
  $region17: #{decoder3d_forward.5} parent=0 // pred_fallthru
    _
  // Predicated region
  $region18: #{decoder3d_forward.5} parent=0 // pred_check
    _
  $region19: #{decoder3d_forward.5} parent=0 // pred_check_branch
    %19 = sbr.rel (0) target = $region21
  $region20: #{decoder3d_forward.5} parent=0 // pred_region
    _
  $region21: #{decoder3d_forward.5} parent=0 // pred_fallthru
    _
  %v21 = vld [vmem:[%s0] sm:$0xf]
  %v22 = vld [vmem:[%s0 + $0x4] sm:$0xf]
  %v23 = vld [vmem:[%s0 + $0x8] sm:$0xf]
  %v24 = vld [vmem:[%s0 + $0xc] sm:$0xf]
  %v25 = vld [vmem:[%s0 + $0x10] sm:$0xf]
  %v26 = vld [vmem:[%s0 + $0x14] sm:$0xf]
  %v27 = vld [vmem:[%s0 + $0x18] sm:$0xf]
  %v28 = vld [vmem:[%s0 + $0x1c] sm:$0xf]
  %v29 = vld [vmem:[%s0 + $0x20] sm:$0xf]
  %v30 = vld [vmem:[%s0 + $0x24] sm:$0xf]
  %v31 = vld [vmem:[%s0 + $0x28] sm:$0xf]
  %v32 = vld [vmem:[%s0 + $0x2c] sm:$0xf]
  %v33 = vld [vmem:[%s0 + $0x30] sm:$0xf]
  %v34 = vld [vmem:[%s0 + $0x34] sm:$0xf]
  %v35 = vld [vmem:[%s0 + $0x38] sm:$0xf]
  %v36 = vld [vmem:[%s0 + $0x3c] sm:$0xf]
  %v37 = vld [vmem:[%s0 + $0x40] sm:$0xf]
  %v38 = vld [vmem:[%s0 + $0x44] sm:$0xf]
  %v39 = vld [vmem:[%s0 + $0x48] sm:$0xf]
  %v40 = vld [vmem:[%s0 + $0x4c] sm:$0xf]
  %v41 = vld [vmem:[%s0 + $0x50] sm:$0xf]
  %v42 = vld [vmem:[%s0 + $0x54] sm:$0xf]
  %v43 = vld [vmem:[%s0 + $0x58] sm:$0xf]
  %v44 = vld [vmem:[%s0 + $0x5c] sm:$0xf]
  %v45 = vld [vmem:[%s0 + $0x60] sm:$0xf]
  %v46 = vld [vmem:[%s0 + $0x64] sm:$0xf]
  %v47 = vld [vmem:[%s0 + $0x68] sm:$0xf]
  %v48 = vld [vmem:[%s0 + $0x6c] sm:$0xf]
  %v49 = vld [vmem:[%s0 + $0x70] sm:$0xf]
  %v50 = vld [vmem:[%s0 + $0x74] sm:$0xf]
  %v51 = vld [vmem:[%s0 + $0x78] sm:$0xf]
  %v52 = vld [vmem:[%s0 + $0x7c] sm:$0xf]
  %v53 = vld [vmem:[%s0 + $0x80] sm:$0xf]
  %v54 = vld [vmem:[%s0 + $0x84] sm:$0xf]
  %v55 = vld [vmem:[%s0 + $0x88] sm:$0xf]
  %v56 = vld [vmem:[%s0 + $0x8c] sm:$0xf]
  %v57 = vld [vmem:[%s0 + $0x90] sm:$0xf]
  %v58 = vld [vmem:[%s0 + $0x94] sm:$0xf]
  %v59 = vld [vmem:[%s0 + $0x98] sm:$0xf]
  %v60 = vld [vmem:[%s0 + $0x9c] sm:$0xf]
  %v61 = vld [vmem:[%s0 + $0xa0] sm:$0xf]
  %v62 = vld [vmem:[%s0 + $0xa4] sm:$0xf]
  %v63 = vld [vmem:[%s0 + $0xa8] sm:$0xf]
  %v64 = vld [vmem:[%s0 + $0xac] sm:$0xf]
  %v65 = vld [vmem:[%s0 + $0xb0] sm:$0xf]
  %v66 = vld [vmem:[%s0 + $0xb4] sm:$0xf]
  %v67 = vld [vmem:[%s0 + $0xb8] sm:$0xf]
  %v68 = vld [vmem:[%s0 + $0xbc] sm:$0xf]
  %v69 = vld [vmem:[%s0 + $0xc0] sm:$0xf]
  %v70 = vld [vmem:[%s0 + $0xc4] sm:$0xf]
  %v71 = vld [vmem:[%s0 + $0xc8] sm:$0xf]
  %v72 = vld [vmem:[%s0 + $0xcc] sm:$0xf]
  %v73 = vld [vmem:[%s0 + $0xd0] sm:$0xf]
  %v74 = vld [vmem:[%s0 + $0xd4] sm:$0xf]
  %v75 = vld [vmem:[%s0 + $0xd8] sm:$0xf]
  %v76 = vld [vmem:[%s0 + $0xdc] sm:$0xf]
  %v77 = vld [vmem:[%s0 + $0xe0] sm:$0xf]
  %v78 = vld [vmem:[%s0 + $0xe4] sm:$0xf]
  %v79 = vld [vmem:[%s0 + $0xe8] sm:$0xf]
  %v80 = vld [vmem:[%s0 + $0xec] sm:$0xf]
  %v81 = vld [vmem:[%s0 + $0xf0] sm:$0xf]
  %v82 = vld [vmem:[%s0 + $0xf4] sm:$0xf]
  %v83 = vld [vmem:[%s0 + $0xf8] sm:$0xf]
  %v84 = vld [vmem:[%s0 + $0xfc] sm:$0xf]
  %v85 = vld [vmem:[%s0 + $0x100] sm:$0xf]
  %v86 = vld [vmem:[%s0 + $0x104] sm:$0xf]
  %v87 = vld [vmem:[%s0 + $0x108] sm:$0xf]
  %v88 = vld [vmem:[%s0 + $0x10c] sm:$0xf]
  %v89 = vld [vmem:[%s0 + $0x110] sm:$0xf]
  %v90 = vld [vmem:[%s0 + $0x114] sm:$0xf]
  %v91 = vld [vmem:[%s0 + $0x118] sm:$0xf]
  %v92 = vld [vmem:[%s0 + $0x11c] sm:$0xf]
  %v93 = vld [vmem:[%s0 + $0x120] sm:$0xf]
  %v94 = vld [vmem:[%s0 + $0x124] sm:$0xf]
  %v95 = vld [vmem:[%s0 + $0x128] sm:$0xf]
  %v96 = vld [vmem:[%s0 + $0x12c] sm:$0xf]
  %v97 = vld [vmem:[%s0 + $0x130] sm:$0xf]
  %v98 = vld [vmem:[%s0 + $0x134] sm:$0xf]
  %v99 = vld [vmem:[%s0 + $0x138] sm:$0xf]
  %v100 = vld [vmem:[%s0 + $0x13c] sm:$0xf]
  %v101 = vld [vmem:[%s0 + $0x140] sm:$0xf]
  %v102 = vld [vmem:[%s0 + $0x144] sm:$0xf]
  %v103 = vld [vmem:[%s0 + $0x148] sm:$0xf]
  %v104 = vld [vmem:[%s0 + $0x14c] sm:$0xf]
  %v105 = vld [vmem:[%s0 + $0x150] sm:$0xf]
  %v106 = vld [vmem:[%s0 + $0x154] sm:$0xf]
  %v107 = vld [vmem:[%s0 + $0x158] sm:$0xf]
  %v108 = vld [vmem:[%s0 + $0x15c] sm:$0xf]
  %v109 = vld [vmem:[%s0 + $0x160] sm:$0xf]
  %v110 = vld [vmem:[%s0 + $0x164] sm:$0xf]
  %v111 = vld [vmem:[%s0 + $0x168] sm:$0xf]
  %v112 = vld [vmem:[%s0 + $0x16c] sm:$0xf]
  %v113 = vld [vmem:[%s0 + $0x170] sm:$0xf]
  %v114 = vld [vmem:[%s0 + $0x174] sm:$0xf]
  %v115 = vld [vmem:[%s0 + $0x178] sm:$0xf]
  %v116 = vld [vmem:[%s0 + $0x17c] sm:$0xf]
  %v117 = vld [vmem:[%s0 + $0x180] sm:$0xf]
  %v118 = vld [vmem:[%s0 + $0x184] sm:$0xf]
  %v119 = vld [vmem:[%s0 + $0x188] sm:$0xf]
  %v120 = vld [vmem:[%s0 + $0x18c] sm:$0xf]
  %v121 = vld [vmem:[%s0 + $0x190] sm:$0xf]
  %v122 = vld [vmem:[%s0 + $0x194] sm:$0xf]
  %v123 = vld [vmem:[%s0 + $0x198] sm:$0xf]
  %v124 = vld [vmem:[%s0 + $0x19c] sm:$0xf]
  %v125 = vld [vmem:[%s0 + $0x1a0] sm:$0xf]
  %v126 = vld [vmem:[%s0 + $0x1a4] sm:$0xf]
  %v127 = vld [vmem:[%s0 + $0x1a8] sm:$0xf]
  %v128 = vld [vmem:[%s0 + $0x1ac] sm:$0xf]
  %v129 = vld [vmem:[%s0 + $0x1b0] sm:$0xf]
  %v130 = vld [vmem:[%s0 + $0x1b4] sm:$0xf]
  %v131 = vld [vmem:[%s0 + $0x1b8] sm:$0xf]
  %v132 = vld [vmem:[%s0 + $0x1bc] sm:$0xf]
  %v133 = vld [vmem:[%s0 + $0x1c0] sm:$0xf]
  %v134 = vld [vmem:[%s0 + $0x1c4] sm:$0xf]
  %v135 = vld [vmem:[%s0 + $0x1c8] sm:$0xf]
  %v136 = vld [vmem:[%s0 + $0x1cc] sm:$0xf]
  %v137 = vld [vmem:[%s0 + $0x1d0] sm:$0xf]
  %v138 = vld [vmem:[%s0 + $0x1d4] sm:$0xf]
  %v139 = vld [vmem:[%s0 + $0x1d8] sm:$0xf]
  %v140 = vld [vmem:[%s0 + $0x1dc] sm:$0xf]
  %v141 = vld [vmem:[%s0 + $0x1e0] sm:$0xf]
  %v142 = vld [vmem:[%s0 + $0x1e4] sm:$0xf]
  %v143 = vld [vmem:[%s0 + $0x1e8] sm:$0xf]
  %v144 = vld [vmem:[%s0 + $0x1ec] sm:$0xf]
  %v145 = vld [vmem:[%s0 + $0x1f0] sm:$0xf]
  %v146 = vld [vmem:[%s0 + $0x1f4] sm:$0xf]
  %v147 = vld [vmem:[%s0 + $0x1f8] sm:$0xf]
  %v148 = vld [vmem:[%s0 + $0x1fc] sm:$0xf]
  %v149 = vunpack.c.l.bf16 %v21
  %v150 = vunpack.c.l.bf16 %v22
  %v151 = vunpack.c.l.bf16 %v23
  %v152 = vunpack.c.l.bf16 %v24
  %v153 = vunpack.c.l.bf16 %v25
  %v154 = vunpack.c.l.bf16 %v26
  %v155 = vunpack.c.l.bf16 %v27
  %v156 = vunpack.c.l.bf16 %v28
  %v157 = vunpack.c.l.bf16 %v29
  %v158 = vunpack.c.l.bf16 %v30
  %v159 = vunpack.c.l.bf16 %v31
  %v160 = vunpack.c.l.bf16 %v32
  %v161 = vunpack.c.l.bf16 %v33
  %v162 = vunpack.c.l.bf16 %v34
  %v163 = vunpack.c.l.bf16 %v35
  %v164 = vunpack.c.l.bf16 %v36
  %v165 = vunpack.c.l.bf16 %v37
  %v166 = vunpack.c.l.bf16 %v38
  %v167 = vunpack.c.l.bf16 %v39
  %v168 = vunpack.c.l.bf16 %v40
  %v169 = vunpack.c.l.bf16 %v41
  %v170 = vunpack.c.l.bf16 %v42
  %v171 = vunpack.c.l.bf16 %v43
  %v172 = vunpack.c.l.bf16 %v44
  %v173 = vunpack.c.l.bf16 %v45
  %v174 = vunpack.c.l.bf16 %v46
  %v175 = vunpack.c.l.bf16 %v47
  %v176 = vunpack.c.l.bf16 %v48
  %v177 = vunpack.c.l.bf16 %v49
  %v178 = vunpack.c.l.bf16 %v50
  %v179 = vunpack.c.l.bf16 %v51
  %v180 = vunpack.c.l.bf16 %v52
  %v181 = vunpack.c.l.bf16 %v53
  %v182 = vunpack.c.l.bf16 %v54
  %v183 = vunpack.c.l.bf16 %v55
  %v184 = vunpack.c.l.bf16 %v56
  %v185 = vunpack.c.l.bf16 %v57
  %v186 = vunpack.c.l.bf16 %v58
  %v187 = vunpack.c.l.bf16 %v59
  %v188 = vunpack.c.l.bf16 %v60
  %v189 = vunpack.c.l.bf16 %v61
  %v190 = vunpack.c.l.bf16 %v62
  %v191 = vunpack.c.l.bf16 %v63
  %v192 = vunpack.c.l.bf16 %v64
  %v193 = vunpack.c.l.bf16 %v65
  %v194 = vunpack.c.l.bf16 %v66
  %v195 = vunpack.c.l.bf16 %v67
  %v196 = vunpack.c.l.bf16 %v68
  %v197 = vunpack.c.l.bf16 %v69
  %v198 = vunpack.c.l.bf16 %v70
  %v199 = vunpack.c.l.bf16 %v71
  %v200 = vunpack.c.l.bf16 %v72
  %v201 = vunpack.c.l.bf16 %v73
  %v202 = vunpack.c.l.bf16 %v74
  %v203 = vunpack.c.l.bf16 %v75
  %v204 = vunpack.c.l.bf16 %v76
  %v205 = vunpack.c.l.bf16 %v77
  %v206 = vunpack.c.l.bf16 %v78
  %v207 = vunpack.c.l.bf16 %v79
  %v208 = vunpack.c.l.bf16 %v80
  %v209 = vunpack.c.l.bf16 %v81
  %v210 = vunpack.c.l.bf16 %v82
  %v211 = vunpack.c.l.bf16 %v83
  %v212 = vunpack.c.l.bf16 %v84
  %v213 = vunpack.c.l.bf16 %v85
  %v214 = vunpack.c.l.bf16 %v86
  %v215 = vunpack.c.l.bf16 %v87
  %v216 = vunpack.c.l.bf16 %v88
  %v217 = vunpack.c.l.bf16 %v89
  %v218 = vunpack.c.l.bf16 %v90
  %v219 = vunpack.c.l.bf16 %v91
  %v220 = vunpack.c.l.bf16 %v92
  %v221 = vunpack.c.l.bf16 %v93
  %v222 = vunpack.c.l.bf16 %v94
  %v223 = vunpack.c.l.bf16 %v95
  %v224 = vunpack.c.l.bf16 %v96
  %v225 = vunpack.c.l.bf16 %v97
  %v226 = vunpack.c.l.bf16 %v98
  %v227 = vunpack.c.l.bf16 %v99
  %v228 = vunpack.c.l.bf16 %v100
  %v229 = vunpack.c.l.bf16 %v101
  %v230 = vunpack.c.l.bf16 %v102
  %v231 = vunpack.c.l.bf16 %v103
  %v232 = vunpack.c.l.bf16 %v104
  %v233 = vunpack.c.l.bf16 %v105
  %v234 = vunpack.c.l.bf16 %v106
  %v235 = vunpack.c.l.bf16 %v107
  %v236 = vunpack.c.l.bf16 %v108
  %v237 = vunpack.c.l.bf16 %v109
  %v238 = vunpack.c.l.bf16 %v110
  %v239 = vunpack.c.l.bf16 %v111
  %v240 = vunpack.c.l.bf16 %v112
  %v241 = vunpack.c.l.bf16 %v113
  %v242 = vunpack.c.l.bf16 %v114
  %v243 = vunpack.c.l.bf16 %v115
  %v244 = vunpack.c.l.bf16 %v116
  %v245 = vunpack.c.l.bf16 %v117
  %v246 = vunpack.c.l.bf16 %v118
  %v247 = vunpack.c.l.bf16 %v119
  %v248 = vunpack.c.l.bf16 %v120
  %v249 = vunpack.c.l.bf16 %v121
  %v250 = vunpack.c.l.bf16 %v122
  %v251 = vunpack.c.l.bf16 %v123
  %v252 = vunpack.c.l.bf16 %v124
  %v253 = vunpack.c.l.bf16 %v125
  %v254 = vunpack.c.l.bf16 %v126
  %v255 = vunpack.c.l.bf16 %v127
  %v256 = vunpack.c.l.bf16 %v128
  %v257 = vunpack.c.l.bf16 %v129
  %v258 = vunpack.c.l.bf16 %v130
  %v259 = vunpack.c.l.bf16 %v131
  %v260 = vunpack.c.l.bf16 %v132
  %v261 = vunpack.c.l.bf16 %v133
  %v262 = vunpack.c.l.bf16 %v134
  %v263 = vunpack.c.l.bf16 %v135
  %v264 = vunpack.c.l.bf16 %v136
  %v265 = vunpack.c.l.bf16 %v137
  %v266 = vunpack.c.l.bf16 %v138
  %v267 = vunpack.c.l.bf16 %v139
  %v268 = vunpack.c.l.bf16 %v140
  %v269 = vunpack.c.l.bf16 %v141
  %v270 = vunpack.c.l.bf16 %v142
  %v271 = vunpack.c.l.bf16 %v143
  %v272 = vunpack.c.l.bf16 %v144
  %v273 = vunpack.c.l.bf16 %v145
  %v274 = vunpack.c.l.bf16 %v146
  %v275 = vunpack.c.l.bf16 %v147
  %v276 = vunpack.c.l.bf16 %v148
  %v277 = vld [vmem:[%s1] sm:$0x1]
  %v279 = vlaneseq
  %v280 = vshrl.u32 %v279, 7
  %v281 = vsub.s32 0, %v280
  %v282 = vrot.slane %v277, %v281
  %v284 = vmul.f32 %v149, %v282
  %v285 = vmul.f32 %v150, %v282
  %v286 = vmul.f32 %v151, %v282
  %v287 = vmul.f32 %v152, %v282
  %v288 = vmul.f32 %v153, %v282
  %v289 = vmul.f32 %v154, %v282
  %v290 = vmul.f32 %v155, %v282
  %v291 = vmul.f32 %v156, %v282
  %v292 = vmul.f32 %v157, %v282
  %v293 = vmul.f32 %v158, %v282
  %v294 = vmul.f32 %v159, %v282
  %v295 = vmul.f32 %v160, %v282
  %v296 = vmul.f32 %v161, %v282
  %v297 = vmul.f32 %v162, %v282
  %v298 = vmul.f32 %v163, %v282
  %v299 = vmul.f32 %v164, %v282
  %v300 = vmul.f32 %v165, %v282
  %v301 = vmul.f32 %v166, %v282
  %v302 = vmul.f32 %v167, %v282
  %v303 = vmul.f32 %v168, %v282
  %v304 = vmul.f32 %v169, %v282
  %v305 = vmul.f32 %v170, %v282
  %v306 = vmul.f32 %v171, %v282
  %v307 = vmul.f32 %v172, %v282
  %v308 = vmul.f32 %v173, %v282
  %v309 = vmul.f32 %v174, %v282
  %v310 = vmul.f32 %v175, %v282
  %v311 = vmul.f32 %v176, %v282
  %v312 = vmul.f32 %v177, %v282
  %v313 = vmul.f32 %v178, %v282
  %v314 = vmul.f32 %v179, %v282
  %v315 = vmul.f32 %v180, %v282
  %v316 = vmul.f32 %v181, %v282
  %v317 = vmul.f32 %v182, %v282
  %v318 = vmul.f32 %v183, %v282
  %v319 = vmul.f32 %v184, %v282
  %v320 = vmul.f32 %v185, %v282
  %v321 = vmul.f32 %v186, %v282
  %v322 = vmul.f32 %v187, %v282
  %v323 = vmul.f32 %v188, %v282
  %v324 = vmul.f32 %v189, %v282
  %v325 = vmul.f32 %v190, %v282
  %v326 = vmul.f32 %v191, %v282
  %v327 = vmul.f32 %v192, %v282
  %v328 = vmul.f32 %v193, %v282
  %v329 = vmul.f32 %v194, %v282
  %v330 = vmul.f32 %v195, %v282
  %v331 = vmul.f32 %v196, %v282
  %v332 = vmul.f32 %v197, %v282
  %v333 = vmul.f32 %v198, %v282
  %v334 = vmul.f32 %v199, %v282
  %v335 = vmul.f32 %v200, %v282
  %v336 = vmul.f32 %v201, %v282
  %v337 = vmul.f32 %v202, %v282
  %v338 = vmul.f32 %v203, %v282
  %v339 = vmul.f32 %v204, %v282
  %v340 = vmul.f32 %v205, %v282
  %v341 = vmul.f32 %v206, %v282
  %v342 = vmul.f32 %v207, %v282
  %v343 = vmul.f32 %v208, %v282
  %v344 = vmul.f32 %v209, %v282
  %v345 = vmul.f32 %v210, %v282
  %v346 = vmul.f32 %v211, %v282
  %v347 = vmul.f32 %v212, %v282
  %v348 = vmul.f32 %v213, %v282
  %v349 = vmul.f32 %v214, %v282
  %v350 = vmul.f32 %v215, %v282
  %v351 = vmul.f32 %v216, %v282
  %v352 = vmul.f32 %v217, %v282
  %v353 = vmul.f32 %v218, %v282
  %v354 = vmul.f32 %v219, %v282
  %v355 = vmul.f32 %v220, %v282
  %v356 = vmul.f32 %v221, %v282
  %v357 = vmul.f32 %v222, %v282
  %v358 = vmul.f32 %v223, %v282
  %v359 = vmul.f32 %v224, %v282
  %v360 = vmul.f32 %v225, %v282
  %v361 = vmul.f32 %v226, %v282
  %v362 = vmul.f32 %v227, %v282
  %v363 = vmul.f32 %v228, %v282
  %v364 = vmul.f32 %v229, %v282
  %v365 = vmul.f32 %v230, %v282
  %v366 = vmul.f32 %v231, %v282
  %v367 = vmul.f32 %v232, %v282
  %v368 = vmul.f32 %v233, %v282
  %v369 = vmul.f32 %v234, %v282
  %v370 = vmul.f32 %v235, %v282
  %v371 = vmul.f32 %v236, %v282
  %v372 = vmul.f32 %v237, %v282
  %v373 = vmul.f32 %v238, %v282
  %v374 = vmul.f32 %v239, %v282
  %v375 = vmul.f32 %v240, %v282
  %v376 = vmul.f32 %v241, %v282
  %v377 = vmul.f32 %v242, %v282
  %v378 = vmul.f32 %v243, %v282
  %v379 = vmul.f32 %v244, %v282
  %v380 = vmul.f32 %v245, %v282
  %v381 = vmul.f32 %v246, %v282
  %v382 = vmul.f32 %v247, %v282
  %v383 = vmul.f32 %v248, %v282
  %v384 = vmul.f32 %v249, %v282
  %v385 = vmul.f32 %v250, %v282
  %v386 = vmul.f32 %v251, %v282
  %v387 = vmul.f32 %v252, %v282
  %v388 = vmul.f32 %v253, %v282
  %v389 = vmul.f32 %v254, %v282
  %v390 = vmul.f32 %v255, %v282
  %v391 = vmul.f32 %v256, %v282
  %v392 = vmul.f32 %v257, %v282
  %v393 = vmul.f32 %v258, %v282
  %v394 = vmul.f32 %v259, %v282
  %v395 = vmul.f32 %v260, %v282
  %v396 = vmul.f32 %v261, %v282
  %v397 = vmul.f32 %v262, %v282
  %v398 = vmul.f32 %v263, %v282
  %v399 = vmul.f32 %v264, %v282
  %v400 = vmul.f32 %v265, %v282
  %v401 = vmul.f32 %v266, %v282
  %v402 = vmul.f32 %v267, %v282
  %v403 = vmul.f32 %v268, %v282
  %v404 = vmul.f32 %v269, %v282
  %v405 = vmul.f32 %v270, %v282
  %v406 = vmul.f32 %v271, %v282
  %v407 = vmul.f32 %v272, %v282
  %v408 = vmul.f32 %v273, %v282
  %v409 = vmul.f32 %v274, %v282
  %v410 = vmul.f32 %v275, %v282
  %v411 = vmul.f32 %v276, %v282
  %v412 = vld [vmem:[%s2] sm:$0x1]
  %v414 = vlaneseq
  %v415 = vshrl.u32 %v414, 7
  %v416 = vsub.s32 0, %v415
  %v417 = vrot.slane %v412, %v416
  %v419 = vadd.f32 %v284, %v417
  %v420 = vadd.f32 %v285, %v417
  %v421 = vadd.f32 %v286, %v417
  %v422 = vadd.f32 %v287, %v417
  %v423 = vadd.f32 %v288, %v417
  %v424 = vadd.f32 %v289, %v417
  %v425 = vadd.f32 %v290, %v417
  %v426 = vadd.f32 %v291, %v417
  %v427 = vadd.f32 %v292, %v417
  %v428 = vadd.f32 %v293, %v417
  %v429 = vadd.f32 %v294, %v417
  %v430 = vadd.f32 %v295, %v417
  %v431 = vadd.f32 %v296, %v417
  %v432 = vadd.f32 %v297, %v417
  %v433 = vadd.f32 %v298, %v417
  %v434 = vadd.f32 %v299, %v417
  %v435 = vadd.f32 %v300, %v417
  %v436 = vadd.f32 %v301, %v417
  %v437 = vadd.f32 %v302, %v417
  %v438 = vadd.f32 %v303, %v417
  %v439 = vadd.f32 %v304, %v417
  %v440 = vadd.f32 %v305, %v417
  %v441 = vadd.f32 %v306, %v417
  %v442 = vadd.f32 %v307, %v417
  %v443 = vadd.f32 %v308, %v417
  %v444 = vadd.f32 %v309, %v417
  %v445 = vadd.f32 %v310, %v417
  %v446 = vadd.f32 %v311, %v417
  %v447 = vadd.f32 %v312, %v417
  %v448 = vadd.f32 %v313, %v417
  %v449 = vadd.f32 %v314, %v417
  %v450 = vadd.f32 %v315, %v417
  %v451 = vadd.f32 %v316, %v417
  %v452 = vadd.f32 %v317, %v417
  %v453 = vadd.f32 %v318, %v417
  %v454 = vadd.f32 %v319, %v417
  %v455 = vadd.f32 %v320, %v417
  %v456 = vadd.f32 %v321, %v417
  %v457 = vadd.f32 %v322, %v417
  %v458 = vadd.f32 %v323, %v417
  %v459 = vadd.f32 %v324, %v417
  %v460 = vadd.f32 %v325, %v417
  %v461 = vadd.f32 %v326, %v417
  %v462 = vadd.f32 %v327, %v417
  %v463 = vadd.f32 %v328, %v417
  %v464 = vadd.f32 %v329, %v417
  %v465 = vadd.f32 %v330, %v417
  %v466 = vadd.f32 %v331, %v417
  %v467 = vadd.f32 %v332, %v417
  %v468 = vadd.f32 %v333, %v417
  %v469 = vadd.f32 %v334, %v417
  %v470 = vadd.f32 %v335, %v417
  %v471 = vadd.f32 %v336, %v417
  %v472 = vadd.f32 %v337, %v417
  %v473 = vadd.f32 %v338, %v417
  %v474 = vadd.f32 %v339, %v417
  %v475 = vadd.f32 %v340, %v417
  %v476 = vadd.f32 %v341, %v417
  %v477 = vadd.f32 %v342, %v417
  %v478 = vadd.f32 %v343, %v417
  %v479 = vadd.f32 %v344, %v417
  %v480 = vadd.f32 %v345, %v417
  %v481 = vadd.f32 %v346, %v417
  %v482 = vadd.f32 %v347, %v417
  %v483 = vadd.f32 %v348, %v417
  %v484 = vadd.f32 %v349, %v417
  %v485 = vadd.f32 %v350, %v417
  %v486 = vadd.f32 %v351, %v417
  %v487 = vadd.f32 %v352, %v417
  %v488 = vadd.f32 %v353, %v417
  %v489 = vadd.f32 %v354, %v417
  %v490 = vadd.f32 %v355, %v417
  %v491 = vadd.f32 %v356, %v417
  %v492 = vadd.f32 %v357, %v417
  %v493 = vadd.f32 %v358, %v417
  %v494 = vadd.f32 %v359, %v417
  %v495 = vadd.f32 %v360, %v417
  %v496 = vadd.f32 %v361, %v417
  %v497 = vadd.f32 %v362, %v417
  %v498 = vadd.f32 %v363, %v417
  %v499 = vadd.f32 %v364, %v417
  %v500 = vadd.f32 %v365, %v417
  %v501 = vadd.f32 %v366, %v417
  %v502 = vadd.f32 %v367, %v417
  %v503 = vadd.f32 %v368, %v417
  %v504 = vadd.f32 %v369, %v417
  %v505 = vadd.f32 %v370, %v417
  %v506 = vadd.f32 %v371, %v417
  %v507 = vadd.f32 %v372, %v417
  %v508 = vadd.f32 %v373, %v417
  %v509 = vadd.f32 %v374, %v417
  %v510 = vadd.f32 %v375, %v417
  %v511 = vadd.f32 %v376, %v417
  %v512 = vadd.f32 %v377, %v417
  %v513 = vadd.f32 %v378, %v417
  %v514 = vadd.f32 %v379, %v417
  %v515 = vadd.f32 %v380, %v417
  %v516 = vadd.f32 %v381, %v417
  %v517 = vadd.f32 %v382, %v417
  %v518 = vadd.f32 %v383, %v417
  %v519 = vadd.f32 %v384, %v417
  %v520 = vadd.f32 %v385, %v417
  %v521 = vadd.f32 %v386, %v417
  %v522 = vadd.f32 %v387, %v417
  %v523 = vadd.f32 %v388, %v417
  %v524 = vadd.f32 %v389, %v417
  %v525 = vadd.f32 %v390, %v417
  %v526 = vadd.f32 %v391, %v417
  %v527 = vadd.f32 %v392, %v417
  %v528 = vadd.f32 %v393, %v417
  %v529 = vadd.f32 %v394, %v417
  %v530 = vadd.f32 %v395, %v417
  %v531 = vadd.f32 %v396, %v417
  %v532 = vadd.f32 %v397, %v417
  %v533 = vadd.f32 %v398, %v417
  %v534 = vadd.f32 %v399, %v417
  %v535 = vadd.f32 %v400, %v417
  %v536 = vadd.f32 %v401, %v417
  %v537 = vadd.f32 %v402, %v417
  %v538 = vadd.f32 %v403, %v417
  %v539 = vadd.f32 %v404, %v417
  %v540 = vadd.f32 %v405, %v417
  %v541 = vadd.f32 %v406, %v417
  %v542 = vadd.f32 %v407, %v417
  %v543 = vadd.f32 %v408, %v417
  %v544 = vadd.f32 %v409, %v417
  %v545 = vadd.f32 %v410, %v417
  %v546 = vadd.f32 %v411, %v417
  %v547 = vmax.f32 %v419, 0.0
  %v548 = vmax.f32 %v420, 0.0
  %v549 = vmax.f32 %v421, 0.0
  %v550 = vmax.f32 %v422, 0.0
  %v551 = vmax.f32 %v423, 0.0
  %v552 = vmax.f32 %v424, 0.0
  %v553 = vmax.f32 %v425, 0.0
  %v554 = vmax.f32 %v426, 0.0
  %v555 = vmax.f32 %v427, 0.0
  %v556 = vmax.f32 %v428, 0.0
  %v557 = vmax.f32 %v429, 0.0
  %v558 = vmax.f32 %v430, 0.0
  %v559 = vmax.f32 %v431, 0.0
  %v560 = vmax.f32 %v432, 0.0
  %v561 = vmax.f32 %v433, 0.0
  %v562 = vmax.f32 %v434, 0.0
  %v563 = vmax.f32 %v435, 0.0
  %v564 = vmax.f32 %v436, 0.0
  %v565 = vmax.f32 %v437, 0.0
  %v566 = vmax.f32 %v438, 0.0
  %v567 = vmax.f32 %v439, 0.0
  %v568 = vmax.f32 %v440, 0.0
  %v569 = vmax.f32 %v441, 0.0
  %v570 = vmax.f32 %v442, 0.0
  %v571 = vmax.f32 %v443, 0.0
  %v572 = vmax.f32 %v444, 0.0
  %v573 = vmax.f32 %v445, 0.0
  %v574 = vmax.f32 %v446, 0.0
  %v575 = vmax.f32 %v447, 0.0
  %v576 = vmax.f32 %v448, 0.0
  %v577 = vmax.f32 %v449, 0.0
  %v578 = vmax.f32 %v450, 0.0
  %v579 = vmax.f32 %v451, 0.0
  %v580 = vmax.f32 %v452, 0.0
  %v581 = vmax.f32 %v453, 0.0
  %v582 = vmax.f32 %v454, 0.0
  %v583 = vmax.f32 %v455, 0.0
  %v584 = vmax.f32 %v456, 0.0
  %v585 = vmax.f32 %v457, 0.0
  %v586 = vmax.f32 %v458, 0.0
  %v587 = vmax.f32 %v459, 0.0
  %v588 = vmax.f32 %v460, 0.0
  %v589 = vmax.f32 %v461, 0.0
  %v590 = vmax.f32 %v462, 0.0
  %v591 = vmax.f32 %v463, 0.0
  %v592 = vmax.f32 %v464, 0.0
  %v593 = vmax.f32 %v465, 0.0
  %v594 = vmax.f32 %v466, 0.0
  %v595 = vmax.f32 %v467, 0.0
  %v596 = vmax.f32 %v468, 0.0
  %v597 = vmax.f32 %v469, 0.0
  %v598 = vmax.f32 %v470, 0.0
  %v599 = vmax.f32 %v471, 0.0
  %v600 = vmax.f32 %v472, 0.0
  %v601 = vmax.f32 %v473, 0.0
  %v602 = vmax.f32 %v474, 0.0
  %v603 = vmax.f32 %v475, 0.0
  %v604 = vmax.f32 %v476, 0.0
  %v605 = vmax.f32 %v477, 0.0
  %v606 = vmax.f32 %v478, 0.0
  %v607 = vmax.f32 %v479, 0.0
  %v608 = vmax.f32 %v480, 0.0
  %v609 = vmax.f32 %v481, 0.0
  %v610 = vmax.f32 %v482, 0.0
  %v611 = vmax.f32 %v483, 0.0
  %v612 = vmax.f32 %v484, 0.0
  %v613 = vmax.f32 %v485, 0.0
  %v614 = vmax.f32 %v486, 0.0
  %v615 = vmax.f32 %v487, 0.0
  %v616 = vmax.f32 %v488, 0.0
  %v617 = vmax.f32 %v489, 0.0
  %v618 = vmax.f32 %v490, 0.0
  %v619 = vmax.f32 %v491, 0.0
  %v620 = vmax.f32 %v492, 0.0
  %v621 = vmax.f32 %v493, 0.0
  %v622 = vmax.f32 %v494, 0.0
  %v623 = vmax.f32 %v495, 0.0
  %v624 = vmax.f32 %v496, 0.0
  %v625 = vmax.f32 %v497, 0.0
  %v626 = vmax.f32 %v498, 0.0
  %v627 = vmax.f32 %v499, 0.0
  %v628 = vmax.f32 %v500, 0.0
  %v629 = vmax.f32 %v501, 0.0
  %v630 = vmax.f32 %v502, 0.0
  %v631 = vmax.f32 %v503, 0.0
  %v632 = vmax.f32 %v504, 0.0
  %v633 = vmax.f32 %v505, 0.0
  %v634 = vmax.f32 %v506, 0.0
  %v635 = vmax.f32 %v507, 0.0
  %v636 = vmax.f32 %v508, 0.0
  %v637 = vmax.f32 %v509, 0.0
  %v638 = vmax.f32 %v510, 0.0
  %v639 = vmax.f32 %v511, 0.0
  %v640 = vmax.f32 %v512, 0.0
  %v641 = vmax.f32 %v513, 0.0
  %v642 = vmax.f32 %v514, 0.0
  %v643 = vmax.f32 %v515, 0.0
  %v644 = vmax.f32 %v516, 0.0
  %v645 = vmax.f32 %v517, 0.0
  %v646 = vmax.f32 %v518, 0.0
  %v647 = vmax.f32 %v519, 0.0
  %v648 = vmax.f32 %v520, 0.0
  %v649 = vmax.f32 %v521, 0.0
  %v650 = vmax.f32 %v522, 0.0
  %v651 = vmax.f32 %v523, 0.0
  %v652 = vmax.f32 %v524, 0.0
  %v653 = vmax.f32 %v525, 0.0
  %v654 = vmax.f32 %v526, 0.0
  %v655 = vmax.f32 %v527, 0.0
  %v656 = vmax.f32 %v528, 0.0
  %v657 = vmax.f32 %v529, 0.0
  %v658 = vmax.f32 %v530, 0.0
  %v659 = vmax.f32 %v531, 0.0
  %v660 = vmax.f32 %v532, 0.0
  %v661 = vmax.f32 %v533, 0.0
  %v662 = vmax.f32 %v534, 0.0
  %v663 = vmax.f32 %v535, 0.0
  %v664 = vmax.f32 %v536, 0.0
  %v665 = vmax.f32 %v537, 0.0
  %v666 = vmax.f32 %v538, 0.0
  %v667 = vmax.f32 %v539, 0.0
  %v668 = vmax.f32 %v540, 0.0
  %v669 = vmax.f32 %v541, 0.0
  %v670 = vmax.f32 %v542, 0.0
  %v671 = vmax.f32 %v543, 0.0
  %v672 = vmax.f32 %v544, 0.0
  %v673 = vmax.f32 %v545, 0.0
  %v674 = vmax.f32 %v546, 0.0
  %v675 = vpack.c.bf16 %v548, %v547
  %v676 = vpack.c.bf16 %v550, %v549
  %v677 = vpack.c.bf16 %v552, %v551
  %v678 = vpack.c.bf16 %v554, %v553
  %v679 = vpack.c.bf16 %v556, %v555
  %v680 = vpack.c.bf16 %v558, %v557
  %v681 = vpack.c.bf16 %v560, %v559
  %v682 = vpack.c.bf16 %v562, %v561
  %v683 = vpack.c.bf16 %v564, %v563
  %v684 = vpack.c.bf16 %v566, %v565
  %v685 = vpack.c.bf16 %v568, %v567
  %v686 = vpack.c.bf16 %v570, %v569
  %v687 = vpack.c.bf16 %v572, %v571
  %v688 = vpack.c.bf16 %v574, %v573
  %v689 = vpack.c.bf16 %v576, %v575
  %v690 = vpack.c.bf16 %v578, %v577
  %v691 = vpack.c.bf16 %v580, %v579
  %v692 = vpack.c.bf16 %v582, %v581
  %v693 = vpack.c.bf16 %v584, %v583
  %v694 = vpack.c.bf16 %v586, %v585
  %v695 = vpack.c.bf16 %v588, %v587
  %v696 = vpack.c.bf16 %v590, %v589
  %v697 = vpack.c.bf16 %v592, %v591
  %v698 = vpack.c.bf16 %v594, %v593
  %v699 = vpack.c.bf16 %v596, %v595
  %v700 = vpack.c.bf16 %v598, %v597
  %v701 = vpack.c.bf16 %v600, %v599
  %v702 = vpack.c.bf16 %v602, %v601
  %v703 = vpack.c.bf16 %v604, %v603
  %v704 = vpack.c.bf16 %v606, %v605
  %v705 = vpack.c.bf16 %v608, %v607
  %v706 = vpack.c.bf16 %v610, %v609
  %v707 = vpack.c.bf16 %v612, %v611
  %v708 = vpack.c.bf16 %v614, %v613
  %v709 = vpack.c.bf16 %v616, %v615
  %v710 = vpack.c.bf16 %v618, %v617
  %v711 = vpack.c.bf16 %v620, %v619
  %v712 = vpack.c.bf16 %v622, %v621
  %v713 = vpack.c.bf16 %v624, %v623
  %v714 = vpack.c.bf16 %v626, %v625
  %v715 = vpack.c.bf16 %v628, %v627
  %v716 = vpack.c.bf16 %v630, %v629
  %v717 = vpack.c.bf16 %v632, %v631
  %v718 = vpack.c.bf16 %v634, %v633
  %v719 = vpack.c.bf16 %v636, %v635
  %v720 = vpack.c.bf16 %v638, %v637
  %v721 = vpack.c.bf16 %v640, %v639
  %v722 = vpack.c.bf16 %v642, %v641
  %v723 = vpack.c.bf16 %v644, %v643
  %v724 = vpack.c.bf16 %v646, %v645
  %v725 = vpack.c.bf16 %v648, %v647
  %v726 = vpack.c.bf16 %v650, %v649
  %v727 = vpack.c.bf16 %v652, %v651
  %v728 = vpack.c.bf16 %v654, %v653
  %v729 = vpack.c.bf16 %v656, %v655
  %v730 = vpack.c.bf16 %v658, %v657
  %v731 = vpack.c.bf16 %v660, %v659
  %v732 = vpack.c.bf16 %v662, %v661
  %v733 = vpack.c.bf16 %v664, %v663
  %v734 = vpack.c.bf16 %v666, %v665
  %v735 = vpack.c.bf16 %v668, %v667
  %v736 = vpack.c.bf16 %v670, %v669
  %v737 = vpack.c.bf16 %v672, %v671
  %v738 = vpack.c.bf16 %v674, %v673
  %v739 = vld [vmem:[%s3] sm:$0xf]
  %v740 = vld [vmem:[%s3 + $0x4] sm:$0xf]
  %v741 = vld [vmem:[%s3 + $0x8] sm:$0xf]
  %v742 = vld [vmem:[%s3 + $0xc] sm:$0xf]
  %v743 = vld [vmem:[%s3 + $0x10] sm:$0xf]
  %v744 = vld [vmem:[%s3 + $0x14] sm:$0xf]
  %v745 = vld [vmem:[%s3 + $0x18] sm:$0xf]
  %v746 = vld [vmem:[%s3 + $0x1c] sm:$0xf]
  %v747 = vld [vmem:[%s3 + $0x20] sm:$0xf]
  %v748 = vld [vmem:[%s3 + $0x24] sm:$0xf]
  %v749 = vld [vmem:[%s3 + $0x28] sm:$0xf]
  %v750 = vld [vmem:[%s3 + $0x2c] sm:$0xf]
  %v751 = vld [vmem:[%s3 + $0x30] sm:$0xf]
  %v752 = vld [vmem:[%s3 + $0x34] sm:$0xf]
  %v753 = vld [vmem:[%s3 + $0x38] sm:$0xf]
  %v754 = vld [vmem:[%s3 + $0x3c] sm:$0xf]
  %v755 = vld [vmem:[%s4] sm:$0x1]
  %v757 = vlaneseq
  %v758 = vshrl.u32 %v757, 7
  %v759 = vsub.s32 0, %v758
  %v760 = vrot.slane %v755, %v759
  %v778 = vunpack.c.l.b16 %v739
  %v779 = vunpack.c.l.b16 %v740
  %v780 = vunpack.c.l.b16 %v741
  %v781 = vunpack.c.l.b16 %v742
  %v782 = vunpack.c.l.b16 %v743
  %v783 = vunpack.c.l.b16 %v744
  %v784 = vunpack.c.l.b16 %v745
  %v785 = vunpack.c.l.b16 %v746
  %v786 = vunpack.c.l.b16 %v747
  %v787 = vunpack.c.l.b16 %v748
  %v788 = vunpack.c.l.b16 %v749
  %v789 = vunpack.c.l.b16 %v750
  %v790 = vunpack.c.l.b16 %v751
  %v791 = vunpack.c.l.b16 %v752
  %v792 = vunpack.c.l.b16 %v753
  %v793 = vunpack.c.l.b16 %v754
  %v794 = vpack.c.b16 %v779, %v778
  %v795 = vpack.c.b16 %v781, %v780
  %v796 = vpack.c.b16 %v783, %v782
  %v797 = vpack.c.b16 %v785, %v784
  %v798 = vpack.c.b16 %v787, %v786
  %v799 = vpack.c.b16 %v789, %v788
  %v800 = vpack.c.b16 %v791, %v790
  %v801 = vpack.c.b16 %v793, %v792
  %810 = vmatprep.subr.bf16.mxu0 0
  %811 = vmatpush1.bf16.msra.mxu0 %v794
  %812 = vmatprep.subr.bf16.mxu0 0
  %813 = vmatpush1.bf16.msra.mxu0 %v795
  %814 = vmatprep.subr.bf16.mxu0 0
  %815 = vmatpush1.bf16.msra.mxu0 %v796
  %816 = vmatprep.subr.bf16.mxu0 0
  %817 = vmatpush1.bf16.msra.mxu0 %v797
  %818 = vmatprep.subr.bf16.mxu0 0
  %819 = vmatpush1.bf16.msra.mxu0 %v798
  %820 = vmatprep.subr.bf16.mxu0 0
  %821 = vmatpush1.bf16.msra.mxu0 %v799
  %822 = vmatprep.subr.bf16.mxu0 0
  %823 = vmatpush1.bf16.msra.mxu0 %v800
  %824 = vmatprep.subr.bf16.mxu0 0
  %825 = vmatpush1.bf16.msra.mxu0 %v801
  %826 = vmatprep.subr.bf16.mxu0 0
  %827 = vmatpush1.bf16.msra.mxu0 0
  %828 = vmatprep.subr.bf16.mxu0 0
  %829 = vmatpush1.bf16.msra.mxu0 0
  %830 = vmatprep.subr.bf16.mxu0 0
  %831 = vmatpush1.bf16.msra.mxu0 0
  %832 = vmatprep.subr.bf16.mxu0 0
  %833 = vmatpush1.bf16.msra.mxu0 0
  %834 = vmatprep.subr.bf16.mxu0 0
  %835 = vmatpush1.bf16.msra.mxu0 0
  %836 = vmatprep.subr.bf16.mxu0 0
  %837 = vmatpush1.bf16.msra.mxu0 0
  %838 = vmatprep.subr.bf16.mxu0 0
  %839 = vmatpush1.bf16.msra.mxu0 0
  %840 = vmatprep.subr.bf16.mxu0 0
  %841 = vmatpush1.bf16.msra.mxu0 0
  %842 = vmatprep.mubr.bf16.mxu0 0
  %843 = vmatmul.mubr.bf16.gmra.mrb[0].mxu0 %v675
  %v844 = vpop.f32.mrb[0].mxu0
  %v845 = vadd.f32 %v760, %v844
  %v846 = vpop.f32.mrb[0].mxu0
  %v847 = vpop.f32.mrb[0].mxu0
  %v848 = vadd.f32 %v760, %v847
  %v849 = vpop.f32.mrb[0].mxu0
  %850 = vmatprep.mubr.bf16.mxu0 0
  %851 = vmatmul.mubr.bf16.gmra.mrb[0].mxu0 %v676
  %v852 = vpop.f32.mrb[0].mxu0
  %v853 = vadd.f32 %v760, %v852
  %v854 = vpop.f32.mrb[0].mxu0
  %v855 = vpop.f32.mrb[0].mxu0
  %v856 = vadd.f32 %v760, %v855
  %v857 = vpop.f32.mrb[0].mxu0
  %858 = vmatprep.mubr.bf16.mxu0 0
  %859 = vmatmul.mubr.bf16.gmra.mrb[0].mxu0 %v677
  %v860 = vpop.f32.mrb[0].mxu0
  %v861 = vadd.f32 %v760, %v860
  %v862 = vpop.f32.mrb[0].mxu0
  %v863 = vpop.f32.mrb[0].mxu0
  %v864 = vadd.f32 %v760, %v863
  %v865 = vpop.f32.mrb[0].mxu0
  %866 = vmatprep.mubr.bf16.mxu0 0
  %867 = vmatmul.mubr.bf16.gmra.mrb[0].mxu0 %v678
  %v868 = vpop.f32.mrb[0].mxu0
  %v869 = vadd.f32 %v760, %v868
  %v870 = vpop.f32.mrb[0].mxu0
  %v871 = vpop.f32.mrb[0].mxu0
  %v872 = vadd.f32 %v760, %v871
  %v873 = vpop.f32.mrb[0].mxu0
  %874 = vmatprep.mubr.bf16.mxu0 0
  %875 = vmatmul.mubr.bf16.gmra.mrb[0].mxu0 %v679
  %v876 = vpop.f32.mrb[0].mxu0
  %v877 = vadd.f32 %v760, %v876
  %v878 = vpop.f32.mrb[0].mxu0
  %v879 = vpop.f32.mrb[0].mxu0
  %v880 = vadd.f32 %v760, %v879
  %v881 = vpop.f32.mrb[0].mxu0
  %882 = vmatprep.mubr.bf16.mxu0 0
  %883 = vmatmul.mubr.bf16.gmra.mrb[0].mxu0 %v680
  %v884 = vpop.f32.mrb[0].mxu0
  %v885 = vadd.f32 %v760, %v884
  %v886 = vpop.f32.mrb[0].mxu0
  %v887 = vpop.f32.mrb[0].mxu0
  %v888 = vadd.f32 %v760, %v887
  %v889 = vpop.f32.mrb[0].mxu0
  %890 = vmatprep.mubr.bf16.mxu0 0
  %891 = vmatmul.mubr.bf16.gmra.mrb[0].mxu0 %v681
  %v892 = vpop.f32.mrb[0].mxu0
  %v893 = vadd.f32 %v760, %v892
  %v894 = vpop.f32.mrb[0].mxu0
  %v895 = vpop.f32.mrb[0].mxu0
  %v896 = vadd.f32 %v760, %v895
  %v897 = vpop.f32.mrb[0].mxu0
  %898 = vmatprep.mubr.bf16.mxu0 0
  %899 = vmatmul.mubr.bf16.gmra.mrb[0].mxu0 %v682
  %v900 = vpop.f32.mrb[0].mxu0
  %v901 = vadd.f32 %v760, %v900
  %v902 = vpop.f32.mrb[0].mxu0
  %v903 = vpop.f32.mrb[0].mxu0
  %v904 = vadd.f32 %v760, %v903
  %v905 = vpop.f32.mrb[0].mxu0
  %906 = vmatprep.mubr.bf16.mxu0 0
  %907 = vmatmul.mubr.bf16.gmra.mrb[0].mxu0 %v683
  %v908 = vpop.f32.mrb[0].mxu0
  %v909 = vadd.f32 %v760, %v908
  %v910 = vpop.f32.mrb[0].mxu0
  %v911 = vpop.f32.mrb[0].mxu0
  %v912 = vadd.f32 %v760, %v911
  %v913 = vpop.f32.mrb[0].mxu0
  %914 = vmatprep.mubr.bf16.mxu0 0
  %915 = vmatmul.mubr.bf16.gmra.mrb[0].mxu0 %v684
  %v916 = vpop.f32.mrb[0].mxu0
  %v917 = vadd.f32 %v760, %v916
  %v918 = vpop.f32.mrb[0].mxu0
  %v919 = vpop.f32.mrb[0].mxu0
  %v920 = vadd.f32 %v760, %v919
  %v921 = vpop.f32.mrb[0].mxu0
  %922 = vmatprep.mubr.bf16.mxu0 0
  %923 = vmatmul.mubr.bf16.gmra.mrb[0].mxu0 %v685
  %v924 = vpop.f32.mrb[0].mxu0
  %v925 = vadd.f32 %v760, %v924
  %v926 = vpop.f32.mrb[0].mxu0
  %v927 = vpop.f32.mrb[0].mxu0
  %v928 = vadd.f32 %v760, %v927
  %v929 = vpop.f32.mrb[0].mxu0
  %930 = vmatprep.mubr.bf16.mxu0 0
  %931 = vmatmul.mubr.bf16.gmra.mrb[0].mxu0 %v686
  %v932 = vpop.f32.mrb[0].mxu0
  %v933 = vadd.f32 %v760, %v932
  %v934 = vpop.f32.mrb[0].mxu0
  %v935 = vpop.f32.mrb[0].mxu0
  %v936 = vadd.f32 %v760, %v935
  %v937 = vpop.f32.mrb[0].mxu0
  %938 = vmatprep.mubr.bf16.mxu0 0
  %939 = vmatmul.mubr.bf16.gmra.mrb[0].mxu0 %v687
  %v940 = vpop.f32.mrb[0].mxu0
  %v941 = vadd.f32 %v760, %v940
  %v942 = vpop.f32.mrb[0].mxu0
  %v943 = vpop.f32.mrb[0].mxu0
  %v944 = vadd.f32 %v760, %v943
  %v945 = vpop.f32.mrb[0].mxu0
  %946 = vmatprep.mubr.bf16.mxu0 0
  %947 = vmatmul.mubr.bf16.gmra.mrb[0].mxu0 %v688
  %v948 = vpop.f32.mrb[0].mxu0
  %v949 = vadd.f32 %v760, %v948
  %v950 = vpop.f32.mrb[0].mxu0
  %v951 = vpop.f32.mrb[0].mxu0
  %v952 = vadd.f32 %v760, %v951
  %v953 = vpop.f32.mrb[0].mxu0
  %954 = vmatprep.mubr.bf16.mxu0 0
  %955 = vmatmul.mubr.bf16.gmra.mrb[0].mxu0 %v689
  %v956 = vpop.f32.mrb[0].mxu0
  %v957 = vadd.f32 %v760, %v956
  %v958 = vpop.f32.mrb[0].mxu0
  %v959 = vpop.f32.mrb[0].mxu0
  %v960 = vadd.f32 %v760, %v959
  %v961 = vpop.f32.mrb[0].mxu0
  %962 = vmatprep.mubr.bf16.mxu0 0
  %963 = vmatmul.mubr.bf16.gmra.mrb[0].mxu0 %v690
  %v964 = vpop.f32.mrb[0].mxu0
  %v965 = vadd.f32 %v760, %v964
  %v966 = vpop.f32.mrb[0].mxu0
  %v967 = vpop.f32.mrb[0].mxu0
  %v968 = vadd.f32 %v760, %v967
  %v969 = vpop.f32.mrb[0].mxu0
  %970 = vmatprep.mubr.bf16.mxu0 0
  %971 = vmatmul.mubr.bf16.gmra.mrb[0].mxu0 %v691
  %v972 = vpop.f32.mrb[0].mxu0
  %v973 = vadd.f32 %v760, %v972
  %v974 = vpop.f32.mrb[0].mxu0
  %v975 = vpop.f32.mrb[0].mxu0
  %v976 = vadd.f32 %v760, %v975
  %v977 = vpop.f32.mrb[0].mxu0
  %978 = vmatprep.mubr.bf16.mxu0 0
  %979 = vmatmul.mubr.bf16.gmra.mrb[0].mxu0 %v692
  %v980 = vpop.f32.mrb[0].mxu0
  %v981 = vadd.f32 %v760, %v980
  %v982 = vpop.f32.mrb[0].mxu0
  %v983 = vpop.f32.mrb[0].mxu0
  %v984 = vadd.f32 %v760, %v983
  %v985 = vpop.f32.mrb[0].mxu0
  %986 = vmatprep.mubr.bf16.mxu0 0
  %987 = vmatmul.mubr.bf16.gmra.mrb[0].mxu0 %v693
  %v988 = vpop.f32.mrb[0].mxu0
  %v989 = vadd.f32 %v760, %v988
  %v990 = vpop.f32.mrb[0].mxu0
  %v991 = vpop.f32.mrb[0].mxu0
  %v992 = vadd.f32 %v760, %v991
  %v993 = vpop.f32.mrb[0].mxu0
  %994 = vmatprep.mubr.bf16.mxu0 0
  %995 = vmatmul.mubr.bf16.gmra.mrb[0].mxu0 %v694
  %v996 = vpop.f32.mrb[0].mxu0
  %v997 = vadd.f32 %v760, %v996
  %v998 = vpop.f32.mrb[0].mxu0
  %v999 = vpop.f32.mrb[0].mxu0
  %v1000 = vadd.f32 %v760, %v999
  %v1001 = vpop.f32.mrb[0].mxu0
  %1002 = vmatprep.mubr.bf16.mxu0 0
  %1003 = vmatmul.mubr.bf16.gmra.mrb[0].mxu0 %v695
  %v1004 = vpop.f32.mrb[0].mxu0
  %v1005 = vadd.f32 %v760, %v1004
  %v1006 = vpop.f32.mrb[0].mxu0
  %v1007 = vpop.f32.mrb[0].mxu0
  %v1008 = vadd.f32 %v760, %v1007
  %v1009 = vpop.f32.mrb[0].mxu0
  %1010 = vmatprep.mubr.bf16.mxu0 0
  %1011 = vmatmul.mubr.bf16.gmra.mrb[0].mxu0 %v696
  %v1012 = vpop.f32.mrb[0].mxu0
  %v1013 = vadd.f32 %v760, %v1012
  %v1014 = vpop.f32.mrb[0].mxu0
  %v1015 = vpop.f32.mrb[0].mxu0
  %v1016 = vadd.f32 %v760, %v1015
  %v1017 = vpop.f32.mrb[0].mxu0
  %1018 = vmatprep.mubr.bf16.mxu0 0
  %1019 = vmatmul.mubr.bf16.gmra.mrb[0].mxu0 %v697
  %v1020 = vpop.f32.mrb[0].mxu0
  %v1021 = vadd.f32 %v760, %v1020
  %v1022 = vpop.f32.mrb[0].mxu0
  %v1023 = vpop.f32.mrb[0].mxu0
  %v1024 = vadd.f32 %v760, %v1023
  %v1025 = vpop.f32.mrb[0].mxu0
  %1026 = vmatprep.mubr.bf16.mxu0 0
  %1027 = vmatmul.mubr.bf16.gmra.mrb[0].mxu0 %v698
  %v1028 = vpop.f32.mrb[0].mxu0
  %v1029 = vadd.f32 %v760, %v1028
  %v1030 = vpop.f32.mrb[0].mxu0
  %v1031 = vpop.f32.mrb[0].mxu0
  %v1032 = vadd.f32 %v760, %v1031
  %v1033 = vpop.f32.mrb[0].mxu0
  %1034 = vmatprep.mubr.bf16.mxu0 0
  %1035 = vmatmul.mubr.bf16.gmra.mrb[0].mxu0 %v699
  %v1036 = vpop.f32.mrb[0].mxu0
  %v1037 = vadd.f32 %v760, %v1036
  %v1038 = vpop.f32.mrb[0].mxu0
  %v1039 = vpop.f32.mrb[0].mxu0
  %v1040 = vadd.f32 %v760, %v1039
  %v1041 = vpop.f32.mrb[0].mxu0
  %1042 = vmatprep.mubr.bf16.mxu0 0
  %1043 = vmatmul.mubr.bf16.gmra.mrb[0].mxu0 %v700
  %v1044 = vpop.f32.mrb[0].mxu0
  %v1045 = vadd.f32 %v760, %v1044
  %v1046 = vpop.f32.mrb[0].mxu0
  %v1047 = vpop.f32.mrb[0].mxu0
  %v1048 = vadd.f32 %v760, %v1047
  %v1049 = vpop.f32.mrb[0].mxu0
  %1050 = vmatprep.mubr.bf16.mxu0 0
  %1051 = vmatmul.mubr.bf16.gmra.mrb[0].mxu0 %v701
  %v1052 = vpop.f32.mrb[0].mxu0
  %v1053 = vadd.f32 %v760, %v1052
  %v1054 = vpop.f32.mrb[0].mxu0
  %v1055 = vpop.f32.mrb[0].mxu0
  %v1056 = vadd.f32 %v760, %v1055
  %v1057 = vpop.f32.mrb[0].mxu0
  %1058 = vmatprep.mubr.bf16.mxu0 0
  %1059 = vmatmul.mubr.bf16.gmra.mrb[0].mxu0 %v702
  %v1060 = vpop.f32.mrb[0].mxu0
  %v1061 = vadd.f32 %v760, %v1060
  %v1062 = vpop.f32.mrb[0].mxu0
  %v1063 = vpop.f32.mrb[0].mxu0
  %v1064 = vadd.f32 %v760, %v1063
  %v1065 = vpop.f32.mrb[0].mxu0
  %1066 = vmatprep.mubr.bf16.mxu0 0
  %1067 = vmatmul.mubr.bf16.gmra.mrb[0].mxu0 %v703
  %v1068 = vpop.f32.mrb[0].mxu0
  %v1069 = vadd.f32 %v760, %v1068
  %v1070 = vpop.f32.mrb[0].mxu0
  %v1071 = vpop.f32.mrb[0].mxu0
  %v1072 = vadd.f32 %v760, %v1071
  %v1073 = vpop.f32.mrb[0].mxu0
  %1074 = vmatprep.mubr.bf16.mxu0 0
  %1075 = vmatmul.mubr.bf16.gmra.mrb[0].mxu0 %v704
  %v1076 = vpop.f32.mrb[0].mxu0
  %v1077 = vadd.f32 %v760, %v1076
  %v1078 = vpop.f32.mrb[0].mxu0
  %v1079 = vpop.f32.mrb[0].mxu0
  %v1080 = vadd.f32 %v760, %v1079
  %v1081 = vpop.f32.mrb[0].mxu0
  %1082 = vmatprep.mubr.bf16.mxu0 0
  %1083 = vmatmul.mubr.bf16.gmra.mrb[0].mxu0 %v705
  %v1084 = vpop.f32.mrb[0].mxu0
  %v1085 = vadd.f32 %v760, %v1084
  %v1086 = vpop.f32.mrb[0].mxu0
  %v1087 = vpop.f32.mrb[0].mxu0
  %v1088 = vadd.f32 %v760, %v1087
  %v1089 = vpop.f32.mrb[0].mxu0
  %1090 = vmatprep.mubr.bf16.mxu0 0
  %1091 = vmatmul.mubr.bf16.gmra.mrb[0].mxu0 %v706
  %v1092 = vpop.f32.mrb[0].mxu0
  %v1093 = vadd.f32 %v760, %v1092
  %v1094 = vpop.f32.mrb[0].mxu0
  %v1095 = vpop.f32.mrb[0].mxu0
  %v1096 = vadd.f32 %v760, %v1095
  %v1097 = vpop.f32.mrb[0].mxu0
  %1098 = vmatprep.mubr.bf16.mxu0 0
  %1099 = vmatmul.mubr.bf16.gmra.mrb[0].mxu0 %v707
  %v1100 = vpop.f32.mrb[0].mxu0
  %v1101 = vadd.f32 %v760, %v1100
  %v1102 = vpop.f32.mrb[0].mxu0
  %v1103 = vpop.f32.mrb[0].mxu0
  %v1104 = vadd.f32 %v760, %v1103
  %v1105 = vpop.f32.mrb[0].mxu0
  %1106 = vmatprep.mubr.bf16.mxu0 0
  %1107 = vmatmul.mubr.bf16.gmra.mrb[0].mxu0 %v708
  %v1108 = vpop.f32.mrb[0].mxu0
  %v1109 = vadd.f32 %v760, %v1108
  %v1110 = vpop.f32.mrb[0].mxu0
  %v1111 = vpop.f32.mrb[0].mxu0
  %v1112 = vadd.f32 %v760, %v1111
  %v1113 = vpop.f32.mrb[0].mxu0
  %1114 = vmatprep.mubr.bf16.mxu0 0
  %1115 = vmatmul.mubr.bf16.gmra.mrb[0].mxu0 %v709
  %v1116 = vpop.f32.mrb[0].mxu0
  %v1117 = vadd.f32 %v760, %v1116
  %v1118 = vpop.f32.mrb[0].mxu0
  %v1119 = vpop.f32.mrb[0].mxu0
  %v1120 = vadd.f32 %v760, %v1119
  %v1121 = vpop.f32.mrb[0].mxu0
  %1122 = vmatprep.mubr.bf16.mxu0 0
  %1123 = vmatmul.mubr.bf16.gmra.mrb[0].mxu0 %v710
  %v1124 = vpop.f32.mrb[0].mxu0
  %v1125 = vadd.f32 %v760, %v1124
  %v1126 = vpop.f32.mrb[0].mxu0
  %v1127 = vpop.f32.mrb[0].mxu0
  %v1128 = vadd.f32 %v760, %v1127
  %v1129 = vpop.f32.mrb[0].mxu0
  %1130 = vmatprep.mubr.bf16.mxu0 0
  %1131 = vmatmul.mubr.bf16.gmra.mrb[0].mxu0 %v711
  %v1132 = vpop.f32.mrb[0].mxu0
  %v1133 = vadd.f32 %v760, %v1132
  %v1134 = vpop.f32.mrb[0].mxu0
  %v1135 = vpop.f32.mrb[0].mxu0
  %v1136 = vadd.f32 %v760, %v1135
  %v1137 = vpop.f32.mrb[0].mxu0
  %1138 = vmatprep.mubr.bf16.mxu0 0
  %1139 = vmatmul.mubr.bf16.gmra.mrb[0].mxu0 %v712
  %v1140 = vpop.f32.mrb[0].mxu0
  %v1141 = vadd.f32 %v760, %v1140
  %v1142 = vpop.f32.mrb[0].mxu0
  %v1143 = vpop.f32.mrb[0].mxu0
  %v1144 = vadd.f32 %v760, %v1143
  %v1145 = vpop.f32.mrb[0].mxu0
  %1146 = vmatprep.mubr.bf16.mxu0 0
  %1147 = vmatmul.mubr.bf16.gmra.mrb[0].mxu0 %v713
  %v1148 = vpop.f32.mrb[0].mxu0
  %v1149 = vadd.f32 %v760, %v1148
  %v1150 = vpop.f32.mrb[0].mxu0
  %v1151 = vpop.f32.mrb[0].mxu0
  %v1152 = vadd.f32 %v760, %v1151
  %v1153 = vpop.f32.mrb[0].mxu0
  %1154 = vmatprep.mubr.bf16.mxu0 0
  %1155 = vmatmul.mubr.bf16.gmra.mrb[0].mxu0 %v714
  %v1156 = vpop.f32.mrb[0].mxu0
  %v1157 = vadd.f32 %v760, %v1156
  %v1158 = vpop.f32.mrb[0].mxu0
  %v1159 = vpop.f32.mrb[0].mxu0
  %v1160 = vadd.f32 %v760, %v1159
  %v1161 = vpop.f32.mrb[0].mxu0
  %1162 = vmatprep.mubr.bf16.mxu0 0
  %1163 = vmatmul.mubr.bf16.gmra.mrb[0].mxu0 %v715
  %v1164 = vpop.f32.mrb[0].mxu0
  %v1165 = vadd.f32 %v760, %v1164
  %v1166 = vpop.f32.mrb[0].mxu0
  %v1167 = vpop.f32.mrb[0].mxu0
  %v1168 = vadd.f32 %v760, %v1167
  %v1169 = vpop.f32.mrb[0].mxu0
  %1170 = vmatprep.mubr.bf16.mxu0 0
  %1171 = vmatmul.mubr.bf16.gmra.mrb[0].mxu0 %v716
  %v1172 = vpop.f32.mrb[0].mxu0
  %v1173 = vadd.f32 %v760, %v1172
  %v1174 = vpop.f32.mrb[0].mxu0
  %v1175 = vpop.f32.mrb[0].mxu0
  %v1176 = vadd.f32 %v760, %v1175
  %v1177 = vpop.f32.mrb[0].mxu0
  %1178 = vmatprep.mubr.bf16.mxu0 0
  %1179 = vmatmul.mubr.bf16.gmra.mrb[0].mxu0 %v717
  %v1180 = vpop.f32.mrb[0].mxu0
  %v1181 = vadd.f32 %v760, %v1180
  %v1182 = vpop.f32.mrb[0].mxu0
  %v1183 = vpop.f32.mrb[0].mxu0
  %v1184 = vadd.f32 %v760, %v1183
  %v1185 = vpop.f32.mrb[0].mxu0
  %1186 = vmatprep.mubr.bf16.mxu0 0
  %1187 = vmatmul.mubr.bf16.gmra.mrb[0].mxu0 %v718
  %v1188 = vpop.f32.mrb[0].mxu0
  %v1189 = vadd.f32 %v760, %v1188
  %v1190 = vpop.f32.mrb[0].mxu0
  %v1191 = vpop.f32.mrb[0].mxu0
  %v1192 = vadd.f32 %v760, %v1191
  %v1193 = vpop.f32.mrb[0].mxu0
  %1194 = vmatprep.mubr.bf16.mxu0 0
  %1195 = vmatmul.mubr.bf16.gmra.mrb[0].mxu0 %v719
  %v1196 = vpop.f32.mrb[0].mxu0
  %v1197 = vadd.f32 %v760, %v1196
  %v1198 = vpop.f32.mrb[0].mxu0
  %v1199 = vpop.f32.mrb[0].mxu0
  %v1200 = vadd.f32 %v760, %v1199
  %v1201 = vpop.f32.mrb[0].mxu0
  %1202 = vmatprep.mubr.bf16.mxu0 0
  %1203 = vmatmul.mubr.bf16.gmra.mrb[0].mxu0 %v720
  %v1204 = vpop.f32.mrb[0].mxu0
  %v1205 = vadd.f32 %v760, %v1204
  %v1206 = vpop.f32.mrb[0].mxu0
  %v1207 = vpop.f32.mrb[0].mxu0
  %v1208 = vadd.f32 %v760, %v1207
  %v1209 = vpop.f32.mrb[0].mxu0
  %1210 = vmatprep.mubr.bf16.mxu0 0
  %1211 = vmatmul.mubr.bf16.gmra.mrb[0].mxu0 %v721
  %v1212 = vpop.f32.mrb[0].mxu0
  %v1213 = vadd.f32 %v760, %v1212
  %v1214 = vpop.f32.mrb[0].mxu0
  %v1215 = vpop.f32.mrb[0].mxu0
  %v1216 = vadd.f32 %v760, %v1215
  %v1217 = vpop.f32.mrb[0].mxu0
  %1218 = vmatprep.mubr.bf16.mxu0 0
  %1219 = vmatmul.mubr.bf16.gmra.mrb[0].mxu0 %v722
  %v1220 = vpop.f32.mrb[0].mxu0
  %v1221 = vadd.f32 %v760, %v1220
  %v1222 = vpop.f32.mrb[0].mxu0
  %v1223 = vpop.f32.mrb[0].mxu0
  %v1224 = vadd.f32 %v760, %v1223
  %v1225 = vpop.f32.mrb[0].mxu0
  %1226 = vmatprep.mubr.bf16.mxu0 0
  %1227 = vmatmul.mubr.bf16.gmra.mrb[0].mxu0 %v723
  %v1228 = vpop.f32.mrb[0].mxu0
  %v1229 = vadd.f32 %v760, %v1228
  %v1230 = vpop.f32.mrb[0].mxu0
  %v1231 = vpop.f32.mrb[0].mxu0
  %v1232 = vadd.f32 %v760, %v1231
  %v1233 = vpop.f32.mrb[0].mxu0
  %1234 = vmatprep.mubr.bf16.mxu0 0
  %1235 = vmatmul.mubr.bf16.gmra.mrb[0].mxu0 %v724
  %v1236 = vpop.f32.mrb[0].mxu0
  %v1237 = vadd.f32 %v760, %v1236
  %v1238 = vpop.f32.mrb[0].mxu0
  %v1239 = vpop.f32.mrb[0].mxu0
  %v1240 = vadd.f32 %v760, %v1239
  %v1241 = vpop.f32.mrb[0].mxu0
  %1242 = vmatprep.mubr.bf16.mxu0 0
  %1243 = vmatmul.mubr.bf16.gmra.mrb[0].mxu0 %v725
  %v1244 = vpop.f32.mrb[0].mxu0
  %v1245 = vadd.f32 %v760, %v1244
  %v1246 = vpop.f32.mrb[0].mxu0
  %v1247 = vpop.f32.mrb[0].mxu0
  %v1248 = vadd.f32 %v760, %v1247
  %v1249 = vpop.f32.mrb[0].mxu0
  %1250 = vmatprep.mubr.bf16.mxu0 0
  %1251 = vmatmul.mubr.bf16.gmra.mrb[0].mxu0 %v726
  %v1252 = vpop.f32.mrb[0].mxu0
  %v1253 = vadd.f32 %v760, %v1252
  %v1254 = vpop.f32.mrb[0].mxu0
  %v1255 = vpop.f32.mrb[0].mxu0
  %v1256 = vadd.f32 %v760, %v1255
  %v1257 = vpop.f32.mrb[0].mxu0
  %1258 = vmatprep.mubr.bf16.mxu0 0
  %1259 = vmatmul.mubr.bf16.gmra.mrb[0].mxu0 %v727
  %v1260 = vpop.f32.mrb[0].mxu0
  %v1261 = vadd.f32 %v760, %v1260
  %v1262 = vpop.f32.mrb[0].mxu0
  %v1263 = vpop.f32.mrb[0].mxu0
  %v1264 = vadd.f32 %v760, %v1263
  %v1265 = vpop.f32.mrb[0].mxu0
  %1266 = vmatprep.mubr.bf16.mxu0 0
  %1267 = vmatmul.mubr.bf16.gmra.mrb[0].mxu0 %v728
  %v1268 = vpop.f32.mrb[0].mxu0
  %v1269 = vadd.f32 %v760, %v1268
  %v1270 = vpop.f32.mrb[0].mxu0
  %v1271 = vpop.f32.mrb[0].mxu0
  %v1272 = vadd.f32 %v760, %v1271
  %v1273 = vpop.f32.mrb[0].mxu0
  %1274 = vmatprep.mubr.bf16.mxu0 0
  %1275 = vmatmul.mubr.bf16.gmra.mrb[0].mxu0 %v729
  %v1276 = vpop.f32.mrb[0].mxu0
  %v1277 = vadd.f32 %v760, %v1276
  %v1278 = vpop.f32.mrb[0].mxu0
  %v1279 = vpop.f32.mrb[0].mxu0
  %v1280 = vadd.f32 %v760, %v1279
  %v1281 = vpop.f32.mrb[0].mxu0
  %1282 = vmatprep.mubr.bf16.mxu0 0
  %1283 = vmatmul.mubr.bf16.gmra.mrb[0].mxu0 %v730
  %v1284 = vpop.f32.mrb[0].mxu0
  %v1285 = vadd.f32 %v760, %v1284
  %v1286 = vpop.f32.mrb[0].mxu0
  %v1287 = vpop.f32.mrb[0].mxu0
  %v1288 = vadd.f32 %v760, %v1287
  %v1289 = vpop.f32.mrb[0].mxu0
  %1290 = vmatprep.mubr.bf16.mxu0 0
  %1291 = vmatmul.mubr.bf16.gmra.mrb[0].mxu0 %v731
  %v1292 = vpop.f32.mrb[0].mxu0
  %v1293 = vadd.f32 %v760, %v1292
  %v1294 = vpop.f32.mrb[0].mxu0
  %v1295 = vpop.f32.mrb[0].mxu0
  %v1296 = vadd.f32 %v760, %v1295
  %v1297 = vpop.f32.mrb[0].mxu0
  %1298 = vmatprep.mubr.bf16.mxu0 0
  %1299 = vmatmul.mubr.bf16.gmra.mrb[0].mxu0 %v732
  %v1300 = vpop.f32.mrb[0].mxu0
  %v1301 = vadd.f32 %v760, %v1300
  %v1302 = vpop.f32.mrb[0].mxu0
  %v1303 = vpop.f32.mrb[0].mxu0
  %v1304 = vadd.f32 %v760, %v1303
  %v1305 = vpop.f32.mrb[0].mxu0
  %1306 = vmatprep.mubr.bf16.mxu0 0
  %1307 = vmatmul.mubr.bf16.gmra.mrb[0].mxu0 %v733
  %v1308 = vpop.f32.mrb[0].mxu0
  %v1309 = vadd.f32 %v760, %v1308
  %v1310 = vpop.f32.mrb[0].mxu0
  %v1311 = vpop.f32.mrb[0].mxu0
  %v1312 = vadd.f32 %v760, %v1311
  %v1313 = vpop.f32.mrb[0].mxu0
  %1314 = vmatprep.mubr.bf16.mxu0 0
  %1315 = vmatmul.mubr.bf16.gmra.mrb[0].mxu0 %v734
  %v1316 = vpop.f32.mrb[0].mxu0
  %v1317 = vadd.f32 %v760, %v1316
  %v1318 = vpop.f32.mrb[0].mxu0
  %v1319 = vpop.f32.mrb[0].mxu0
  %v1320 = vadd.f32 %v760, %v1319
  %v1321 = vpop.f32.mrb[0].mxu0
  %1322 = vmatprep.mubr.bf16.mxu0 0
  %1323 = vmatmul.mubr.bf16.gmra.mrb[0].mxu0 %v735
  %v1324 = vpop.f32.mrb[0].mxu0
  %v1325 = vadd.f32 %v760, %v1324
  %v1326 = vpop.f32.mrb[0].mxu0
  %v1327 = vpop.f32.mrb[0].mxu0
  %v1328 = vadd.f32 %v760, %v1327
  %v1329 = vpop.f32.mrb[0].mxu0
  %1330 = vmatprep.mubr.bf16.mxu0 0
  %1331 = vmatmul.mubr.bf16.gmra.mrb[0].mxu0 %v736
  %v1332 = vpop.f32.mrb[0].mxu0
  %v1333 = vadd.f32 %v760, %v1332
  %v1334 = vpop.f32.mrb[0].mxu0
  %v1335 = vpop.f32.mrb[0].mxu0
  %v1336 = vadd.f32 %v760, %v1335
  %v1337 = vpop.f32.mrb[0].mxu0
  %1338 = vmatprep.mubr.bf16.mxu0 0
  %1339 = vmatmul.mubr.bf16.gmra.mrb[0].mxu0 %v737
  %v1340 = vpop.f32.mrb[0].mxu0
  %v1341 = vadd.f32 %v760, %v1340
  %v1342 = vpop.f32.mrb[0].mxu0
  %v1343 = vpop.f32.mrb[0].mxu0
  %v1344 = vadd.f32 %v760, %v1343
  %v1345 = vpop.f32.mrb[0].mxu0
  %1346 = vmatprep.mubr.bf16.mxu0 0
  %1347 = vmatmul.mubr.bf16.gmra.mrb[0].mxu0 %v738
  %v1348 = vpop.f32.mrb[0].mxu0
  %v1349 = vadd.f32 %v760, %v1348
  %v1350 = vpop.f32.mrb[0].mxu0
  %v1351 = vpop.f32.mrb[0].mxu0
  %v1352 = vadd.f32 %v760, %v1351
  %v1353 = vpop.f32.mrb[0].mxu0
  %1354 = vdwg.mxu0
  %v1355 = vpack.c.bf16 %v848, %v845
  %v1356 = vpack.c.bf16 %v856, %v853
  %v1357 = vpack.c.bf16 %v864, %v861
  %v1358 = vpack.c.bf16 %v872, %v869
  %v1359 = vpack.c.bf16 %v880, %v877
  %v1360 = vpack.c.bf16 %v888, %v885
  %v1361 = vpack.c.bf16 %v896, %v893
  %v1362 = vpack.c.bf16 %v904, %v901
  %v1363 = vpack.c.bf16 %v912, %v909
  %v1364 = vpack.c.bf16 %v920, %v917
  %v1365 = vpack.c.bf16 %v928, %v925
  %v1366 = vpack.c.bf16 %v936, %v933
  %v1367 = vpack.c.bf16 %v944, %v941
  %v1368 = vpack.c.bf16 %v952, %v949
  %v1369 = vpack.c.bf16 %v960, %v957
  %v1370 = vpack.c.bf16 %v968, %v965
  %v1371 = vpack.c.bf16 %v976, %v973
  %v1372 = vpack.c.bf16 %v984, %v981
  %v1373 = vpack.c.bf16 %v992, %v989
  %v1374 = vpack.c.bf16 %v1000, %v997
  %v1375 = vpack.c.bf16 %v1008, %v1005
  %v1376 = vpack.c.bf16 %v1016, %v1013
  %v1377 = vpack.c.bf16 %v1024, %v1021
  %v1378 = vpack.c.bf16 %v1032, %v1029
  %v1379 = vpack.c.bf16 %v1040, %v1037
  %v1380 = vpack.c.bf16 %v1048, %v1045
  %v1381 = vpack.c.bf16 %v1056, %v1053
  %v1382 = vpack.c.bf16 %v1064, %v1061
  %v1383 = vpack.c.bf16 %v1072, %v1069
  %v1384 = vpack.c.bf16 %v1080, %v1077
  %v1385 = vpack.c.bf16 %v1088, %v1085
  %v1386 = vpack.c.bf16 %v1096, %v1093
  %v1387 = vpack.c.bf16 %v1104, %v1101
  %v1388 = vpack.c.bf16 %v1112, %v1109
  %v1389 = vpack.c.bf16 %v1120, %v1117
  %v1390 = vpack.c.bf16 %v1128, %v1125
  %v1391 = vpack.c.bf16 %v1136, %v1133
  %v1392 = vpack.c.bf16 %v1144, %v1141
  %v1393 = vpack.c.bf16 %v1152, %v1149
  %v1394 = vpack.c.bf16 %v1160, %v1157
  %v1395 = vpack.c.bf16 %v1168, %v1165
  %v1396 = vpack.c.bf16 %v1176, %v1173
  %v1397 = vpack.c.bf16 %v1184, %v1181
  %v1398 = vpack.c.bf16 %v1192, %v1189
  %v1399 = vpack.c.bf16 %v1200, %v1197
  %v1400 = vpack.c.bf16 %v1208, %v1205
  %v1401 = vpack.c.bf16 %v1216, %v1213
  %v1402 = vpack.c.bf16 %v1224, %v1221
  %v1403 = vpack.c.bf16 %v1232, %v1229
  %v1404 = vpack.c.bf16 %v1240, %v1237
  %v1405 = vpack.c.bf16 %v1248, %v1245
  %v1406 = vpack.c.bf16 %v1256, %v1253
  %v1407 = vpack.c.bf16 %v1264, %v1261
  %v1408 = vpack.c.bf16 %v1272, %v1269
  %v1409 = vpack.c.bf16 %v1280, %v1277
  %v1410 = vpack.c.bf16 %v1288, %v1285
  %v1411 = vpack.c.bf16 %v1296, %v1293
  %v1412 = vpack.c.bf16 %v1304, %v1301
  %v1413 = vpack.c.bf16 %v1312, %v1309
  %v1414 = vpack.c.bf16 %v1320, %v1317
  %v1415 = vpack.c.bf16 %v1328, %v1325
  %v1416 = vpack.c.bf16 %v1336, %v1333
  %v1417 = vpack.c.bf16 %v1344, %v1341
  %v1418 = vpack.c.bf16 %v1352, %v1349
  %v1483 = vunpack.c.l.b16 %v1355
  %v1484 = vunpack.c.h.b16 %v1355
  %v1485 = vunpack.c.l.b16 %v1356
  %v1486 = vunpack.c.h.b16 %v1356
  %v1487 = vunpack.c.l.b16 %v1357
  %v1488 = vunpack.c.h.b16 %v1357
  %v1489 = vunpack.c.l.b16 %v1358
  %v1490 = vunpack.c.h.b16 %v1358
  %v1491 = vunpack.c.l.b16 %v1359
  %v1492 = vunpack.c.h.b16 %v1359
  %v1493 = vunpack.c.l.b16 %v1360
  %v1494 = vunpack.c.h.b16 %v1360
  %v1495 = vunpack.c.l.b16 %v1361
  %v1496 = vunpack.c.h.b16 %v1361
  %v1497 = vunpack.c.l.b16 %v1362
  %v1498 = vunpack.c.h.b16 %v1362
  %v1499 = vunpack.c.l.b16 %v1363
  %v1500 = vunpack.c.h.b16 %v1363
  %v1501 = vunpack.c.l.b16 %v1364
  %v1502 = vunpack.c.h.b16 %v1364
  %v1503 = vunpack.c.l.b16 %v1365
  %v1504 = vunpack.c.h.b16 %v1365
  %v1505 = vunpack.c.l.b16 %v1366
  %v1506 = vunpack.c.h.b16 %v1366
  %v1507 = vunpack.c.l.b16 %v1367
  %v1508 = vunpack.c.h.b16 %v1367
  %v1509 = vunpack.c.l.b16 %v1368
  %v1510 = vunpack.c.h.b16 %v1368
  %v1511 = vunpack.c.l.b16 %v1369
  %v1512 = vunpack.c.h.b16 %v1369
  %v1513 = vunpack.c.l.b16 %v1370
  %v1514 = vunpack.c.h.b16 %v1370
  %v1515 = vunpack.c.l.b16 %v1371
  %v1516 = vunpack.c.h.b16 %v1371
  %v1517 = vunpack.c.l.b16 %v1372
  %v1518 = vunpack.c.h.b16 %v1372
  %v1519 = vunpack.c.l.b16 %v1373
  %v1520 = vunpack.c.h.b16 %v1373
  %v1521 = vunpack.c.l.b16 %v1374
  %v1522 = vunpack.c.h.b16 %v1374
  %v1523 = vunpack.c.l.b16 %v1375
  %v1524 = vunpack.c.h.b16 %v1375
  %v1525 = vunpack.c.l.b16 %v1376
  %v1526 = vunpack.c.h.b16 %v1376
  %v1527 = vunpack.c.l.b16 %v1377
  %v1528 = vunpack.c.h.b16 %v1377
  %v1529 = vunpack.c.l.b16 %v1378
  %v1530 = vunpack.c.h.b16 %v1378
  %v1531 = vunpack.c.l.b16 %v1379
  %v1532 = vunpack.c.h.b16 %v1379
  %v1533 = vunpack.c.l.b16 %v1380
  %v1534 = vunpack.c.h.b16 %v1380
  %v1535 = vunpack.c.l.b16 %v1381
  %v1536 = vunpack.c.h.b16 %v1381
  %v1537 = vunpack.c.l.b16 %v1382
  %v1538 = vunpack.c.h.b16 %v1382
  %v1539 = vunpack.c.l.b16 %v1383
  %v1540 = vunpack.c.h.b16 %v1383
  %v1541 = vunpack.c.l.b16 %v1384
  %v1542 = vunpack.c.h.b16 %v1384
  %v1543 = vunpack.c.l.b16 %v1385
  %v1544 = vunpack.c.h.b16 %v1385
  %v1545 = vunpack.c.l.b16 %v1386
  %v1546 = vunpack.c.h.b16 %v1386
  %v1547 = vunpack.c.l.b16 %v1387
  %v1548 = vunpack.c.h.b16 %v1387
  %v1549 = vunpack.c.l.b16 %v1388
  %v1550 = vunpack.c.h.b16 %v1388
  %v1551 = vunpack.c.l.b16 %v1389
  %v1552 = vunpack.c.h.b16 %v1389
  %v1553 = vunpack.c.l.b16 %v1390
  %v1554 = vunpack.c.h.b16 %v1390
  %v1555 = vunpack.c.l.b16 %v1391
  %v1556 = vunpack.c.h.b16 %v1391
  %v1557 = vunpack.c.l.b16 %v1392
  %v1558 = vunpack.c.h.b16 %v1392
  %v1559 = vunpack.c.l.b16 %v1393
  %v1560 = vunpack.c.h.b16 %v1393
  %v1561 = vunpack.c.l.b16 %v1394
  %v1562 = vunpack.c.h.b16 %v1394
  %v1563 = vunpack.c.l.b16 %v1395
  %v1564 = vunpack.c.h.b16 %v1395
  %v1565 = vunpack.c.l.b16 %v1396
  %v1566 = vunpack.c.h.b16 %v1396
  %v1567 = vunpack.c.l.b16 %v1397
  %v1568 = vunpack.c.h.b16 %v1397
  %v1569 = vunpack.c.l.b16 %v1398
  %v1570 = vunpack.c.h.b16 %v1398
  %v1571 = vunpack.c.l.b16 %v1399
  %v1572 = vunpack.c.h.b16 %v1399
  %v1573 = vunpack.c.l.b16 %v1400
  %v1574 = vunpack.c.h.b16 %v1400
  %v1575 = vunpack.c.l.b16 %v1401
  %v1576 = vunpack.c.h.b16 %v1401
  %v1577 = vunpack.c.l.b16 %v1402
  %v1578 = vunpack.c.h.b16 %v1402
  %v1579 = vunpack.c.l.b16 %v1403
  %v1580 = vunpack.c.h.b16 %v1403
  %v1581 = vunpack.c.l.b16 %v1404
  %v1582 = vunpack.c.h.b16 %v1404
  %v1583 = vunpack.c.l.b16 %v1405
  %v1584 = vunpack.c.h.b16 %v1405
  %v1585 = vunpack.c.l.b16 %v1406
  %v1586 = vunpack.c.h.b16 %v1406
  %v1587 = vunpack.c.l.b16 %v1407
  %v1588 = vunpack.c.h.b16 %v1407
  %v1589 = vunpack.c.l.b16 %v1408
  %v1590 = vunpack.c.h.b16 %v1408
  %v1591 = vunpack.c.l.b16 %v1409
  %v1592 = vunpack.c.h.b16 %v1409
  %v1593 = vunpack.c.l.b16 %v1410
  %v1594 = vunpack.c.h.b16 %v1410
  %v1595 = vunpack.c.l.b16 %v1411
  %v1596 = vunpack.c.h.b16 %v1411
  %v1597 = vunpack.c.l.b16 %v1412
  %v1598 = vunpack.c.h.b16 %v1412
  %v1599 = vunpack.c.l.b16 %v1413
  %v1600 = vunpack.c.h.b16 %v1413
  %v1601 = vunpack.c.l.b16 %v1414
  %v1602 = vunpack.c.h.b16 %v1414
  %v1603 = vunpack.c.l.b16 %v1415
  %v1604 = vunpack.c.h.b16 %v1415
  %v1605 = vunpack.c.l.b16 %v1416
  %v1606 = vunpack.c.h.b16 %v1416
  %v1607 = vunpack.c.l.b16 %v1417
  %v1608 = vunpack.c.h.b16 %v1417
  %v1609 = vunpack.c.l.b16 %v1418
  %v1610 = vunpack.c.h.b16 %v1418
  %v1611 = vpack.c.b16 %v1483, %v1483
  %v1612 = vpack.c.b16 %v1484, %v1484
  %v1613 = vpack.c.b16 %v1485, %v1485
  %v1614 = vpack.c.b16 %v1486, %v1486
  %v1615 = vpack.c.b16 %v1487, %v1487
  %v1616 = vpack.c.b16 %v1488, %v1488
  %v1617 = vpack.c.b16 %v1489, %v1489
  %v1618 = vpack.c.b16 %v1490, %v1490
  %v1619 = vpack.c.b16 %v1491, %v1491
  %v1620 = vpack.c.b16 %v1492, %v1492
  %v1621 = vpack.c.b16 %v1493, %v1493
  %v1622 = vpack.c.b16 %v1494, %v1494
  %v1623 = vpack.c.b16 %v1495, %v1495
  %v1624 = vpack.c.b16 %v1496, %v1496
  %v1625 = vpack.c.b16 %v1497, %v1497
  %v1626 = vpack.c.b16 %v1498, %v1498
  %v1627 = vpack.c.b16 %v1499, %v1499
  %v1628 = vpack.c.b16 %v1500, %v1500
  %v1629 = vpack.c.b16 %v1501, %v1501
  %v1630 = vpack.c.b16 %v1502, %v1502
  %v1631 = vpack.c.b16 %v1503, %v1503
  %v1632 = vpack.c.b16 %v1504, %v1504
  %v1633 = vpack.c.b16 %v1505, %v1505
  %v1634 = vpack.c.b16 %v1506, %v1506
  %v1635 = vpack.c.b16 %v1507, %v1507
  %v1636 = vpack.c.b16 %v1508, %v1508
  %v1637 = vpack.c.b16 %v1509, %v1509
  %v1638 = vpack.c.b16 %v1510, %v1510
  %v1639 = vpack.c.b16 %v1511, %v1511
  %v1640 = vpack.c.b16 %v1512, %v1512
  %v1641 = vpack.c.b16 %v1513, %v1513
  %v1642 = vpack.c.b16 %v1514, %v1514
  %v1643 = vpack.c.b16 %v1515, %v1515
  %v1644 = vpack.c.b16 %v1516, %v1516
  %v1645 = vpack.c.b16 %v1517, %v1517
  %v1646 = vpack.c.b16 %v1518, %v1518
  %v1647 = vpack.c.b16 %v1519, %v1519
  %v1648 = vpack.c.b16 %v1520, %v1520
  %v1649 = vpack.c.b16 %v1521, %v1521
  %v1650 = vpack.c.b16 %v1522, %v1522
  %v1651 = vpack.c.b16 %v1523, %v1523
  %v1652 = vpack.c.b16 %v1524, %v1524
  %v1653 = vpack.c.b16 %v1525, %v1525
  %v1654 = vpack.c.b16 %v1526, %v1526
  %v1655 = vpack.c.b16 %v1527, %v1527
  %v1656 = vpack.c.b16 %v1528, %v1528
  %v1657 = vpack.c.b16 %v1529, %v1529
  %v1658 = vpack.c.b16 %v1530, %v1530
  %v1659 = vpack.c.b16 %v1531, %v1531
  %v1660 = vpack.c.b16 %v1532, %v1532
  %v1661 = vpack.c.b16 %v1533, %v1533
  %v1662 = vpack.c.b16 %v1534, %v1534
  %v1663 = vpack.c.b16 %v1535, %v1535
  %v1664 = vpack.c.b16 %v1536, %v1536
  %v1665 = vpack.c.b16 %v1537, %v1537
  %v1666 = vpack.c.b16 %v1538, %v1538
  %v1667 = vpack.c.b16 %v1539, %v1539
  %v1668 = vpack.c.b16 %v1540, %v1540
  %v1669 = vpack.c.b16 %v1541, %v1541
  %v1670 = vpack.c.b16 %v1542, %v1542
  %v1671 = vpack.c.b16 %v1543, %v1543
  %v1672 = vpack.c.b16 %v1544, %v1544
  %v1673 = vpack.c.b16 %v1545, %v1545
  %v1674 = vpack.c.b16 %v1546, %v1546
  %v1675 = vpack.c.b16 %v1547, %v1547
  %v1676 = vpack.c.b16 %v1548, %v1548
  %v1677 = vpack.c.b16 %v1549, %v1549
  %v1678 = vpack.c.b16 %v1550, %v1550
  %v1679 = vpack.c.b16 %v1551, %v1551
  %v1680 = vpack.c.b16 %v1552, %v1552
  %v1681 = vpack.c.b16 %v1553, %v1553
  %v1682 = vpack.c.b16 %v1554, %v1554
  %v1683 = vpack.c.b16 %v1555, %v1555
  %v1684 = vpack.c.b16 %v1556, %v1556
  %v1685 = vpack.c.b16 %v1557, %v1557
  %v1686 = vpack.c.b16 %v1558, %v1558
  %v1687 = vpack.c.b16 %v1559, %v1559
  %v1688 = vpack.c.b16 %v1560, %v1560
  %v1689 = vpack.c.b16 %v1561, %v1561
  %v1690 = vpack.c.b16 %v1562, %v1562
  %v1691 = vpack.c.b16 %v1563, %v1563
  %v1692 = vpack.c.b16 %v1564, %v1564
  %v1693 = vpack.c.b16 %v1565, %v1565
  %v1694 = vpack.c.b16 %v1566, %v1566
  %v1695 = vpack.c.b16 %v1567, %v1567
  %v1696 = vpack.c.b16 %v1568, %v1568
  %v1697 = vpack.c.b16 %v1569, %v1569
  %v1698 = vpack.c.b16 %v1570, %v1570
  %v1699 = vpack.c.b16 %v1571, %v1571
  %v1700 = vpack.c.b16 %v1572, %v1572
  %v1701 = vpack.c.b16 %v1573, %v1573
  %v1702 = vpack.c.b16 %v1574, %v1574
  %v1703 = vpack.c.b16 %v1575, %v1575
  %v1704 = vpack.c.b16 %v1576, %v1576
  %v1705 = vpack.c.b16 %v1577, %v1577
  %v1706 = vpack.c.b16 %v1578, %v1578
  %v1707 = vpack.c.b16 %v1579, %v1579
  %v1708 = vpack.c.b16 %v1580, %v1580
  %v1709 = vpack.c.b16 %v1581, %v1581
  %v1710 = vpack.c.b16 %v1582, %v1582
  %v1711 = vpack.c.b16 %v1583, %v1583
  %v1712 = vpack.c.b16 %v1584, %v1584
  %v1713 = vpack.c.b16 %v1585, %v1585
  %v1714 = vpack.c.b16 %v1586, %v1586
  %v1715 = vpack.c.b16 %v1587, %v1587
  %v1716 = vpack.c.b16 %v1588, %v1588
  %v1717 = vpack.c.b16 %v1589, %v1589
  %v1718 = vpack.c.b16 %v1590, %v1590
  %v1719 = vpack.c.b16 %v1591, %v1591
  %v1720 = vpack.c.b16 %v1592, %v1592
  %v1721 = vpack.c.b16 %v1593, %v1593
  %v1722 = vpack.c.b16 %v1594, %v1594
  %v1723 = vpack.c.b16 %v1595, %v1595
  %v1724 = vpack.c.b16 %v1596, %v1596
  %v1725 = vpack.c.b16 %v1597, %v1597
  %v1726 = vpack.c.b16 %v1598, %v1598
  %v1727 = vpack.c.b16 %v1599, %v1599
  %v1728 = vpack.c.b16 %v1600, %v1600
  %v1729 = vpack.c.b16 %v1601, %v1601
  %v1730 = vpack.c.b16 %v1602, %v1602
  %v1731 = vpack.c.b16 %v1603, %v1603
  %v1732 = vpack.c.b16 %v1604, %v1604
  %v1733 = vpack.c.b16 %v1605, %v1605
  %v1734 = vpack.c.b16 %v1606, %v1606
  %v1735 = vpack.c.b16 %v1607, %v1607
  %v1736 = vpack.c.b16 %v1608, %v1608
  %v1737 = vpack.c.b16 %v1609, %v1609
  %v1738 = vpack.c.b16 %v1610, %v1610
  %1867 = vst [vmem:[%s5] sm:$0xf] %v1611
  %1868 = vst [vmem:[%s5 + $0x4] sm:$0xf] %v1612
  %1869 = vst [vmem:[%s5 + $0x8] sm:$0xf] %v1613
  %1870 = vst [vmem:[%s5 + $0xc] sm:$0xf] %v1614
  %1871 = vst [vmem:[%s5 + $0x10] sm:$0xf] %v1615
  %1872 = vst [vmem:[%s5 + $0x14] sm:$0xf] %v1616
  %1873 = vst [vmem:[%s5 + $0x18] sm:$0xf] %v1617
  %1874 = vst [vmem:[%s5 + $0x1c] sm:$0xf] %v1618
  %1875 = vst [vmem:[%s5 + $0x20] sm:$0xf] %v1619
  %1876 = vst [vmem:[%s5 + $0x24] sm:$0xf] %v1620
  %1877 = vst [vmem:[%s5 + $0x28] sm:$0xf] %v1621
  %1878 = vst [vmem:[%s5 + $0x2c] sm:$0xf] %v1622
  %1879 = vst [vmem:[%s5 + $0x30] sm:$0xf] %v1623
  %1880 = vst [vmem:[%s5 + $0x34] sm:$0xf] %v1624
  %1881 = vst [vmem:[%s5 + $0x38] sm:$0xf] %v1625
  %1882 = vst [vmem:[%s5 + $0x3c] sm:$0xf] %v1626
  %1883 = vst [vmem:[%s5 + $0x40] sm:$0xf] %v1627
  %1884 = vst [vmem:[%s5 + $0x44] sm:$0xf] %v1628
  %1885 = vst [vmem:[%s5 + $0x48] sm:$0xf] %v1629
  %1886 = vst [vmem:[%s5 + $0x4c] sm:$0xf] %v1630
  %1887 = vst [vmem:[%s5 + $0x50] sm:$0xf] %v1631
  %1888 = vst [vmem:[%s5 + $0x54] sm:$0xf] %v1632
  %1889 = vst [vmem:[%s5 + $0x58] sm:$0xf] %v1633
  %1890 = vst [vmem:[%s5 + $0x5c] sm:$0xf] %v1634
  %1891 = vst [vmem:[%s5 + $0x60] sm:$0xf] %v1635
  %1892 = vst [vmem:[%s5 + $0x64] sm:$0xf] %v1636
  %1893 = vst [vmem:[%s5 + $0x68] sm:$0xf] %v1637
  %1894 = vst [vmem:[%s5 + $0x6c] sm:$0xf] %v1638
  %1895 = vst [vmem:[%s5 + $0x70] sm:$0xf] %v1639
  %1896 = vst [vmem:[%s5 + $0x74] sm:$0xf] %v1640
  %1897 = vst [vmem:[%s5 + $0x78] sm:$0xf] %v1641
  %1898 = vst [vmem:[%s5 + $0x7c] sm:$0xf] %v1642
  %1899 = vst [vmem:[%s5 + $0x80] sm:$0xf] %v1643
  %1900 = vst [vmem:[%s5 + $0x84] sm:$0xf] %v1644
  %1901 = vst [vmem:[%s5 + $0x88] sm:$0xf] %v1645
  %1902 = vst [vmem:[%s5 + $0x8c] sm:$0xf] %v1646
  %1903 = vst [vmem:[%s5 + $0x90] sm:$0xf] %v1647
  %1904 = vst [vmem:[%s5 + $0x94] sm:$0xf] %v1648
  %1905 = vst [vmem:[%s5 + $0x98] sm:$0xf] %v1649
  %1906 = vst [vmem:[%s5 + $0x9c] sm:$0xf] %v1650
  %1907 = vst [vmem:[%s5 + $0xa0] sm:$0xf] %v1651
  %1908 = vst [vmem:[%s5 + $0xa4] sm:$0xf] %v1652
  %1909 = vst [vmem:[%s5 + $0xa8] sm:$0xf] %v1653
  %1910 = vst [vmem:[%s5 + $0xac] sm:$0xf] %v1654
  %1911 = vst [vmem:[%s5 + $0xb0] sm:$0xf] %v1655
  %1912 = vst [vmem:[%s5 + $0xb4] sm:$0xf] %v1656
  %1913 = vst [vmem:[%s5 + $0xb8] sm:$0xf] %v1657
  %1914 = vst [vmem:[%s5 + $0xbc] sm:$0xf] %v1658
  %1915 = vst [vmem:[%s5 + $0xc0] sm:$0xf] %v1659
  %1916 = vst [vmem:[%s5 + $0xc4] sm:$0xf] %v1660
  %1917 = vst [vmem:[%s5 + $0xc8] sm:$0xf] %v1661
  %1918 = vst [vmem:[%s5 + $0xcc] sm:$0xf] %v1662
  %1919 = vst [vmem:[%s5 + $0xd0] sm:$0xf] %v1663
  %1920 = vst [vmem:[%s5 + $0xd4] sm:$0xf] %v1664
  %1921 = vst [vmem:[%s5 + $0xd8] sm:$0xf] %v1665
  %1922 = vst [vmem:[%s5 + $0xdc] sm:$0xf] %v1666
  %1923 = vst [vmem:[%s5 + $0xe0] sm:$0xf] %v1667
  %1924 = vst [vmem:[%s5 + $0xe4] sm:$0xf] %v1668
  %1925 = vst [vmem:[%s5 + $0xe8] sm:$0xf] %v1669
  %1926 = vst [vmem:[%s5 + $0xec] sm:$0xf] %v1670
  %1927 = vst [vmem:[%s5 + $0xf0] sm:$0xf] %v1671
  %1928 = vst [vmem:[%s5 + $0xf4] sm:$0xf] %v1672
  %1929 = vst [vmem:[%s5 + $0xf8] sm:$0xf] %v1673
  %1930 = vst [vmem:[%s5 + $0xfc] sm:$0xf] %v1674
  %1931 = vst [vmem:[%s5 + $0x100] sm:$0xf] %v1675
  %1932 = vst [vmem:[%s5 + $0x104] sm:$0xf] %v1676
  %1933 = vst [vmem:[%s5 + $0x108] sm:$0xf] %v1677
  %1934 = vst [vmem:[%s5 + $0x10c] sm:$0xf] %v1678
  %1935 = vst [vmem:[%s5 + $0x110] sm:$0xf] %v1679
  %1936 = vst [vmem:[%s5 + $0x114] sm:$0xf] %v1680
  %1937 = vst [vmem:[%s5 + $0x118] sm:$0xf] %v1681
  %1938 = vst [vmem:[%s5 + $0x11c] sm:$0xf] %v1682
  %1939 = vst [vmem:[%s5 + $0x120] sm:$0xf] %v1683
  %1940 = vst [vmem:[%s5 + $0x124] sm:$0xf] %v1684
  %1941 = vst [vmem:[%s5 + $0x128] sm:$0xf] %v1685
  %1942 = vst [vmem:[%s5 + $0x12c] sm:$0xf] %v1686
  %1943 = vst [vmem:[%s5 + $0x130] sm:$0xf] %v1687
  %1944 = vst [vmem:[%s5 + $0x134] sm:$0xf] %v1688
  %1945 = vst [vmem:[%s5 + $0x138] sm:$0xf] %v1689
  %1946 = vst [vmem:[%s5 + $0x13c] sm:$0xf] %v1690
  %1947 = vst [vmem:[%s5 + $0x140] sm:$0xf] %v1691
  %1948 = vst [vmem:[%s5 + $0x144] sm:$0xf] %v1692
  %1949 = vst [vmem:[%s5 + $0x148] sm:$0xf] %v1693
  %1950 = vst [vmem:[%s5 + $0x14c] sm:$0xf] %v1694
  %1951 = vst [vmem:[%s5 + $0x150] sm:$0xf] %v1695
  %1952 = vst [vmem:[%s5 + $0x154] sm:$0xf] %v1696
  %1953 = vst [vmem:[%s5 + $0x158] sm:$0xf] %v1697
  %1954 = vst [vmem:[%s5 + $0x15c] sm:$0xf] %v1698
  %1955 = vst [vmem:[%s5 + $0x160] sm:$0xf] %v1699
  %1956 = vst [vmem:[%s5 + $0x164] sm:$0xf] %v1700
  %1957 = vst [vmem:[%s5 + $0x168] sm:$0xf] %v1701
  %1958 = vst [vmem:[%s5 + $0x16c] sm:$0xf] %v1702
  %1959 = vst [vmem:[%s5 + $0x170] sm:$0xf] %v1703
  %1960 = vst [vmem:[%s5 + $0x174] sm:$0xf] %v1704
  %1961 = vst [vmem:[%s5 + $0x178] sm:$0xf] %v1705
  %1962 = vst [vmem:[%s5 + $0x17c] sm:$0xf] %v1706
  %1963 = vst [vmem:[%s5 + $0x180] sm:$0xf] %v1707
  %1964 = vst [vmem:[%s5 + $0x184] sm:$0xf] %v1708
  %1965 = vst [vmem:[%s5 + $0x188] sm:$0xf] %v1709
  %1966 = vst [vmem:[%s5 + $0x18c] sm:$0xf] %v1710
  %1967 = vst [vmem:[%s5 + $0x190] sm:$0xf] %v1711
  %1968 = vst [vmem:[%s5 + $0x194] sm:$0xf] %v1712
  %1969 = vst [vmem:[%s5 + $0x198] sm:$0xf] %v1713
  %1970 = vst [vmem:[%s5 + $0x19c] sm:$0xf] %v1714
  %1971 = vst [vmem:[%s5 + $0x1a0] sm:$0xf] %v1715
  %1972 = vst [vmem:[%s5 + $0x1a4] sm:$0xf] %v1716
  %1973 = vst [vmem:[%s5 + $0x1a8] sm:$0xf] %v1717
  %1974 = vst [vmem:[%s5 + $0x1ac] sm:$0xf] %v1718
  %1975 = vst [vmem:[%s5 + $0x1b0] sm:$0xf] %v1719
  %1976 = vst [vmem:[%s5 + $0x1b4] sm:$0xf] %v1720
  %1977 = vst [vmem:[%s5 + $0x1b8] sm:$0xf] %v1721
  %1978 = vst [vmem:[%s5 + $0x1bc] sm:$0xf] %v1722
  %1979 = vst [vmem:[%s5 + $0x1c0] sm:$0xf] %v1723
  %1980 = vst [vmem:[%s5 + $0x1c4] sm:$0xf] %v1724
  %1981 = vst [vmem:[%s5 + $0x1c8] sm:$0xf] %v1725
  %1982 = vst [vmem:[%s5 + $0x1cc] sm:$0xf] %v1726
  %1983 = vst [vmem:[%s5 + $0x1d0] sm:$0xf] %v1727
  %1984 = vst [vmem:[%s5 + $0x1d4] sm:$0xf] %v1728
  %1985 = vst [vmem:[%s5 + $0x1d8] sm:$0xf] %v1729
  %1986 = vst [vmem:[%s5 + $0x1dc] sm:$0xf] %v1730
  %1987 = vst [vmem:[%s5 + $0x1e0] sm:$0xf] %v1731
  %1988 = vst [vmem:[%s5 + $0x1e4] sm:$0xf] %v1732
  %1989 = vst [vmem:[%s5 + $0x1e8] sm:$0xf] %v1733
  %1990 = vst [vmem:[%s5 + $0x1ec] sm:$0xf] %v1734
  %1991 = vst [vmem:[%s5 + $0x1f0] sm:$0xf] %v1735
  %1992 = vst [vmem:[%s5 + $0x1f4] sm:$0xf] %v1736
  %1993 = vst [vmem:[%s5 + $0x1f8] sm:$0xf] %v1737
  %1994 = vst [vmem:[%s5 + $0x1fc] sm:$0xf] %v1738
  // Predicated region
  $region22: #{decoder3d_forward.5} parent=0 // pred_check
    _
  $region23: #{decoder3d_forward.5} parent=0 // pred_check_branch
    %1996 = sbr.rel (0) target = $region25
  $region24: #{decoder3d_forward.5} parent=0 // pred_region
    _
  $region25: #{decoder3d_forward.5} parent=0 // pred_fallthru
    _
  // Predicated region
  $region26: #{decoder3d_forward.5} parent=0 // pred_check
    _
  $region27: #{decoder3d_forward.5} parent=0 // pred_check_branch
    %1998 = sbr.rel (0) target = $region29
  $region28: #{decoder3d_forward.5} parent=0 // pred_region
    _
  $region29: #{decoder3d_forward.5} parent=0 // pred_fallthru
    _

// kernel: decoder3d_forward.3
$region0: #{decoder3d_forward.3}
  #allocation0 [shape = 'u32[]', space=smem, size = 0x4, offset = 0x4, fixed_abs, tag = 'smem constant byte address 0x4 - core index']
  #allocation1 [shape = 'u32[144,128]{1,0:T(1,128)}', space=vmem, size = 0x12000, scoped, tag = 'internal scratch']
  %s0 = inlined_call_operand.vmem [shape: bf16[2,8,8,8,4], index: 0, kind: input, shape index: {}, may-alias: {0,1,2}]
  %s1 = inlined_call_operand.vmem [shape: bf16[2,8,8,8,4], index: 1, kind: input, shape index: {}, may-alias: {0,1,2}]
  %s2 = inlined_call_operand.vmem [shape: bf16[2,8,8,8,4], index: 2, kind: input, shape index: {}, may-alias: {0,1,2}]
  %s3 = inlined_call_operand.vmem [shape: bf16[27,4,128], index: 3, kind: input, shape index: {}]
  %s4 = inlined_call_operand.vmem [shape: f32[1,4], index: 4, kind: input, shape index: {}, may-alias: {4,5}]
  %s5 = inlined_call_operand.vmem [shape: f32[1,4], index: 5, kind: input, shape index: {}, may-alias: {4,5}]
  %s6 = inlined_call_operand.vmem [shape: bf16[2,8,8,8,128], index: 6, kind: output, shape index: {0}]
  %s7 = inlined_call_operand.vmem [shape: f32[2,8,2,128], index: 7, kind: output, shape index: {1}]
  %8 = xla_tuple %s6, %s7
  %s9 = sld [smem:[#allocation0]]
  $region65: #{decoder3d_forward.3} parent=0
    _
  %s11 = ssub.s32 1, %s9
  %s12 = scalar_select 0, %s11, %s9
  loop: start=0, step=1, limit=18
  $region2: #{decoder3d_forward.3} parent=0 // loop_pre_header
    _
  $region3: #{decoder3d_forward.3} parent=0 // loop_header
    %s14 = sphi 0, %s18
    %p15 = scmp.ge.s32.totalorder %s14, 18
    %s21 = sphi 0, %s33
    %s22 = sphi 0, %s29
    %s23 = sphi 0, %s21
    %s24 = sphi 0, %s22
    %s25 = sphi 0, %s23
    %s26 = sphi 0, %s24
    %s44 = sphi 0, %s46
    %s47 = sphi 0, %s44
    %s48 = sphi 0, %s47
    %s64 = sphi 0, %s48
    %s72 = sphi 0, %s74
    %s75 = sphi 0, %s72
    %s76 = sphi 0, %s75
    %s92 = sphi 0, %s76
    %s106 = sphi 0, %s108
    %s109 = sphi 0, %s106
    %s110 = sphi 0, %s109
    %s126 = sphi 0, %s110
    %s130 = sphi 0, %s130
    %s132 = sphi 0, %s130
    %s133 = sphi 0, %s132
    %s147 = sphi 0, %s133
    %s151 = sphi 0, %s151
    %s153 = sphi 0, %s151
    %s154 = sphi 0, %s153
    %s168 = sphi 0, %s154
    %s172 = sphi 0, %s172
    %s174 = sphi 0, %s172
    %s175 = sphi 0, %s174
    %s189 = sphi 0, %s175
    %s197 = sphi 0, %s199
    %s200 = sphi 0, %s197
    %s201 = sphi 0, %s200
    %s217 = sphi 0, %s201
    %s225 = sphi 0, %s227
    %s228 = sphi 0, %s225
    %s229 = sphi 0, %s228
    %s245 = sphi 0, %s229
  $region4: #{decoder3d_forward.3} parent=0 // loop_header_branch
    %17 = sbr.rel (%p15) target = $region8
  $region5: #{decoder3d_forward.3} parent=0 // loop_body
    %s19 = ssub.s32 %s14, 1
    %s20 = ssub.s32 %s14, 2
    %s27 = sadd.s32 1, %s22
    %p28 = scmp.ge.s32.totalorder %s27, 8
    %s29 = scalar_select %p28, 0, %s27
    %s30 = sadd.s32 1, %s21
    %s31 = scalar_select %p28, %s30, %s21
    %p32 = scmp.ge.s32.totalorder %s31, 2
    %s33 = scalar_select %p32, 0, %s31
    %s34 = ssub.s32 %s22, 1
    %p35 = scmp.gt.s32.totalorder %s34, 0
    %s36 = scalar_select %p35, %s34, 0
    %s37 = ssub.s32 %s29, 1
    %p38 = scmp.gt.s32.totalorder %s37, 0
    %s39 = scalar_select %p38, %s37, 0
    %s40 = ssub.s32 %s21, %s33
    %s41 = ssub.s32 %s36, %s39
    %s42 = sor.u32 %s40, %s41
    %p43 = scmp.eq.s32.totalorder %s42, 0
    %s45 = sadd.s32 %s44, 1
    %s46 = scalar_select %p43, %s44, %s45
    %p49 = pneg %p43
    %p50 = scmp.eq.s32.totalorder %s14, 15
    %p51 = por %p49, %p50
    %p52 = scmp.ne.s32.totalorder %s44, %s47
    %p53 = scmp.eq.s32.totalorder %s14, 0
    %p54 = por %p52, %p53
    %p55 = scmp.ne.s32.totalorder %s44, %s47
    %p56 = scmp.eq.s32.totalorder %s19, 15
    %p57 = por %p55, %p56
    %p58 = scmp.ne.s32.totalorder %s47, %s48
    %p59 = scmp.eq.s32.totalorder %s19, 0
    %p60 = por %p58, %p59
    %p61 = scmp.ne.s32.totalorder %s47, %s48
    %p62 = scmp.eq.s32.totalorder %s20, 15
    %p63 = por %p61, %p62
    %p65 = scmp.ne.s32.totalorder %s48, %s64
    %p66 = scmp.eq.s32.totalorder %s20, 0
    %p67 = por %p65, %p66
    %s68 = ssub.s32 %s21, %s33
    %s69 = ssub.s32 %s22, %s29
    %s70 = sor.u32 %s68, %s69
    %p71 = scmp.eq.s32.totalorder %s70, 0
    %s73 = sadd.s32 %s72, 1
    %s74 = scalar_select %p71, %s72, %s73
    %p77 = pneg %p71
    %p78 = scmp.eq.s32.totalorder %s14, 15
    %p79 = por %p77, %p78
    %p80 = scmp.ne.s32.totalorder %s72, %s75
    %p81 = scmp.eq.s32.totalorder %s14, 0
    %p82 = por %p80, %p81
    %p83 = scmp.ne.s32.totalorder %s72, %s75
    %p84 = scmp.eq.s32.totalorder %s19, 15
    %p85 = por %p83, %p84
    %p86 = scmp.ne.s32.totalorder %s75, %s76
    %p87 = scmp.eq.s32.totalorder %s19, 0
    %p88 = por %p86, %p87
    %p89 = scmp.ne.s32.totalorder %s75, %s76
    %p90 = scmp.eq.s32.totalorder %s20, 15
    %p91 = por %p89, %p90
    %p93 = scmp.ne.s32.totalorder %s76, %s92
    %p94 = scmp.eq.s32.totalorder %s20, 0
    %p95 = por %p93, %p94
    %s96 = sadd.s32 %s22, 1
    %p97 = scmp.lt.s32.totalorder %s96, 7
    %s98 = scalar_select %p97, %s96, 7
    %s99 = sadd.s32 %s29, 1
    %p100 = scmp.lt.s32.totalorder %s99, 7
    %s101 = scalar_select %p100, %s99, 7
    %s102 = ssub.s32 %s21, %s33
    %s103 = ssub.s32 %s98, %s101
    %s104 = sor.u32 %s102, %s103
    %p105 = scmp.eq.s32.totalorder %s104, 0
    %s107 = sadd.s32 %s106, 1
    %s108 = scalar_select %p105, %s106, %s107
    %p111 = pneg %p105
    %p112 = scmp.eq.s32.totalorder %s14, 15
    %p113 = por %p111, %p112
    %p114 = scmp.ne.s32.totalorder %s106, %s109
    %p115 = scmp.eq.s32.totalorder %s14, 0
    %p116 = por %p114, %p115
    %p117 = scmp.ne.s32.totalorder %s106, %s109
    %p118 = scmp.eq.s32.totalorder %s19, 15
    %p119 = por %p117, %p118
    %p120 = scmp.ne.s32.totalorder %s109, %s110
    %p121 = scmp.eq.s32.totalorder %s19, 0
    %p122 = por %p120, %p121
    %p123 = scmp.ne.s32.totalorder %s109, %s110
    %p124 = scmp.eq.s32.totalorder %s20, 15
    %p125 = por %p123, %p124
    %p127 = scmp.ne.s32.totalorder %s110, %s126
    %p128 = scmp.eq.s32.totalorder %s20, 0
    %p129 = por %p127, %p128
    %s131 = sadd.s32 %s130, 1
    %p134 = scmp.eq.s32.totalorder %s14, 15
    %p135 = scmp.ne.s32.totalorder %s130, %s132
    %p136 = scmp.eq.s32.totalorder %s14, 0
    %p137 = por %p135, %p136
    %p138 = scmp.ne.s32.totalorder %s130, %s132
    %p139 = scmp.eq.s32.totalorder %s19, 15
    %p140 = por %p138, %p139
    %p141 = scmp.ne.s32.totalorder %s132, %s133
    %p142 = scmp.eq.s32.totalorder %s19, 0
    %p143 = por %p141, %p142
    %p144 = scmp.ne.s32.totalorder %s132, %s133
    %p145 = scmp.eq.s32.totalorder %s20, 15
    %p146 = por %p144, %p145
    %p148 = scmp.ne.s32.totalorder %s133, %s147
    %p149 = scmp.eq.s32.totalorder %s20, 0
    %p150 = por %p148, %p149
    %s152 = sadd.s32 %s151, 1
    %p155 = scmp.eq.s32.totalorder %s14, 15
    %p156 = scmp.ne.s32.totalorder %s151, %s153
    %p157 = scmp.eq.s32.totalorder %s14, 0
    %p158 = por %p156, %p157
    %p159 = scmp.ne.s32.totalorder %s151, %s153
    %p160 = scmp.eq.s32.totalorder %s19, 15
    %p161 = por %p159, %p160
    %p162 = scmp.ne.s32.totalorder %s153, %s154
    %p163 = scmp.eq.s32.totalorder %s19, 0
    %p164 = por %p162, %p163
    %p165 = scmp.ne.s32.totalorder %s153, %s154
    %p166 = scmp.eq.s32.totalorder %s20, 15
    %p167 = por %p165, %p166
    %p169 = scmp.ne.s32.totalorder %s154, %s168
    %p170 = scmp.eq.s32.totalorder %s20, 0
    %p171 = por %p169, %p170
    %s173 = sadd.s32 %s172, 1
    %p176 = scmp.eq.s32.totalorder %s14, 15
    %p177 = scmp.ne.s32.totalorder %s172, %s174
    %p178 = scmp.eq.s32.totalorder %s14, 0
    %p179 = por %p177, %p178
    %p180 = scmp.ne.s32.totalorder %s172, %s174
    %p181 = scmp.eq.s32.totalorder %s19, 15
    %p182 = por %p180, %p181
    %p183 = scmp.ne.s32.totalorder %s174, %s175
    %p184 = scmp.eq.s32.totalorder %s19, 0
    %p185 = por %p183, %p184
    %p186 = scmp.ne.s32.totalorder %s174, %s175
    %p187 = scmp.eq.s32.totalorder %s20, 15
    %p188 = por %p186, %p187
    %p190 = scmp.ne.s32.totalorder %s175, %s189
    %p191 = scmp.eq.s32.totalorder %s20, 0
    %p192 = por %p190, %p191
    %s193 = ssub.s32 %s21, %s33
    %s194 = ssub.s32 %s22, %s29
    %s195 = sor.u32 %s193, %s194
    %p196 = scmp.eq.s32.totalorder %s195, 0
    %s198 = sadd.s32 %s197, 1
    %s199 = scalar_select %p196, %s197, %s198
    %p202 = pneg %p196
    %p203 = scmp.eq.s32.totalorder %s14, 15
    %p204 = por %p202, %p203
    %p205 = scmp.ne.s32.totalorder %s197, %s200
    %p206 = scmp.eq.s32.totalorder %s14, 0
    %p207 = por %p205, %p206
    %p208 = scmp.ne.s32.totalorder %s197, %s200
    %p209 = scmp.eq.s32.totalorder %s19, 15
    %p210 = por %p208, %p209
    %p211 = scmp.ne.s32.totalorder %s200, %s201
    %p212 = scmp.eq.s32.totalorder %s19, 0
    %p213 = por %p211, %p212
    %p214 = scmp.ne.s32.totalorder %s200, %s201
    %p215 = scmp.eq.s32.totalorder %s20, 15
    %p216 = por %p214, %p215
    %p218 = scmp.ne.s32.totalorder %s201, %s217
    %p219 = scmp.eq.s32.totalorder %s20, 0
    %p220 = por %p218, %p219
    %s221 = ssub.s32 %s21, %s33
    %s222 = ssub.s32 %s22, %s29
    %s223 = sor.u32 %s221, %s222
    %p224 = scmp.eq.s32.totalorder %s223, 0
    %s226 = sadd.s32 %s225, 1
    %s227 = scalar_select %p224, %s225, %s226
    %p230 = pneg %p224
    %p231 = scmp.eq.s32.totalorder %s14, 15
    %p232 = por %p230, %p231
    %p233 = scmp.ne.s32.totalorder %s225, %s228
    %p234 = scmp.eq.s32.totalorder %s14, 0
    %p235 = por %p233, %p234
    %p236 = scmp.ne.s32.totalorder %s225, %s228
    %p237 = scmp.eq.s32.totalorder %s19, 15
    %p238 = por %p236, %p237
    %p239 = scmp.ne.s32.totalorder %s228, %s229
    %p240 = scmp.eq.s32.totalorder %s19, 0
    %p241 = por %p239, %p240
    %p242 = scmp.ne.s32.totalorder %s228, %s229
    %p243 = scmp.eq.s32.totalorder %s20, 15
    %p244 = por %p242, %p243
    %p246 = scmp.ne.s32.totalorder %s229, %s245
    %p247 = scmp.eq.s32.totalorder %s20, 0
    %p248 = por %p246, %p247
    %p249 = scmp.le.s32.totalorder 1, %s14
    %p250 = scmp.lt.s32.totalorder %s14, 17
    %p251 = pnand %p249, %p250
    %p252 = pneg %p251
    // Predicated region
    $region9: #{decoder3d_forward.3} parent=5 // pred_check
      _
    $region10: #{decoder3d_forward.3} parent=5 // pred_check_branch
      %254 = sbr.rel (%p251) target = $region12
    $region11: #{decoder3d_forward.3} parent=5 // pred_region
      %s255 = ssub.s32 %s14, 1
      // Predicated region
      $region13: #{decoder3d_forward.3} parent=11 // pred_check
        %p256 = pneg %p143
      $region14: #{decoder3d_forward.3} parent=11 // pred_check_branch
        %258 = sbr.rel (%p256) target = $region16
      $region15: #{decoder3d_forward.3} parent=11 // pred_region
        _
      $region16: #{decoder3d_forward.3} parent=11 // pred_fallthru
        _
      // Predicated region
      $region17: #{decoder3d_forward.3} parent=11 // pred_check
        %p259 = pneg %p164
      $region18: #{decoder3d_forward.3} parent=11 // pred_check_branch
        %261 = sbr.rel (%p259) target = $region20
      $region19: #{decoder3d_forward.3} parent=11 // pred_region
        _
      $region20: #{decoder3d_forward.3} parent=11 // pred_fallthru
        _
      // Predicated region
      $region21: #{decoder3d_forward.3} parent=11 // pred_check
        %p262 = pneg %p185
      $region22: #{decoder3d_forward.3} parent=11 // pred_check_branch
        %264 = sbr.rel (%p262) target = $region24
      $region23: #{decoder3d_forward.3} parent=11 // pred_region
        _
      $region24: #{decoder3d_forward.3} parent=11 // pred_fallthru
        _
    $region12: #{decoder3d_forward.3} parent=5 // pred_fallthru
      _
    %p265 = scmp.lt.s32.totalorder %s14, 16
    // Predicated region
    $region25: #{decoder3d_forward.3} parent=5 // pred_check
      %p266 = pneg %p265
    $region26: #{decoder3d_forward.3} parent=5 // pred_check_branch
      %268 = sbr.rel (%p266) target = $region28
    $region27: #{decoder3d_forward.3} parent=5 // pred_region
      // Predicated region
      $region29: #{decoder3d_forward.3} parent=27 // pred_check
        %p269 = pneg %p54
      $region30: #{decoder3d_forward.3} parent=27 // pred_check_branch
        %271 = sbr.rel (%p269) target = $region32
      $region31: #{decoder3d_forward.3} parent=27 // pred_region
        %s272 = ssub.s32 %s22, 1
        %p273 = scmp.gt.s32.totalorder %s272, 0
        %s274 = scalar_select %p273, %s272, 0
        %p275 = scmp.lt.s32.totalorder %s21, 1
        %s276 = scalar_select %p275, %s21, 1
        %p277 = scmp.lt.s32.totalorder %s274, 7
        %s278 = scalar_select %p277, %s274, 7
        %s279 = smul.addr %s278, 8
        %s280 = smul.addr %s276, 64
        %s281 = sadd.s32 %s279, %s280
        %s282 = smul.addr %s281, 4
        %s283 = scalar_lea.vmem %s0, %s282
        %s284 = ssub.s32 %s22, 1
        %p285 = scmp.gt.s32.totalorder %s284, 0
        %s286 = scalar_select %p285, %s284, 0
      $region32: #{decoder3d_forward.3} parent=27 // pred_fallthru
        _
      // Predicated region
      $region33: #{decoder3d_forward.3} parent=27 // pred_check
        %p287 = pneg %p82
      $region34: #{decoder3d_forward.3} parent=27 // pred_check_branch
        %289 = sbr.rel (%p287) target = $region36
      $region35: #{decoder3d_forward.3} parent=27 // pred_region
        %p290 = scmp.lt.s32.totalorder %s21, 1
        %s291 = scalar_select %p290, %s21, 1
        %p292 = scmp.lt.s32.totalorder %s22, 7
        %s293 = scalar_select %p292, %s22, 7
        %s294 = smul.addr %s293, 8
        %s295 = smul.addr %s291, 64
        %s296 = sadd.s32 %s294, %s295
        %s297 = smul.addr %s296, 4
        %s298 = scalar_lea.vmem %s1, %s297
      $region36: #{decoder3d_forward.3} parent=27 // pred_fallthru
        _
      // Predicated region
      $region37: #{decoder3d_forward.3} parent=27 // pred_check
        %p299 = pneg %p116
      $region38: #{decoder3d_forward.3} parent=27 // pred_check_branch
        %301 = sbr.rel (%p299) target = $region40
      $region39: #{decoder3d_forward.3} parent=27 // pred_region
        %s302 = sadd.s32 %s22, 1
        %p303 = scmp.lt.s32.totalorder %s302, 7
        %s304 = scalar_select %p303, %s302, 7
        %p305 = scmp.lt.s32.totalorder %s21, 1
        %s306 = scalar_select %p305, %s21, 1
        %p307 = scmp.lt.s32.totalorder %s304, 7
        %s308 = scalar_select %p307, %s304, 7
        %s309 = smul.addr %s308, 8
        %s310 = smul.addr %s306, 64
        %s311 = sadd.s32 %s309, %s310
        %s312 = smul.addr %s311, 4
        %s313 = scalar_lea.vmem %s2, %s312
        %s314 = sadd.s32 %s22, 1
        %p315 = scmp.lt.s32.totalorder %s314, 7
        %s316 = scalar_select %p315, %s314, 7
      $region40: #{decoder3d_forward.3} parent=27 // pred_fallthru
        _
    $region28: #{decoder3d_forward.3} parent=5 // pred_fallthru
      _
    %p317 = scmp.le.s32.totalorder 1, %s14
    %p318 = scmp.lt.s32.totalorder %s14, 17
    %p319 = pnand %p317, %p318
    %p320 = pneg %p319
    // Predicated region
    $region41: #{decoder3d_forward.3} parent=5 // pred_check
      _
    $region42: #{decoder3d_forward.3} parent=5 // pred_check_branch
      %322 = sbr.rel (%p319) target = $region44
    $region43: #{decoder3d_forward.3} parent=5 // pred_region
      %s323 = ssub.s32 %s14, 1
      %s324 = ssub.s32 %s24, 1
      %p325 = scmp.gt.s32.totalorder %s324, 0
      %s326 = scalar_select %p325, %s324, 0
      %p327 = scmp.lt.s32.totalorder %s23, 1
      %s328 = scalar_select %p327, %s23, 1
      %p329 = scmp.lt.s32.totalorder %s326, 7
      %s330 = scalar_select %p329, %s326, 7
      %s331 = smul.addr %s330, 8
      %s332 = smul.addr %s328, 64
      %s333 = sadd.s32 %s331, %s332
      %s334 = smul.addr %s333, 4
      %s335 = scalar_lea.vmem %s0, %s334
      %p336 = pneg %p60
      %p337 = pneg %p57
      %p338 = scmp.lt.s32.totalorder %s23, 1
      %s339 = scalar_select %p338, %s23, 1
      %p340 = scmp.lt.s32.totalorder %s24, 7
      %s341 = scalar_select %p340, %s24, 7
      %s342 = smul.addr %s341, 8
      %s343 = smul.addr %s339, 64
      %s344 = sadd.s32 %s342, %s343
      %s345 = smul.addr %s344, 4
      %s346 = scalar_lea.vmem %s1, %s345
      %p347 = pneg %p88
      %p348 = pneg %p85
      %s349 = sadd.s32 %s24, 1
      %p350 = scmp.lt.s32.totalorder %s349, 7
      %s351 = scalar_select %p350, %s349, 7
      %p352 = scmp.lt.s32.totalorder %s23, 1
      %s353 = scalar_select %p352, %s23, 1
      %p354 = scmp.lt.s32.totalorder %s351, 7
      %s355 = scalar_select %p354, %s351, 7
      %s356 = smul.addr %s355, 8
      %s357 = smul.addr %s353, 64
      %s358 = sadd.s32 %s356, %s357
      %s359 = smul.addr %s358, 4
      %s360 = scalar_lea.vmem %s2, %s359
      %p361 = pneg %p122
      %p362 = pneg %p119
      %p363 = pneg %p143
      %p364 = pneg %p140
      %p365 = pneg %p164
      %p366 = pneg %p161
      %p367 = pneg %p185
      %p368 = pneg %p182
      %p369 = pneg %p213
      %p370 = pneg %p210
      %p371 = scmp.lt.s32.totalorder %s23, 1
      %s372 = scalar_select %p371, %s23, 1
      %p373 = scmp.lt.s32.totalorder %s24, 7
      %s374 = scalar_select %p373, %s24, 7
      %s375 = smul.addr %s374, 8
      %s376 = smul.addr %s372, 64
      %s377 = sadd.s32 %s375, %s376
      %s378 = smul.addr %s377, 4
      %s379 = scalar_lea.vmem %s6, %s378
      %p380 = pneg %p241
      %p381 = pneg %p238
      %p382 = scmp.lt.s32.totalorder %s23, 1
      %s383 = scalar_select %p382, %s23, 1
      %p384 = scmp.lt.s32.totalorder %s24, 7
      %s385 = scalar_select %p384, %s24, 7
      %s386 = smul.addr %s383, 8
      %s387 = sadd.s32 %s385, %s386
      %s388 = smul.addr %s387, 2
      %s389 = scalar_lea.vmem %s7, %s388
      %s390 = ssub.s32 %s24, 1
      %p391 = scmp.gt.s32.totalorder %s390, 0
      %s392 = scalar_select %p391, %s390, 0
      %p393 = scmp.lt.s32.totalorder %s23, 1
      %s394 = scalar_select %p393, %s23, 1
      %p395 = scmp.lt.s32.totalorder %s392, 7
      %s396 = scalar_select %p395, %s392, 7
      %s397 = smul.addr %s396, 8
      %s398 = smul.addr %s394, 64
      %s399 = sadd.s32 %s397, %s398
      %s400 = smul.addr %s399, 4
      %s401 = scalar_lea.vmem %s0, %s400
      %s402 = ssub.s32 %s24, 1
      %p403 = scmp.gt.s32.totalorder %s402, 0
      %s404 = scalar_select %p403, %s402, 0
      %p405 = scmp.lt.s32.totalorder %s23, 1
      %s406 = scalar_select %p405, %s23, 1
      %p407 = scmp.lt.s32.totalorder %s24, 7
      %s408 = scalar_select %p407, %s24, 7
      %s409 = smul.addr %s408, 8
      %s410 = smul.addr %s406, 64
      %s411 = sadd.s32 %s409, %s410
      %s412 = smul.addr %s411, 4
      %s413 = scalar_lea.vmem %s1, %s412
      %s414 = sadd.s32 %s24, 1
      %p415 = scmp.lt.s32.totalorder %s414, 7
      %s416 = scalar_select %p415, %s414, 7
      %p417 = scmp.lt.s32.totalorder %s23, 1
      %s418 = scalar_select %p417, %s23, 1
      %p419 = scmp.lt.s32.totalorder %s416, 7
      %s420 = scalar_select %p419, %s416, 7
      %s421 = smul.addr %s420, 8
      %s422 = smul.addr %s418, 64
      %s423 = sadd.s32 %s421, %s422
      %s424 = smul.addr %s423, 4
      %s425 = scalar_lea.vmem %s2, %s424
      %s426 = sadd.s32 %s24, 1
      %p427 = scmp.lt.s32.totalorder %s426, 7
      %s428 = scalar_select %p427, %s426, 7
      %p429 = scmp.lt.s32.totalorder %s23, 1
      %s430 = scalar_select %p429, %s23, 1
      %p431 = scmp.lt.s32.totalorder %s24, 7
      %s432 = scalar_select %p431, %s24, 7
      %s433 = smul.addr %s432, 8
      %s434 = smul.addr %s430, 64
      %s435 = sadd.s32 %s433, %s434
      %s436 = smul.addr %s435, 4
      %s437 = scalar_lea.vmem %s6, %s436
      %p438 = scmp.lt.s32.totalorder %s23, 1
      %s439 = scalar_select %p438, %s23, 1
      %p440 = scmp.lt.s32.totalorder %s24, 7
      %s441 = scalar_select %p440, %s24, 7
      %s442 = smul.addr %s439, 8
      %s443 = sadd.s32 %s441, %s442
      %s444 = smul.addr %s443, 2
      %s445 = scalar_lea.vmem %s7, %s444
      %p447 = scmp.gt.s32.totalorder %s24, 0
      %v448 = vld [vmem:[%s401] sm:$0xf]
      %v449 = vld [vmem:[%s401 + $0x4] sm:$0xf]
      %v450 = vld [vmem:[%s401 + $0x8] sm:$0xf]
      %v451 = vld [vmem:[%s401 + $0xc] sm:$0xf]
      %v452 = vld [vmem:[%s401 + $0x10] sm:$0xf]
      %v453 = vld [vmem:[%s401 + $0x14] sm:$0xf]
      %v454 = vld [vmem:[%s401 + $0x18] sm:$0xf]
      %v455 = vld [vmem:[%s401 + $0x1c] sm:$0xf]
      %s456 = scalar_select %p447, 1, 0
      %s457 = scvt.s32.f32 %s456
      %p459 = scmp.ne.f32.partialorder %s457, %s457
      %s460 = sshrl.u32 %s457, 16
      %s461 = sand.u32 %s460, 1
      %s462 = sadd.s32 32767, %s461
      %s463 = sadd.s32 %s457, %s462
      %s464 = sand.u32 %s463, 4294901760
      %s465 = scalar_select %p459, 2143289344, %s464
      %s467 = sshrl.u32 %s465, 16
      %s468 = sshll.u32 %s467, 16
      %s469 = sor.u32 %s467, %s468
      %v470 = vstv %s469
      %v472 = vmul.bf16 %v448, %v470
      %v473 = vmul.bf16 %v449, %v470
      %v474 = vmul.bf16 %v450, %v470
      %v475 = vmul.bf16 %v451, %v470
      %v476 = vmul.bf16 %v452, %v470
      %v477 = vmul.bf16 %v453, %v470
      %v478 = vmul.bf16 %v454, %v470
      %v479 = vmul.bf16 %v455, %v470
      %v480 = vld [vmem:[%s413] sm:$0xf]
      %v481 = vld [vmem:[%s413 + $0x4] sm:$0xf]
      %v482 = vld [vmem:[%s413 + $0x8] sm:$0xf]
      %v483 = vld [vmem:[%s413 + $0xc] sm:$0xf]
      %v484 = vld [vmem:[%s413 + $0x10] sm:$0xf]
      %v485 = vld [vmem:[%s413 + $0x14] sm:$0xf]
      %v486 = vld [vmem:[%s413 + $0x18] sm:$0xf]
      %v487 = vld [vmem:[%s413 + $0x1c] sm:$0xf]
      %p488 = scmp.lt.s32.totalorder %s24, 7
      %v489 = vld [vmem:[%s425] sm:$0xf]
      %v490 = vld [vmem:[%s425 + $0x4] sm:$0xf]
      %v491 = vld [vmem:[%s425 + $0x8] sm:$0xf]
      %v492 = vld [vmem:[%s425 + $0xc] sm:$0xf]
      %v493 = vld [vmem:[%s425 + $0x10] sm:$0xf]
      %v494 = vld [vmem:[%s425 + $0x14] sm:$0xf]
      %v495 = vld [vmem:[%s425 + $0x18] sm:$0xf]
      %v496 = vld [vmem:[%s425 + $0x1c] sm:$0xf]
      %s497 = scalar_select %p488, 1, 0
      %s498 = scvt.s32.f32 %s497
      %p500 = scmp.ne.f32.partialorder %s498, %s498
      %s501 = sshrl.u32 %s498, 16
      %s502 = sand.u32 %s501, 1
      %s503 = sadd.s32 32767, %s502
      %s504 = sadd.s32 %s498, %s503
      %s505 = sand.u32 %s504, 4294901760
      %s506 = scalar_select %p500, 2143289344, %s505
      %s508 = sshrl.u32 %s506, 16
      %s509 = sshll.u32 %s508, 16
      %s510 = sor.u32 %s508, %s509
      %v511 = vstv %s510
      %v513 = vmul.bf16 %v489, %v511
      %v514 = vmul.bf16 %v490, %v511
      %v515 = vmul.bf16 %v491, %v511
      %v516 = vmul.bf16 %v492, %v511
      %v517 = vmul.bf16 %v493, %v511
      %v518 = vmul.bf16 %v494, %v511
      %v519 = vmul.bf16 %v495, %v511
      %v520 = vmul.bf16 %v496, %v511
      %v522 = vshrl.u32 0, 16
      %v524 = vrot.slane %v522, 7
      %v525 = vshll.u32 0, 16
      %v527 = vor.u32 %v524, %v525
      %v529 = vshrl.u32 %v472, 16
      %v531 = vrot.slane %v529, 7
      %v532 = vshll.u32 %v472, 16
      %v534 = vor.u32 %v531, %v532
      %v536 = vshrl.u32 %v473, 16
      %v538 = vrot.slane %v536, 7
      %v539 = vshll.u32 %v473, 16
      %v541 = vor.u32 %v538, %v539
      %v543 = vshrl.u32 %v474, 16
      %v545 = vrot.slane %v543, 7
      %v546 = vshll.u32 %v474, 16
      %v548 = vor.u32 %v545, %v546
      %v550 = vshrl.u32 %v475, 16
      %v552 = vrot.slane %v550, 7
      %v553 = vshll.u32 %v475, 16
      %v555 = vor.u32 %v552, %v553
      %v557 = vshrl.u32 %v476, 16
      %v559 = vrot.slane %v557, 7
      %v560 = vshll.u32 %v476, 16
      %v562 = vor.u32 %v559, %v560
      %v564 = vshrl.u32 %v477, 16
      %v566 = vrot.slane %v564, 7
      %v567 = vshll.u32 %v477, 16
      %v569 = vor.u32 %v566, %v567
      %v571 = vshrl.u32 %v478, 16
      %v573 = vrot.slane %v571, 7
      %v574 = vshll.u32 %v478, 16
      %v576 = vor.u32 %v573, %v574
      %v578 = vshrl.u32 %v479, 16
      %v580 = vrot.slane %v578, 7
      %v581 = vshll.u32 %v479, 16
      %v583 = vor.u32 %v580, %v581
      %vm593 = vcmask 1040384
      %vm594 = vsmask.f32 256
      %vm595 = vmand %vm593, %vm594
      %v596 = vsel %vm595, 0, %v527
      %v597 = vsel %vm595, 0, %v534
      %v598 = vsel %vm595, 0, %v541
      %v599 = vsel %vm595, 0, %v548
      %v600 = vsel %vm595, 0, %v555
      %v601 = vsel %vm595, 0, %v562
      %v602 = vsel %vm595, 0, %v569
      %v603 = vsel %vm595, 0, %v576
      %v604 = vsel %vm595, 0, %v583
      %vm605 = vcmask 1044480
      %vm606 = vsmask.f32 4352
      %vm607 = vmand %vm605, %vm606
      %v608 = vsel %vm607, %v596, 0
      %v609 = vsel %vm607, %v597, 0
      %v610 = vsel %vm607, %v598, 0
      %v611 = vsel %vm607, %v599, 0
      %v612 = vsel %vm607, %v600, 0
      %v613 = vsel %vm607, %v601, 0
      %v614 = vsel %vm607, %v602, 0
      %v615 = vsel %vm607, %v603, 0
      %v616 = vsel %vm607, %v604, 0
      %v617 = vld [vmem:[%s3] sm:$0x3]
      %s618 = scalar_lea.vmem %s3, 6
      %v619 = vld [vmem:[%s618] sm:$0x3]
      %v628 = vunpack.c.l.b16 %v609
      %v629 = vunpack.c.l.b16 %v610
      %v630 = vunpack.c.l.b16 %v611
      %v631 = vunpack.c.l.b16 %v612
      %v632 = vunpack.c.l.b16 %v613
      %v633 = vunpack.c.l.b16 %v614
      %v634 = vunpack.c.l.b16 %v615
      %v635 = vunpack.c.l.b16 %v616
      %v636 = vpack.c.b16 %v629, %v628
      %v637 = vpack.c.b16 %v631, %v630
      %v638 = vpack.c.b16 %v633, %v632
      %v639 = vpack.c.b16 %v635, %v634
      %vm640 = vcmask 31744
      %v642 = vsel %vm640, %v636, 0
      %v645 = vsel %vm640, %v637, 0
      %v648 = vsel %vm640, %v638, 0
      %v651 = vsel %vm640, %v639, 0
      %vm653 = vcmask 1041408
      %v655 = vsel %vm653, %v619, 0
      %657 = vmatprep.subr.bf16.mxu0 0
      %658 = vmatpush1.bf16.msra.mxu0 %v655
      %659 = vmatprep.subr.bf16.mxu0 0
      %660 = vmatpush1.bf16.msra.mxu0 0
      %661 = vmatprep.subr.bf16.mxu0 0
      %662 = vmatpush1.bf16.msra.mxu0 0
      %663 = vmatprep.subr.bf16.mxu0 0
      %664 = vmatpush1.bf16.msra.mxu0 0
      %665 = vmatprep.subr.bf16.mxu0 0
      %666 = vmatpush1.bf16.msra.mxu0 0
      %667 = vmatprep.subr.bf16.mxu0 0
      %668 = vmatpush1.bf16.msra.mxu0 0
      %669 = vmatprep.subr.bf16.mxu0 0
      %670 = vmatpush1.bf16.msra.mxu0 0
      %671 = vmatprep.subr.bf16.mxu0 0
      %672 = vmatpush1.bf16.msra.mxu0 0
      %673 = vmatprep.subr.bf16.mxu0 0
      %674 = vmatpush1.bf16.msra.mxu0 0
      %675 = vmatprep.subr.bf16.mxu0 0
      %676 = vmatpush1.bf16.msra.mxu0 0
      %677 = vmatprep.subr.bf16.mxu0 0
      %678 = vmatpush1.bf16.msra.mxu0 0
      %679 = vmatprep.subr.bf16.mxu0 0
      %680 = vmatpush1.bf16.msra.mxu0 0
      %681 = vmatprep.subr.bf16.mxu0 0
      %682 = vmatpush1.bf16.msra.mxu0 0
      %683 = vmatprep.subr.bf16.mxu0 0
      %684 = vmatpush1.bf16.msra.mxu0 0
      %685 = vmatprep.subr.bf16.mxu0 0
      %686 = vmatpush1.bf16.msra.mxu0 0
      %687 = vmatprep.subr.bf16.mxu0 0
      %688 = vmatpush1.bf16.msra.mxu0 0
      %689 = vmatprep.mubr.bf16.mxu0 0
      %690 = vmatmul.mubr.bf16.gmra.mrb[0].mxu0 %v642
      %v691 = vpop.f32.mrb[0].mxu0
      %v692 = vadd.f32 0.0, %v691
      %v693 = vpop.f32.mrb[0].mxu0
      %v694 = vpop.f32.mrb[0].mxu0
      %v695 = vadd.f32 0.0, %v694
      %v696 = vpop.f32.mrb[0].mxu0
      %697 = vmatprep.mubr.bf16.mxu0 0
      %698 = vmatmul.mubr.bf16.gmra.mrb[0].mxu0 %v645
      %v699 = vpop.f32.mrb[0].mxu0
      %v700 = vadd.f32 0.0, %v699
      %v701 = vpop.f32.mrb[0].mxu0
      %v702 = vpop.f32.mrb[0].mxu0
      %v703 = vadd.f32 0.0, %v702
      %v704 = vpop.f32.mrb[0].mxu0
      %705 = vmatprep.mubr.bf16.mxu0 0
      %706 = vmatmul.mubr.bf16.gmra.mrb[0].mxu0 %v648
      %v707 = vpop.f32.mrb[0].mxu0
      %v708 = vadd.f32 0.0, %v707
      %v709 = vpop.f32.mrb[0].mxu0
      %v710 = vpop.f32.mrb[0].mxu0
      %v711 = vadd.f32 0.0, %v710
      %v712 = vpop.f32.mrb[0].mxu0
      %713 = vmatprep.mubr.bf16.mxu0 0
      %714 = vmatmul.mubr.bf16.gmra.mrb[0].mxu0 %v651
      %v715 = vpop.f32.mrb[0].mxu0
      %v716 = vadd.f32 0.0, %v715
      %v717 = vpop.f32.mrb[0].mxu0
      %v718 = vpop.f32.mrb[0].mxu0
      %v719 = vadd.f32 0.0, %v718
      %v720 = vpop.f32.mrb[0].mxu0
      %721 = vdwg.mxu0
      %v723 = vunpack.c.l.b16 %v608
      %v724 = vpack.c.b16 %v628, %v723
      %v725 = vpack.c.b16 %v630, %v629
      %v726 = vpack.c.b16 %v632, %v631
      %v727 = vpack.c.b16 %v634, %v633
      %v729 = vsel %vm640, %v724, 0
      %v732 = vsel %vm640, %v725, 0
      %v735 = vsel %vm640, %v726, 0
      %v738 = vsel %vm640, %v727, 0
      %v741 = vsel %vm653, %v617, 0
      %743 = vmatprep.subr.bf16.mxu0 0
      %744 = vmatpush1.bf16.msra.mxu0 %v741
      %745 = vmatprep.subr.bf16.mxu0 0
      %746 = vmatpush1.bf16.msra.mxu0 0
      %747 = vmatprep.subr.bf16.mxu0 0
      %748 = vmatpush1.bf16.msra.mxu0 0
      %749 = vmatprep.subr.bf16.mxu0 0
      %750 = vmatpush1.bf16.msra.mxu0 0
      %751 = vmatprep.subr.bf16.mxu0 0
      %752 = vmatpush1.bf16.msra.mxu0 0
      %753 = vmatprep.subr.bf16.mxu0 0
      %754 = vmatpush1.bf16.msra.mxu0 0
      %755 = vmatprep.subr.bf16.mxu0 0
      %756 = vmatpush1.bf16.msra.mxu0 0
      %757 = vmatprep.subr.bf16.mxu0 0
      %758 = vmatpush1.bf16.msra.mxu0 0
      %759 = vmatprep.subr.bf16.mxu0 0
      %760 = vmatpush1.bf16.msra.mxu0 0
      %761 = vmatprep.subr.bf16.mxu0 0
      %762 = vmatpush1.bf16.msra.mxu0 0
      %763 = vmatprep.subr.bf16.mxu0 0
      %764 = vmatpush1.bf16.msra.mxu0 0
      %765 = vmatprep.subr.bf16.mxu0 0
      %766 = vmatpush1.bf16.msra.mxu0 0
      %767 = vmatprep.subr.bf16.mxu0 0
      %768 = vmatpush1.bf16.msra.mxu0 0
      %769 = vmatprep.subr.bf16.mxu0 0
      %770 = vmatpush1.bf16.msra.mxu0 0
      %771 = vmatprep.subr.bf16.mxu0 0
      %772 = vmatpush1.bf16.msra.mxu0 0
      %773 = vmatprep.subr.bf16.mxu0 0
      %774 = vmatpush1.bf16.msra.mxu0 0
      %775 = vmatprep.mubr.bf16.mxu0 0
      %776 = vmatmul.mubr.bf16.gmra.mrb[0].mxu0 %v729
      %v777 = vpop.f32.mrb[0].mxu0
      %v778 = vadd.f32 %v692, %v777
      %v779 = vpop.f32.mrb[0].mxu0
      %v780 = vpop.f32.mrb[0].mxu0
      %v781 = vadd.f32 %v695, %v780
      %v782 = vpop.f32.mrb[0].mxu0
      %783 = vmatprep.mubr.bf16.mxu0 0
      %784 = vmatmul.mubr.bf16.gmra.mrb[0].mxu0 %v732
      %v785 = vpop.f32.mrb[0].mxu0
      %v786 = vadd.f32 %v700, %v785
      %v787 = vpop.f32.mrb[0].mxu0
      %v788 = vpop.f32.mrb[0].mxu0
      %v789 = vadd.f32 %v703, %v788
      %v790 = vpop.f32.mrb[0].mxu0
      %791 = vmatprep.mubr.bf16.mxu0 0
      %792 = vmatmul.mubr.bf16.gmra.mrb[0].mxu0 %v735
      %v793 = vpop.f32.mrb[0].mxu0
      %v794 = vadd.f32 %v708, %v793
      %v795 = vpop.f32.mrb[0].mxu0
      %v796 = vpop.f32.mrb[0].mxu0
      %v797 = vadd.f32 %v711, %v796
      %v798 = vpop.f32.mrb[0].mxu0
      %799 = vmatprep.mubr.bf16.mxu0 0
      %800 = vmatmul.mubr.bf16.gmra.mrb[0].mxu0 %v738
      %v801 = vpop.f32.mrb[0].mxu0
      %v802 = vadd.f32 %v716, %v801
      %v803 = vpop.f32.mrb[0].mxu0
      %v804 = vpop.f32.mrb[0].mxu0
      %v805 = vadd.f32 %v719, %v804
      %v806 = vpop.f32.mrb[0].mxu0
      %807 = vdwg.mxu0
      %s808 = scalar_lea.vmem %s3, 12
      %v809 = vld [vmem:[%s808] sm:$0x3]
      %v810 = vpack.c.b16 %v723, %v635
      %v812 = vsel %vm640, %v810, 0
      %v815 = vsel %vm653, %v809, 0
      %817 = vmatprep.subr.bf16.mxu0 0
      %818 = vmatpush1.bf16.msra.mxu0 %v815
      %819 = vmatprep.subr.bf16.mxu0 0
      %820 = vmatpush1.bf16.msra.mxu0 0
      %821 = vmatprep.subr.bf16.mxu0 0
      %822 = vmatpush1.bf16.msra.mxu0 0
      %823 = vmatprep.subr.bf16.mxu0 0
      %824 = vmatpush1.bf16.msra.mxu0 0
      %825 = vmatprep.subr.bf16.mxu0 0
      %826 = vmatpush1.bf16.msra.mxu0 0
      %827 = vmatprep.subr.bf16.mxu0 0
      %828 = vmatpush1.bf16.msra.mxu0 0
      %829 = vmatprep.subr.bf16.mxu0 0
      %830 = vmatpush1.bf16.msra.mxu0 0
      %831 = vmatprep.subr.bf16.mxu0 0
      %832 = vmatpush1.bf16.msra.mxu0 0
      %833 = vmatprep.subr.bf16.mxu0 0
      %834 = vmatpush1.bf16.msra.mxu0 0
      %835 = vmatprep.subr.bf16.mxu0 0
      %836 = vmatpush1.bf16.msra.mxu0 0
      %837 = vmatprep.subr.bf16.mxu0 0
      %838 = vmatpush1.bf16.msra.mxu0 0
      %839 = vmatprep.subr.bf16.mxu0 0
      %840 = vmatpush1.bf16.msra.mxu0 0
      %841 = vmatprep.subr.bf16.mxu0 0
      %842 = vmatpush1.bf16.msra.mxu0 0
      %843 = vmatprep.subr.bf16.mxu0 0
      %844 = vmatpush1.bf16.msra.mxu0 0
      %845 = vmatprep.subr.bf16.mxu0 0
      %846 = vmatpush1.bf16.msra.mxu0 0
      %847 = vmatprep.subr.bf16.mxu0 0
      %848 = vmatpush1.bf16.msra.mxu0 0
      %849 = vmatprep.mubr.bf16.mxu0 0
      %850 = vmatmul.mubr.bf16.gmra.mrb[0].mxu0 %v732
      %v851 = vpop.f32.mrb[0].mxu0
      %v852 = vadd.f32 0.0, %v851
      %v853 = vpop.f32.mrb[0].mxu0
      %v854 = vpop.f32.mrb[0].mxu0
      %v855 = vadd.f32 0.0, %v854
      %v856 = vpop.f32.mrb[0].mxu0
      %857 = vmatprep.mubr.bf16.mxu0 0
      %858 = vmatmul.mubr.bf16.gmra.mrb[0].mxu0 %v735
      %v859 = vpop.f32.mrb[0].mxu0
      %v860 = vadd.f32 0.0, %v859
      %v861 = vpop.f32.mrb[0].mxu0
      %v862 = vpop.f32.mrb[0].mxu0
      %v863 = vadd.f32 0.0, %v862
      %v864 = vpop.f32.mrb[0].mxu0
      %865 = vmatprep.mubr.bf16.mxu0 0
      %866 = vmatmul.mubr.bf16.gmra.mrb[0].mxu0 %v738
      %v867 = vpop.f32.mrb[0].mxu0
      %v868 = vadd.f32 0.0, %v867
      %v869 = vpop.f32.mrb[0].mxu0
      %v870 = vpop.f32.mrb[0].mxu0
      %v871 = vadd.f32 0.0, %v870
      %v872 = vpop.f32.mrb[0].mxu0
      %873 = vmatprep.mubr.bf16.mxu0 0
      %874 = vmatmul.mubr.bf16.gmra.mrb[0].mxu0 %v812
      %v875 = vpop.f32.mrb[0].mxu0
      %v876 = vadd.f32 0.0, %v875
      %v877 = vpop.f32.mrb[0].mxu0
      %v878 = vpop.f32.mrb[0].mxu0
      %v879 = vadd.f32 0.0, %v878
      %v880 = vpop.f32.mrb[0].mxu0
      %881 = vdwg.mxu0
      %v882 = vadd.f32 %v778, %v852
      %v883 = vadd.f32 %v781, %v855
      %v884 = vadd.f32 %v786, %v860
      %v885 = vadd.f32 %v789, %v863
      %v886 = vadd.f32 %v794, %v868
      %v887 = vadd.f32 %v797, %v871
      %v888 = vadd.f32 %v802, %v876
      %v889 = vadd.f32 %v805, %v879
      %v890 = vunpack.c.h.b16 %v608
      %v891 = vunpack.c.h.b16 %v609
      %v892 = vunpack.c.h.b16 %v610
      %v893 = vunpack.c.h.b16 %v611
      %v894 = vunpack.c.h.b16 %v612
      %v895 = vunpack.c.h.b16 %v613
      %v896 = vunpack.c.h.b16 %v614
      %v897 = vunpack.c.h.b16 %v615
      %v898 = vunpack.c.h.b16 %v616
      %v899 = vpack.c.b16 %v723, %v723
      %v900 = vpack.c.b16 %v890, %v890
      %v901 = vpack.c.b16 %v628, %v628
      %v902 = vpack.c.b16 %v891, %v891
      %v903 = vpack.c.b16 %v629, %v629
      %v904 = vpack.c.b16 %v892, %v892
      %v905 = vpack.c.b16 %v630, %v630
      %v906 = vpack.c.b16 %v893, %v893
      %v907 = vpack.c.b16 %v631, %v631
      %v908 = vpack.c.b16 %v894, %v894
      %v909 = vpack.c.b16 %v632, %v632
      %v910 = vpack.c.b16 %v895, %v895
      %v911 = vpack.c.b16 %v633, %v633
      %v912 = vpack.c.b16 %v896, %v896
      %v913 = vpack.c.b16 %v634, %v634
      %v914 = vpack.c.b16 %v897, %v897
      %v915 = vpack.c.b16 %v635, %v635
      %v916 = vpack.c.b16 %v898, %v898
      %vm917 = vsmask.f32 3328
      %vm918 = vsmask.f32 7440
      %vm919 = vmor %vm917, %vm918
      %v921 = vshrl.u32 %v899, 16
      %v923 = vrot.slane %v921, 4
      %v924 = vshll.u32 %v899, 16
      %v926 = vrot.slane %v924, 5
      %v927 = vor.u32 %v923, %v926
      %v928 = vrot.slane %v927, 4
      %v930 = vshll.u32 %v900, 16
      %v932 = vrot.slane %v930, 5
      %v933 = vsel %vm919, %v928, %v932
      %v935 = vshrl.u32 %v901, 16
      %v937 = vrot.slane %v935, 4
      %v938 = vshll.u32 %v901, 16
      %v940 = vrot.slane %v938, 5
      %v941 = vor.u32 %v937, %v940
      %v942 = vrot.slane %v941, 4
      %v944 = vshll.u32 %v902, 16
      %v946 = vrot.slane %v944, 5
      %v947 = vsel %vm919, %v942, %v946
      %v949 = vshrl.u32 %v903, 16
      %v951 = vrot.slane %v949, 4
      %v952 = vshll.u32 %v903, 16
      %v954 = vrot.slane %v952, 5
      %v955 = vor.u32 %v951, %v954
      %v956 = vrot.slane %v955, 4
      %v958 = vshll.u32 %v904, 16
      %v960 = vrot.slane %v958, 5
      %v961 = vsel %vm919, %v956, %v960
      %v963 = vshrl.u32 %v905, 16
      %v965 = vrot.slane %v963, 4
      %v966 = vshll.u32 %v905, 16
      %v968 = vrot.slane %v966, 5
      %v969 = vor.u32 %v965, %v968
      %v970 = vrot.slane %v969, 4
      %v972 = vshll.u32 %v906, 16
      %v974 = vrot.slane %v972, 5
      %v975 = vsel %vm919, %v970, %v974
      %v977 = vshrl.u32 %v907, 16
      %v979 = vrot.slane %v977, 4
      %v980 = vshll.u32 %v907, 16
      %v982 = vrot.slane %v980, 5
      %v983 = vor.u32 %v979, %v982
      %v984 = vrot.slane %v983, 4
      %v986 = vshll.u32 %v908, 16
      %v988 = vrot.slane %v986, 5
      %v989 = vsel %vm919, %v984, %v988
      %v991 = vshrl.u32 %v909, 16
      %v993 = vrot.slane %v991, 4
      %v994 = vshll.u32 %v909, 16
      %v996 = vrot.slane %v994, 5
      %v997 = vor.u32 %v993, %v996
      %v998 = vrot.slane %v997, 4
      %v1000 = vshll.u32 %v910, 16
      %v1002 = vrot.slane %v1000, 5
      %v1003 = vsel %vm919, %v998, %v1002
      %v1005 = vshrl.u32 %v911, 16
      %v1007 = vrot.slane %v1005, 4
      %v1008 = vshll.u32 %v911, 16
      %v1010 = vrot.slane %v1008, 5
      %v1011 = vor.u32 %v1007, %v1010
      %v1012 = vrot.slane %v1011, 4
      %v1014 = vshll.u32 %v912, 16
      %v1016 = vrot.slane %v1014, 5
      %v1017 = vsel %vm919, %v1012, %v1016
      %v1019 = vshrl.u32 %v913, 16
      %v1021 = vrot.slane %v1019, 4
      %v1022 = vshll.u32 %v913, 16
      %v1024 = vrot.slane %v1022, 5
      %v1025 = vor.u32 %v1021, %v1024
      %v1026 = vrot.slane %v1025, 4
      %v1028 = vshll.u32 %v914, 16
      %v1030 = vrot.slane %v1028, 5
      %v1031 = vsel %vm919, %v1026, %v1030
      %v1033 = vshrl.u32 %v915, 16
      %v1035 = vrot.slane %v1033, 4
      %v1036 = vshll.u32 %v915, 16
      %v1038 = vrot.slane %v1036, 5
      %v1039 = vor.u32 %v1035, %v1038
      %v1040 = vrot.slane %v1039, 4
      %v1042 = vshll.u32 %v916, 16
      %v1044 = vrot.slane %v1042, 5
      %v1045 = vsel %vm919, %v1040, %v1044
      %s1046 = scalar_lea.vmem %s3, 2
      %v1047 = vld [vmem:[%s1046] sm:$0x3]
      %v1048 = vunpack.c.l.b16 %v933
      %v1049 = vunpack.c.l.b16 %v947
      %v1050 = vunpack.c.l.b16 %v961
      %v1051 = vunpack.c.l.b16 %v975
      %v1052 = vunpack.c.l.b16 %v989
      %v1053 = vunpack.c.l.b16 %v1003
      %v1054 = vunpack.c.l.b16 %v1017
      %v1055 = vunpack.c.l.b16 %v1031
      %v1056 = vpack.c.b16 %v1049, %v1048
      %v1057 = vpack.c.b16 %v1051, %v1050
      %v1058 = vpack.c.b16 %v1053, %v1052
      %v1059 = vpack.c.b16 %v1055, %v1054
      %v1061 = vsel %vm640, %v1056, 0
      %v1064 = vsel %vm640, %v1057, 0
      %v1067 = vsel %vm640, %v1058, 0
      %v1070 = vsel %vm640, %v1059, 0
      %v1073 = vsel %vm653, %v1047, 0
      %1075 = vmatprep.subr.bf16.mxu0 0
      %1076 = vmatpush1.bf16.msra.mxu0 %v1073
      %1077 = vmatprep.subr.bf16.mxu0 0
      %1078 = vmatpush1.bf16.msra.mxu0 0
      %1079 = vmatprep.subr.bf16.mxu0 0
      %1080 = vmatpush1.bf16.msra.mxu0 0
      %1081 = vmatprep.subr.bf16.mxu0 0
      %1082 = vmatpush1.bf16.msra.mxu0 0
      %1083 = vmatprep.subr.bf16.mxu0 0
      %1084 = vmatpush1.bf16.msra.mxu0 0
      %1085 = vmatprep.subr.bf16.mxu0 0
      %1086 = vmatpush1.bf16.msra.mxu0 0
      %1087 = vmatprep.subr.bf16.mxu0 0
      %1088 = vmatpush1.bf16.msra.mxu0 0
      %1089 = vmatprep.subr.bf16.mxu0 0
      %1090 = vmatpush1.bf16.msra.mxu0 0
      %1091 = vmatprep.subr.bf16.mxu0 0
      %1092 = vmatpush1.bf16.msra.mxu0 0
      %1093 = vmatprep.subr.bf16.mxu0 0
      %1094 = vmatpush1.bf16.msra.mxu0 0
      %1095 = vmatprep.subr.bf16.mxu0 0
      %1096 = vmatpush1.bf16.msra.mxu0 0
      %1097 = vmatprep.subr.bf16.mxu0 0
      %1098 = vmatpush1.bf16.msra.mxu0 0
      %1099 = vmatprep.subr.bf16.mxu0 0
      %1100 = vmatpush1.bf16.msra.mxu0 0
      %1101 = vmatprep.subr.bf16.mxu0 0
      %1102 = vmatpush1.bf16.msra.mxu0 0
      %1103 = vmatprep.subr.bf16.mxu0 0
      %1104 = vmatpush1.bf16.msra.mxu0 0
      %1105 = vmatprep.subr.bf16.mxu0 0
      %1106 = vmatpush1.bf16.msra.mxu0 0
      %1107 = vmatprep.mubr.bf16.mxu0 0
      %1108 = vmatmul.mubr.bf16.gmra.mrb[0].mxu0 %v1061
      %v1109 = vpop.f32.mrb[0].mxu0
      %v1110 = vadd.f32 0.0, %v1109
      %v1111 = vpop.f32.mrb[0].mxu0
      %v1112 = vpop.f32.mrb[0].mxu0
      %v1113 = vadd.f32 0.0, %v1112
      %v1114 = vpop.f32.mrb[0].mxu0
      %1115 = vmatprep.mubr.bf16.mxu0 0
      %1116 = vmatmul.mubr.bf16.gmra.mrb[0].mxu0 %v1064
      %v1117 = vpop.f32.mrb[0].mxu0
      %v1118 = vadd.f32 0.0, %v1117
      %v1119 = vpop.f32.mrb[0].mxu0
      %v1120 = vpop.f32.mrb[0].mxu0
      %v1121 = vadd.f32 0.0, %v1120
      %v1122 = vpop.f32.mrb[0].mxu0
      %1123 = vmatprep.mubr.bf16.mxu0 0
      %1124 = vmatmul.mubr.bf16.gmra.mrb[0].mxu0 %v1067
      %v1125 = vpop.f32.mrb[0].mxu0
      %v1126 = vadd.f32 0.0, %v1125
      %v1127 = vpop.f32.mrb[0].mxu0
      %v1128 = vpop.f32.mrb[0].mxu0
      %v1129 = vadd.f32 0.0, %v1128
      %v1130 = vpop.f32.mrb[0].mxu0
      %1131 = vmatprep.mubr.bf16.mxu0 0
      %1132 = vmatmul.mubr.bf16.gmra.mrb[0].mxu0 %v1070
      %v1133 = vpop.f32.mrb[0].mxu0
      %v1134 = vadd.f32 0.0, %v1133
      %v1135 = vpop.f32.mrb[0].mxu0
      %v1136 = vpop.f32.mrb[0].mxu0
      %v1137 = vadd.f32 0.0, %v1136
      %v1138 = vpop.f32.mrb[0].mxu0
      %1139 = vdwg.mxu0
      %v1140 = vadd.f32 %v882, %v1110
      %v1141 = vadd.f32 %v883, %v1113
      %v1142 = vadd.f32 %v884, %v1118
      %v1143 = vadd.f32 %v885, %v1121
      %v1144 = vadd.f32 %v886, %v1126
      %v1145 = vadd.f32 %v887, %v1129
      %v1146 = vadd.f32 %v888, %v1134
      %v1147 = vadd.f32 %v889, %v1137
      %s1148 = scalar_lea.vmem %s3, 8
      %v1149 = vld [vmem:[%s1148] sm:$0x3]
      %v1150 = vunpack.c.l.b16 %v1045
      %v1151 = vpack.c.b16 %v1050, %v1049
      %v1152 = vpack.c.b16 %v1052, %v1051
      %v1153 = vpack.c.b16 %v1054, %v1053
      %v1154 = vpack.c.b16 %v1150, %v1055
      %v1156 = vsel %vm640, %v1151, 0
      %v1159 = vsel %vm640, %v1152, 0
      %v1162 = vsel %vm640, %v1153, 0
      %v1165 = vsel %vm640, %v1154, 0
      %v1168 = vsel %vm653, %v1149, 0
      %1170 = vmatprep.subr.bf16.mxu0 0
      %1171 = vmatpush1.bf16.msra.mxu0 %v1168
      %1172 = vmatprep.subr.bf16.mxu0 0
      %1173 = vmatpush1.bf16.msra.mxu0 0
      %1174 = vmatprep.subr.bf16.mxu0 0
      %1175 = vmatpush1.bf16.msra.mxu0 0
      %1176 = vmatprep.subr.bf16.mxu0 0
      %1177 = vmatpush1.bf16.msra.mxu0 0
      %1178 = vmatprep.subr.bf16.mxu0 0
      %1179 = vmatpush1.bf16.msra.mxu0 0
      %1180 = vmatprep.subr.bf16.mxu0 0
      %1181 = vmatpush1.bf16.msra.mxu0 0
      %1182 = vmatprep.subr.bf16.mxu0 0
      %1183 = vmatpush1.bf16.msra.mxu0 0
      %1184 = vmatprep.subr.bf16.mxu0 0
      %1185 = vmatpush1.bf16.msra.mxu0 0
      %1186 = vmatprep.subr.bf16.mxu0 0
      %1187 = vmatpush1.bf16.msra.mxu0 0
      %1188 = vmatprep.subr.bf16.mxu0 0
      %1189 = vmatpush1.bf16.msra.mxu0 0
      %1190 = vmatprep.subr.bf16.mxu0 0
      %1191 = vmatpush1.bf16.msra.mxu0 0
      %1192 = vmatprep.subr.bf16.mxu0 0
      %1193 = vmatpush1.bf16.msra.mxu0 0
      %1194 = vmatprep.subr.bf16.mxu0 0
      %1195 = vmatpush1.bf16.msra.mxu0 0
      %1196 = vmatprep.subr.bf16.mxu0 0
      %1197 = vmatpush1.bf16.msra.mxu0 0
      %1198 = vmatprep.subr.bf16.mxu0 0
      %1199 = vmatpush1.bf16.msra.mxu0 0
      %1200 = vmatprep.subr.bf16.mxu0 0
      %1201 = vmatpush1.bf16.msra.mxu0 0
      %1202 = vmatprep.mubr.bf16.mxu0 0
      %1203 = vmatmul.mubr.bf16.gmra.mrb[0].mxu0 %v1156
      %v1204 = vpop.f32.mrb[0].mxu0
      %v1205 = vadd.f32 0.0, %v1204
      %v1206 = vpop.f32.mrb[0].mxu0
      %v1207 = vpop.f32.mrb[0].mxu0
      %v1208 = vadd.f32 0.0, %v1207
      %v1209 = vpop.f32.mrb[0].mxu0
      %1210 = vmatprep.mubr.bf16.mxu0 0
      %1211 = vmatmul.mubr.bf16.gmra.mrb[0].mxu0 %v1159
      %v1212 = vpop.f32.mrb[0].mxu0
      %v1213 = vadd.f32 0.0, %v1212
      %v1214 = vpop.f32.mrb[0].mxu0
      %v1215 = vpop.f32.mrb[0].mxu0
      %v1216 = vadd.f32 0.0, %v1215
      %v1217 = vpop.f32.mrb[0].mxu0
      %1218 = vmatprep.mubr.bf16.mxu0 0
      %1219 = vmatmul.mubr.bf16.gmra.mrb[0].mxu0 %v1162
      %v1220 = vpop.f32.mrb[0].mxu0
      %v1221 = vadd.f32 0.0, %v1220
      %v1222 = vpop.f32.mrb[0].mxu0
      %v1223 = vpop.f32.mrb[0].mxu0
      %v1224 = vadd.f32 0.0, %v1223
      %v1225 = vpop.f32.mrb[0].mxu0
      %1226 = vmatprep.mubr.bf16.mxu0 0
      %1227 = vmatmul.mubr.bf16.gmra.mrb[0].mxu0 %v1165
      %v1228 = vpop.f32.mrb[0].mxu0
      %v1229 = vadd.f32 0.0, %v1228
      %v1230 = vpop.f32.mrb[0].mxu0
      %v1231 = vpop.f32.mrb[0].mxu0
      %v1232 = vadd.f32 0.0, %v1231
      %v1233 = vpop.f32.mrb[0].mxu0
      %1234 = vdwg.mxu0
      %v1235 = vadd.f32 %v1140, %v1205
      %v1236 = vadd.f32 %v1141, %v1208
      %v1237 = vadd.f32 %v1142, %v1213
      %v1238 = vadd.f32 %v1143, %v1216
      %v1239 = vadd.f32 %v1144, %v1221
      %v1240 = vadd.f32 %v1145, %v1224
      %v1241 = vadd.f32 %v1146, %v1229
      %v1242 = vadd.f32 %v1147, %v1232
      %s1243 = scalar_lea.vmem %s3, 14
      %v1244 = vld [vmem:[%s1243] sm:$0x3]
      %v1245 = vpack.c.b16 %v1048, %v1150
      %v1247 = vsel %vm640, %v1245, 0
      %v1250 = vsel %vm653, %v1244, 0
      %1252 = vmatprep.subr.bf16.mxu0 0
      %1253 = vmatpush1.bf16.msra.mxu0 %v1250
      %1254 = vmatprep.subr.bf16.mxu0 0
      %1255 = vmatpush1.bf16.msra.mxu0 0
      %1256 = vmatprep.subr.bf16.mxu0 0
      %1257 = vmatpush1.bf16.msra.mxu0 0
      %1258 = vmatprep.subr.bf16.mxu0 0
      %1259 = vmatpush1.bf16.msra.mxu0 0
      %1260 = vmatprep.subr.bf16.mxu0 0
      %1261 = vmatpush1.bf16.msra.mxu0 0
      %1262 = vmatprep.subr.bf16.mxu0 0
      %1263 = vmatpush1.bf16.msra.mxu0 0
      %1264 = vmatprep.subr.bf16.mxu0 0
      %1265 = vmatpush1.bf16.msra.mxu0 0
      %1266 = vmatprep.subr.bf16.mxu0 0
      %1267 = vmatpush1.bf16.msra.mxu0 0
      %1268 = vmatprep.subr.bf16.mxu0 0
      %1269 = vmatpush1.bf16.msra.mxu0 0
      %1270 = vmatprep.subr.bf16.mxu0 0
      %1271 = vmatpush1.bf16.msra.mxu0 0
      %1272 = vmatprep.subr.bf16.mxu0 0
      %1273 = vmatpush1.bf16.msra.mxu0 0
      %1274 = vmatprep.subr.bf16.mxu0 0
      %1275 = vmatpush1.bf16.msra.mxu0 0
      %1276 = vmatprep.subr.bf16.mxu0 0
      %1277 = vmatpush1.bf16.msra.mxu0 0
      %1278 = vmatprep.subr.bf16.mxu0 0
      %1279 = vmatpush1.bf16.msra.mxu0 0
      %1280 = vmatprep.subr.bf16.mxu0 0
      %1281 = vmatpush1.bf16.msra.mxu0 0
      %1282 = vmatprep.subr.bf16.mxu0 0
      %1283 = vmatpush1.bf16.msra.mxu0 0
      %1284 = vmatprep.mubr.bf16.mxu0 0
      %1285 = vmatmul.mubr.bf16.gmra.mrb[0].mxu0 %v1064
      %v1286 = vpop.f32.mrb[0].mxu0
      %v1287 = vadd.f32 0.0, %v1286
      %v1288 = vpop.f32.mrb[0].mxu0
      %v1289 = vpop.f32.mrb[0].mxu0
      %v1290 = vadd.f32 0.0, %v1289
      %v1291 = vpop.f32.mrb[0].mxu0
      %1292 = vmatprep.mubr.bf16.mxu0 0
      %1293 = vmatmul.mubr.bf16.gmra.mrb[0].mxu0 %v1067
      %v1294 = vpop.f32.mrb[0].mxu0
      %v1295 = vadd.f32 0.0, %v1294
      %v1296 = vpop.f32.mrb[0].mxu0
      %v1297 = vpop.f32.mrb[0].mxu0
      %v1298 = vadd.f32 0.0, %v1297
      %v1299 = vpop.f32.mrb[0].mxu0
      %1300 = vmatprep.mubr.bf16.mxu0 0
      %1301 = vmatmul.mubr.bf16.gmra.mrb[0].mxu0 %v1070
      %v1302 = vpop.f32.mrb[0].mxu0
      %v1303 = vadd.f32 0.0, %v1302
      %v1304 = vpop.f32.mrb[0].mxu0
      %v1305 = vpop.f32.mrb[0].mxu0
      %v1306 = vadd.f32 0.0, %v1305
      %v1307 = vpop.f32.mrb[0].mxu0
      %1308 = vmatprep.mubr.bf16.mxu0 0
      %1309 = vmatmul.mubr.bf16.gmra.mrb[0].mxu0 %v1247
      %v1310 = vpop.f32.mrb[0].mxu0
      %v1311 = vadd.f32 0.0, %v1310
      %v1312 = vpop.f32.mrb[0].mxu0
      %v1313 = vpop.f32.mrb[0].mxu0
      %v1314 = vadd.f32 0.0, %v1313
      %v1315 = vpop.f32.mrb[0].mxu0
      %1316 = vdwg.mxu0
      %v1317 = vadd.f32 %v1235, %v1287
      %v1318 = vadd.f32 %v1236, %v1290
      %v1319 = vadd.f32 %v1237, %v1295
      %v1320 = vadd.f32 %v1238, %v1298
      %v1321 = vadd.f32 %v1239, %v1303
      %v1322 = vadd.f32 %v1240, %v1306
      %v1323 = vadd.f32 %v1241, %v1311
      %v1324 = vadd.f32 %v1242, %v1314
      %vm1325 = vcmask 1042432
      %vm1326 = vcmask 1046532
      %vm1327 = vmor %vm1325, %vm1326
      %v1328 = vrot.slane %v899, 5
      %v1329 = vrot.slane %v1328, 4
      %v1330 = vrot.slane %v900, 5
      %v1331 = vsel %vm1327, %v1329, %v1330
      %v1332 = vrot.slane %v901, 5
      %v1333 = vrot.slane %v1332, 4
      %v1334 = vrot.slane %v902, 5
      %v1335 = vsel %vm1327, %v1333, %v1334
      %v1336 = vrot.slane %v903, 5
      %v1337 = vrot.slane %v1336, 4
      %v1338 = vrot.slane %v904, 5
      %v1339 = vsel %vm1327, %v1337, %v1338
      %v1340 = vrot.slane %v905, 5
      %v1341 = vrot.slane %v1340, 4
      %v1342 = vrot.slane %v906, 5
      %v1343 = vsel %vm1327, %v1341, %v1342
      %v1344 = vrot.slane %v907, 5
      %v1345 = vrot.slane %v1344, 4
      %v1346 = vrot.slane %v908, 5
      %v1347 = vsel %vm1327, %v1345, %v1346
      %v1348 = vrot.slane %v909, 5
      %v1349 = vrot.slane %v1348, 4
      %v1350 = vrot.slane %v910, 5
      %v1351 = vsel %vm1327, %v1349, %v1350
      %v1352 = vrot.slane %v911, 5
      %v1353 = vrot.slane %v1352, 4
      %v1354 = vrot.slane %v912, 5
      %v1355 = vsel %vm1327, %v1353, %v1354
      %v1356 = vrot.slane %v913, 5
      %v1357 = vrot.slane %v1356, 4
      %v1358 = vrot.slane %v914, 5
      %v1359 = vsel %vm1327, %v1357, %v1358
      %v1360 = vrot.slane %v915, 5
      %v1361 = vrot.slane %v1360, 4
      %v1362 = vrot.slane %v916, 5
      %v1363 = vsel %vm1327, %v1361, %v1362
      %s1364 = scalar_lea.vmem %s3, 4
      %v1365 = vld [vmem:[%s1364] sm:$0x3]
      %v1366 = vunpack.c.l.b16 %v1331
      %v1367 = vunpack.c.l.b16 %v1335
      %v1368 = vunpack.c.l.b16 %v1339
      %v1369 = vunpack.c.l.b16 %v1343
      %v1370 = vunpack.c.l.b16 %v1347
      %v1371 = vunpack.c.l.b16 %v1351
      %v1372 = vunpack.c.l.b16 %v1355
      %v1373 = vunpack.c.l.b16 %v1359
      %v1374 = vpack.c.b16 %v1367, %v1366
      %v1375 = vpack.c.b16 %v1369, %v1368
      %v1376 = vpack.c.b16 %v1371, %v1370
      %v1377 = vpack.c.b16 %v1373, %v1372
      %v1379 = vsel %vm640, %v1374, 0
      %v1382 = vsel %vm640, %v1375, 0
      %v1385 = vsel %vm640, %v1376, 0
      %v1388 = vsel %vm640, %v1377, 0
      %v1391 = vsel %vm653, %v1365, 0
      %1393 = vmatprep.subr.bf16.mxu0 0
      %1394 = vmatpush1.bf16.msra.mxu0 %v1391
      %1395 = vmatprep.subr.bf16.mxu0 0
      %1396 = vmatpush1.bf16.msra.mxu0 0
      %1397 = vmatprep.subr.bf16.mxu0 0
      %1398 = vmatpush1.bf16.msra.mxu0 0
      %1399 = vmatprep.subr.bf16.mxu0 0
      %1400 = vmatpush1.bf16.msra.mxu0 0
      %1401 = vmatprep.subr.bf16.mxu0 0
      %1402 = vmatpush1.bf16.msra.mxu0 0
      %1403 = vmatprep.subr.bf16.mxu0 0
      %1404 = vmatpush1.bf16.msra.mxu0 0
      %1405 = vmatprep.subr.bf16.mxu0 0
      %1406 = vmatpush1.bf16.msra.mxu0 0
      %1407 = vmatprep.subr.bf16.mxu0 0
      %1408 = vmatpush1.bf16.msra.mxu0 0
      %1409 = vmatprep.subr.bf16.mxu0 0
      %1410 = vmatpush1.bf16.msra.mxu0 0
      %1411 = vmatprep.subr.bf16.mxu0 0
      %1412 = vmatpush1.bf16.msra.mxu0 0
      %1413 = vmatprep.subr.bf16.mxu0 0
      %1414 = vmatpush1.bf16.msra.mxu0 0
      %1415 = vmatprep.subr.bf16.mxu0 0
      %1416 = vmatpush1.bf16.msra.mxu0 0
      %1417 = vmatprep.subr.bf16.mxu0 0
      %1418 = vmatpush1.bf16.msra.mxu0 0
      %1419 = vmatprep.subr.bf16.mxu0 0
      %1420 = vmatpush1.bf16.msra.mxu0 0
      %1421 = vmatprep.subr.bf16.mxu0 0
      %1422 = vmatpush1.bf16.msra.mxu0 0
      %1423 = vmatprep.subr.bf16.mxu0 0
      %1424 = vmatpush1.bf16.msra.mxu0 0
      %1425 = vmatprep.mubr.bf16.mxu0 0
      %1426 = vmatmul.mubr.bf16.gmra.mrb[0].mxu0 %v1379
      %v1427 = vpop.f32.mrb[0].mxu0
      %v1428 = vadd.f32 0.0, %v1427
      %v1429 = vpop.f32.mrb[0].mxu0
      %v1430 = vpop.f32.mrb[0].mxu0
      %v1431 = vadd.f32 0.0, %v1430
      %v1432 = vpop.f32.mrb[0].mxu0
      %1433 = vmatprep.mubr.bf16.mxu0 0
      %1434 = vmatmul.mubr.bf16.gmra.mrb[0].mxu0 %v1382
      %v1435 = vpop.f32.mrb[0].mxu0
      %v1436 = vadd.f32 0.0, %v1435
      %v1437 = vpop.f32.mrb[0].mxu0
      %v1438 = vpop.f32.mrb[0].mxu0
      %v1439 = vadd.f32 0.0, %v1438
      %v1440 = vpop.f32.mrb[0].mxu0
      %1441 = vmatprep.mubr.bf16.mxu0 0
      %1442 = vmatmul.mubr.bf16.gmra.mrb[0].mxu0 %v1385
      %v1443 = vpop.f32.mrb[0].mxu0
      %v1444 = vadd.f32 0.0, %v1443
      %v1445 = vpop.f32.mrb[0].mxu0
      %v1446 = vpop.f32.mrb[0].mxu0
      %v1447 = vadd.f32 0.0, %v1446
      %v1448 = vpop.f32.mrb[0].mxu0
      %1449 = vmatprep.mubr.bf16.mxu0 0
      %1450 = vmatmul.mubr.bf16.gmra.mrb[0].mxu0 %v1388
      %v1451 = vpop.f32.mrb[0].mxu0
      %v1452 = vadd.f32 0.0, %v1451
      %v1453 = vpop.f32.mrb[0].mxu0
      %v1454 = vpop.f32.mrb[0].mxu0
      %v1455 = vadd.f32 0.0, %v1454
      %v1456 = vpop.f32.mrb[0].mxu0
      %1457 = vdwg.mxu0
      %v1458 = vadd.f32 %v1317, %v1428
      %v1459 = vadd.f32 %v1318, %v1431
      %v1460 = vadd.f32 %v1319, %v1436
      %v1461 = vadd.f32 %v1320, %v1439
      %v1462 = vadd.f32 %v1321, %v1444
      %v1463 = vadd.f32 %v1322, %v1447
      %v1464 = vadd.f32 %v1323, %v1452
      %v1465 = vadd.f32 %v1324, %v1455
      %s1466 = scalar_lea.vmem %s3, 10
      %v1467 = vld [vmem:[%s1466] sm:$0x3]
      %v1468 = vunpack.c.l.b16 %v1363
      %v1469 = vpack.c.b16 %v1368, %v1367
      %v1470 = vpack.c.b16 %v1370, %v1369
      %v1471 = vpack.c.b16 %v1372, %v1371
      %v1472 = vpack.c.b16 %v1468, %v1373
      %v1474 = vsel %vm640, %v1469, 0
      %v1477 = vsel %vm640, %v1470, 0
      %v1480 = vsel %vm640, %v1471, 0
      %v1483 = vsel %vm640, %v1472, 0
      %v1486 = vsel %vm653, %v1467, 0
      %1488 = vmatprep.subr.bf16.mxu0 0
      %1489 = vmatpush1.bf16.msra.mxu0 %v1486
      %1490 = vmatprep.subr.bf16.mxu0 0
      %1491 = vmatpush1.bf16.msra.mxu0 0
      %1492 = vmatprep.subr.bf16.mxu0 0
      %1493 = vmatpush1.bf16.msra.mxu0 0
      %1494 = vmatprep.subr.bf16.mxu0 0
      %1495 = vmatpush1.bf16.msra.mxu0 0
      %1496 = vmatprep.subr.bf16.mxu0 0
      %1497 = vmatpush1.bf16.msra.mxu0 0
      %1498 = vmatprep.subr.bf16.mxu0 0
      %1499 = vmatpush1.bf16.msra.mxu0 0
      %1500 = vmatprep.subr.bf16.mxu0 0
      %1501 = vmatpush1.bf16.msra.mxu0 0
      %1502 = vmatprep.subr.bf16.mxu0 0
      %1503 = vmatpush1.bf16.msra.mxu0 0
      %1504 = vmatprep.subr.bf16.mxu0 0
      %1505 = vmatpush1.bf16.msra.mxu0 0
      %1506 = vmatprep.subr.bf16.mxu0 0
      %1507 = vmatpush1.bf16.msra.mxu0 0
      %1508 = vmatprep.subr.bf16.mxu0 0
      %1509 = vmatpush1.bf16.msra.mxu0 0
      %1510 = vmatprep.subr.bf16.mxu0 0
      %1511 = vmatpush1.bf16.msra.mxu0 0
      %1512 = vmatprep.subr.bf16.mxu0 0
      %1513 = vmatpush1.bf16.msra.mxu0 0
      %1514 = vmatprep.subr.bf16.mxu0 0
      %1515 = vmatpush1.bf16.msra.mxu0 0
      %1516 = vmatprep.subr.bf16.mxu0 0
      %1517 = vmatpush1.bf16.msra.mxu0 0
      %1518 = vmatprep.subr.bf16.mxu0 0
      %1519 = vmatpush1.bf16.msra.mxu0 0
      %1520 = vmatprep.mubr.bf16.mxu0 0
      %1521 = vmatmul.mubr.bf16.gmra.mrb[0].mxu0 %v1474
      %v1522 = vpop.f32.mrb[0].mxu0
      %v1523 = vadd.f32 0.0, %v1522
      %v1524 = vpop.f32.mrb[0].mxu0
      %v1525 = vpop.f32.mrb[0].mxu0
      %v1526 = vadd.f32 0.0, %v1525
      %v1527 = vpop.f32.mrb[0].mxu0
      %1528 = vmatprep.mubr.bf16.mxu0 0
      %1529 = vmatmul.mubr.bf16.gmra.mrb[0].mxu0 %v1477
      %v1530 = vpop.f32.mrb[0].mxu0
      %v1531 = vadd.f32 0.0, %v1530
      %v1532 = vpop.f32.mrb[0].mxu0
      %v1533 = vpop.f32.mrb[0].mxu0
      %v1534 = vadd.f32 0.0, %v1533
      %v1535 = vpop.f32.mrb[0].mxu0
      %1536 = vmatprep.mubr.bf16.mxu0 0
      %1537 = vmatmul.mubr.bf16.gmra.mrb[0].mxu0 %v1480
      %v1538 = vpop.f32.mrb[0].mxu0
      %v1539 = vadd.f32 0.0, %v1538
      %v1540 = vpop.f32.mrb[0].mxu0
      %v1541 = vpop.f32.mrb[0].mxu0
      %v1542 = vadd.f32 0.0, %v1541
      %v1543 = vpop.f32.mrb[0].mxu0
      %1544 = vmatprep.mubr.bf16.mxu0 0
      %1545 = vmatmul.mubr.bf16.gmra.mrb[0].mxu0 %v1483
      %v1546 = vpop.f32.mrb[0].mxu0
      %v1547 = vadd.f32 0.0, %v1546
      %v1548 = vpop.f32.mrb[0].mxu0
      %v1549 = vpop.f32.mrb[0].mxu0
      %v1550 = vadd.f32 0.0, %v1549
      %v1551 = vpop.f32.mrb[0].mxu0
      %1552 = vdwg.mxu0
      %v1553 = vadd.f32 %v1458, %v1523
      %v1554 = vadd.f32 %v1459, %v1526
      %v1555 = vadd.f32 %v1460, %v1531
      %v1556 = vadd.f32 %v1461, %v1534
      %v1557 = vadd.f32 %v1462, %v1539
      %v1558 = vadd.f32 %v1463, %v1542
      %v1559 = vadd.f32 %v1464, %v1547
      %v1560 = vadd.f32 %v1465, %v1550
      %s1561 = scalar_lea.vmem %s3, 16
      %v1562 = vld [vmem:[%s1561] sm:$0x3]
      %v1563 = vpack.c.b16 %v1366, %v1468
      %v1565 = vsel %vm640, %v1563, 0
      %v1568 = vsel %vm653, %v1562, 0
      %1570 = vmatprep.subr.bf16.mxu0 0
      %1571 = vmatpush1.bf16.msra.mxu0 %v1568
      %1572 = vmatprep.subr.bf16.mxu0 0
      %1573 = vmatpush1.bf16.msra.mxu0 0
      %1574 = vmatprep.subr.bf16.mxu0 0
      %1575 = vmatpush1.bf16.msra.mxu0 0
      %1576 = vmatprep.subr.bf16.mxu0 0
      %1577 = vmatpush1.bf16.msra.mxu0 0
      %1578 = vmatprep.subr.bf16.mxu0 0
      %1579 = vmatpush1.bf16.msra.mxu0 0
      %1580 = vmatprep.subr.bf16.mxu0 0
      %1581 = vmatpush1.bf16.msra.mxu0 0
      %1582 = vmatprep.subr.bf16.mxu0 0
      %1583 = vmatpush1.bf16.msra.mxu0 0
      %1584 = vmatprep.subr.bf16.mxu0 0
      %1585 = vmatpush1.bf16.msra.mxu0 0
      %1586 = vmatprep.subr.bf16.mxu0 0
      %1587 = vmatpush1.bf16.msra.mxu0 0
      %1588 = vmatprep.subr.bf16.mxu0 0
      %1589 = vmatpush1.bf16.msra.mxu0 0
      %1590 = vmatprep.subr.bf16.mxu0 0
      %1591 = vmatpush1.bf16.msra.mxu0 0
      %1592 = vmatprep.subr.bf16.mxu0 0
      %1593 = vmatpush1.bf16.msra.mxu0 0
      %1594 = vmatprep.subr.bf16.mxu0 0
      %1595 = vmatpush1.bf16.msra.mxu0 0
      %1596 = vmatprep.subr.bf16.mxu0 0
      %1597 = vmatpush1.bf16.msra.mxu0 0
      %1598 = vmatprep.subr.bf16.mxu0 0
      %1599 = vmatpush1.bf16.msra.mxu0 0
      %1600 = vmatprep.subr.bf16.mxu0 0
      %1601 = vmatpush1.bf16.msra.mxu0 0
      %1602 = vmatprep.mubr.bf16.mxu0 0
      %1603 = vmatmul.mubr.bf16.gmra.mrb[0].mxu0 %v1382
      %v1604 = vpop.f32.mrb[0].mxu0
      %v1605 = vadd.f32 0.0, %v1604
      %v1606 = vpop.f32.mrb[0].mxu0
      %v1607 = vpop.f32.mrb[0].mxu0
      %v1608 = vadd.f32 0.0, %v1607
      %v1609 = vpop.f32.mrb[0].mxu0
      %1610 = vmatprep.mubr.bf16.mxu0 0
      %1611 = vmatmul.mubr.bf16.gmra.mrb[0].mxu0 %v1385
      %v1612 = vpop.f32.mrb[0].mxu0
      %v1613 = vadd.f32 0.0, %v1612
      %v1614 = vpop.f32.mrb[0].mxu0
      %v1615 = vpop.f32.mrb[0].mxu0
      %v1616 = vadd.f32 0.0, %v1615
      %v1617 = vpop.f32.mrb[0].mxu0
      %1618 = vmatprep.mubr.bf16.mxu0 0
      %1619 = vmatmul.mubr.bf16.gmra.mrb[0].mxu0 %v1388
      %v1620 = vpop.f32.mrb[0].mxu0
      %v1621 = vadd.f32 0.0, %v1620
      %v1622 = vpop.f32.mrb[0].mxu0
      %v1623 = vpop.f32.mrb[0].mxu0
      %v1624 = vadd.f32 0.0, %v1623
      %v1625 = vpop.f32.mrb[0].mxu0
      %1626 = vmatprep.mubr.bf16.mxu0 0
      %1627 = vmatmul.mubr.bf16.gmra.mrb[0].mxu0 %v1565
      %v1628 = vpop.f32.mrb[0].mxu0
      %v1629 = vadd.f32 0.0, %v1628
      %v1630 = vpop.f32.mrb[0].mxu0
      %v1631 = vpop.f32.mrb[0].mxu0
      %v1632 = vadd.f32 0.0, %v1631
      %v1633 = vpop.f32.mrb[0].mxu0
      %1634 = vdwg.mxu0
      %v1635 = vadd.f32 %v1553, %v1605
      %v1636 = vadd.f32 %v1554, %v1608
      %v1637 = vadd.f32 %v1555, %v1613
      %v1638 = vadd.f32 %v1556, %v1616
      %v1639 = vadd.f32 %v1557, %v1621
      %v1640 = vadd.f32 %v1558, %v1624
      %v1641 = vadd.f32 %v1559, %v1629
      %v1642 = vadd.f32 %v1560, %v1632
      %v1644 = vshrl.u32 %v480, 16
      %v1646 = vrot.slane %v1644, 7
      %v1647 = vshll.u32 %v480, 16
      %v1649 = vor.u32 %v1646, %v1647
      %v1651 = vshrl.u32 %v481, 16
      %v1653 = vrot.slane %v1651, 7
      %v1654 = vshll.u32 %v481, 16
      %v1656 = vor.u32 %v1653, %v1654
      %v1658 = vshrl.u32 %v482, 16
      %v1660 = vrot.slane %v1658, 7
      %v1661 = vshll.u32 %v482, 16
      %v1663 = vor.u32 %v1660, %v1661
      %v1665 = vshrl.u32 %v483, 16
      %v1667 = vrot.slane %v1665, 7
      %v1668 = vshll.u32 %v483, 16
      %v1670 = vor.u32 %v1667, %v1668
      %v1672 = vshrl.u32 %v484, 16
      %v1674 = vrot.slane %v1672, 7
      %v1675 = vshll.u32 %v484, 16
      %v1677 = vor.u32 %v1674, %v1675
      %v1679 = vshrl.u32 %v485, 16
      %v1681 = vrot.slane %v1679, 7
      %v1682 = vshll.u32 %v485, 16
      %v1684 = vor.u32 %v1681, %v1682
      %v1686 = vshrl.u32 %v486, 16
      %v1688 = vrot.slane %v1686, 7
      %v1689 = vshll.u32 %v486, 16
      %v1691 = vor.u32 %v1688, %v1689
      %v1693 = vshrl.u32 %v487, 16
      %v1695 = vrot.slane %v1693, 7
      %v1696 = vshll.u32 %v487, 16
      %v1698 = vor.u32 %v1695, %v1696
      %v1707 = vsel %vm595, 0, %v1649
      %v1708 = vsel %vm595, 0, %v1656
      %v1709 = vsel %vm595, 0, %v1663
      %v1710 = vsel %vm595, 0, %v1670
      %v1711 = vsel %vm595, 0, %v1677
      %v1712 = vsel %vm595, 0, %v1684
      %v1713 = vsel %vm595, 0, %v1691
      %v1714 = vsel %vm595, 0, %v1698
      %v1715 = vsel %vm607, %v1707, 0
      %v1716 = vsel %vm607, %v1708, 0
      %v1717 = vsel %vm607, %v1709, 0
      %v1718 = vsel %vm607, %v1710, 0
      %v1719 = vsel %vm607, %v1711, 0
      %v1720 = vsel %vm607, %v1712, 0
      %v1721 = vsel %vm607, %v1713, 0
      %v1722 = vsel %vm607, %v1714, 0
      %s1723 = scalar_lea.vmem %s3, 18
      %v1724 = vld [vmem:[%s1723] sm:$0x3]
      %v1732 = vunpack.c.l.b16 %v1715
      %v1733 = vunpack.c.l.b16 %v1716
      %v1734 = vunpack.c.l.b16 %v1717
      %v1735 = vunpack.c.l.b16 %v1718
      %v1736 = vunpack.c.l.b16 %v1719
      %v1737 = vunpack.c.l.b16 %v1720
      %v1738 = vunpack.c.l.b16 %v1721
      %v1739 = vpack.c.b16 %v1732, %v723
      %v1740 = vpack.c.b16 %v1734, %v1733
      %v1741 = vpack.c.b16 %v1736, %v1735
      %v1742 = vpack.c.b16 %v1738, %v1737
      %v1744 = vsel %vm640, %v1739, 0
      %v1747 = vsel %vm640, %v1740, 0
      %v1750 = vsel %vm640, %v1741, 0
      %v1753 = vsel %vm640, %v1742, 0
      %v1756 = vsel %vm653, %v1724, 0
      %1758 = vmatprep.subr.bf16.mxu0 0
      %1759 = vmatpush1.bf16.msra.mxu0 %v1756
      %1760 = vmatprep.subr.bf16.mxu0 0
      %1761 = vmatpush1.bf16.msra.mxu0 0
      %1762 = vmatprep.subr.bf16.mxu0 0
      %1763 = vmatpush1.bf16.msra.mxu0 0
      %1764 = vmatprep.subr.bf16.mxu0 0
      %1765 = vmatpush1.bf16.msra.mxu0 0
      %1766 = vmatprep.subr.bf16.mxu0 0
      %1767 = vmatpush1.bf16.msra.mxu0 0
      %1768 = vmatprep.subr.bf16.mxu0 0
      %1769 = vmatpush1.bf16.msra.mxu0 0
      %1770 = vmatprep.subr.bf16.mxu0 0
      %1771 = vmatpush1.bf16.msra.mxu0 0
      %1772 = vmatprep.subr.bf16.mxu0 0
      %1773 = vmatpush1.bf16.msra.mxu0 0
      %1774 = vmatprep.subr.bf16.mxu0 0
      %1775 = vmatpush1.bf16.msra.mxu0 0
      %1776 = vmatprep.subr.bf16.mxu0 0
      %1777 = vmatpush1.bf16.msra.mxu0 0
      %1778 = vmatprep.subr.bf16.mxu0 0
      %1779 = vmatpush1.bf16.msra.mxu0 0
      %1780 = vmatprep.subr.bf16.mxu0 0
      %1781 = vmatpush1.bf16.msra.mxu0 0
      %1782 = vmatprep.subr.bf16.mxu0 0
      %1783 = vmatpush1.bf16.msra.mxu0 0
      %1784 = vmatprep.subr.bf16.mxu0 0
      %1785 = vmatpush1.bf16.msra.mxu0 0
      %1786 = vmatprep.subr.bf16.mxu0 0
      %1787 = vmatpush1.bf16.msra.mxu0 0
      %1788 = vmatprep.subr.bf16.mxu0 0
      %1789 = vmatpush1.bf16.msra.mxu0 0
      %1790 = vmatprep.mubr.bf16.mxu0 0
      %1791 = vmatmul.mubr.bf16.gmra.mrb[0].mxu0 %v1744
      %v1792 = vpop.f32.mrb[0].mxu0
      %v1793 = vadd.f32 0.0, %v1792
      %v1794 = vpop.f32.mrb[0].mxu0
      %v1795 = vpop.f32.mrb[0].mxu0
      %v1796 = vadd.f32 0.0, %v1795
      %v1797 = vpop.f32.mrb[0].mxu0
      %1798 = vmatprep.mubr.bf16.mxu0 0
      %1799 = vmatmul.mubr.bf16.gmra.mrb[0].mxu0 %v1747
      %v1800 = vpop.f32.mrb[0].mxu0
      %v1801 = vadd.f32 0.0, %v1800
      %v1802 = vpop.f32.mrb[0].mxu0
      %v1803 = vpop.f32.mrb[0].mxu0
      %v1804 = vadd.f32 0.0, %v1803
      %v1805 = vpop.f32.mrb[0].mxu0
      %1806 = vmatprep.mubr.bf16.mxu0 0
      %1807 = vmatmul.mubr.bf16.gmra.mrb[0].mxu0 %v1750
      %v1808 = vpop.f32.mrb[0].mxu0
      %v1809 = vadd.f32 0.0, %v1808
      %v1810 = vpop.f32.mrb[0].mxu0
      %v1811 = vpop.f32.mrb[0].mxu0
      %v1812 = vadd.f32 0.0, %v1811
      %v1813 = vpop.f32.mrb[0].mxu0
      %1814 = vmatprep.mubr.bf16.mxu0 0
      %1815 = vmatmul.mubr.bf16.gmra.mrb[0].mxu0 %v1753
      %v1816 = vpop.f32.mrb[0].mxu0
      %v1817 = vadd.f32 0.0, %v1816
      %v1818 = vpop.f32.mrb[0].mxu0
      %v1819 = vpop.f32.mrb[0].mxu0
      %v1820 = vadd.f32 0.0, %v1819
      %v1821 = vpop.f32.mrb[0].mxu0
      %1822 = vdwg.mxu0
      %v1823 = vadd.f32 %v1635, %v1793
      %v1824 = vadd.f32 %v1636, %v1796
      %v1825 = vadd.f32 %v1637, %v1801
      %v1826 = vadd.f32 %v1638, %v1804
      %v1827 = vadd.f32 %v1639, %v1809
      %v1828 = vadd.f32 %v1640, %v1812
      %v1829 = vadd.f32 %v1641, %v1817
      %v1830 = vadd.f32 %v1642, %v1820
      %s1831 = scalar_lea.vmem %s3, 24
      %v1832 = vld [vmem:[%s1831] sm:$0x3]
      %v1834 = vunpack.c.l.b16 %v1722
      %v1835 = vpack.c.b16 %v1733, %v1732
      %v1836 = vpack.c.b16 %v1735, %v1734
      %v1837 = vpack.c.b16 %v1737, %v1736
      %v1838 = vpack.c.b16 %v1834, %v1738
      %v1840 = vsel %vm640, %v1835, 0
      %v1843 = vsel %vm640, %v1836, 0
      %v1846 = vsel %vm640, %v1837, 0
      %v1849 = vsel %vm640, %v1838, 0
      %v1852 = vsel %vm653, %v1832, 0
      %1854 = vmatprep.subr.bf16.mxu0 0
      %1855 = vmatpush1.bf16.msra.mxu0 %v1852
      %1856 = vmatprep.subr.bf16.mxu0 0
      %1857 = vmatpush1.bf16.msra.mxu0 0
      %1858 = vmatprep.subr.bf16.mxu0 0
      %1859 = vmatpush1.bf16.msra.mxu0 0
      %1860 = vmatprep.subr.bf16.mxu0 0
      %1861 = vmatpush1.bf16.msra.mxu0 0
      %1862 = vmatprep.subr.bf16.mxu0 0
      %1863 = vmatpush1.bf16.msra.mxu0 0
      %1864 = vmatprep.subr.bf16.mxu0 0
      %1865 = vmatpush1.bf16.msra.mxu0 0
      %1866 = vmatprep.subr.bf16.mxu0 0
      %1867 = vmatpush1.bf16.msra.mxu0 0
      %1868 = vmatprep.subr.bf16.mxu0 0
      %1869 = vmatpush1.bf16.msra.mxu0 0
      %1870 = vmatprep.subr.bf16.mxu0 0
      %1871 = vmatpush1.bf16.msra.mxu0 0
      %1872 = vmatprep.subr.bf16.mxu0 0
      %1873 = vmatpush1.bf16.msra.mxu0 0
      %1874 = vmatprep.subr.bf16.mxu0 0
      %1875 = vmatpush1.bf16.msra.mxu0 0
      %1876 = vmatprep.subr.bf16.mxu0 0
      %1877 = vmatpush1.bf16.msra.mxu0 0
      %1878 = vmatprep.subr.bf16.mxu0 0
      %1879 = vmatpush1.bf16.msra.mxu0 0
      %1880 = vmatprep.subr.bf16.mxu0 0
      %1881 = vmatpush1.bf16.msra.mxu0 0
      %1882 = vmatprep.subr.bf16.mxu0 0
      %1883 = vmatpush1.bf16.msra.mxu0 0
      %1884 = vmatprep.subr.bf16.mxu0 0
      %1885 = vmatpush1.bf16.msra.mxu0 0
      %1886 = vmatprep.mubr.bf16.mxu0 0
      %1887 = vmatmul.mubr.bf16.gmra.mrb[0].mxu0 %v1840
      %v1888 = vpop.f32.mrb[0].mxu0
      %v1889 = vadd.f32 0.0, %v1888
      %v1890 = vpop.f32.mrb[0].mxu0
      %v1891 = vpop.f32.mrb[0].mxu0
      %v1892 = vadd.f32 0.0, %v1891
      %v1893 = vpop.f32.mrb[0].mxu0
      %1894 = vmatprep.mubr.bf16.mxu0 0
      %1895 = vmatmul.mubr.bf16.gmra.mrb[0].mxu0 %v1843
      %v1896 = vpop.f32.mrb[0].mxu0
      %v1897 = vadd.f32 0.0, %v1896
      %v1898 = vpop.f32.mrb[0].mxu0
      %v1899 = vpop.f32.mrb[0].mxu0
      %v1900 = vadd.f32 0.0, %v1899
      %v1901 = vpop.f32.mrb[0].mxu0
      %1902 = vmatprep.mubr.bf16.mxu0 0
      %1903 = vmatmul.mubr.bf16.gmra.mrb[0].mxu0 %v1846
      %v1904 = vpop.f32.mrb[0].mxu0
      %v1905 = vadd.f32 0.0, %v1904
      %v1906 = vpop.f32.mrb[0].mxu0
      %v1907 = vpop.f32.mrb[0].mxu0
      %v1908 = vadd.f32 0.0, %v1907
      %v1909 = vpop.f32.mrb[0].mxu0
      %1910 = vmatprep.mubr.bf16.mxu0 0
      %1911 = vmatmul.mubr.bf16.gmra.mrb[0].mxu0 %v1849
      %v1912 = vpop.f32.mrb[0].mxu0
      %v1913 = vadd.f32 0.0, %v1912
      %v1914 = vpop.f32.mrb[0].mxu0
      %v1915 = vpop.f32.mrb[0].mxu0
      %v1916 = vadd.f32 0.0, %v1915
      %v1917 = vpop.f32.mrb[0].mxu0
      %1918 = vdwg.mxu0
      %v1919 = vadd.f32 %v1823, %v1889
      %v1920 = vadd.f32 %v1824, %v1892
      %v1921 = vadd.f32 %v1825, %v1897
      %v1922 = vadd.f32 %v1826, %v1900
      %v1923 = vadd.f32 %v1827, %v1905
      %v1924 = vadd.f32 %v1828, %v1908
      %v1925 = vadd.f32 %v1829, %v1913
      %v1926 = vadd.f32 %v1830, %v1916
      %s1927 = scalar_lea.vmem %s3, 30
      %v1928 = vld [vmem:[%s1927] sm:$0x3]
      %v1929 = vpack.c.b16 %v723, %v1834
      %v1931 = vsel %vm640, %v1929, 0
      %v1934 = vsel %vm653, %v1928, 0
      %1936 = vmatprep.subr.bf16.mxu0 0
      %1937 = vmatpush1.bf16.msra.mxu0 %v1934
      %1938 = vmatprep.subr.bf16.mxu0 0
      %1939 = vmatpush1.bf16.msra.mxu0 0
      %1940 = vmatprep.subr.bf16.mxu0 0
      %1941 = vmatpush1.bf16.msra.mxu0 0
      %1942 = vmatprep.subr.bf16.mxu0 0
      %1943 = vmatpush1.bf16.msra.mxu0 0
      %1944 = vmatprep.subr.bf16.mxu0 0
      %1945 = vmatpush1.bf16.msra.mxu0 0
      %1946 = vmatprep.subr.bf16.mxu0 0
      %1947 = vmatpush1.bf16.msra.mxu0 0
      %1948 = vmatprep.subr.bf16.mxu0 0
      %1949 = vmatpush1.bf16.msra.mxu0 0
      %1950 = vmatprep.subr.bf16.mxu0 0
      %1951 = vmatpush1.bf16.msra.mxu0 0
      %1952 = vmatprep.subr.bf16.mxu0 0
      %1953 = vmatpush1.bf16.msra.mxu0 0
      %1954 = vmatprep.subr.bf16.mxu0 0
      %1955 = vmatpush1.bf16.msra.mxu0 0
      %1956 = vmatprep.subr.bf16.mxu0 0
      %1957 = vmatpush1.bf16.msra.mxu0 0
      %1958 = vmatprep.subr.bf16.mxu0 0
      %1959 = vmatpush1.bf16.msra.mxu0 0
      %1960 = vmatprep.subr.bf16.mxu0 0
      %1961 = vmatpush1.bf16.msra.mxu0 0
      %1962 = vmatprep.subr.bf16.mxu0 0
      %1963 = vmatpush1.bf16.msra.mxu0 0
      %1964 = vmatprep.subr.bf16.mxu0 0
      %1965 = vmatpush1.bf16.msra.mxu0 0
      %1966 = vmatprep.subr.bf16.mxu0 0
      %1967 = vmatpush1.bf16.msra.mxu0 0
      %1968 = vmatprep.mubr.bf16.mxu0 0
      %1969 = vmatmul.mubr.bf16.gmra.mrb[0].mxu0 %v1747
      %v1970 = vpop.f32.mrb[0].mxu0
      %v1971 = vadd.f32 0.0, %v1970
      %v1972 = vpop.f32.mrb[0].mxu0
      %v1973 = vpop.f32.mrb[0].mxu0
      %v1974 = vadd.f32 0.0, %v1973
      %v1975 = vpop.f32.mrb[0].mxu0
      %1976 = vmatprep.mubr.bf16.mxu0 0
      %1977 = vmatmul.mubr.bf16.gmra.mrb[0].mxu0 %v1750
      %v1978 = vpop.f32.mrb[0].mxu0
      %v1979 = vadd.f32 0.0, %v1978
      %v1980 = vpop.f32.mrb[0].mxu0
      %v1981 = vpop.f32.mrb[0].mxu0
      %v1982 = vadd.f32 0.0, %v1981
      %v1983 = vpop.f32.mrb[0].mxu0
      %1984 = vmatprep.mubr.bf16.mxu0 0
      %1985 = vmatmul.mubr.bf16.gmra.mrb[0].mxu0 %v1753
      %v1986 = vpop.f32.mrb[0].mxu0
      %v1987 = vadd.f32 0.0, %v1986
      %v1988 = vpop.f32.mrb[0].mxu0
      %v1989 = vpop.f32.mrb[0].mxu0
      %v1990 = vadd.f32 0.0, %v1989
      %v1991 = vpop.f32.mrb[0].mxu0
      %1992 = vmatprep.mubr.bf16.mxu0 0
      %1993 = vmatmul.mubr.bf16.gmra.mrb[0].mxu0 %v1931
      %v1994 = vpop.f32.mrb[0].mxu0
      %v1995 = vadd.f32 0.0, %v1994
      %v1996 = vpop.f32.mrb[0].mxu0
      %v1997 = vpop.f32.mrb[0].mxu0
      %v1998 = vadd.f32 0.0, %v1997
      %v1999 = vpop.f32.mrb[0].mxu0
      %2000 = vdwg.mxu0
      %v2001 = vadd.f32 %v1919, %v1971
      %v2002 = vadd.f32 %v1920, %v1974
      %v2003 = vadd.f32 %v1921, %v1979
      %v2004 = vadd.f32 %v1922, %v1982
      %v2005 = vadd.f32 %v1923, %v1987
      %v2006 = vadd.f32 %v1924, %v1990
      %v2007 = vadd.f32 %v1925, %v1995
      %v2008 = vadd.f32 %v1926, %v1998
      %v2009 = vunpack.c.h.b16 %v1715
      %v2010 = vunpack.c.h.b16 %v1716
      %v2011 = vunpack.c.h.b16 %v1717
      %v2012 = vunpack.c.h.b16 %v1718
      %v2013 = vunpack.c.h.b16 %v1719
      %v2014 = vunpack.c.h.b16 %v1720
      %v2015 = vunpack.c.h.b16 %v1721
      %v2016 = vunpack.c.h.b16 %v1722
      %v2017 = vpack.c.b16 %v1732, %v1732
      %v2018 = vpack.c.b16 %v2009, %v2009
      %v2019 = vpack.c.b16 %v1733, %v1733
      %v2020 = vpack.c.b16 %v2010, %v2010
      %v2021 = vpack.c.b16 %v1734, %v1734
      %v2022 = vpack.c.b16 %v2011, %v2011
      %v2023 = vpack.c.b16 %v1735, %v1735
      %v2024 = vpack.c.b16 %v2012, %v2012
      %v2025 = vpack.c.b16 %v1736, %v1736
      %v2026 = vpack.c.b16 %v2013, %v2013
      %v2027 = vpack.c.b16 %v1737, %v1737
      %v2028 = vpack.c.b16 %v2014, %v2014
      %v2029 = vpack.c.b16 %v1738, %v1738
      %v2030 = vpack.c.b16 %v2015, %v2015
      %v2031 = vpack.c.b16 %v1834, %v1834
      %v2032 = vpack.c.b16 %v2016, %v2016
      %v2034 = vshrl.u32 %v2017, 16
      %v2036 = vrot.slane %v2034, 4
      %v2037 = vshll.u32 %v2017, 16
      %v2039 = vrot.slane %v2037, 5
      %v2040 = vor.u32 %v2036, %v2039
      %v2041 = vrot.slane %v2040, 4
      %v2043 = vshll.u32 %v2018, 16
      %v2045 = vrot.slane %v2043, 5
      %v2046 = vsel %vm919, %v2041, %v2045
      %v2048 = vshrl.u32 %v2019, 16
      %v2050 = vrot.slane %v2048, 4
      %v2051 = vshll.u32 %v2019, 16
      %v2053 = vrot.slane %v2051, 5
      %v2054 = vor.u32 %v2050, %v2053
      %v2055 = vrot.slane %v2054, 4
      %v2057 = vshll.u32 %v2020, 16
      %v2059 = vrot.slane %v2057, 5
      %v2060 = vsel %vm919, %v2055, %v2059
      %v2062 = vshrl.u32 %v2021, 16
      %v2064 = vrot.slane %v2062, 4
      %v2065 = vshll.u32 %v2021, 16
      %v2067 = vrot.slane %v2065, 5
      %v2068 = vor.u32 %v2064, %v2067
      %v2069 = vrot.slane %v2068, 4
      %v2071 = vshll.u32 %v2022, 16
      %v2073 = vrot.slane %v2071, 5
      %v2074 = vsel %vm919, %v2069, %v2073
      %v2076 = vshrl.u32 %v2023, 16
      %v2078 = vrot.slane %v2076, 4
      %v2079 = vshll.u32 %v2023, 16
      %v2081 = vrot.slane %v2079, 5
      %v2082 = vor.u32 %v2078, %v2081
      %v2083 = vrot.slane %v2082, 4
      %v2085 = vshll.u32 %v2024, 16
      %v2087 = vrot.slane %v2085, 5
      %v2088 = vsel %vm919, %v2083, %v2087
      %v2090 = vshrl.u32 %v2025, 16
      %v2092 = vrot.slane %v2090, 4
      %v2093 = vshll.u32 %v2025, 16
      %v2095 = vrot.slane %v2093, 5
      %v2096 = vor.u32 %v2092, %v2095
      %v2097 = vrot.slane %v2096, 4
      %v2099 = vshll.u32 %v2026, 16
      %v2101 = vrot.slane %v2099, 5
      %v2102 = vsel %vm919, %v2097, %v2101
      %v2104 = vshrl.u32 %v2027, 16
      %v2106 = vrot.slane %v2104, 4
      %v2107 = vshll.u32 %v2027, 16
      %v2109 = vrot.slane %v2107, 5
      %v2110 = vor.u32 %v2106, %v2109
      %v2111 = vrot.slane %v2110, 4
      %v2113 = vshll.u32 %v2028, 16
      %v2115 = vrot.slane %v2113, 5
      %v2116 = vsel %vm919, %v2111, %v2115
      %v2118 = vshrl.u32 %v2029, 16
      %v2120 = vrot.slane %v2118, 4
      %v2121 = vshll.u32 %v2029, 16
      %v2123 = vrot.slane %v2121, 5
      %v2124 = vor.u32 %v2120, %v2123
      %v2125 = vrot.slane %v2124, 4
      %v2127 = vshll.u32 %v2030, 16
      %v2129 = vrot.slane %v2127, 5
      %v2130 = vsel %vm919, %v2125, %v2129
      %v2132 = vshrl.u32 %v2031, 16
      %v2134 = vrot.slane %v2132, 4
      %v2135 = vshll.u32 %v2031, 16
      %v2137 = vrot.slane %v2135, 5
      %v2138 = vor.u32 %v2134, %v2137
      %v2139 = vrot.slane %v2138, 4
      %v2141 = vshll.u32 %v2032, 16
      %v2143 = vrot.slane %v2141, 5
      %v2144 = vsel %vm919, %v2139, %v2143
      %s2145 = scalar_lea.vmem %s3, 20
      %v2146 = vld [vmem:[%s2145] sm:$0x3]
      %v2147 = vunpack.c.l.b16 %v2046
      %v2148 = vunpack.c.l.b16 %v2060
      %v2149 = vunpack.c.l.b16 %v2074
      %v2150 = vunpack.c.l.b16 %v2088
      %v2151 = vunpack.c.l.b16 %v2102
      %v2152 = vunpack.c.l.b16 %v2116
      %v2153 = vunpack.c.l.b16 %v2130
      %v2154 = vpack.c.b16 %v2147, %v1048
      %v2155 = vpack.c.b16 %v2149, %v2148
      %v2156 = vpack.c.b16 %v2151, %v2150
      %v2157 = vpack.c.b16 %v2153, %v2152
      %v2159 = vsel %vm640, %v2154, 0
      %v2162 = vsel %vm640, %v2155, 0
      %v2165 = vsel %vm640, %v2156, 0
      %v2168 = vsel %vm640, %v2157, 0
      %v2171 = vsel %vm653, %v2146, 0
      %2173 = vmatprep.subr.bf16.mxu0 0
      %2174 = vmatpush1.bf16.msra.mxu0 %v2171
      %2175 = vmatprep.subr.bf16.mxu0 0
      %2176 = vmatpush1.bf16.msra.mxu0 0
      %2177 = vmatprep.subr.bf16.mxu0 0
      %2178 = vmatpush1.bf16.msra.mxu0 0
      %2179 = vmatprep.subr.bf16.mxu0 0
      %2180 = vmatpush1.bf16.msra.mxu0 0
      %2181 = vmatprep.subr.bf16.mxu0 0
      %2182 = vmatpush1.bf16.msra.mxu0 0
      %2183 = vmatprep.subr.bf16.mxu0 0
      %2184 = vmatpush1.bf16.msra.mxu0 0
      %2185 = vmatprep.subr.bf16.mxu0 0
      %2186 = vmatpush1.bf16.msra.mxu0 0
      %2187 = vmatprep.subr.bf16.mxu0 0
      %2188 = vmatpush1.bf16.msra.mxu0 0
      %2189 = vmatprep.subr.bf16.mxu0 0
      %2190 = vmatpush1.bf16.msra.mxu0 0
      %2191 = vmatprep.subr.bf16.mxu0 0
      %2192 = vmatpush1.bf16.msra.mxu0 0
      %2193 = vmatprep.subr.bf16.mxu0 0
      %2194 = vmatpush1.bf16.msra.mxu0 0
      %2195 = vmatprep.subr.bf16.mxu0 0
      %2196 = vmatpush1.bf16.msra.mxu0 0
      %2197 = vmatprep.subr.bf16.mxu0 0
      %2198 = vmatpush1.bf16.msra.mxu0 0
      %2199 = vmatprep.subr.bf16.mxu0 0
      %2200 = vmatpush1.bf16.msra.mxu0 0
      %2201 = vmatprep.subr.bf16.mxu0 0
      %2202 = vmatpush1.bf16.msra.mxu0 0
      %2203 = vmatprep.subr.bf16.mxu0 0
      %2204 = vmatpush1.bf16.msra.mxu0 0
      %2205 = vmatprep.mubr.bf16.mxu0 0
      %2206 = vmatmul.mubr.bf16.gmra.mrb[0].mxu0 %v2159
      %v2207 = vpop.f32.mrb[0].mxu0
      %v2208 = vadd.f32 0.0, %v2207
      %v2209 = vpop.f32.mrb[0].mxu0
      %v2210 = vpop.f32.mrb[0].mxu0
      %v2211 = vadd.f32 0.0, %v2210
      %v2212 = vpop.f32.mrb[0].mxu0
      %2213 = vmatprep.mubr.bf16.mxu0 0
      %2214 = vmatmul.mubr.bf16.gmra.mrb[0].mxu0 %v2162
      %v2215 = vpop.f32.mrb[0].mxu0
      %v2216 = vadd.f32 0.0, %v2215
      %v2217 = vpop.f32.mrb[0].mxu0
      %v2218 = vpop.f32.mrb[0].mxu0
      %v2219 = vadd.f32 0.0, %v2218
      %v2220 = vpop.f32.mrb[0].mxu0
      %2221 = vmatprep.mubr.bf16.mxu0 0
      %2222 = vmatmul.mubr.bf16.gmra.mrb[0].mxu0 %v2165
      %v2223 = vpop.f32.mrb[0].mxu0
      %v2224 = vadd.f32 0.0, %v2223
      %v2225 = vpop.f32.mrb[0].mxu0
      %v2226 = vpop.f32.mrb[0].mxu0
      %v2227 = vadd.f32 0.0, %v2226
      %v2228 = vpop.f32.mrb[0].mxu0
      %2229 = vmatprep.mubr.bf16.mxu0 0
      %2230 = vmatmul.mubr.bf16.gmra.mrb[0].mxu0 %v2168
      %v2231 = vpop.f32.mrb[0].mxu0
      %v2232 = vadd.f32 0.0, %v2231
      %v2233 = vpop.f32.mrb[0].mxu0
      %v2234 = vpop.f32.mrb[0].mxu0
      %v2235 = vadd.f32 0.0, %v2234
      %v2236 = vpop.f32.mrb[0].mxu0
      %2237 = vdwg.mxu0
      %v2238 = vadd.f32 %v2001, %v2208
      %v2239 = vadd.f32 %v2002, %v2211
      %v2240 = vadd.f32 %v2003, %v2216
      %v2241 = vadd.f32 %v2004, %v2219
      %v2242 = vadd.f32 %v2005, %v2224
      %v2243 = vadd.f32 %v2006, %v2227
      %v2244 = vadd.f32 %v2007, %v2232
      %v2245 = vadd.f32 %v2008, %v2235
      %s2246 = scalar_lea.vmem %s3, 26
      %v2247 = vld [vmem:[%s2246] sm:$0x3]
      %v2248 = vunpack.c.l.b16 %v2144
      %v2249 = vpack.c.b16 %v2148, %v2147
      %v2250 = vpack.c.b16 %v2150, %v2149
      %v2251 = vpack.c.b16 %v2152, %v2151
      %v2252 = vpack.c.b16 %v2248, %v2153
      %v2254 = vsel %vm640, %v2249, 0
      %v2257 = vsel %vm640, %v2250, 0
      %v2260 = vsel %vm640, %v2251, 0
      %v2263 = vsel %vm640, %v2252, 0
      %v2266 = vsel %vm653, %v2247, 0
      %2268 = vmatprep.subr.bf16.mxu0 0
      %2269 = vmatpush1.bf16.msra.mxu0 %v2266
      %2270 = vmatprep.subr.bf16.mxu0 0
      %2271 = vmatpush1.bf16.msra.mxu0 0
      %2272 = vmatprep.subr.bf16.mxu0 0
      %2273 = vmatpush1.bf16.msra.mxu0 0
      %2274 = vmatprep.subr.bf16.mxu0 0
      %2275 = vmatpush1.bf16.msra.mxu0 0
      %2276 = vmatprep.subr.bf16.mxu0 0
      %2277 = vmatpush1.bf16.msra.mxu0 0
      %2278 = vmatprep.subr.bf16.mxu0 0
      %2279 = vmatpush1.bf16.msra.mxu0 0
      %2280 = vmatprep.subr.bf16.mxu0 0
      %2281 = vmatpush1.bf16.msra.mxu0 0
      %2282 = vmatprep.subr.bf16.mxu0 0
      %2283 = vmatpush1.bf16.msra.mxu0 0
      %2284 = vmatprep.subr.bf16.mxu0 0
      %2285 = vmatpush1.bf16.msra.mxu0 0
      %2286 = vmatprep.subr.bf16.mxu0 0
      %2287 = vmatpush1.bf16.msra.mxu0 0
      %2288 = vmatprep.subr.bf16.mxu0 0
      %2289 = vmatpush1.bf16.msra.mxu0 0
      %2290 = vmatprep.subr.bf16.mxu0 0
      %2291 = vmatpush1.bf16.msra.mxu0 0
      %2292 = vmatprep.subr.bf16.mxu0 0
      %2293 = vmatpush1.bf16.msra.mxu0 0
      %2294 = vmatprep.subr.bf16.mxu0 0
      %2295 = vmatpush1.bf16.msra.mxu0 0
      %2296 = vmatprep.subr.bf16.mxu0 0
      %2297 = vmatpush1.bf16.msra.mxu0 0
      %2298 = vmatprep.subr.bf16.mxu0 0
      %2299 = vmatpush1.bf16.msra.mxu0 0
      %2300 = vmatprep.mubr.bf16.mxu0 0
      %2301 = vmatmul.mubr.bf16.gmra.mrb[0].mxu0 %v2254
      %v2302 = vpop.f32.mrb[0].mxu0
      %v2303 = vadd.f32 0.0, %v2302
      %v2304 = vpop.f32.mrb[0].mxu0
      %v2305 = vpop.f32.mrb[0].mxu0
      %v2306 = vadd.f32 0.0, %v2305
      %v2307 = vpop.f32.mrb[0].mxu0
      %2308 = vmatprep.mubr.bf16.mxu0 0
      %2309 = vmatmul.mubr.bf16.gmra.mrb[0].mxu0 %v2257
      %v2310 = vpop.f32.mrb[0].mxu0
      %v2311 = vadd.f32 0.0, %v2310
      %v2312 = vpop.f32.mrb[0].mxu0
      %v2313 = vpop.f32.mrb[0].mxu0
      %v2314 = vadd.f32 0.0, %v2313
      %v2315 = vpop.f32.mrb[0].mxu0
      %2316 = vmatprep.mubr.bf16.mxu0 0
      %2317 = vmatmul.mubr.bf16.gmra.mrb[0].mxu0 %v2260
      %v2318 = vpop.f32.mrb[0].mxu0
      %v2319 = vadd.f32 0.0, %v2318
      %v2320 = vpop.f32.mrb[0].mxu0
      %v2321 = vpop.f32.mrb[0].mxu0
      %v2322 = vadd.f32 0.0, %v2321
      %v2323 = vpop.f32.mrb[0].mxu0
      %2324 = vmatprep.mubr.bf16.mxu0 0
      %2325 = vmatmul.mubr.bf16.gmra.mrb[0].mxu0 %v2263
      %v2326 = vpop.f32.mrb[0].mxu0
      %v2327 = vadd.f32 0.0, %v2326
      %v2328 = vpop.f32.mrb[0].mxu0
      %v2329 = vpop.f32.mrb[0].mxu0
      %v2330 = vadd.f32 0.0, %v2329
      %v2331 = vpop.f32.mrb[0].mxu0
      %2332 = vdwg.mxu0
      %v2333 = vadd.f32 %v2238, %v2303
      %v2334 = vadd.f32 %v2239, %v2306
      %v2335 = vadd.f32 %v2240, %v2311
      %v2336 = vadd.f32 %v2241, %v2314
      %v2337 = vadd.f32 %v2242, %v2319
      %v2338 = vadd.f32 %v2243, %v2322
      %v2339 = vadd.f32 %v2244, %v2327
      %v2340 = vadd.f32 %v2245, %v2330
      %s2341 = scalar_lea.vmem %s3, 32
      %v2342 = vld [vmem:[%s2341] sm:$0x3]
      %v2343 = vpack.c.b16 %v1048, %v2248
      %v2345 = vsel %vm640, %v2343, 0
      %v2348 = vsel %vm653, %v2342, 0
      %2350 = vmatprep.subr.bf16.mxu0 0
      %2351 = vmatpush1.bf16.msra.mxu0 %v2348
      %2352 = vmatprep.subr.bf16.mxu0 0
      %2353 = vmatpush1.bf16.msra.mxu0 0
      %2354 = vmatprep.subr.bf16.mxu0 0
      %2355 = vmatpush1.bf16.msra.mxu0 0
      %2356 = vmatprep.subr.bf16.mxu0 0
      %2357 = vmatpush1.bf16.msra.mxu0 0
      %2358 = vmatprep.subr.bf16.mxu0 0
      %2359 = vmatpush1.bf16.msra.mxu0 0
      %2360 = vmatprep.subr.bf16.mxu0 0
      %2361 = vmatpush1.bf16.msra.mxu0 0
      %2362 = vmatprep.subr.bf16.mxu0 0
      %2363 = vmatpush1.bf16.msra.mxu0 0
      %2364 = vmatprep.subr.bf16.mxu0 0
      %2365 = vmatpush1.bf16.msra.mxu0 0
      %2366 = vmatprep.subr.bf16.mxu0 0
      %2367 = vmatpush1.bf16.msra.mxu0 0
      %2368 = vmatprep.subr.bf16.mxu0 0
      %2369 = vmatpush1.bf16.msra.mxu0 0
      %2370 = vmatprep.subr.bf16.mxu0 0
      %2371 = vmatpush1.bf16.msra.mxu0 0
      %2372 = vmatprep.subr.bf16.mxu0 0
      %2373 = vmatpush1.bf16.msra.mxu0 0
      %2374 = vmatprep.subr.bf16.mxu0 0
      %2375 = vmatpush1.bf16.msra.mxu0 0
      %2376 = vmatprep.subr.bf16.mxu0 0
      %2377 = vmatpush1.bf16.msra.mxu0 0
      %2378 = vmatprep.subr.bf16.mxu0 0
      %2379 = vmatpush1.bf16.msra.mxu0 0
      %2380 = vmatprep.subr.bf16.mxu0 0
      %2381 = vmatpush1.bf16.msra.mxu0 0
      %2382 = vmatprep.mubr.bf16.mxu0 0
      %2383 = vmatmul.mubr.bf16.gmra.mrb[0].mxu0 %v2162
      %v2384 = vpop.f32.mrb[0].mxu0
      %v2385 = vadd.f32 0.0, %v2384
      %v2386 = vpop.f32.mrb[0].mxu0
      %v2387 = vpop.f32.mrb[0].mxu0
      %v2388 = vadd.f32 0.0, %v2387
      %v2389 = vpop.f32.mrb[0].mxu0
      %2390 = vmatprep.mubr.bf16.mxu0 0
      %2391 = vmatmul.mubr.bf16.gmra.mrb[0].mxu0 %v2165
      %v2392 = vpop.f32.mrb[0].mxu0
      %v2393 = vadd.f32 0.0, %v2392
      %v2394 = vpop.f32.mrb[0].mxu0
      %v2395 = vpop.f32.mrb[0].mxu0
      %v2396 = vadd.f32 0.0, %v2395
      %v2397 = vpop.f32.mrb[0].mxu0
      %2398 = vmatprep.mubr.bf16.mxu0 0
      %2399 = vmatmul.mubr.bf16.gmra.mrb[0].mxu0 %v2168
      %v2400 = vpop.f32.mrb[0].mxu0
      %v2401 = vadd.f32 0.0, %v2400
      %v2402 = vpop.f32.mrb[0].mxu0
      %v2403 = vpop.f32.mrb[0].mxu0
      %v2404 = vadd.f32 0.0, %v2403
      %v2405 = vpop.f32.mrb[0].mxu0
      %2406 = vmatprep.mubr.bf16.mxu0 0
      %2407 = vmatmul.mubr.bf16.gmra.mrb[0].mxu0 %v2345
      %v2408 = vpop.f32.mrb[0].mxu0
      %v2409 = vadd.f32 0.0, %v2408
      %v2410 = vpop.f32.mrb[0].mxu0
      %v2411 = vpop.f32.mrb[0].mxu0
      %v2412 = vadd.f32 0.0, %v2411
      %v2413 = vpop.f32.mrb[0].mxu0
      %2414 = vdwg.mxu0
      %v2415 = vadd.f32 %v2333, %v2385
      %v2416 = vadd.f32 %v2334, %v2388
      %v2417 = vadd.f32 %v2335, %v2393
      %v2418 = vadd.f32 %v2336, %v2396
      %v2419 = vadd.f32 %v2337, %v2401
      %v2420 = vadd.f32 %v2338, %v2404
      %v2421 = vadd.f32 %v2339, %v2409
      %v2422 = vadd.f32 %v2340, %v2412
      %v2423 = vrot.slane %v2017, 5
      %v2424 = vrot.slane %v2423, 4
      %v2425 = vrot.slane %v2018, 5
      %v2426 = vsel %vm1327, %v2424, %v2425
      %v2427 = vrot.slane %v2019, 5
      %v2428 = vrot.slane %v2427, 4
      %v2429 = vrot.slane %v2020, 5
      %v2430 = vsel %vm1327, %v2428, %v2429
      %v2431 = vrot.slane %v2021, 5
      %v2432 = vrot.slane %v2431, 4
      %v2433 = vrot.slane %v2022, 5
      %v2434 = vsel %vm1327, %v2432, %v2433
      %v2435 = vrot.slane %v2023, 5
      %v2436 = vrot.slane %v2435, 4
      %v2437 = vrot.slane %v2024, 5
      %v2438 = vsel %vm1327, %v2436, %v2437
      %v2439 = vrot.slane %v2025, 5
      %v2440 = vrot.slane %v2439, 4
      %v2441 = vrot.slane %v2026, 5
      %v2442 = vsel %vm1327, %v2440, %v2441
      %v2443 = vrot.slane %v2027, 5
      %v2444 = vrot.slane %v2443, 4
      %v2445 = vrot.slane %v2028, 5
      %v2446 = vsel %vm1327, %v2444, %v2445
      %v2447 = vrot.slane %v2029, 5
      %v2448 = vrot.slane %v2447, 4
      %v2449 = vrot.slane %v2030, 5
      %v2450 = vsel %vm1327, %v2448, %v2449
      %v2451 = vrot.slane %v2031, 5
      %v2452 = vrot.slane %v2451, 4
      %v2453 = vrot.slane %v2032, 5
      %v2454 = vsel %vm1327, %v2452, %v2453
      %s2455 = scalar_lea.vmem %s3, 22
      %v2456 = vld [vmem:[%s2455] sm:$0x3]
      %v2457 = vunpack.c.l.b16 %v2426
      %v2458 = vunpack.c.l.b16 %v2430
      %v2459 = vunpack.c.l.b16 %v2434
      %v2460 = vunpack.c.l.b16 %v2438
      %v2461 = vunpack.c.l.b16 %v2442
      %v2462 = vunpack.c.l.b16 %v2446
      %v2463 = vunpack.c.l.b16 %v2450
      %v2464 = vpack.c.b16 %v2457, %v1366
      %v2465 = vpack.c.b16 %v2459, %v2458
      %v2466 = vpack.c.b16 %v2461, %v2460
      %v2467 = vpack.c.b16 %v2463, %v2462
      %v2469 = vsel %vm640, %v2464, 0
      %v2472 = vsel %vm640, %v2465, 0
      %v2475 = vsel %vm640, %v2466, 0
      %v2478 = vsel %vm640, %v2467, 0
      %v2481 = vsel %vm653, %v2456, 0
      %2483 = vmatprep.subr.bf16.mxu0 0
      %2484 = vmatpush1.bf16.msra.mxu0 %v2481
      %2485 = vmatprep.subr.bf16.mxu0 0
      %2486 = vmatpush1.bf16.msra.mxu0 0
      %2487 = vmatprep.subr.bf16.mxu0 0
      %2488 = vmatpush1.bf16.msra.mxu0 0
      %2489 = vmatprep.subr.bf16.mxu0 0
      %2490 = vmatpush1.bf16.msra.mxu0 0
      %2491 = vmatprep.subr.bf16.mxu0 0
      %2492 = vmatpush1.bf16.msra.mxu0 0
      %2493 = vmatprep.subr.bf16.mxu0 0
      %2494 = vmatpush1.bf16.msra.mxu0 0
      %2495 = vmatprep.subr.bf16.mxu0 0
      %2496 = vmatpush1.bf16.msra.mxu0 0
      %2497 = vmatprep.subr.bf16.mxu0 0
      %2498 = vmatpush1.bf16.msra.mxu0 0
      %2499 = vmatprep.subr.bf16.mxu0 0
      %2500 = vmatpush1.bf16.msra.mxu0 0
      %2501 = vmatprep.subr.bf16.mxu0 0
      %2502 = vmatpush1.bf16.msra.mxu0 0
      %2503 = vmatprep.subr.bf16.mxu0 0
      %2504 = vmatpush1.bf16.msra.mxu0 0
      %2505 = vmatprep.subr.bf16.mxu0 0
      %2506 = vmatpush1.bf16.msra.mxu0 0
      %2507 = vmatprep.subr.bf16.mxu0 0
      %2508 = vmatpush1.bf16.msra.mxu0 0
      %2509 = vmatprep.subr.bf16.mxu0 0
      %2510 = vmatpush1.bf16.msra.mxu0 0
      %2511 = vmatprep.subr.bf16.mxu0 0
      %2512 = vmatpush1.bf16.msra.mxu0 0
      %2513 = vmatprep.subr.bf16.mxu0 0
      %2514 = vmatpush1.bf16.msra.mxu0 0
      %2515 = vmatprep.mubr.bf16.mxu0 0
      %2516 = vmatmul.mubr.bf16.gmra.mrb[0].mxu0 %v2469
      %v2517 = vpop.f32.mrb[0].mxu0
      %v2518 = vadd.f32 0.0, %v2517
      %v2519 = vpop.f32.mrb[0].mxu0
      %v2520 = vpop.f32.mrb[0].mxu0
      %v2521 = vadd.f32 0.0, %v2520
      %v2522 = vpop.f32.mrb[0].mxu0
      %2523 = vmatprep.mubr.bf16.mxu0 0
      %2524 = vmatmul.mubr.bf16.gmra.mrb[0].mxu0 %v2472
      %v2525 = vpop.f32.mrb[0].mxu0
      %v2526 = vadd.f32 0.0, %v2525
      %v2527 = vpop.f32.mrb[0].mxu0
      %v2528 = vpop.f32.mrb[0].mxu0
      %v2529 = vadd.f32 0.0, %v2528
      %v2530 = vpop.f32.mrb[0].mxu0
      %2531 = vmatprep.mubr.bf16.mxu0 0
      %2532 = vmatmul.mubr.bf16.gmra.mrb[0].mxu0 %v2475
      %v2533 = vpop.f32.mrb[0].mxu0
      %v2534 = vadd.f32 0.0, %v2533
      %v2535 = vpop.f32.mrb[0].mxu0
      %v2536 = vpop.f32.mrb[0].mxu0
      %v2537 = vadd.f32 0.0, %v2536
      %v2538 = vpop.f32.mrb[0].mxu0
      %2539 = vmatprep.mubr.bf16.mxu0 0
      %2540 = vmatmul.mubr.bf16.gmra.mrb[0].mxu0 %v2478
      %v2541 = vpop.f32.mrb[0].mxu0
      %v2542 = vadd.f32 0.0, %v2541
      %v2543 = vpop.f32.mrb[0].mxu0
      %v2544 = vpop.f32.mrb[0].mxu0
      %v2545 = vadd.f32 0.0, %v2544
      %v2546 = vpop.f32.mrb[0].mxu0
      %2547 = vdwg.mxu0
      %v2548 = vadd.f32 %v2415, %v2518
      %v2549 = vadd.f32 %v2416, %v2521
      %v2550 = vadd.f32 %v2417, %v2526
      %v2551 = vadd.f32 %v2418, %v2529
      %v2552 = vadd.f32 %v2419, %v2534
      %v2553 = vadd.f32 %v2420, %v2537
      %v2554 = vadd.f32 %v2421, %v2542
      %v2555 = vadd.f32 %v2422, %v2545
      %s2556 = scalar_lea.vmem %s3, 28
      %v2557 = vld [vmem:[%s2556] sm:$0x3]
      %v2558 = vunpack.c.l.b16 %v2454
      %v2559 = vpack.c.b16 %v2458, %v2457
      %v2560 = vpack.c.b16 %v2460, %v2459
      %v2561 = vpack.c.b16 %v2462, %v2461
      %v2562 = vpack.c.b16 %v2558, %v2463
      %v2564 = vsel %vm640, %v2559, 0
      %v2567 = vsel %vm640, %v2560, 0
      %v2570 = vsel %vm640, %v2561, 0
      %v2573 = vsel %vm640, %v2562, 0
      %v2576 = vsel %vm653, %v2557, 0
      %2578 = vmatprep.subr.bf16.mxu0 0
      %2579 = vmatpush1.bf16.msra.mxu0 %v2576
      %2580 = vmatprep.subr.bf16.mxu0 0
      %2581 = vmatpush1.bf16.msra.mxu0 0
      %2582 = vmatprep.subr.bf16.mxu0 0
      %2583 = vmatpush1.bf16.msra.mxu0 0
      %2584 = vmatprep.subr.bf16.mxu0 0
      %2585 = vmatpush1.bf16.msra.mxu0 0
      %2586 = vmatprep.subr.bf16.mxu0 0
      %2587 = vmatpush1.bf16.msra.mxu0 0
      %2588 = vmatprep.subr.bf16.mxu0 0
      %2589 = vmatpush1.bf16.msra.mxu0 0
      %2590 = vmatprep.subr.bf16.mxu0 0
      %2591 = vmatpush1.bf16.msra.mxu0 0
      %2592 = vmatprep.subr.bf16.mxu0 0
      %2593 = vmatpush1.bf16.msra.mxu0 0
      %2594 = vmatprep.subr.bf16.mxu0 0
      %2595 = vmatpush1.bf16.msra.mxu0 0
      %2596 = vmatprep.subr.bf16.mxu0 0
      %2597 = vmatpush1.bf16.msra.mxu0 0
      %2598 = vmatprep.subr.bf16.mxu0 0
      %2599 = vmatpush1.bf16.msra.mxu0 0
      %2600 = vmatprep.subr.bf16.mxu0 0
      %2601 = vmatpush1.bf16.msra.mxu0 0
      %2602 = vmatprep.subr.bf16.mxu0 0
      %2603 = vmatpush1.bf16.msra.mxu0 0
      %2604 = vmatprep.subr.bf16.mxu0 0
      %2605 = vmatpush1.bf16.msra.mxu0 0
      %2606 = vmatprep.subr.bf16.mxu0 0
      %2607 = vmatpush1.bf16.msra.mxu0 0
      %2608 = vmatprep.subr.bf16.mxu0 0
      %2609 = vmatpush1.bf16.msra.mxu0 0
      %2610 = vmatprep.mubr.bf16.mxu0 0
      %2611 = vmatmul.mubr.bf16.gmra.mrb[0].mxu0 %v2564
      %v2612 = vpop.f32.mrb[0].mxu0
      %v2613 = vadd.f32 0.0, %v2612
      %v2614 = vpop.f32.mrb[0].mxu0
      %v2615 = vpop.f32.mrb[0].mxu0
      %v2616 = vadd.f32 0.0, %v2615
      %v2617 = vpop.f32.mrb[0].mxu0
      %2618 = vmatprep.mubr.bf16.mxu0 0
      %2619 = vmatmul.mubr.bf16.gmra.mrb[0].mxu0 %v2567
      %v2620 = vpop.f32.mrb[0].mxu0
      %v2621 = vadd.f32 0.0, %v2620
      %v2622 = vpop.f32.mrb[0].mxu0
      %v2623 = vpop.f32.mrb[0].mxu0
      %v2624 = vadd.f32 0.0, %v2623
      %v2625 = vpop.f32.mrb[0].mxu0
      %2626 = vmatprep.mubr.bf16.mxu0 0
      %2627 = vmatmul.mubr.bf16.gmra.mrb[0].mxu0 %v2570
      %v2628 = vpop.f32.mrb[0].mxu0
      %v2629 = vadd.f32 0.0, %v2628
      %v2630 = vpop.f32.mrb[0].mxu0
      %v2631 = vpop.f32.mrb[0].mxu0
      %v2632 = vadd.f32 0.0, %v2631
      %v2633 = vpop.f32.mrb[0].mxu0
      %2634 = vmatprep.mubr.bf16.mxu0 0
      %2635 = vmatmul.mubr.bf16.gmra.mrb[0].mxu0 %v2573
      %v2636 = vpop.f32.mrb[0].mxu0
      %v2637 = vadd.f32 0.0, %v2636
      %v2638 = vpop.f32.mrb[0].mxu0
      %v2639 = vpop.f32.mrb[0].mxu0
      %v2640 = vadd.f32 0.0, %v2639
      %v2641 = vpop.f32.mrb[0].mxu0
      %2642 = vdwg.mxu0
      %v2643 = vadd.f32 %v2548, %v2613
      %v2644 = vadd.f32 %v2549, %v2616
      %v2645 = vadd.f32 %v2550, %v2621
      %v2646 = vadd.f32 %v2551, %v2624
      %v2647 = vadd.f32 %v2552, %v2629
      %v2648 = vadd.f32 %v2553, %v2632
      %v2649 = vadd.f32 %v2554, %v2637
      %v2650 = vadd.f32 %v2555, %v2640
      %s2651 = scalar_lea.vmem %s3, 34
      %v2652 = vld [vmem:[%s2651] sm:$0x3]
      %v2653 = vpack.c.b16 %v1366, %v2558
      %v2655 = vsel %vm640, %v2653, 0
      %v2658 = vsel %vm653, %v2652, 0
      %2660 = vmatprep.subr.bf16.mxu0 0
      %2661 = vmatpush1.bf16.msra.mxu0 %v2658
      %2662 = vmatprep.subr.bf16.mxu0 0
      %2663 = vmatpush1.bf16.msra.mxu0 0
      %2664 = vmatprep.subr.bf16.mxu0 0
      %2665 = vmatpush1.bf16.msra.mxu0 0
      %2666 = vmatprep.subr.bf16.mxu0 0
      %2667 = vmatpush1.bf16.msra.mxu0 0
      %2668 = vmatprep.subr.bf16.mxu0 0
      %2669 = vmatpush1.bf16.msra.mxu0 0
      %2670 = vmatprep.subr.bf16.mxu0 0
      %2671 = vmatpush1.bf16.msra.mxu0 0
      %2672 = vmatprep.subr.bf16.mxu0 0
      %2673 = vmatpush1.bf16.msra.mxu0 0
      %2674 = vmatprep.subr.bf16.mxu0 0
      %2675 = vmatpush1.bf16.msra.mxu0 0
      %2676 = vmatprep.subr.bf16.mxu0 0
      %2677 = vmatpush1.bf16.msra.mxu0 0
      %2678 = vmatprep.subr.bf16.mxu0 0
      %2679 = vmatpush1.bf16.msra.mxu0 0
      %2680 = vmatprep.subr.bf16.mxu0 0
      %2681 = vmatpush1.bf16.msra.mxu0 0
      %2682 = vmatprep.subr.bf16.mxu0 0
      %2683 = vmatpush1.bf16.msra.mxu0 0
      %2684 = vmatprep.subr.bf16.mxu0 0
      %2685 = vmatpush1.bf16.msra.mxu0 0
      %2686 = vmatprep.subr.bf16.mxu0 0
      %2687 = vmatpush1.bf16.msra.mxu0 0
      %2688 = vmatprep.subr.bf16.mxu0 0
      %2689 = vmatpush1.bf16.msra.mxu0 0
      %2690 = vmatprep.subr.bf16.mxu0 0
      %2691 = vmatpush1.bf16.msra.mxu0 0
      %2692 = vmatprep.mubr.bf16.mxu0 0
      %2693 = vmatmul.mubr.bf16.gmra.mrb[0].mxu0 %v2472
      %v2694 = vpop.f32.mrb[0].mxu0
      %v2695 = vadd.f32 0.0, %v2694
      %v2696 = vpop.f32.mrb[0].mxu0
      %v2697 = vpop.f32.mrb[0].mxu0
      %v2698 = vadd.f32 0.0, %v2697
      %v2699 = vpop.f32.mrb[0].mxu0
      %2700 = vmatprep.mubr.bf16.mxu0 0
      %2701 = vmatmul.mubr.bf16.gmra.mrb[0].mxu0 %v2475
      %v2702 = vpop.f32.mrb[0].mxu0
      %v2703 = vadd.f32 0.0, %v2702
      %v2704 = vpop.f32.mrb[0].mxu0
      %v2705 = vpop.f32.mrb[0].mxu0
      %v2706 = vadd.f32 0.0, %v2705
      %v2707 = vpop.f32.mrb[0].mxu0
      %2708 = vmatprep.mubr.bf16.mxu0 0
      %2709 = vmatmul.mubr.bf16.gmra.mrb[0].mxu0 %v2478
      %v2710 = vpop.f32.mrb[0].mxu0
      %v2711 = vadd.f32 0.0, %v2710
      %v2712 = vpop.f32.mrb[0].mxu0
      %v2713 = vpop.f32.mrb[0].mxu0
      %v2714 = vadd.f32 0.0, %v2713
      %v2715 = vpop.f32.mrb[0].mxu0
      %2716 = vmatprep.mubr.bf16.mxu0 0
      %2717 = vmatmul.mubr.bf16.gmra.mrb[0].mxu0 %v2655
      %v2718 = vpop.f32.mrb[0].mxu0
      %v2719 = vadd.f32 0.0, %v2718
      %v2720 = vpop.f32.mrb[0].mxu0
      %v2721 = vpop.f32.mrb[0].mxu0
      %v2722 = vadd.f32 0.0, %v2721
      %v2723 = vpop.f32.mrb[0].mxu0
      %2724 = vdwg.mxu0
      %v2725 = vadd.f32 %v2643, %v2695
      %v2726 = vadd.f32 %v2644, %v2698
      %v2727 = vadd.f32 %v2645, %v2703
      %v2728 = vadd.f32 %v2646, %v2706
      %v2729 = vadd.f32 %v2647, %v2711
      %v2730 = vadd.f32 %v2648, %v2714
      %v2731 = vadd.f32 %v2649, %v2719
      %v2732 = vadd.f32 %v2650, %v2722
      %v2734 = vshrl.u32 %v513, 16
      %v2736 = vrot.slane %v2734, 7
      %v2737 = vshll.u32 %v513, 16
      %v2739 = vor.u32 %v2736, %v2737
      %v2741 = vshrl.u32 %v514, 16
      %v2743 = vrot.slane %v2741, 7
      %v2744 = vshll.u32 %v514, 16
      %v2746 = vor.u32 %v2743, %v2744
      %v2748 = vshrl.u32 %v515, 16
      %v2750 = vrot.slane %v2748, 7
      %v2751 = vshll.u32 %v515, 16
      %v2753 = vor.u32 %v2750, %v2751
      %v2755 = vshrl.u32 %v516, 16
      %v2757 = vrot.slane %v2755, 7
      %v2758 = vshll.u32 %v516, 16
      %v2760 = vor.u32 %v2757, %v2758
      %v2762 = vshrl.u32 %v517, 16
      %v2764 = vrot.slane %v2762, 7
      %v2765 = vshll.u32 %v517, 16
      %v2767 = vor.u32 %v2764, %v2765
      %v2769 = vshrl.u32 %v518, 16
      %v2771 = vrot.slane %v2769, 7
      %v2772 = vshll.u32 %v518, 16
      %v2774 = vor.u32 %v2771, %v2772
      %v2776 = vshrl.u32 %v519, 16
      %v2778 = vrot.slane %v2776, 7
      %v2779 = vshll.u32 %v519, 16
      %v2781 = vor.u32 %v2778, %v2779
      %v2783 = vshrl.u32 %v520, 16
      %v2785 = vrot.slane %v2783, 7
      %v2786 = vshll.u32 %v520, 16
      %v2788 = vor.u32 %v2785, %v2786
      %v2797 = vsel %vm595, 0, %v2739
      %v2798 = vsel %vm595, 0, %v2746
      %v2799 = vsel %vm595, 0, %v2753
      %v2800 = vsel %vm595, 0, %v2760
      %v2801 = vsel %vm595, 0, %v2767
      %v2802 = vsel %vm595, 0, %v2774
      %v2803 = vsel %vm595, 0, %v2781
      %v2804 = vsel %vm595, 0, %v2788
      %v2805 = vsel %vm607, %v2797, 0
      %v2806 = vsel %vm607, %v2798, 0
      %v2807 = vsel %vm607, %v2799, 0
      %v2808 = vsel %vm607, %v2800, 0
      %v2809 = vsel %vm607, %v2801, 0
      %v2810 = vsel %vm607, %v2802, 0
      %v2811 = vsel %vm607, %v2803, 0
      %v2812 = vsel %vm607, %v2804, 0
      %s2813 = scalar_lea.vmem %s3, 36
      %v2814 = vld [vmem:[%s2813] sm:$0x3]
      %v2822 = vunpack.c.l.b16 %v2805
      %v2823 = vunpack.c.l.b16 %v2806
      %v2824 = vunpack.c.l.b16 %v2807
      %v2825 = vunpack.c.l.b16 %v2808
      %v2826 = vunpack.c.l.b16 %v2809
      %v2827 = vunpack.c.l.b16 %v2810
      %v2828 = vunpack.c.l.b16 %v2811
      %v2829 = vpack.c.b16 %v2822, %v723
      %v2830 = vpack.c.b16 %v2824, %v2823
      %v2831 = vpack.c.b16 %v2826, %v2825
      %v2832 = vpack.c.b16 %v2828, %v2827
      %v2834 = vsel %vm640, %v2829, 0
      %v2837 = vsel %vm640, %v2830, 0
      %v2840 = vsel %vm640, %v2831, 0
      %v2843 = vsel %vm640, %v2832, 0
      %v2846 = vsel %vm653, %v2814, 0
      %2848 = vmatprep.subr.bf16.mxu0 0
      %2849 = vmatpush1.bf16.msra.mxu0 %v2846
      %2850 = vmatprep.subr.bf16.mxu0 0
      %2851 = vmatpush1.bf16.msra.mxu0 0
      %2852 = vmatprep.subr.bf16.mxu0 0
      %2853 = vmatpush1.bf16.msra.mxu0 0
      %2854 = vmatprep.subr.bf16.mxu0 0
      %2855 = vmatpush1.bf16.msra.mxu0 0
      %2856 = vmatprep.subr.bf16.mxu0 0
      %2857 = vmatpush1.bf16.msra.mxu0 0
      %2858 = vmatprep.subr.bf16.mxu0 0
      %2859 = vmatpush1.bf16.msra.mxu0 0
      %2860 = vmatprep.subr.bf16.mxu0 0
      %2861 = vmatpush1.bf16.msra.mxu0 0
      %2862 = vmatprep.subr.bf16.mxu0 0
      %2863 = vmatpush1.bf16.msra.mxu0 0
      %2864 = vmatprep.subr.bf16.mxu0 0
      %2865 = vmatpush1.bf16.msra.mxu0 0
      %2866 = vmatprep.subr.bf16.mxu0 0
      %2867 = vmatpush1.bf16.msra.mxu0 0
      %2868 = vmatprep.subr.bf16.mxu0 0
      %2869 = vmatpush1.bf16.msra.mxu0 0
      %2870 = vmatprep.subr.bf16.mxu0 0
      %2871 = vmatpush1.bf16.msra.mxu0 0
      %2872 = vmatprep.subr.bf16.mxu0 0
      %2873 = vmatpush1.bf16.msra.mxu0 0
      %2874 = vmatprep.subr.bf16.mxu0 0
      %2875 = vmatpush1.bf16.msra.mxu0 0
      %2876 = vmatprep.subr.bf16.mxu0 0
      %2877 = vmatpush1.bf16.msra.mxu0 0
      %2878 = vmatprep.subr.bf16.mxu0 0
      %2879 = vmatpush1.bf16.msra.mxu0 0
      %2880 = vmatprep.mubr.bf16.mxu0 0
      %2881 = vmatmul.mubr.bf16.gmra.mrb[0].mxu0 %v2834
      %v2882 = vpop.f32.mrb[0].mxu0
      %v2883 = vadd.f32 0.0, %v2882
      %v2884 = vpop.f32.mrb[0].mxu0
      %v2885 = vpop.f32.mrb[0].mxu0
      %v2886 = vadd.f32 0.0, %v2885
      %v2887 = vpop.f32.mrb[0].mxu0
      %2888 = vmatprep.mubr.bf16.mxu0 0
      %2889 = vmatmul.mubr.bf16.gmra.mrb[0].mxu0 %v2837
      %v2890 = vpop.f32.mrb[0].mxu0
      %v2891 = vadd.f32 0.0, %v2890
      %v2892 = vpop.f32.mrb[0].mxu0
      %v2893 = vpop.f32.mrb[0].mxu0
      %v2894 = vadd.f32 0.0, %v2893
      %v2895 = vpop.f32.mrb[0].mxu0
      %2896 = vmatprep.mubr.bf16.mxu0 0
      %2897 = vmatmul.mubr.bf16.gmra.mrb[0].mxu0 %v2840
      %v2898 = vpop.f32.mrb[0].mxu0
      %v2899 = vadd.f32 0.0, %v2898
      %v2900 = vpop.f32.mrb[0].mxu0
      %v2901 = vpop.f32.mrb[0].mxu0
      %v2902 = vadd.f32 0.0, %v2901
      %v2903 = vpop.f32.mrb[0].mxu0
      %2904 = vmatprep.mubr.bf16.mxu0 0
      %2905 = vmatmul.mubr.bf16.gmra.mrb[0].mxu0 %v2843
      %v2906 = vpop.f32.mrb[0].mxu0
      %v2907 = vadd.f32 0.0, %v2906
      %v2908 = vpop.f32.mrb[0].mxu0
      %v2909 = vpop.f32.mrb[0].mxu0
      %v2910 = vadd.f32 0.0, %v2909
      %v2911 = vpop.f32.mrb[0].mxu0
      %2912 = vdwg.mxu0
      %v2913 = vadd.f32 %v2725, %v2883
      %v2914 = vadd.f32 %v2726, %v2886
      %v2915 = vadd.f32 %v2727, %v2891
      %v2916 = vadd.f32 %v2728, %v2894
      %v2917 = vadd.f32 %v2729, %v2899
      %v2918 = vadd.f32 %v2730, %v2902
      %v2919 = vadd.f32 %v2731, %v2907
      %v2920 = vadd.f32 %v2732, %v2910
      %s2921 = scalar_lea.vmem %s3, 42
      %v2922 = vld [vmem:[%s2921] sm:$0x3]
      %v2924 = vunpack.c.l.b16 %v2812
      %v2925 = vpack.c.b16 %v2823, %v2822
      %v2926 = vpack.c.b16 %v2825, %v2824
      %v2927 = vpack.c.b16 %v2827, %v2826
      %v2928 = vpack.c.b16 %v2924, %v2828
      %v2930 = vsel %vm640, %v2925, 0
      %v2933 = vsel %vm640, %v2926, 0
      %v2936 = vsel %vm640, %v2927, 0
      %v2939 = vsel %vm640, %v2928, 0
      %v2942 = vsel %vm653, %v2922, 0
      %2944 = vmatprep.subr.bf16.mxu0 0
      %2945 = vmatpush1.bf16.msra.mxu0 %v2942
      %2946 = vmatprep.subr.bf16.mxu0 0
      %2947 = vmatpush1.bf16.msra.mxu0 0
      %2948 = vmatprep.subr.bf16.mxu0 0
      %2949 = vmatpush1.bf16.msra.mxu0 0
      %2950 = vmatprep.subr.bf16.mxu0 0
      %2951 = vmatpush1.bf16.msra.mxu0 0
      %2952 = vmatprep.subr.bf16.mxu0 0
      %2953 = vmatpush1.bf16.msra.mxu0 0
      %2954 = vmatprep.subr.bf16.mxu0 0
      %2955 = vmatpush1.bf16.msra.mxu0 0
      %2956 = vmatprep.subr.bf16.mxu0 0
      %2957 = vmatpush1.bf16.msra.mxu0 0
      %2958 = vmatprep.subr.bf16.mxu0 0
      %2959 = vmatpush1.bf16.msra.mxu0 0
      %2960 = vmatprep.subr.bf16.mxu0 0
      %2961 = vmatpush1.bf16.msra.mxu0 0
      %2962 = vmatprep.subr.bf16.mxu0 0
      %2963 = vmatpush1.bf16.msra.mxu0 0
      %2964 = vmatprep.subr.bf16.mxu0 0
      %2965 = vmatpush1.bf16.msra.mxu0 0
      %2966 = vmatprep.subr.bf16.mxu0 0
      %2967 = vmatpush1.bf16.msra.mxu0 0
      %2968 = vmatprep.subr.bf16.mxu0 0
      %2969 = vmatpush1.bf16.msra.mxu0 0
      %2970 = vmatprep.subr.bf16.mxu0 0
      %2971 = vmatpush1.bf16.msra.mxu0 0
      %2972 = vmatprep.subr.bf16.mxu0 0
      %2973 = vmatpush1.bf16.msra.mxu0 0
      %2974 = vmatprep.subr.bf16.mxu0 0
      %2975 = vmatpush1.bf16.msra.mxu0 0
      %2976 = vmatprep.mubr.bf16.mxu0 0
      %2977 = vmatmul.mubr.bf16.gmra.mrb[0].mxu0 %v2930
      %v2978 = vpop.f32.mrb[0].mxu0
      %v2979 = vadd.f32 0.0, %v2978
      %v2980 = vpop.f32.mrb[0].mxu0
      %v2981 = vpop.f32.mrb[0].mxu0
      %v2982 = vadd.f32 0.0, %v2981
      %v2983 = vpop.f32.mrb[0].mxu0
      %2984 = vmatprep.mubr.bf16.mxu0 0
      %2985 = vmatmul.mubr.bf16.gmra.mrb[0].mxu0 %v2933
      %v2986 = vpop.f32.mrb[0].mxu0
      %v2987 = vadd.f32 0.0, %v2986
      %v2988 = vpop.f32.mrb[0].mxu0
      %v2989 = vpop.f32.mrb[0].mxu0
      %v2990 = vadd.f32 0.0, %v2989
      %v2991 = vpop.f32.mrb[0].mxu0
      %2992 = vmatprep.mubr.bf16.mxu0 0
      %2993 = vmatmul.mubr.bf16.gmra.mrb[0].mxu0 %v2936
      %v2994 = vpop.f32.mrb[0].mxu0
      %v2995 = vadd.f32 0.0, %v2994
      %v2996 = vpop.f32.mrb[0].mxu0
      %v2997 = vpop.f32.mrb[0].mxu0
      %v2998 = vadd.f32 0.0, %v2997
      %v2999 = vpop.f32.mrb[0].mxu0
      %3000 = vmatprep.mubr.bf16.mxu0 0
      %3001 = vmatmul.mubr.bf16.gmra.mrb[0].mxu0 %v2939
      %v3002 = vpop.f32.mrb[0].mxu0
      %v3003 = vadd.f32 0.0, %v3002
      %v3004 = vpop.f32.mrb[0].mxu0
      %v3005 = vpop.f32.mrb[0].mxu0
      %v3006 = vadd.f32 0.0, %v3005
      %v3007 = vpop.f32.mrb[0].mxu0
      %3008 = vdwg.mxu0
      %v3009 = vadd.f32 %v2913, %v2979
      %v3010 = vadd.f32 %v2914, %v2982
      %v3011 = vadd.f32 %v2915, %v2987
      %v3012 = vadd.f32 %v2916, %v2990
      %v3013 = vadd.f32 %v2917, %v2995
      %v3014 = vadd.f32 %v2918, %v2998
      %v3015 = vadd.f32 %v2919, %v3003
      %v3016 = vadd.f32 %v2920, %v3006
      %s3017 = scalar_lea.vmem %s3, 48
      %v3018 = vld [vmem:[%s3017] sm:$0x3]
      %v3019 = vpack.c.b16 %v723, %v2924
      %v3021 = vsel %vm640, %v3019, 0
      %v3024 = vsel %vm653, %v3018, 0
      %3026 = vmatprep.subr.bf16.mxu0 0
      %3027 = vmatpush1.bf16.msra.mxu0 %v3024
      %3028 = vmatprep.subr.bf16.mxu0 0
      %3029 = vmatpush1.bf16.msra.mxu0 0
      %3030 = vmatprep.subr.bf16.mxu0 0
      %3031 = vmatpush1.bf16.msra.mxu0 0
      %3032 = vmatprep.subr.bf16.mxu0 0
      %3033 = vmatpush1.bf16.msra.mxu0 0
      %3034 = vmatprep.subr.bf16.mxu0 0
      %3035 = vmatpush1.bf16.msra.mxu0 0
      %3036 = vmatprep.subr.bf16.mxu0 0
      %3037 = vmatpush1.bf16.msra.mxu0 0
      %3038 = vmatprep.subr.bf16.mxu0 0
      %3039 = vmatpush1.bf16.msra.mxu0 0
      %3040 = vmatprep.subr.bf16.mxu0 0
      %3041 = vmatpush1.bf16.msra.mxu0 0
      %3042 = vmatprep.subr.bf16.mxu0 0
      %3043 = vmatpush1.bf16.msra.mxu0 0
      %3044 = vmatprep.subr.bf16.mxu0 0
      %3045 = vmatpush1.bf16.msra.mxu0 0
      %3046 = vmatprep.subr.bf16.mxu0 0
      %3047 = vmatpush1.bf16.msra.mxu0 0
      %3048 = vmatprep.subr.bf16.mxu0 0
      %3049 = vmatpush1.bf16.msra.mxu0 0
      %3050 = vmatprep.subr.bf16.mxu0 0
      %3051 = vmatpush1.bf16.msra.mxu0 0
      %3052 = vmatprep.subr.bf16.mxu0 0
      %3053 = vmatpush1.bf16.msra.mxu0 0
      %3054 = vmatprep.subr.bf16.mxu0 0
      %3055 = vmatpush1.bf16.msra.mxu0 0
      %3056 = vmatprep.subr.bf16.mxu0 0
      %3057 = vmatpush1.bf16.msra.mxu0 0
      %3058 = vmatprep.mubr.bf16.mxu0 0
      %3059 = vmatmul.mubr.bf16.gmra.mrb[0].mxu0 %v2837
      %v3060 = vpop.f32.mrb[0].mxu0
      %v3061 = vadd.f32 0.0, %v3060
      %v3062 = vpop.f32.mrb[0].mxu0
      %v3063 = vpop.f32.mrb[0].mxu0
      %v3064 = vadd.f32 0.0, %v3063
      %v3065 = vpop.f32.mrb[0].mxu0
      %3066 = vmatprep.mubr.bf16.mxu0 0
      %3067 = vmatmul.mubr.bf16.gmra.mrb[0].mxu0 %v2840
      %v3068 = vpop.f32.mrb[0].mxu0
      %v3069 = vadd.f32 0.0, %v3068
      %v3070 = vpop.f32.mrb[0].mxu0
      %v3071 = vpop.f32.mrb[0].mxu0
      %v3072 = vadd.f32 0.0, %v3071
      %v3073 = vpop.f32.mrb[0].mxu0
      %3074 = vmatprep.mubr.bf16.mxu0 0
      %3075 = vmatmul.mubr.bf16.gmra.mrb[0].mxu0 %v2843
      %v3076 = vpop.f32.mrb[0].mxu0
      %v3077 = vadd.f32 0.0, %v3076
      %v3078 = vpop.f32.mrb[0].mxu0
      %v3079 = vpop.f32.mrb[0].mxu0
      %v3080 = vadd.f32 0.0, %v3079
      %v3081 = vpop.f32.mrb[0].mxu0
      %3082 = vmatprep.mubr.bf16.mxu0 0
      %3083 = vmatmul.mubr.bf16.gmra.mrb[0].mxu0 %v3021
      %v3084 = vpop.f32.mrb[0].mxu0
      %v3085 = vadd.f32 0.0, %v3084
      %v3086 = vpop.f32.mrb[0].mxu0
      %v3087 = vpop.f32.mrb[0].mxu0
      %v3088 = vadd.f32 0.0, %v3087
      %v3089 = vpop.f32.mrb[0].mxu0
      %3090 = vdwg.mxu0
      %v3091 = vadd.f32 %v3009, %v3061
      %v3092 = vadd.f32 %v3010, %v3064
      %v3093 = vadd.f32 %v3011, %v3069
      %v3094 = vadd.f32 %v3012, %v3072
      %v3095 = vadd.f32 %v3013, %v3077
      %v3096 = vadd.f32 %v3014, %v3080
      %v3097 = vadd.f32 %v3015, %v3085
      %v3098 = vadd.f32 %v3016, %v3088
      %v3099 = vunpack.c.h.b16 %v2805
      %v3100 = vunpack.c.h.b16 %v2806
      %v3101 = vunpack.c.h.b16 %v2807
      %v3102 = vunpack.c.h.b16 %v2808
      %v3103 = vunpack.c.h.b16 %v2809
      %v3104 = vunpack.c.h.b16 %v2810
      %v3105 = vunpack.c.h.b16 %v2811
      %v3106 = vunpack.c.h.b16 %v2812
      %v3107 = vpack.c.b16 %v2822, %v2822
      %v3108 = vpack.c.b16 %v3099, %v3099
      %v3109 = vpack.c.b16 %v2823, %v2823
      %v3110 = vpack.c.b16 %v3100, %v3100
      %v3111 = vpack.c.b16 %v2824, %v2824
      %v3112 = vpack.c.b16 %v3101, %v3101
      %v3113 = vpack.c.b16 %v2825, %v2825
      %v3114 = vpack.c.b16 %v3102, %v3102
      %v3115 = vpack.c.b16 %v2826, %v2826
      %v3116 = vpack.c.b16 %v3103, %v3103
      %v3117 = vpack.c.b16 %v2827, %v2827
      %v3118 = vpack.c.b16 %v3104, %v3104
      %v3119 = vpack.c.b16 %v2828, %v2828
      %v3120 = vpack.c.b16 %v3105, %v3105
      %v3121 = vpack.c.b16 %v2924, %v2924
      %v3122 = vpack.c.b16 %v3106, %v3106
      %v3124 = vshrl.u32 %v3107, 16
      %v3126 = vrot.slane %v3124, 4
      %v3127 = vshll.u32 %v3107, 16
      %v3129 = vrot.slane %v3127, 5
      %v3130 = vor.u32 %v3126, %v3129
      %v3131 = vrot.slane %v3130, 4
      %v3133 = vshll.u32 %v3108, 16
      %v3135 = vrot.slane %v3133, 5
      %v3136 = vsel %vm919, %v3131, %v3135
      %v3138 = vshrl.u32 %v3109, 16
      %v3140 = vrot.slane %v3138, 4
      %v3141 = vshll.u32 %v3109, 16
      %v3143 = vrot.slane %v3141, 5
      %v3144 = vor.u32 %v3140, %v3143
      %v3145 = vrot.slane %v3144, 4
      %v3147 = vshll.u32 %v3110, 16
      %v3149 = vrot.slane %v3147, 5
      %v3150 = vsel %vm919, %v3145, %v3149
      %v3152 = vshrl.u32 %v3111, 16
      %v3154 = vrot.slane %v3152, 4
      %v3155 = vshll.u32 %v3111, 16
      %v3157 = vrot.slane %v3155, 5
      %v3158 = vor.u32 %v3154, %v3157
      %v3159 = vrot.slane %v3158, 4
      %v3161 = vshll.u32 %v3112, 16
      %v3163 = vrot.slane %v3161, 5
      %v3164 = vsel %vm919, %v3159, %v3163
      %v3166 = vshrl.u32 %v3113, 16
      %v3168 = vrot.slane %v3166, 4
      %v3169 = vshll.u32 %v3113, 16
      %v3171 = vrot.slane %v3169, 5
      %v3172 = vor.u32 %v3168, %v3171
      %v3173 = vrot.slane %v3172, 4
      %v3175 = vshll.u32 %v3114, 16
      %v3177 = vrot.slane %v3175, 5
      %v3178 = vsel %vm919, %v3173, %v3177
      %v3180 = vshrl.u32 %v3115, 16
      %v3182 = vrot.slane %v3180, 4
      %v3183 = vshll.u32 %v3115, 16
      %v3185 = vrot.slane %v3183, 5
      %v3186 = vor.u32 %v3182, %v3185
      %v3187 = vrot.slane %v3186, 4
      %v3189 = vshll.u32 %v3116, 16
      %v3191 = vrot.slane %v3189, 5
      %v3192 = vsel %vm919, %v3187, %v3191
      %v3194 = vshrl.u32 %v3117, 16
      %v3196 = vrot.slane %v3194, 4
      %v3197 = vshll.u32 %v3117, 16
      %v3199 = vrot.slane %v3197, 5
      %v3200 = vor.u32 %v3196, %v3199
      %v3201 = vrot.slane %v3200, 4
      %v3203 = vshll.u32 %v3118, 16
      %v3205 = vrot.slane %v3203, 5
      %v3206 = vsel %vm919, %v3201, %v3205
      %v3208 = vshrl.u32 %v3119, 16
      %v3210 = vrot.slane %v3208, 4
      %v3211 = vshll.u32 %v3119, 16
      %v3213 = vrot.slane %v3211, 5
      %v3214 = vor.u32 %v3210, %v3213
      %v3215 = vrot.slane %v3214, 4
      %v3217 = vshll.u32 %v3120, 16
      %v3219 = vrot.slane %v3217, 5
      %v3220 = vsel %vm919, %v3215, %v3219
      %v3222 = vshrl.u32 %v3121, 16
      %v3224 = vrot.slane %v3222, 4
      %v3225 = vshll.u32 %v3121, 16
      %v3227 = vrot.slane %v3225, 5
      %v3228 = vor.u32 %v3224, %v3227
      %v3229 = vrot.slane %v3228, 4
      %v3231 = vshll.u32 %v3122, 16
      %v3233 = vrot.slane %v3231, 5
      %v3234 = vsel %vm919, %v3229, %v3233
      %s3235 = scalar_lea.vmem %s3, 38
      %v3236 = vld [vmem:[%s3235] sm:$0x3]
      %v3237 = vunpack.c.l.b16 %v3136
      %v3238 = vunpack.c.l.b16 %v3150
      %v3239 = vunpack.c.l.b16 %v3164
      %v3240 = vunpack.c.l.b16 %v3178
      %v3241 = vunpack.c.l.b16 %v3192
      %v3242 = vunpack.c.l.b16 %v3206
      %v3243 = vunpack.c.l.b16 %v3220
      %v3244 = vpack.c.b16 %v3237, %v1048
      %v3245 = vpack.c.b16 %v3239, %v3238
      %v3246 = vpack.c.b16 %v3241, %v3240
      %v3247 = vpack.c.b16 %v3243, %v3242
      %v3249 = vsel %vm640, %v3244, 0
      %v3252 = vsel %vm640, %v3245, 0
      %v3255 = vsel %vm640, %v3246, 0
      %v3258 = vsel %vm640, %v3247, 0
      %v3261 = vsel %vm653, %v3236, 0
      %3263 = vmatprep.subr.bf16.mxu0 0
      %3264 = vmatpush1.bf16.msra.mxu0 %v3261
      %3265 = vmatprep.subr.bf16.mxu0 0
      %3266 = vmatpush1.bf16.msra.mxu0 0
      %3267 = vmatprep.subr.bf16.mxu0 0
      %3268 = vmatpush1.bf16.msra.mxu0 0
      %3269 = vmatprep.subr.bf16.mxu0 0
      %3270 = vmatpush1.bf16.msra.mxu0 0
      %3271 = vmatprep.subr.bf16.mxu0 0
      %3272 = vmatpush1.bf16.msra.mxu0 0
      %3273 = vmatprep.subr.bf16.mxu0 0
      %3274 = vmatpush1.bf16.msra.mxu0 0
      %3275 = vmatprep.subr.bf16.mxu0 0
      %3276 = vmatpush1.bf16.msra.mxu0 0
      %3277 = vmatprep.subr.bf16.mxu0 0
      %3278 = vmatpush1.bf16.msra.mxu0 0
      %3279 = vmatprep.subr.bf16.mxu0 0
      %3280 = vmatpush1.bf16.msra.mxu0 0
      %3281 = vmatprep.subr.bf16.mxu0 0
      %3282 = vmatpush1.bf16.msra.mxu0 0
      %3283 = vmatprep.subr.bf16.mxu0 0
      %3284 = vmatpush1.bf16.msra.mxu0 0
      %3285 = vmatprep.subr.bf16.mxu0 0
      %3286 = vmatpush1.bf16.msra.mxu0 0
      %3287 = vmatprep.subr.bf16.mxu0 0
      %3288 = vmatpush1.bf16.msra.mxu0 0
      %3289 = vmatprep.subr.bf16.mxu0 0
      %3290 = vmatpush1.bf16.msra.mxu0 0
      %3291 = vmatprep.subr.bf16.mxu0 0
      %3292 = vmatpush1.bf16.msra.mxu0 0
      %3293 = vmatprep.subr.bf16.mxu0 0
      %3294 = vmatpush1.bf16.msra.mxu0 0
      %3295 = vmatprep.mubr.bf16.mxu0 0
      %3296 = vmatmul.mubr.bf16.gmra.mrb[0].mxu0 %v3249
      %v3297 = vpop.f32.mrb[0].mxu0
      %v3298 = vadd.f32 0.0, %v3297
      %v3299 = vpop.f32.mrb[0].mxu0
      %v3300 = vpop.f32.mrb[0].mxu0
      %v3301 = vadd.f32 0.0, %v3300
      %v3302 = vpop.f32.mrb[0].mxu0
      %3303 = vmatprep.mubr.bf16.mxu0 0
      %3304 = vmatmul.mubr.bf16.gmra.mrb[0].mxu0 %v3252
      %v3305 = vpop.f32.mrb[0].mxu0
      %v3306 = vadd.f32 0.0, %v3305
      %v3307 = vpop.f32.mrb[0].mxu0
      %v3308 = vpop.f32.mrb[0].mxu0
      %v3309 = vadd.f32 0.0, %v3308
      %v3310 = vpop.f32.mrb[0].mxu0
      %3311 = vmatprep.mubr.bf16.mxu0 0
      %3312 = vmatmul.mubr.bf16.gmra.mrb[0].mxu0 %v3255
      %v3313 = vpop.f32.mrb[0].mxu0
      %v3314 = vadd.f32 0.0, %v3313
      %v3315 = vpop.f32.mrb[0].mxu0
      %v3316 = vpop.f32.mrb[0].mxu0
      %v3317 = vadd.f32 0.0, %v3316
      %v3318 = vpop.f32.mrb[0].mxu0
      %3319 = vmatprep.mubr.bf16.mxu0 0
      %3320 = vmatmul.mubr.bf16.gmra.mrb[0].mxu0 %v3258
      %v3321 = vpop.f32.mrb[0].mxu0
      %v3322 = vadd.f32 0.0, %v3321
      %v3323 = vpop.f32.mrb[0].mxu0
      %v3324 = vpop.f32.mrb[0].mxu0
      %v3325 = vadd.f32 0.0, %v3324
      %v3326 = vpop.f32.mrb[0].mxu0
      %3327 = vdwg.mxu0
      %v3328 = vadd.f32 %v3091, %v3298
      %v3329 = vadd.f32 %v3092, %v3301
      %v3330 = vadd.f32 %v3093, %v3306
      %v3331 = vadd.f32 %v3094, %v3309
      %v3332 = vadd.f32 %v3095, %v3314
      %v3333 = vadd.f32 %v3096, %v3317
      %v3334 = vadd.f32 %v3097, %v3322
      %v3335 = vadd.f32 %v3098, %v3325
      %s3336 = scalar_lea.vmem %s3, 44
      %v3337 = vld [vmem:[%s3336] sm:$0x3]
      %v3338 = vunpack.c.l.b16 %v3234
      %v3339 = vpack.c.b16 %v3238, %v3237
      %v3340 = vpack.c.b16 %v3240, %v3239
      %v3341 = vpack.c.b16 %v3242, %v3241
      %v3342 = vpack.c.b16 %v3338, %v3243
      %v3344 = vsel %vm640, %v3339, 0
      %v3347 = vsel %vm640, %v3340, 0
      %v3350 = vsel %vm640, %v3341, 0
      %v3353 = vsel %vm640, %v3342, 0
      %v3356 = vsel %vm653, %v3337, 0
      %3358 = vmatprep.subr.bf16.mxu0 0
      %3359 = vmatpush1.bf16.msra.mxu0 %v3356
      %3360 = vmatprep.subr.bf16.mxu0 0
      %3361 = vmatpush1.bf16.msra.mxu0 0
      %3362 = vmatprep.subr.bf16.mxu0 0
      %3363 = vmatpush1.bf16.msra.mxu0 0
      %3364 = vmatprep.subr.bf16.mxu0 0
      %3365 = vmatpush1.bf16.msra.mxu0 0
      %3366 = vmatprep.subr.bf16.mxu0 0
      %3367 = vmatpush1.bf16.msra.mxu0 0
      %3368 = vmatprep.subr.bf16.mxu0 0
      %3369 = vmatpush1.bf16.msra.mxu0 0
      %3370 = vmatprep.subr.bf16.mxu0 0
      %3371 = vmatpush1.bf16.msra.mxu0 0
      %3372 = vmatprep.subr.bf16.mxu0 0
      %3373 = vmatpush1.bf16.msra.mxu0 0
      %3374 = vmatprep.subr.bf16.mxu0 0
      %3375 = vmatpush1.bf16.msra.mxu0 0
      %3376 = vmatprep.subr.bf16.mxu0 0
      %3377 = vmatpush1.bf16.msra.mxu0 0
      %3378 = vmatprep.subr.bf16.mxu0 0
      %3379 = vmatpush1.bf16.msra.mxu0 0
      %3380 = vmatprep.subr.bf16.mxu0 0
      %3381 = vmatpush1.bf16.msra.mxu0 0
      %3382 = vmatprep.subr.bf16.mxu0 0
      %3383 = vmatpush1.bf16.msra.mxu0 0
      %3384 = vmatprep.subr.bf16.mxu0 0
      %3385 = vmatpush1.bf16.msra.mxu0 0
      %3386 = vmatprep.subr.bf16.mxu0 0
      %3387 = vmatpush1.bf16.msra.mxu0 0
      %3388 = vmatprep.subr.bf16.mxu0 0
      %3389 = vmatpush1.bf16.msra.mxu0 0
      %3390 = vmatprep.mubr.bf16.mxu0 0
      %3391 = vmatmul.mubr.bf16.gmra.mrb[0].mxu0 %v3344
      %v3392 = vpop.f32.mrb[0].mxu0
      %v3393 = vadd.f32 0.0, %v3392
      %v3394 = vpop.f32.mrb[0].mxu0
      %v3395 = vpop.f32.mrb[0].mxu0
      %v3396 = vadd.f32 0.0, %v3395
      %v3397 = vpop.f32.mrb[0].mxu0
      %3398 = vmatprep.mubr.bf16.mxu0 0
      %3399 = vmatmul.mubr.bf16.gmra.mrb[0].mxu0 %v3347
      %v3400 = vpop.f32.mrb[0].mxu0
      %v3401 = vadd.f32 0.0, %v3400
      %v3402 = vpop.f32.mrb[0].mxu0
      %v3403 = vpop.f32.mrb[0].mxu0
      %v3404 = vadd.f32 0.0, %v3403
      %v3405 = vpop.f32.mrb[0].mxu0
      %3406 = vmatprep.mubr.bf16.mxu0 0
      %3407 = vmatmul.mubr.bf16.gmra.mrb[0].mxu0 %v3350
      %v3408 = vpop.f32.mrb[0].mxu0
      %v3409 = vadd.f32 0.0, %v3408
      %v3410 = vpop.f32.mrb[0].mxu0
      %v3411 = vpop.f32.mrb[0].mxu0
      %v3412 = vadd.f32 0.0, %v3411
      %v3413 = vpop.f32.mrb[0].mxu0
      %3414 = vmatprep.mubr.bf16.mxu0 0
      %3415 = vmatmul.mubr.bf16.gmra.mrb[0].mxu0 %v3353
      %v3416 = vpop.f32.mrb[0].mxu0
      %v3417 = vadd.f32 0.0, %v3416
      %v3418 = vpop.f32.mrb[0].mxu0
      %v3419 = vpop.f32.mrb[0].mxu0
      %v3420 = vadd.f32 0.0, %v3419
      %v3421 = vpop.f32.mrb[0].mxu0
      %3422 = vdwg.mxu0
      %v3423 = vadd.f32 %v3328, %v3393
      %v3424 = vadd.f32 %v3329, %v3396
      %v3425 = vadd.f32 %v3330, %v3401
      %v3426 = vadd.f32 %v3331, %v3404
      %v3427 = vadd.f32 %v3332, %v3409
      %v3428 = vadd.f32 %v3333, %v3412
      %v3429 = vadd.f32 %v3334, %v3417
      %v3430 = vadd.f32 %v3335, %v3420
      %s3431 = scalar_lea.vmem %s3, 50
      %v3432 = vld [vmem:[%s3431] sm:$0x3]
      %v3433 = vpack.c.b16 %v1048, %v3338
      %v3435 = vsel %vm640, %v3433, 0
      %v3438 = vsel %vm653, %v3432, 0
      %3440 = vmatprep.subr.bf16.mxu0 0
      %3441 = vmatpush1.bf16.msra.mxu0 %v3438
      %3442 = vmatprep.subr.bf16.mxu0 0
      %3443 = vmatpush1.bf16.msra.mxu0 0
      %3444 = vmatprep.subr.bf16.mxu0 0
      %3445 = vmatpush1.bf16.msra.mxu0 0
      %3446 = vmatprep.subr.bf16.mxu0 0
      %3447 = vmatpush1.bf16.msra.mxu0 0
      %3448 = vmatprep.subr.bf16.mxu0 0
      %3449 = vmatpush1.bf16.msra.mxu0 0
      %3450 = vmatprep.subr.bf16.mxu0 0
      %3451 = vmatpush1.bf16.msra.mxu0 0
      %3452 = vmatprep.subr.bf16.mxu0 0
      %3453 = vmatpush1.bf16.msra.mxu0 0
      %3454 = vmatprep.subr.bf16.mxu0 0
      %3455 = vmatpush1.bf16.msra.mxu0 0
      %3456 = vmatprep.subr.bf16.mxu0 0
      %3457 = vmatpush1.bf16.msra.mxu0 0
      %3458 = vmatprep.subr.bf16.mxu0 0
      %3459 = vmatpush1.bf16.msra.mxu0 0
      %3460 = vmatprep.subr.bf16.mxu0 0
      %3461 = vmatpush1.bf16.msra.mxu0 0
      %3462 = vmatprep.subr.bf16.mxu0 0
      %3463 = vmatpush1.bf16.msra.mxu0 0
      %3464 = vmatprep.subr.bf16.mxu0 0
      %3465 = vmatpush1.bf16.msra.mxu0 0
      %3466 = vmatprep.subr.bf16.mxu0 0
      %3467 = vmatpush1.bf16.msra.mxu0 0
      %3468 = vmatprep.subr.bf16.mxu0 0
      %3469 = vmatpush1.bf16.msra.mxu0 0
      %3470 = vmatprep.subr.bf16.mxu0 0
      %3471 = vmatpush1.bf16.msra.mxu0 0
      %3472 = vmatprep.mubr.bf16.mxu0 0
      %3473 = vmatmul.mubr.bf16.gmra.mrb[0].mxu0 %v3252
      %v3474 = vpop.f32.mrb[0].mxu0
      %v3475 = vadd.f32 0.0, %v3474
      %v3476 = vpop.f32.mrb[0].mxu0
      %v3477 = vpop.f32.mrb[0].mxu0
      %v3478 = vadd.f32 0.0, %v3477
      %v3479 = vpop.f32.mrb[0].mxu0
      %3480 = vmatprep.mubr.bf16.mxu0 0
      %3481 = vmatmul.mubr.bf16.gmra.mrb[0].mxu0 %v3255
      %v3482 = vpop.f32.mrb[0].mxu0
      %v3483 = vadd.f32 0.0, %v3482
      %v3484 = vpop.f32.mrb[0].mxu0
      %v3485 = vpop.f32.mrb[0].mxu0
      %v3486 = vadd.f32 0.0, %v3485
      %v3487 = vpop.f32.mrb[0].mxu0
      %3488 = vmatprep.mubr.bf16.mxu0 0
      %3489 = vmatmul.mubr.bf16.gmra.mrb[0].mxu0 %v3258
      %v3490 = vpop.f32.mrb[0].mxu0
      %v3491 = vadd.f32 0.0, %v3490
      %v3492 = vpop.f32.mrb[0].mxu0
      %v3493 = vpop.f32.mrb[0].mxu0
      %v3494 = vadd.f32 0.0, %v3493
      %v3495 = vpop.f32.mrb[0].mxu0
      %3496 = vmatprep.mubr.bf16.mxu0 0
      %3497 = vmatmul.mubr.bf16.gmra.mrb[0].mxu0 %v3435
      %v3498 = vpop.f32.mrb[0].mxu0
      %v3499 = vadd.f32 0.0, %v3498
      %v3500 = vpop.f32.mrb[0].mxu0
      %v3501 = vpop.f32.mrb[0].mxu0
      %v3502 = vadd.f32 0.0, %v3501
      %v3503 = vpop.f32.mrb[0].mxu0
      %3504 = vdwg.mxu0
      %v3505 = vadd.f32 %v3423, %v3475
      %v3506 = vadd.f32 %v3424, %v3478
      %v3507 = vadd.f32 %v3425, %v3483
      %v3508 = vadd.f32 %v3426, %v3486
      %v3509 = vadd.f32 %v3427, %v3491
      %v3510 = vadd.f32 %v3428, %v3494
      %v3511 = vadd.f32 %v3429, %v3499
      %v3512 = vadd.f32 %v3430, %v3502
      %v3513 = vrot.slane %v3107, 5
      %v3514 = vrot.slane %v3513, 4
      %v3515 = vrot.slane %v3108, 5
      %v3516 = vsel %vm1327, %v3514, %v3515
      %v3517 = vrot.slane %v3109, 5
      %v3518 = vrot.slane %v3517, 4
      %v3519 = vrot.slane %v3110, 5
      %v3520 = vsel %vm1327, %v3518, %v3519
      %v3521 = vrot.slane %v3111, 5
      %v3522 = vrot.slane %v3521, 4
      %v3523 = vrot.slane %v3112, 5
      %v3524 = vsel %vm1327, %v3522, %v3523
      %v3525 = vrot.slane %v3113, 5
      %v3526 = vrot.slane %v3525, 4
      %v3527 = vrot.slane %v3114, 5
      %v3528 = vsel %vm1327, %v3526, %v3527
      %v3529 = vrot.slane %v3115, 5
      %v3530 = vrot.slane %v3529, 4
      %v3531 = vrot.slane %v3116, 5
      %v3532 = vsel %vm1327, %v3530, %v3531
      %v3533 = vrot.slane %v3117, 5
      %v3534 = vrot.slane %v3533, 4
      %v3535 = vrot.slane %v3118, 5
      %v3536 = vsel %vm1327, %v3534, %v3535
      %v3537 = vrot.slane %v3119, 5
      %v3538 = vrot.slane %v3537, 4
      %v3539 = vrot.slane %v3120, 5
      %v3540 = vsel %vm1327, %v3538, %v3539
      %v3541 = vrot.slane %v3121, 5
      %v3542 = vrot.slane %v3541, 4
      %v3543 = vrot.slane %v3122, 5
      %v3544 = vsel %vm1327, %v3542, %v3543
      %s3545 = scalar_lea.vmem %s3, 40
      %v3546 = vld [vmem:[%s3545] sm:$0x3]
      %v3547 = vunpack.c.l.b16 %v3516
      %v3548 = vunpack.c.l.b16 %v3520
      %v3549 = vunpack.c.l.b16 %v3524
      %v3550 = vunpack.c.l.b16 %v3528
      %v3551 = vunpack.c.l.b16 %v3532
      %v3552 = vunpack.c.l.b16 %v3536
      %v3553 = vunpack.c.l.b16 %v3540
      %v3554 = vpack.c.b16 %v3547, %v1366
      %v3555 = vpack.c.b16 %v3549, %v3548
      %v3556 = vpack.c.b16 %v3551, %v3550
      %v3557 = vpack.c.b16 %v3553, %v3552
      %v3559 = vsel %vm640, %v3554, 0
      %v3562 = vsel %vm640, %v3555, 0
      %v3565 = vsel %vm640, %v3556, 0
      %v3568 = vsel %vm640, %v3557, 0
      %v3571 = vsel %vm653, %v3546, 0
      %3573 = vmatprep.subr.bf16.mxu0 0
      %3574 = vmatpush1.bf16.msra.mxu0 %v3571
      %3575 = vmatprep.subr.bf16.mxu0 0
      %3576 = vmatpush1.bf16.msra.mxu0 0
      %3577 = vmatprep.subr.bf16.mxu0 0
      %3578 = vmatpush1.bf16.msra.mxu0 0
      %3579 = vmatprep.subr.bf16.mxu0 0
      %3580 = vmatpush1.bf16.msra.mxu0 0
      %3581 = vmatprep.subr.bf16.mxu0 0
      %3582 = vmatpush1.bf16.msra.mxu0 0
      %3583 = vmatprep.subr.bf16.mxu0 0
      %3584 = vmatpush1.bf16.msra.mxu0 0
      %3585 = vmatprep.subr.bf16.mxu0 0
      %3586 = vmatpush1.bf16.msra.mxu0 0
      %3587 = vmatprep.subr.bf16.mxu0 0
      %3588 = vmatpush1.bf16.msra.mxu0 0
      %3589 = vmatprep.subr.bf16.mxu0 0
      %3590 = vmatpush1.bf16.msra.mxu0 0
      %3591 = vmatprep.subr.bf16.mxu0 0
      %3592 = vmatpush1.bf16.msra.mxu0 0
      %3593 = vmatprep.subr.bf16.mxu0 0
      %3594 = vmatpush1.bf16.msra.mxu0 0
      %3595 = vmatprep.subr.bf16.mxu0 0
      %3596 = vmatpush1.bf16.msra.mxu0 0
      %3597 = vmatprep.subr.bf16.mxu0 0
      %3598 = vmatpush1.bf16.msra.mxu0 0
      %3599 = vmatprep.subr.bf16.mxu0 0
      %3600 = vmatpush1.bf16.msra.mxu0 0
      %3601 = vmatprep.subr.bf16.mxu0 0
      %3602 = vmatpush1.bf16.msra.mxu0 0
      %3603 = vmatprep.subr.bf16.mxu0 0
      %3604 = vmatpush1.bf16.msra.mxu0 0
      %3605 = vmatprep.mubr.bf16.mxu0 0
      %3606 = vmatmul.mubr.bf16.gmra.mrb[0].mxu0 %v3559
      %v3607 = vpop.f32.mrb[0].mxu0
      %v3608 = vadd.f32 0.0, %v3607
      %v3609 = vpop.f32.mrb[0].mxu0
      %v3610 = vpop.f32.mrb[0].mxu0
      %v3611 = vadd.f32 0.0, %v3610
      %v3612 = vpop.f32.mrb[0].mxu0
      %3613 = vmatprep.mubr.bf16.mxu0 0
      %3614 = vmatmul.mubr.bf16.gmra.mrb[0].mxu0 %v3562
      %v3615 = vpop.f32.mrb[0].mxu0
      %v3616 = vadd.f32 0.0, %v3615
      %v3617 = vpop.f32.mrb[0].mxu0
      %v3618 = vpop.f32.mrb[0].mxu0
      %v3619 = vadd.f32 0.0, %v3618
      %v3620 = vpop.f32.mrb[0].mxu0
      %3621 = vmatprep.mubr.bf16.mxu0 0
      %3622 = vmatmul.mubr.bf16.gmra.mrb[0].mxu0 %v3565
      %v3623 = vpop.f32.mrb[0].mxu0
      %v3624 = vadd.f32 0.0, %v3623
      %v3625 = vpop.f32.mrb[0].mxu0
      %v3626 = vpop.f32.mrb[0].mxu0
      %v3627 = vadd.f32 0.0, %v3626
      %v3628 = vpop.f32.mrb[0].mxu0
      %3629 = vmatprep.mubr.bf16.mxu0 0
      %3630 = vmatmul.mubr.bf16.gmra.mrb[0].mxu0 %v3568
      %v3631 = vpop.f32.mrb[0].mxu0
      %v3632 = vadd.f32 0.0, %v3631
      %v3633 = vpop.f32.mrb[0].mxu0
      %v3634 = vpop.f32.mrb[0].mxu0
      %v3635 = vadd.f32 0.0, %v3634
      %v3636 = vpop.f32.mrb[0].mxu0
      %3637 = vdwg.mxu0
      %v3638 = vadd.f32 %v3505, %v3608
      %v3639 = vadd.f32 %v3506, %v3611
      %v3640 = vadd.f32 %v3507, %v3616
      %v3641 = vadd.f32 %v3508, %v3619
      %v3642 = vadd.f32 %v3509, %v3624
      %v3643 = vadd.f32 %v3510, %v3627
      %v3644 = vadd.f32 %v3511, %v3632
      %v3645 = vadd.f32 %v3512, %v3635
      %s3646 = scalar_lea.vmem %s3, 46
      %v3647 = vld [vmem:[%s3646] sm:$0x3]
      %v3648 = vunpack.c.l.b16 %v3544
      %v3649 = vpack.c.b16 %v3548, %v3547
      %v3650 = vpack.c.b16 %v3550, %v3549
      %v3651 = vpack.c.b16 %v3552, %v3551
      %v3652 = vpack.c.b16 %v3648, %v3553
      %v3654 = vsel %vm640, %v3649, 0
      %v3657 = vsel %vm640, %v3650, 0
      %v3660 = vsel %vm640, %v3651, 0
      %v3663 = vsel %vm640, %v3652, 0
      %v3666 = vsel %vm653, %v3647, 0
      %3668 = vmatprep.subr.bf16.mxu0 0
      %3669 = vmatpush1.bf16.msra.mxu0 %v3666
      %3670 = vmatprep.subr.bf16.mxu0 0
      %3671 = vmatpush1.bf16.msra.mxu0 0
      %3672 = vmatprep.subr.bf16.mxu0 0
      %3673 = vmatpush1.bf16.msra.mxu0 0
      %3674 = vmatprep.subr.bf16.mxu0 0
      %3675 = vmatpush1.bf16.msra.mxu0 0
      %3676 = vmatprep.subr.bf16.mxu0 0
      %3677 = vmatpush1.bf16.msra.mxu0 0
      %3678 = vmatprep.subr.bf16.mxu0 0
      %3679 = vmatpush1.bf16.msra.mxu0 0
      %3680 = vmatprep.subr.bf16.mxu0 0
      %3681 = vmatpush1.bf16.msra.mxu0 0
      %3682 = vmatprep.subr.bf16.mxu0 0
      %3683 = vmatpush1.bf16.msra.mxu0 0
      %3684 = vmatprep.subr.bf16.mxu0 0
      %3685 = vmatpush1.bf16.msra.mxu0 0
      %3686 = vmatprep.subr.bf16.mxu0 0
      %3687 = vmatpush1.bf16.msra.mxu0 0
      %3688 = vmatprep.subr.bf16.mxu0 0
      %3689 = vmatpush1.bf16.msra.mxu0 0
      %3690 = vmatprep.subr.bf16.mxu0 0
      %3691 = vmatpush1.bf16.msra.mxu0 0
      %3692 = vmatprep.subr.bf16.mxu0 0
      %3693 = vmatpush1.bf16.msra.mxu0 0
      %3694 = vmatprep.subr.bf16.mxu0 0
      %3695 = vmatpush1.bf16.msra.mxu0 0
      %3696 = vmatprep.subr.bf16.mxu0 0
      %3697 = vmatpush1.bf16.msra.mxu0 0
      %3698 = vmatprep.subr.bf16.mxu0 0
      %3699 = vmatpush1.bf16.msra.mxu0 0
      %3700 = vmatprep.mubr.bf16.mxu0 0
      %3701 = vmatmul.mubr.bf16.gmra.mrb[0].mxu0 %v3654
      %v3702 = vpop.f32.mrb[0].mxu0
      %v3703 = vadd.f32 0.0, %v3702
      %v3704 = vpop.f32.mrb[0].mxu0
      %v3705 = vpop.f32.mrb[0].mxu0
      %v3706 = vadd.f32 0.0, %v3705
      %v3707 = vpop.f32.mrb[0].mxu0
      %3708 = vmatprep.mubr.bf16.mxu0 0
      %3709 = vmatmul.mubr.bf16.gmra.mrb[0].mxu0 %v3657
      %v3710 = vpop.f32.mrb[0].mxu0
      %v3711 = vadd.f32 0.0, %v3710
      %v3712 = vpop.f32.mrb[0].mxu0
      %v3713 = vpop.f32.mrb[0].mxu0
      %v3714 = vadd.f32 0.0, %v3713
      %v3715 = vpop.f32.mrb[0].mxu0
      %3716 = vmatprep.mubr.bf16.mxu0 0
      %3717 = vmatmul.mubr.bf16.gmra.mrb[0].mxu0 %v3660
      %v3718 = vpop.f32.mrb[0].mxu0
      %v3719 = vadd.f32 0.0, %v3718
      %v3720 = vpop.f32.mrb[0].mxu0
      %v3721 = vpop.f32.mrb[0].mxu0
      %v3722 = vadd.f32 0.0, %v3721
      %v3723 = vpop.f32.mrb[0].mxu0
      %3724 = vmatprep.mubr.bf16.mxu0 0
      %3725 = vmatmul.mubr.bf16.gmra.mrb[0].mxu0 %v3663
      %v3726 = vpop.f32.mrb[0].mxu0
      %v3727 = vadd.f32 0.0, %v3726
      %v3728 = vpop.f32.mrb[0].mxu0
      %v3729 = vpop.f32.mrb[0].mxu0
      %v3730 = vadd.f32 0.0, %v3729
      %v3731 = vpop.f32.mrb[0].mxu0
      %3732 = vdwg.mxu0
      %v3733 = vadd.f32 %v3638, %v3703
      %v3734 = vadd.f32 %v3639, %v3706
      %v3735 = vadd.f32 %v3640, %v3711
      %v3736 = vadd.f32 %v3641, %v3714
      %v3737 = vadd.f32 %v3642, %v3719
      %v3738 = vadd.f32 %v3643, %v3722
      %v3739 = vadd.f32 %v3644, %v3727
      %v3740 = vadd.f32 %v3645, %v3730
      %s3741 = scalar_lea.vmem %s3, 52
      %v3742 = vld [vmem:[%s3741] sm:$0x3]
      %v3743 = vpack.c.b16 %v1366, %v3648
      %v3745 = vsel %vm640, %v3743, 0
      %v3748 = vsel %vm653, %v3742, 0
      %3750 = vmatprep.subr.bf16.mxu0 0
      %3751 = vmatpush1.bf16.msra.mxu0 %v3748
      %3752 = vmatprep.subr.bf16.mxu0 0
      %3753 = vmatpush1.bf16.msra.mxu0 0
      %3754 = vmatprep.subr.bf16.mxu0 0
      %3755 = vmatpush1.bf16.msra.mxu0 0
      %3756 = vmatprep.subr.bf16.mxu0 0
      %3757 = vmatpush1.bf16.msra.mxu0 0
      %3758 = vmatprep.subr.bf16.mxu0 0
      %3759 = vmatpush1.bf16.msra.mxu0 0
      %3760 = vmatprep.subr.bf16.mxu0 0
      %3761 = vmatpush1.bf16.msra.mxu0 0
      %3762 = vmatprep.subr.bf16.mxu0 0
      %3763 = vmatpush1.bf16.msra.mxu0 0
      %3764 = vmatprep.subr.bf16.mxu0 0
      %3765 = vmatpush1.bf16.msra.mxu0 0
      %3766 = vmatprep.subr.bf16.mxu0 0
      %3767 = vmatpush1.bf16.msra.mxu0 0
      %3768 = vmatprep.subr.bf16.mxu0 0
      %3769 = vmatpush1.bf16.msra.mxu0 0
      %3770 = vmatprep.subr.bf16.mxu0 0
      %3771 = vmatpush1.bf16.msra.mxu0 0
      %3772 = vmatprep.subr.bf16.mxu0 0
      %3773 = vmatpush1.bf16.msra.mxu0 0
      %3774 = vmatprep.subr.bf16.mxu0 0
      %3775 = vmatpush1.bf16.msra.mxu0 0
      %3776 = vmatprep.subr.bf16.mxu0 0
      %3777 = vmatpush1.bf16.msra.mxu0 0
      %3778 = vmatprep.subr.bf16.mxu0 0
      %3779 = vmatpush1.bf16.msra.mxu0 0
      %3780 = vmatprep.subr.bf16.mxu0 0
      %3781 = vmatpush1.bf16.msra.mxu0 0
      %3782 = vmatprep.mubr.bf16.mxu0 0
      %3783 = vmatmul.mubr.bf16.gmra.mrb[0].mxu0 %v3562
      %v3784 = vpop.f32.mrb[0].mxu0
      %v3785 = vadd.f32 0.0, %v3784
      %v3786 = vpop.f32.mrb[0].mxu0
      %v3787 = vpop.f32.mrb[0].mxu0
      %v3788 = vadd.f32 0.0, %v3787
      %v3789 = vpop.f32.mrb[0].mxu0
      %3790 = vmatprep.mubr.bf16.mxu0 0
      %3791 = vmatmul.mubr.bf16.gmra.mrb[0].mxu0 %v3565
      %v3792 = vpop.f32.mrb[0].mxu0
      %v3793 = vadd.f32 0.0, %v3792
      %v3794 = vpop.f32.mrb[0].mxu0
      %v3795 = vpop.f32.mrb[0].mxu0
      %v3796 = vadd.f32 0.0, %v3795
      %v3797 = vpop.f32.mrb[0].mxu0
      %3798 = vmatprep.mubr.bf16.mxu0 0
      %3799 = vmatmul.mubr.bf16.gmra.mrb[0].mxu0 %v3568
      %v3800 = vpop.f32.mrb[0].mxu0
      %v3801 = vadd.f32 0.0, %v3800
      %v3802 = vpop.f32.mrb[0].mxu0
      %v3803 = vpop.f32.mrb[0].mxu0
      %v3804 = vadd.f32 0.0, %v3803
      %v3805 = vpop.f32.mrb[0].mxu0
      %3806 = vmatprep.mubr.bf16.mxu0 0
      %3807 = vmatmul.mubr.bf16.gmra.mrb[0].mxu0 %v3745
      %v3808 = vpop.f32.mrb[0].mxu0
      %v3809 = vadd.f32 0.0, %v3808
      %v3810 = vpop.f32.mrb[0].mxu0
      %v3811 = vpop.f32.mrb[0].mxu0
      %v3812 = vadd.f32 0.0, %v3811
      %v3813 = vpop.f32.mrb[0].mxu0
      %3814 = vdwg.mxu0
      %v3815 = vadd.f32 %v3733, %v3785
      %v3816 = vadd.f32 %v3734, %v3788
      %v3817 = vadd.f32 %v3735, %v3793
      %v3818 = vadd.f32 %v3736, %v3796
      %v3819 = vadd.f32 %v3737, %v3801
      %v3820 = vadd.f32 %v3738, %v3804
      %v3821 = vadd.f32 %v3739, %v3809
      %v3822 = vadd.f32 %v3740, %v3812
      %v3823 = vadd.f32 %v3815, %v3816
      %v3824 = vadd.f32 %v3823, %v3817
      %v3825 = vadd.f32 %v3824, %v3818
      %v3826 = vadd.f32 %v3825, %v3819
      %v3827 = vadd.f32 %v3826, %v3820
      %v3828 = vadd.f32 %v3827, %v3821
      %v3829 = vadd.f32 %v3828, %v3822
      %v3830 = vrot.slane %v3829, 4
      %v3831 = vadd.f32 %v3829, %v3830
      %v3832 = vrot.slane %v3831, 2
      %v3833 = vadd.f32 %v3831, %v3832
      %v3834 = vrot.slane %v3833, 1
      %v3835 = vadd.f32 %v3833, %v3834
      %v3836 = vmul.f32 %v3815, %v3815
      %v3837 = vmul.f32 %v3816, %v3816
      %v3838 = vmul.f32 %v3817, %v3817
      %v3839 = vmul.f32 %v3818, %v3818
      %v3840 = vmul.f32 %v3819, %v3819
      %v3841 = vmul.f32 %v3820, %v3820
      %v3842 = vmul.f32 %v3821, %v3821
      %v3843 = vmul.f32 %v3822, %v3822
      %v3844 = vadd.f32 %v3836, %v3837
      %v3845 = vadd.f32 %v3844, %v3838
      %v3846 = vadd.f32 %v3845, %v3839
      %v3847 = vadd.f32 %v3846, %v3840
      %v3848 = vadd.f32 %v3847, %v3841
      %v3849 = vadd.f32 %v3848, %v3842
      %v3850 = vadd.f32 %v3849, %v3843
      %v3851 = vrot.slane %v3850, 4
      %v3852 = vadd.f32 %v3850, %v3851
      %v3853 = vrot.slane %v3852, 2
      %v3854 = vadd.f32 %v3852, %v3853
      %v3855 = vrot.slane %v3854, 1
      %v3856 = vadd.f32 %v3854, %v3855
      %vm3857 = vcmask 1040384
      %v3858 = vsel %vm3857, %v3835, %v3856
      %3859 = vst [vmem:[%s445] sm:$0x3] %v3858
      %v3860 = vpack.c.bf16 %v3815, %v3815
      %v3861 = vpack.c.bf16 %v3816, %v3816
      %v3862 = vpack.c.bf16 %v3817, %v3817
      %v3863 = vpack.c.bf16 %v3818, %v3818
      %v3864 = vpack.c.bf16 %v3819, %v3819
      %v3865 = vpack.c.bf16 %v3820, %v3820
      %v3866 = vpack.c.bf16 %v3821, %v3821
      %v3867 = vpack.c.bf16 %v3822, %v3822
      %3868 = vst [vmem:[%s437] sm:$0xf] %v3860
      %3869 = vst [vmem:[%s437 + $0x4] sm:$0xf] %v3861
      %3870 = vst [vmem:[%s437 + $0x8] sm:$0xf] %v3862
      %3871 = vst [vmem:[%s437 + $0xc] sm:$0xf] %v3863
      %3872 = vst [vmem:[%s437 + $0x10] sm:$0xf] %v3864
      %3873 = vst [vmem:[%s437 + $0x14] sm:$0xf] %v3865
      %3874 = vst [vmem:[%s437 + $0x18] sm:$0xf] %v3866
      %3875 = vst [vmem:[%s437 + $0x1c] sm:$0xf] %v3867
      %p3876 = scmp.lt.s32.totalorder %s23, 1
      %s3877 = scalar_select %p3876, %s23, 1
      %p3878 = scmp.lt.s32.totalorder %s24, 7
      %s3879 = scalar_select %p3878, %s24, 7
      %s3880 = smul.addr %s3879, 8
      %s3881 = smul.addr %s3877, 64
      %s3882 = sadd.s32 %s3880, %s3881
      %s3883 = smul.addr %s3882, 4
      %s3884 = scalar_lea.vmem %s6, %s3883
      %p3885 = scmp.lt.s32.totalorder %s23, 1
      %s3886 = scalar_select %p3885, %s23, 1
      %p3887 = scmp.lt.s32.totalorder %s24, 7
      %s3888 = scalar_select %p3887, %s24, 7
      %s3889 = smul.addr %s3886, 8
      %s3890 = sadd.s32 %s3888, %s3889
      %s3891 = smul.addr %s3890, 2
      %s3892 = scalar_lea.vmem %s7, %s3891
      // Predicated region
      $region45: #{decoder3d_forward.3} parent=43 // pred_check
        %p3893 = pneg %p210
      $region46: #{decoder3d_forward.3} parent=43 // pred_check_branch
        %3895 = sbr.rel (%p3893) target = $region48
      $region47: #{decoder3d_forward.3} parent=43 // pred_region
        _
      $region48: #{decoder3d_forward.3} parent=43 // pred_fallthru
        _
      // Predicated region
      $region49: #{decoder3d_forward.3} parent=43 // pred_check
        %p3896 = pneg %p238
      $region50: #{decoder3d_forward.3} parent=43 // pred_check_branch
        %3898 = sbr.rel (%p3896) target = $region52
      $region51: #{decoder3d_forward.3} parent=43 // pred_region
        _
      $region52: #{decoder3d_forward.3} parent=43 // pred_fallthru
        _
    $region44: #{decoder3d_forward.3} parent=5 // pred_fallthru
      _
    %p3899 = scmp.le.s32.totalorder 2, %s14
    // Predicated region
    $region53: #{decoder3d_forward.3} parent=5 // pred_check
      %p3900 = pneg %p3899
    $region54: #{decoder3d_forward.3} parent=5 // pred_check_branch
      %3902 = sbr.rel (%p3900) target = $region56
    $region55: #{decoder3d_forward.3} parent=5 // pred_region
      %s3903 = ssub.s32 %s14, 2
      // Predicated region
      $region57: #{decoder3d_forward.3} parent=55 // pred_check
        %p3904 = pneg %p216
      $region58: #{decoder3d_forward.3} parent=55 // pred_check_branch
        %3906 = sbr.rel (%p3904) target = $region60
      $region59: #{decoder3d_forward.3} parent=55 // pred_region
        %p3907 = scmp.lt.s32.totalorder %s25, 1
        %s3908 = scalar_select %p3907, %s25, 1
        %p3909 = scmp.lt.s32.totalorder %s26, 7
        %s3910 = scalar_select %p3909, %s26, 7
        %s3911 = smul.addr %s3910, 8
        %s3912 = smul.addr %s3908, 64
        %s3913 = sadd.s32 %s3911, %s3912
        %s3914 = smul.addr %s3913, 4
        %s3915 = scalar_lea.vmem %s6, %s3914
      $region60: #{decoder3d_forward.3} parent=55 // pred_fallthru
        _
      // Predicated region
      $region61: #{decoder3d_forward.3} parent=55 // pred_check
        %p3916 = pneg %p244
      $region62: #{decoder3d_forward.3} parent=55 // pred_check_branch
        %3918 = sbr.rel (%p3916) target = $region64
      $region63: #{decoder3d_forward.3} parent=55 // pred_region
        %p3919 = scmp.lt.s32.totalorder %s25, 1
        %s3920 = scalar_select %p3919, %s25, 1
        %p3921 = scmp.lt.s32.totalorder %s26, 7
        %s3922 = scalar_select %p3921, %s26, 7
        %s3923 = smul.addr %s3920, 8
        %s3924 = sadd.s32 %s3922, %s3923
        %s3925 = smul.addr %s3924, 2
        %s3926 = scalar_lea.vmem %s7, %s3925
      $region64: #{decoder3d_forward.3} parent=55 // pred_fallthru
        _
    $region56: #{decoder3d_forward.3} parent=5 // pred_fallthru
      _
  $region6: #{decoder3d_forward.3} parent=0 // loop_footer
    %s18 = sadd.s32 1, %s14
  $region7: #{decoder3d_forward.3} parent=0 // loop_footer_branch
    %13 = sbr.rel target = $region3
  $region8: #{decoder3d_forward.3} parent=0 // loop_exit
    _

// kernel: decoder3d_forward.4
$region0: #{decoder3d_forward.4}
  #allocation0 [shape = 'u32[]', space=smem, size = 0x4, offset = 0x4, fixed_abs, tag = 'smem constant byte address 0x4 - core index']
  #allocation1 [shape = 'u32[144,128]{1,0:T(1,128)}', space=vmem, size = 0x12000, scoped, tag = 'internal scratch']
  %s0 = inlined_call_operand.vmem [shape: bf16[2,8,8,8,128], index: 0, kind: input, shape index: {}, may-alias: {0,1,2}]
  %s1 = inlined_call_operand.vmem [shape: bf16[2,8,8,8,128], index: 1, kind: input, shape index: {}, may-alias: {0,1,2}]
  %s2 = inlined_call_operand.vmem [shape: bf16[2,8,8,8,128], index: 2, kind: input, shape index: {}, may-alias: {0,1,2}]
  %s3 = inlined_call_operand.vmem [shape: bf16[27,128,128], index: 3, kind: input, shape index: {}]
  %s4 = inlined_call_operand.vmem [shape: f32[1,128], index: 4, kind: input, shape index: {}]
  %s5 = inlined_call_operand.vmem [shape: f32[1,128], index: 5, kind: input, shape index: {}]
  %s6 = inlined_call_operand.vmem [shape: bf16[2,8,8,8,128], index: 6, kind: output, shape index: {0}]
  %s7 = inlined_call_operand.vmem [shape: f32[2,8,2,128], index: 7, kind: output, shape index: {1}]
  %8 = xla_tuple %s6, %s7
  %s9 = sld [smem:[#allocation0]]
  $region65: #{decoder3d_forward.4} parent=0
    _
  %s11 = ssub.s32 1, %s9
  %s12 = scalar_select 0, %s11, %s9
  loop: start=0, step=1, limit=18
  $region2: #{decoder3d_forward.4} parent=0 // loop_pre_header
    _
  $region3: #{decoder3d_forward.4} parent=0 // loop_header
    %s14 = sphi 0, %s18
    %p15 = scmp.ge.s32.totalorder %s14, 18
    %s21 = sphi 0, %s33
    %s22 = sphi 0, %s29
    %s23 = sphi 0, %s21
    %s24 = sphi 0, %s22
    %s25 = sphi 0, %s23
    %s26 = sphi 0, %s24
    %s44 = sphi 0, %s46
    %s47 = sphi 0, %s44
    %s48 = sphi 0, %s47
    %s64 = sphi 0, %s48
    %s72 = sphi 0, %s74
    %s75 = sphi 0, %s72
    %s76 = sphi 0, %s75
    %s92 = sphi 0, %s76
    %s106 = sphi 0, %s108
    %s109 = sphi 0, %s106
    %s110 = sphi 0, %s109
    %s126 = sphi 0, %s110
    %s130 = sphi 0, %s130
    %s132 = sphi 0, %s130
    %s133 = sphi 0, %s132
    %s147 = sphi 0, %s133
    %s151 = sphi 0, %s151
    %s153 = sphi 0, %s151
    %s154 = sphi 0, %s153
    %s168 = sphi 0, %s154
    %s172 = sphi 0, %s172
    %s174 = sphi 0, %s172
    %s175 = sphi 0, %s174
    %s189 = sphi 0, %s175
    %s197 = sphi 0, %s199
    %s200 = sphi 0, %s197
    %s201 = sphi 0, %s200
    %s217 = sphi 0, %s201
    %s225 = sphi 0, %s227
    %s228 = sphi 0, %s225
    %s229 = sphi 0, %s228
    %s245 = sphi 0, %s229
  $region4: #{decoder3d_forward.4} parent=0 // loop_header_branch
    %17 = sbr.rel (%p15) target = $region8
  $region5: #{decoder3d_forward.4} parent=0 // loop_body
    %s19 = ssub.s32 %s14, 1
    %s20 = ssub.s32 %s14, 2
    %s27 = sadd.s32 1, %s22
    %p28 = scmp.ge.s32.totalorder %s27, 8
    %s29 = scalar_select %p28, 0, %s27
    %s30 = sadd.s32 1, %s21
    %s31 = scalar_select %p28, %s30, %s21
    %p32 = scmp.ge.s32.totalorder %s31, 2
    %s33 = scalar_select %p32, 0, %s31
    %s34 = ssub.s32 %s22, 1
    %p35 = scmp.gt.s32.totalorder %s34, 0
    %s36 = scalar_select %p35, %s34, 0
    %s37 = ssub.s32 %s29, 1
    %p38 = scmp.gt.s32.totalorder %s37, 0
    %s39 = scalar_select %p38, %s37, 0
    %s40 = ssub.s32 %s21, %s33
    %s41 = ssub.s32 %s36, %s39
    %s42 = sor.u32 %s40, %s41
    %p43 = scmp.eq.s32.totalorder %s42, 0
    %s45 = sadd.s32 %s44, 1
    %s46 = scalar_select %p43, %s44, %s45
    %p49 = pneg %p43
    %p50 = scmp.eq.s32.totalorder %s14, 15
    %p51 = por %p49, %p50
    %p52 = scmp.ne.s32.totalorder %s44, %s47
    %p53 = scmp.eq.s32.totalorder %s14, 0
    %p54 = por %p52, %p53
    %p55 = scmp.ne.s32.totalorder %s44, %s47
    %p56 = scmp.eq.s32.totalorder %s19, 15
    %p57 = por %p55, %p56
    %p58 = scmp.ne.s32.totalorder %s47, %s48
    %p59 = scmp.eq.s32.totalorder %s19, 0
    %p60 = por %p58, %p59
    %p61 = scmp.ne.s32.totalorder %s47, %s48
    %p62 = scmp.eq.s32.totalorder %s20, 15
    %p63 = por %p61, %p62
    %p65 = scmp.ne.s32.totalorder %s48, %s64
    %p66 = scmp.eq.s32.totalorder %s20, 0
    %p67 = por %p65, %p66
    %s68 = ssub.s32 %s21, %s33
    %s69 = ssub.s32 %s22, %s29
    %s70 = sor.u32 %s68, %s69
    %p71 = scmp.eq.s32.totalorder %s70, 0
    %s73 = sadd.s32 %s72, 1
    %s74 = scalar_select %p71, %s72, %s73
    %p77 = pneg %p71
    %p78 = scmp.eq.s32.totalorder %s14, 15
    %p79 = por %p77, %p78
    %p80 = scmp.ne.s32.totalorder %s72, %s75
    %p81 = scmp.eq.s32.totalorder %s14, 0
    %p82 = por %p80, %p81
    %p83 = scmp.ne.s32.totalorder %s72, %s75
    %p84 = scmp.eq.s32.totalorder %s19, 15
    %p85 = por %p83, %p84
    %p86 = scmp.ne.s32.totalorder %s75, %s76
    %p87 = scmp.eq.s32.totalorder %s19, 0
    %p88 = por %p86, %p87
    %p89 = scmp.ne.s32.totalorder %s75, %s76
    %p90 = scmp.eq.s32.totalorder %s20, 15
    %p91 = por %p89, %p90
    %p93 = scmp.ne.s32.totalorder %s76, %s92
    %p94 = scmp.eq.s32.totalorder %s20, 0
    %p95 = por %p93, %p94
    %s96 = sadd.s32 %s22, 1
    %p97 = scmp.lt.s32.totalorder %s96, 7
    %s98 = scalar_select %p97, %s96, 7
    %s99 = sadd.s32 %s29, 1
    %p100 = scmp.lt.s32.totalorder %s99, 7
    %s101 = scalar_select %p100, %s99, 7
    %s102 = ssub.s32 %s21, %s33
    %s103 = ssub.s32 %s98, %s101
    %s104 = sor.u32 %s102, %s103
    %p105 = scmp.eq.s32.totalorder %s104, 0
    %s107 = sadd.s32 %s106, 1
    %s108 = scalar_select %p105, %s106, %s107
    %p111 = pneg %p105
    %p112 = scmp.eq.s32.totalorder %s14, 15
    %p113 = por %p111, %p112
    %p114 = scmp.ne.s32.totalorder %s106, %s109
    %p115 = scmp.eq.s32.totalorder %s14, 0
    %p116 = por %p114, %p115
    %p117 = scmp.ne.s32.totalorder %s106, %s109
    %p118 = scmp.eq.s32.totalorder %s19, 15
    %p119 = por %p117, %p118
    %p120 = scmp.ne.s32.totalorder %s109, %s110
    %p121 = scmp.eq.s32.totalorder %s19, 0
    %p122 = por %p120, %p121
    %p123 = scmp.ne.s32.totalorder %s109, %s110
    %p124 = scmp.eq.s32.totalorder %s20, 15
    %p125 = por %p123, %p124
    %p127 = scmp.ne.s32.totalorder %s110, %s126
    %p128 = scmp.eq.s32.totalorder %s20, 0
    %p129 = por %p127, %p128
    %s131 = sadd.s32 %s130, 1
    %p134 = scmp.eq.s32.totalorder %s14, 15
    %p135 = scmp.ne.s32.totalorder %s130, %s132
    %p136 = scmp.eq.s32.totalorder %s14, 0
    %p137 = por %p135, %p136
    %p138 = scmp.ne.s32.totalorder %s130, %s132
    %p139 = scmp.eq.s32.totalorder %s19, 15
    %p140 = por %p138, %p139
    %p141 = scmp.ne.s32.totalorder %s132, %s133
    %p142 = scmp.eq.s32.totalorder %s19, 0
    %p143 = por %p141, %p142
    %p144 = scmp.ne.s32.totalorder %s132, %s133
    %p145 = scmp.eq.s32.totalorder %s20, 15
    %p146 = por %p144, %p145
    %p148 = scmp.ne.s32.totalorder %s133, %s147
    %p149 = scmp.eq.s32.totalorder %s20, 0
    %p150 = por %p148, %p149
    %s152 = sadd.s32 %s151, 1
    %p155 = scmp.eq.s32.totalorder %s14, 15
    %p156 = scmp.ne.s32.totalorder %s151, %s153
    %p157 = scmp.eq.s32.totalorder %s14, 0
    %p158 = por %p156, %p157
    %p159 = scmp.ne.s32.totalorder %s151, %s153
    %p160 = scmp.eq.s32.totalorder %s19, 15
    %p161 = por %p159, %p160
    %p162 = scmp.ne.s32.totalorder %s153, %s154
    %p163 = scmp.eq.s32.totalorder %s19, 0
    %p164 = por %p162, %p163
    %p165 = scmp.ne.s32.totalorder %s153, %s154
    %p166 = scmp.eq.s32.totalorder %s20, 15
    %p167 = por %p165, %p166
    %p169 = scmp.ne.s32.totalorder %s154, %s168
    %p170 = scmp.eq.s32.totalorder %s20, 0
    %p171 = por %p169, %p170
    %s173 = sadd.s32 %s172, 1
    %p176 = scmp.eq.s32.totalorder %s14, 15
    %p177 = scmp.ne.s32.totalorder %s172, %s174
    %p178 = scmp.eq.s32.totalorder %s14, 0
    %p179 = por %p177, %p178
    %p180 = scmp.ne.s32.totalorder %s172, %s174
    %p181 = scmp.eq.s32.totalorder %s19, 15
    %p182 = por %p180, %p181
    %p183 = scmp.ne.s32.totalorder %s174, %s175
    %p184 = scmp.eq.s32.totalorder %s19, 0
    %p185 = por %p183, %p184
    %p186 = scmp.ne.s32.totalorder %s174, %s175
    %p187 = scmp.eq.s32.totalorder %s20, 15
    %p188 = por %p186, %p187
    %p190 = scmp.ne.s32.totalorder %s175, %s189
    %p191 = scmp.eq.s32.totalorder %s20, 0
    %p192 = por %p190, %p191
    %s193 = ssub.s32 %s21, %s33
    %s194 = ssub.s32 %s22, %s29
    %s195 = sor.u32 %s193, %s194
    %p196 = scmp.eq.s32.totalorder %s195, 0
    %s198 = sadd.s32 %s197, 1
    %s199 = scalar_select %p196, %s197, %s198
    %p202 = pneg %p196
    %p203 = scmp.eq.s32.totalorder %s14, 15
    %p204 = por %p202, %p203
    %p205 = scmp.ne.s32.totalorder %s197, %s200
    %p206 = scmp.eq.s32.totalorder %s14, 0
    %p207 = por %p205, %p206
    %p208 = scmp.ne.s32.totalorder %s197, %s200
    %p209 = scmp.eq.s32.totalorder %s19, 15
    %p210 = por %p208, %p209
    %p211 = scmp.ne.s32.totalorder %s200, %s201
    %p212 = scmp.eq.s32.totalorder %s19, 0
    %p213 = por %p211, %p212
    %p214 = scmp.ne.s32.totalorder %s200, %s201
    %p215 = scmp.eq.s32.totalorder %s20, 15
    %p216 = por %p214, %p215
    %p218 = scmp.ne.s32.totalorder %s201, %s217
    %p219 = scmp.eq.s32.totalorder %s20, 0
    %p220 = por %p218, %p219
    %s221 = ssub.s32 %s21, %s33
    %s222 = ssub.s32 %s22, %s29
    %s223 = sor.u32 %s221, %s222
    %p224 = scmp.eq.s32.totalorder %s223, 0
    %s226 = sadd.s32 %s225, 1
    %s227 = scalar_select %p224, %s225, %s226
    %p230 = pneg %p224
    %p231 = scmp.eq.s32.totalorder %s14, 15
    %p232 = por %p230, %p231
    %p233 = scmp.ne.s32.totalorder %s225, %s228
    %p234 = scmp.eq.s32.totalorder %s14, 0
    %p235 = por %p233, %p234
    %p236 = scmp.ne.s32.totalorder %s225, %s228
    %p237 = scmp.eq.s32.totalorder %s19, 15
    %p238 = por %p236, %p237
    %p239 = scmp.ne.s32.totalorder %s228, %s229
    %p240 = scmp.eq.s32.totalorder %s19, 0
    %p241 = por %p239, %p240
    %p242 = scmp.ne.s32.totalorder %s228, %s229
    %p243 = scmp.eq.s32.totalorder %s20, 15
    %p244 = por %p242, %p243
    %p246 = scmp.ne.s32.totalorder %s229, %s245
    %p247 = scmp.eq.s32.totalorder %s20, 0
    %p248 = por %p246, %p247
    %p249 = scmp.le.s32.totalorder 1, %s14
    %p250 = scmp.lt.s32.totalorder %s14, 17
    %p251 = pnand %p249, %p250
    %p252 = pneg %p251
    // Predicated region
    $region9: #{decoder3d_forward.4} parent=5 // pred_check
      _
    $region10: #{decoder3d_forward.4} parent=5 // pred_check_branch
      %254 = sbr.rel (%p251) target = $region12
    $region11: #{decoder3d_forward.4} parent=5 // pred_region
      %s255 = ssub.s32 %s14, 1
      // Predicated region
      $region13: #{decoder3d_forward.4} parent=11 // pred_check
        %p256 = pneg %p143
      $region14: #{decoder3d_forward.4} parent=11 // pred_check_branch
        %258 = sbr.rel (%p256) target = $region16
      $region15: #{decoder3d_forward.4} parent=11 // pred_region
        _
      $region16: #{decoder3d_forward.4} parent=11 // pred_fallthru
        _
      // Predicated region
      $region17: #{decoder3d_forward.4} parent=11 // pred_check
        %p259 = pneg %p164
      $region18: #{decoder3d_forward.4} parent=11 // pred_check_branch
        %261 = sbr.rel (%p259) target = $region20
      $region19: #{decoder3d_forward.4} parent=11 // pred_region
        _
      $region20: #{decoder3d_forward.4} parent=11 // pred_fallthru
        _
      // Predicated region
      $region21: #{decoder3d_forward.4} parent=11 // pred_check
        %p262 = pneg %p185
      $region22: #{decoder3d_forward.4} parent=11 // pred_check_branch
        %264 = sbr.rel (%p262) target = $region24
      $region23: #{decoder3d_forward.4} parent=11 // pred_region
        _
      $region24: #{decoder3d_forward.4} parent=11 // pred_fallthru
        _
    $region12: #{decoder3d_forward.4} parent=5 // pred_fallthru
      _
    %p265 = scmp.lt.s32.totalorder %s14, 16
    // Predicated region
    $region25: #{decoder3d_forward.4} parent=5 // pred_check
      %p266 = pneg %p265
    $region26: #{decoder3d_forward.4} parent=5 // pred_check_branch
      %268 = sbr.rel (%p266) target = $region28
    $region27: #{decoder3d_forward.4} parent=5 // pred_region
      // Predicated region
      $region29: #{decoder3d_forward.4} parent=27 // pred_check
        %p269 = pneg %p54
      $region30: #{decoder3d_forward.4} parent=27 // pred_check_branch
        %271 = sbr.rel (%p269) target = $region32
      $region31: #{decoder3d_forward.4} parent=27 // pred_region
        %s272 = ssub.s32 %s22, 1
        %p273 = scmp.gt.s32.totalorder %s272, 0
        %s274 = scalar_select %p273, %s272, 0
        %p275 = scmp.lt.s32.totalorder %s21, 1
        %s276 = scalar_select %p275, %s21, 1
        %p277 = scmp.lt.s32.totalorder %s274, 7
        %s278 = scalar_select %p277, %s274, 7
        %s279 = smul.addr %s278, 8
        %s280 = smul.addr %s276, 64
        %s281 = sadd.s32 %s279, %s280
        %s282 = smul.addr %s281, 4
        %s283 = scalar_lea.vmem %s0, %s282
        %s284 = ssub.s32 %s22, 1
        %p285 = scmp.gt.s32.totalorder %s284, 0
        %s286 = scalar_select %p285, %s284, 0
      $region32: #{decoder3d_forward.4} parent=27 // pred_fallthru
        _
      // Predicated region
      $region33: #{decoder3d_forward.4} parent=27 // pred_check
        %p287 = pneg %p82
      $region34: #{decoder3d_forward.4} parent=27 // pred_check_branch
        %289 = sbr.rel (%p287) target = $region36
      $region35: #{decoder3d_forward.4} parent=27 // pred_region
        %p290 = scmp.lt.s32.totalorder %s21, 1
        %s291 = scalar_select %p290, %s21, 1
        %p292 = scmp.lt.s32.totalorder %s22, 7
        %s293 = scalar_select %p292, %s22, 7
        %s294 = smul.addr %s293, 8
        %s295 = smul.addr %s291, 64
        %s296 = sadd.s32 %s294, %s295
        %s297 = smul.addr %s296, 4
        %s298 = scalar_lea.vmem %s1, %s297
      $region36: #{decoder3d_forward.4} parent=27 // pred_fallthru
        _
      // Predicated region
      $region37: #{decoder3d_forward.4} parent=27 // pred_check
        %p299 = pneg %p116
      $region38: #{decoder3d_forward.4} parent=27 // pred_check_branch
        %301 = sbr.rel (%p299) target = $region40
      $region39: #{decoder3d_forward.4} parent=27 // pred_region
        %s302 = sadd.s32 %s22, 1
        %p303 = scmp.lt.s32.totalorder %s302, 7
        %s304 = scalar_select %p303, %s302, 7
        %p305 = scmp.lt.s32.totalorder %s21, 1
        %s306 = scalar_select %p305, %s21, 1
        %p307 = scmp.lt.s32.totalorder %s304, 7
        %s308 = scalar_select %p307, %s304, 7
        %s309 = smul.addr %s308, 8
        %s310 = smul.addr %s306, 64
        %s311 = sadd.s32 %s309, %s310
        %s312 = smul.addr %s311, 4
        %s313 = scalar_lea.vmem %s2, %s312
        %s314 = sadd.s32 %s22, 1
        %p315 = scmp.lt.s32.totalorder %s314, 7
        %s316 = scalar_select %p315, %s314, 7
      $region40: #{decoder3d_forward.4} parent=27 // pred_fallthru
        _
    $region28: #{decoder3d_forward.4} parent=5 // pred_fallthru
      _
    %p317 = scmp.le.s32.totalorder 1, %s14
    %p318 = scmp.lt.s32.totalorder %s14, 17
    %p319 = pnand %p317, %p318
    %p320 = pneg %p319
    // Predicated region
    $region41: #{decoder3d_forward.4} parent=5 // pred_check
      _
    $region42: #{decoder3d_forward.4} parent=5 // pred_check_branch
      %322 = sbr.rel (%p319) target = $region44
    $region43: #{decoder3d_forward.4} parent=5 // pred_region
      %s323 = ssub.s32 %s14, 1
      %s324 = ssub.s32 %s24, 1
      %p325 = scmp.gt.s32.totalorder %s324, 0
      %s326 = scalar_select %p325, %s324, 0
      %p327 = scmp.lt.s32.totalorder %s23, 1
      %s328 = scalar_select %p327, %s23, 1
      %p329 = scmp.lt.s32.totalorder %s326, 7
      %s330 = scalar_select %p329, %s326, 7
      %s331 = smul.addr %s330, 8
      %s332 = smul.addr %s328, 64
      %s333 = sadd.s32 %s331, %s332
      %s334 = smul.addr %s333, 4
      %s335 = scalar_lea.vmem %s0, %s334
      %p336 = pneg %p60
      %p337 = pneg %p57
      %p338 = scmp.lt.s32.totalorder %s23, 1
      %s339 = scalar_select %p338, %s23, 1
      %p340 = scmp.lt.s32.totalorder %s24, 7
      %s341 = scalar_select %p340, %s24, 7
      %s342 = smul.addr %s341, 8
      %s343 = smul.addr %s339, 64
      %s344 = sadd.s32 %s342, %s343
      %s345 = smul.addr %s344, 4
      %s346 = scalar_lea.vmem %s1, %s345
      %p347 = pneg %p88
      %p348 = pneg %p85
      %s349 = sadd.s32 %s24, 1
      %p350 = scmp.lt.s32.totalorder %s349, 7
      %s351 = scalar_select %p350, %s349, 7
      %p352 = scmp.lt.s32.totalorder %s23, 1
      %s353 = scalar_select %p352, %s23, 1
      %p354 = scmp.lt.s32.totalorder %s351, 7
      %s355 = scalar_select %p354, %s351, 7
      %s356 = smul.addr %s355, 8
      %s357 = smul.addr %s353, 64
      %s358 = sadd.s32 %s356, %s357
      %s359 = smul.addr %s358, 4
      %s360 = scalar_lea.vmem %s2, %s359
      %p361 = pneg %p122
      %p362 = pneg %p119
      %p363 = pneg %p143
      %p364 = pneg %p140
      %p365 = pneg %p164
      %p366 = pneg %p161
      %p367 = pneg %p185
      %p368 = pneg %p182
      %p369 = pneg %p213
      %p370 = pneg %p210
      %p371 = scmp.lt.s32.totalorder %s23, 1
      %s372 = scalar_select %p371, %s23, 1
      %p373 = scmp.lt.s32.totalorder %s24, 7
      %s374 = scalar_select %p373, %s24, 7
      %s375 = smul.addr %s374, 8
      %s376 = smul.addr %s372, 64
      %s377 = sadd.s32 %s375, %s376
      %s378 = smul.addr %s377, 4
      %s379 = scalar_lea.vmem %s6, %s378
      %p380 = pneg %p241
      %p381 = pneg %p238
      %p382 = scmp.lt.s32.totalorder %s23, 1
      %s383 = scalar_select %p382, %s23, 1
      %p384 = scmp.lt.s32.totalorder %s24, 7
      %s385 = scalar_select %p384, %s24, 7
      %s386 = smul.addr %s383, 8
      %s387 = sadd.s32 %s385, %s386
      %s388 = smul.addr %s387, 2
      %s389 = scalar_lea.vmem %s7, %s388
      %s390 = ssub.s32 %s24, 1
      %p391 = scmp.gt.s32.totalorder %s390, 0
      %s392 = scalar_select %p391, %s390, 0
      %p393 = scmp.lt.s32.totalorder %s23, 1
      %s394 = scalar_select %p393, %s23, 1
      %p395 = scmp.lt.s32.totalorder %s392, 7
      %s396 = scalar_select %p395, %s392, 7
      %s397 = smul.addr %s396, 8
      %s398 = smul.addr %s394, 64
      %s399 = sadd.s32 %s397, %s398
      %s400 = smul.addr %s399, 4
      %s401 = scalar_lea.vmem %s0, %s400
      %s402 = ssub.s32 %s24, 1
      %p403 = scmp.gt.s32.totalorder %s402, 0
      %s404 = scalar_select %p403, %s402, 0
      %p405 = scmp.lt.s32.totalorder %s23, 1
      %s406 = scalar_select %p405, %s23, 1
      %p407 = scmp.lt.s32.totalorder %s24, 7
      %s408 = scalar_select %p407, %s24, 7
      %s409 = smul.addr %s408, 8
      %s410 = smul.addr %s406, 64
      %s411 = sadd.s32 %s409, %s410
      %s412 = smul.addr %s411, 4
      %s413 = scalar_lea.vmem %s1, %s412
      %s414 = sadd.s32 %s24, 1
      %p415 = scmp.lt.s32.totalorder %s414, 7
      %s416 = scalar_select %p415, %s414, 7
      %p417 = scmp.lt.s32.totalorder %s23, 1
      %s418 = scalar_select %p417, %s23, 1
      %p419 = scmp.lt.s32.totalorder %s416, 7
      %s420 = scalar_select %p419, %s416, 7
      %s421 = smul.addr %s420, 8
      %s422 = smul.addr %s418, 64
      %s423 = sadd.s32 %s421, %s422
      %s424 = smul.addr %s423, 4
      %s425 = scalar_lea.vmem %s2, %s424
      %s426 = sadd.s32 %s24, 1
      %p427 = scmp.lt.s32.totalorder %s426, 7
      %s428 = scalar_select %p427, %s426, 7
      %p429 = scmp.lt.s32.totalorder %s23, 1
      %s430 = scalar_select %p429, %s23, 1
      %p431 = scmp.lt.s32.totalorder %s24, 7
      %s432 = scalar_select %p431, %s24, 7
      %s433 = smul.addr %s432, 8
      %s434 = smul.addr %s430, 64
      %s435 = sadd.s32 %s433, %s434
      %s436 = smul.addr %s435, 4
      %s437 = scalar_lea.vmem %s6, %s436
      %p438 = scmp.lt.s32.totalorder %s23, 1
      %s439 = scalar_select %p438, %s23, 1
      %p440 = scmp.lt.s32.totalorder %s24, 7
      %s441 = scalar_select %p440, %s24, 7
      %s442 = smul.addr %s439, 8
      %s443 = sadd.s32 %s441, %s442
      %s444 = smul.addr %s443, 2
      %s445 = scalar_lea.vmem %s7, %s444
      %p447 = scmp.gt.s32.totalorder %s24, 0
      %v448 = vld [vmem:[%s401] sm:$0xf]
      %v449 = vld [vmem:[%s401 + $0x4] sm:$0xf]
      %v450 = vld [vmem:[%s401 + $0x8] sm:$0xf]
      %v451 = vld [vmem:[%s401 + $0xc] sm:$0xf]
      %v452 = vld [vmem:[%s401 + $0x10] sm:$0xf]
      %v453 = vld [vmem:[%s401 + $0x14] sm:$0xf]
      %v454 = vld [vmem:[%s401 + $0x18] sm:$0xf]
      %v455 = vld [vmem:[%s401 + $0x1c] sm:$0xf]
      %v456 = vunpack.c.l.bf16 %v448
      %v457 = vunpack.c.l.bf16 %v449
      %v458 = vunpack.c.l.bf16 %v450
      %v459 = vunpack.c.l.bf16 %v451
      %v460 = vunpack.c.l.bf16 %v452
      %v461 = vunpack.c.l.bf16 %v453
      %v462 = vunpack.c.l.bf16 %v454
      %v463 = vunpack.c.l.bf16 %v455
      %v464 = vld [vmem:[%s4] sm:$0x1]
      %v466 = vlaneseq
      %v467 = vshrl.u32 %v466, 7
      %v468 = vsub.s32 0, %v467
      %v469 = vrot.slane %v464, %v468
      %v471 = vmul.f32 %v456, %v469
      %v472 = vmul.f32 %v457, %v469
      %v473 = vmul.f32 %v458, %v469
      %v474 = vmul.f32 %v459, %v469
      %v475 = vmul.f32 %v460, %v469
      %v476 = vmul.f32 %v461, %v469
      %v477 = vmul.f32 %v462, %v469
      %v478 = vmul.f32 %v463, %v469
      %v479 = vld [vmem:[%s5] sm:$0x1]
      %v481 = vlaneseq
      %v482 = vshrl.u32 %v481, 7
      %v483 = vsub.s32 0, %v482
      %v484 = vrot.slane %v479, %v483
      %v486 = vadd.f32 %v471, %v484
      %v487 = vadd.f32 %v472, %v484
      %v488 = vadd.f32 %v473, %v484
      %v489 = vadd.f32 %v474, %v484
      %v490 = vadd.f32 %v475, %v484
      %v491 = vadd.f32 %v476, %v484
      %v492 = vadd.f32 %v477, %v484
      %v493 = vadd.f32 %v478, %v484
      %v494 = vmax.f32 %v486, 0.0
      %v495 = vmax.f32 %v487, 0.0
      %v496 = vmax.f32 %v488, 0.0
      %v497 = vmax.f32 %v489, 0.0
      %v498 = vmax.f32 %v490, 0.0
      %v499 = vmax.f32 %v491, 0.0
      %v500 = vmax.f32 %v492, 0.0
      %v501 = vmax.f32 %v493, 0.0
      %s502 = scalar_select %p447, 1, 0
      %s503 = scvt.s32.f32 %s502
      %v504 = vstv %s503
      %v505 = vmul.f32 %v494, %v504
      %v506 = vmul.f32 %v495, %v504
      %v507 = vmul.f32 %v496, %v504
      %v508 = vmul.f32 %v497, %v504
      %v509 = vmul.f32 %v498, %v504
      %v510 = vmul.f32 %v499, %v504
      %v511 = vmul.f32 %v500, %v504
      %v512 = vmul.f32 %v501, %v504
      %v513 = vpack.c.bf16 %v505, %v505
      %v514 = vpack.c.bf16 %v506, %v506
      %v515 = vpack.c.bf16 %v507, %v507
      %v516 = vpack.c.bf16 %v508, %v508
      %v517 = vpack.c.bf16 %v509, %v509
      %v518 = vpack.c.bf16 %v510, %v510
      %v519 = vpack.c.bf16 %v511, %v511
      %v520 = vpack.c.bf16 %v512, %v512
      %v521 = vld [vmem:[%s413] sm:$0xf]
      %v522 = vld [vmem:[%s413 + $0x4] sm:$0xf]
      %v523 = vld [vmem:[%s413 + $0x8] sm:$0xf]
      %v524 = vld [vmem:[%s413 + $0xc] sm:$0xf]
      %v525 = vld [vmem:[%s413 + $0x10] sm:$0xf]
      %v526 = vld [vmem:[%s413 + $0x14] sm:$0xf]
      %v527 = vld [vmem:[%s413 + $0x18] sm:$0xf]
      %v528 = vld [vmem:[%s413 + $0x1c] sm:$0xf]
      %v529 = vunpack.c.l.bf16 %v521
      %v530 = vunpack.c.l.bf16 %v522
      %v531 = vunpack.c.l.bf16 %v523
      %v532 = vunpack.c.l.bf16 %v524
      %v533 = vunpack.c.l.bf16 %v525
      %v534 = vunpack.c.l.bf16 %v526
      %v535 = vunpack.c.l.bf16 %v527
      %v536 = vunpack.c.l.bf16 %v528
      %v537 = vmul.f32 %v529, %v469
      %v538 = vmul.f32 %v530, %v469
      %v539 = vmul.f32 %v531, %v469
      %v540 = vmul.f32 %v532, %v469
      %v541 = vmul.f32 %v533, %v469
      %v542 = vmul.f32 %v534, %v469
      %v543 = vmul.f32 %v535, %v469
      %v544 = vmul.f32 %v536, %v469
      %v545 = vadd.f32 %v537, %v484
      %v546 = vadd.f32 %v538, %v484
      %v547 = vadd.f32 %v539, %v484
      %v548 = vadd.f32 %v540, %v484
      %v549 = vadd.f32 %v541, %v484
      %v550 = vadd.f32 %v542, %v484
      %v551 = vadd.f32 %v543, %v484
      %v552 = vadd.f32 %v544, %v484
      %v553 = vmax.f32 %v545, 0.0
      %v554 = vmax.f32 %v546, 0.0
      %v555 = vmax.f32 %v547, 0.0
      %v556 = vmax.f32 %v548, 0.0
      %v557 = vmax.f32 %v549, 0.0
      %v558 = vmax.f32 %v550, 0.0
      %v559 = vmax.f32 %v551, 0.0
      %v560 = vmax.f32 %v552, 0.0
      %v561 = vpack.c.bf16 %v553, %v553
      %v562 = vpack.c.bf16 %v554, %v554
      %v563 = vpack.c.bf16 %v555, %v555
      %v564 = vpack.c.bf16 %v556, %v556
      %v565 = vpack.c.bf16 %v557, %v557
      %v566 = vpack.c.bf16 %v558, %v558
      %v567 = vpack.c.bf16 %v559, %v559
      %v568 = vpack.c.bf16 %v560, %v560
      %p569 = scmp.lt.s32.totalorder %s24, 7
      %v570 = vld [vmem:[%s425] sm:$0xf]
      %v571 = vld [vmem:[%s425 + $0x4] sm:$0xf]
      %v572 = vld [vmem:[%s425 + $0x8] sm:$0xf]
      %v573 = vld [vmem:[%s425 + $0xc] sm:$0xf]
      %v574 = vld [vmem:[%s425 + $0x10] sm:$0xf]
      %v575 = vld [vmem:[%s425 + $0x14] sm:$0xf]
      %v576 = vld [vmem:[%s425 + $0x18] sm:$0xf]
      %v577 = vld [vmem:[%s425 + $0x1c] sm:$0xf]
      %v578 = vunpack.c.l.bf16 %v570
      %v579 = vunpack.c.l.bf16 %v571
      %v580 = vunpack.c.l.bf16 %v572
      %v581 = vunpack.c.l.bf16 %v573
      %v582 = vunpack.c.l.bf16 %v574
      %v583 = vunpack.c.l.bf16 %v575
      %v584 = vunpack.c.l.bf16 %v576
      %v585 = vunpack.c.l.bf16 %v577
      %v586 = vmul.f32 %v578, %v469
      %v587 = vmul.f32 %v579, %v469
      %v588 = vmul.f32 %v580, %v469
      %v589 = vmul.f32 %v581, %v469
      %v590 = vmul.f32 %v582, %v469
      %v591 = vmul.f32 %v583, %v469
      %v592 = vmul.f32 %v584, %v469
      %v593 = vmul.f32 %v585, %v469
      %v594 = vadd.f32 %v586, %v484
      %v595 = vadd.f32 %v587, %v484
      %v596 = vadd.f32 %v588, %v484
      %v597 = vadd.f32 %v589, %v484
      %v598 = vadd.f32 %v590, %v484
      %v599 = vadd.f32 %v591, %v484
      %v600 = vadd.f32 %v592, %v484
      %v601 = vadd.f32 %v593, %v484
      %v602 = vmax.f32 %v594, 0.0
      %v603 = vmax.f32 %v595, 0.0
      %v604 = vmax.f32 %v596, 0.0
      %v605 = vmax.f32 %v597, 0.0
      %v606 = vmax.f32 %v598, 0.0
      %v607 = vmax.f32 %v599, 0.0
      %v608 = vmax.f32 %v600, 0.0
      %v609 = vmax.f32 %v601, 0.0
      %s610 = scalar_select %p569, 1, 0
      %s611 = scvt.s32.f32 %s610
      %v612 = vstv %s611
      %v613 = vmul.f32 %v602, %v612
      %v614 = vmul.f32 %v603, %v612
      %v615 = vmul.f32 %v604, %v612
      %v616 = vmul.f32 %v605, %v612
      %v617 = vmul.f32 %v606, %v612
      %v618 = vmul.f32 %v607, %v612
      %v619 = vmul.f32 %v608, %v612
      %v620 = vmul.f32 %v609, %v612
      %v621 = vpack.c.bf16 %v613, %v613
      %v622 = vpack.c.bf16 %v614, %v614
      %v623 = vpack.c.bf16 %v615, %v615
      %v624 = vpack.c.bf16 %v616, %v616
      %v625 = vpack.c.bf16 %v617, %v617
      %v626 = vpack.c.bf16 %v618, %v618
      %v627 = vpack.c.bf16 %v619, %v619
      %v628 = vpack.c.bf16 %v620, %v620
      %v630 = vshrl.u32 0, 16
      %v632 = vrot.slane %v630, 7
      %v633 = vshll.u32 0, 16
      %v635 = vor.u32 %v632, %v633
      %v637 = vshrl.u32 %v513, 16
      %v639 = vrot.slane %v637, 7
      %v640 = vshll.u32 %v513, 16
      %v642 = vor.u32 %v639, %v640
      %v644 = vshrl.u32 %v514, 16
      %v646 = vrot.slane %v644, 7
      %v647 = vshll.u32 %v514, 16
      %v649 = vor.u32 %v646, %v647
      %v651 = vshrl.u32 %v515, 16
      %v653 = vrot.slane %v651, 7
      %v654 = vshll.u32 %v515, 16
      %v656 = vor.u32 %v653, %v654
      %v658 = vshrl.u32 %v516, 16
      %v660 = vrot.slane %v658, 7
      %v661 = vshll.u32 %v516, 16
      %v663 = vor.u32 %v660, %v661
      %v665 = vshrl.u32 %v517, 16
      %v667 = vrot.slane %v665, 7
      %v668 = vshll.u32 %v517, 16
      %v670 = vor.u32 %v667, %v668
      %v672 = vshrl.u32 %v518, 16
      %v674 = vrot.slane %v672, 7
      %v675 = vshll.u32 %v518, 16
      %v677 = vor.u32 %v674, %v675
      %v679 = vshrl.u32 %v519, 16
      %v681 = vrot.slane %v679, 7
      %v682 = vshll.u32 %v519, 16
      %v684 = vor.u32 %v681, %v682
      %v686 = vshrl.u32 %v520, 16
      %v688 = vrot.slane %v686, 7
      %v689 = vshll.u32 %v520, 16
      %v691 = vor.u32 %v688, %v689
      %vm701 = vcmask 1040384
      %vm702 = vsmask.f32 256
      %vm703 = vmand %vm701, %vm702
      %v704 = vsel %vm703, 0, %v635
      %v705 = vsel %vm703, 0, %v642
      %v706 = vsel %vm703, 0, %v649
      %v707 = vsel %vm703, 0, %v656
      %v708 = vsel %vm703, 0, %v663
      %v709 = vsel %vm703, 0, %v670
      %v710 = vsel %vm703, 0, %v677
      %v711 = vsel %vm703, 0, %v684
      %v712 = vsel %vm703, 0, %v691
      %vm713 = vcmask 1044480
      %vm714 = vsmask.f32 4352
      %vm715 = vmand %vm713, %vm714
      %v716 = vsel %vm715, %v704, 0
      %v717 = vsel %vm715, %v705, 0
      %v718 = vsel %vm715, %v706, 0
      %v719 = vsel %vm715, %v707, 0
      %v720 = vsel %vm715, %v708, 0
      %v721 = vsel %vm715, %v709, 0
      %v722 = vsel %vm715, %v710, 0
      %v723 = vsel %vm715, %v711, 0
      %v724 = vsel %vm715, %v712, 0
      %v725 = vld [vmem:[%s3] sm:$0xf]
      %v726 = vld [vmem:[%s3 + $0x4] sm:$0xf]
      %v727 = vld [vmem:[%s3 + $0x8] sm:$0xf]
      %v728 = vld [vmem:[%s3 + $0xc] sm:$0xf]
      %v729 = vld [vmem:[%s3 + $0x10] sm:$0xf]
      %v730 = vld [vmem:[%s3 + $0x14] sm:$0xf]
      %v731 = vld [vmem:[%s3 + $0x18] sm:$0xf]
      %v732 = vld [vmem:[%s3 + $0x1c] sm:$0xf]
      %v733 = vld [vmem:[%s3 + $0x20] sm:$0xf]
      %v734 = vld [vmem:[%s3 + $0x24] sm:$0xf]
      %v735 = vld [vmem:[%s3 + $0x28] sm:$0xf]
      %v736 = vld [vmem:[%s3 + $0x2c] sm:$0xf]
      %v737 = vld [vmem:[%s3 + $0x30] sm:$0xf]
      %v738 = vld [vmem:[%s3 + $0x34] sm:$0xf]
      %v739 = vld [vmem:[%s3 + $0x38] sm:$0xf]
      %v740 = vld [vmem:[%s3 + $0x3c] sm:$0xf]
      %s741 = scalar_lea.vmem %s3, 192
      %v742 = vld [vmem:[%s741] sm:$0xf]
      %v743 = vld [vmem:[%s741 + $0x4] sm:$0xf]
      %v744 = vld [vmem:[%s741 + $0x8] sm:$0xf]
      %v745 = vld [vmem:[%s741 + $0xc] sm:$0xf]
      %v746 = vld [vmem:[%s741 + $0x10] sm:$0xf]
      %v747 = vld [vmem:[%s741 + $0x14] sm:$0xf]
      %v748 = vld [vmem:[%s741 + $0x18] sm:$0xf]
      %v749 = vld [vmem:[%s741 + $0x1c] sm:$0xf]
      %v750 = vld [vmem:[%s741 + $0x20] sm:$0xf]
      %v751 = vld [vmem:[%s741 + $0x24] sm:$0xf]
      %v752 = vld [vmem:[%s741 + $0x28] sm:$0xf]
      %v753 = vld [vmem:[%s741 + $0x2c] sm:$0xf]
      %v754 = vld [vmem:[%s741 + $0x30] sm:$0xf]
      %v755 = vld [vmem:[%s741 + $0x34] sm:$0xf]
      %v756 = vld [vmem:[%s741 + $0x38] sm:$0xf]
      %v757 = vld [vmem:[%s741 + $0x3c] sm:$0xf]
      %v766 = vunpack.c.l.b16 %v717
      %v767 = vunpack.c.l.b16 %v718
      %v768 = vunpack.c.l.b16 %v719
      %v769 = vunpack.c.l.b16 %v720
      %v770 = vunpack.c.l.b16 %v721
      %v771 = vunpack.c.l.b16 %v722
      %v772 = vunpack.c.l.b16 %v723
      %v773 = vunpack.c.l.b16 %v724
      %v774 = vpack.c.b16 %v767, %v766
      %v775 = vpack.c.b16 %v769, %v768
      %v776 = vpack.c.b16 %v771, %v770
      %v777 = vpack.c.b16 %v773, %v772
      %v798 = vunpack.c.l.b16 %v742
      %v799 = vunpack.c.l.b16 %v743
      %v800 = vunpack.c.l.b16 %v744
      %v801 = vunpack.c.l.b16 %v745
      %v802 = vunpack.c.l.b16 %v746
      %v803 = vunpack.c.l.b16 %v747
      %v804 = vunpack.c.l.b16 %v748
      %v805 = vunpack.c.l.b16 %v749
      %v806 = vunpack.c.l.b16 %v750
      %v807 = vunpack.c.l.b16 %v751
      %v808 = vunpack.c.l.b16 %v752
      %v809 = vunpack.c.l.b16 %v753
      %v810 = vunpack.c.l.b16 %v754
      %v811 = vunpack.c.l.b16 %v755
      %v812 = vunpack.c.l.b16 %v756
      %v813 = vunpack.c.l.b16 %v757
      %v814 = vpack.c.b16 %v799, %v798
      %v815 = vpack.c.b16 %v801, %v800
      %v816 = vpack.c.b16 %v803, %v802
      %v817 = vpack.c.b16 %v805, %v804
      %v818 = vpack.c.b16 %v807, %v806
      %v819 = vpack.c.b16 %v809, %v808
      %v820 = vpack.c.b16 %v811, %v810
      %v821 = vpack.c.b16 %v813, %v812
      %830 = vmatprep.subr.bf16.mxu0 0
      %831 = vmatpush1.bf16.msra.mxu0 %v814
      %832 = vmatprep.subr.bf16.mxu0 0
      %833 = vmatpush1.bf16.msra.mxu0 %v815
      %834 = vmatprep.subr.bf16.mxu0 0
      %835 = vmatpush1.bf16.msra.mxu0 %v816
      %836 = vmatprep.subr.bf16.mxu0 0
      %837 = vmatpush1.bf16.msra.mxu0 %v817
      %838 = vmatprep.subr.bf16.mxu0 0
      %839 = vmatpush1.bf16.msra.mxu0 %v818
      %840 = vmatprep.subr.bf16.mxu0 0
      %841 = vmatpush1.bf16.msra.mxu0 %v819
      %842 = vmatprep.subr.bf16.mxu0 0
      %843 = vmatpush1.bf16.msra.mxu0 %v820
      %844 = vmatprep.subr.bf16.mxu0 0
      %845 = vmatpush1.bf16.msra.mxu0 %v821
      %846 = vmatprep.subr.bf16.mxu0 0
      %847 = vmatpush1.bf16.msra.mxu0 0
      %848 = vmatprep.subr.bf16.mxu0 0
      %849 = vmatpush1.bf16.msra.mxu0 0
      %850 = vmatprep.subr.bf16.mxu0 0
      %851 = vmatpush1.bf16.msra.mxu0 0
      %852 = vmatprep.subr.bf16.mxu0 0
      %853 = vmatpush1.bf16.msra.mxu0 0
      %854 = vmatprep.subr.bf16.mxu0 0
      %855 = vmatpush1.bf16.msra.mxu0 0
      %856 = vmatprep.subr.bf16.mxu0 0
      %857 = vmatpush1.bf16.msra.mxu0 0
      %858 = vmatprep.subr.bf16.mxu0 0
      %859 = vmatpush1.bf16.msra.mxu0 0
      %860 = vmatprep.subr.bf16.mxu0 0
      %861 = vmatpush1.bf16.msra.mxu0 0
      %862 = vmatprep.mubr.bf16.mxu0 0
      %863 = vmatmul.mubr.bf16.gmra.mrb[0].mxu0 %v774
      %v864 = vpop.f32.mrb[0].mxu0
      %v865 = vadd.f32 0.0, %v864
      %v866 = vpop.f32.mrb[0].mxu0
      %v867 = vpop.f32.mrb[0].mxu0
      %v868 = vadd.f32 0.0, %v867
      %v869 = vpop.f32.mrb[0].mxu0
      %870 = vmatprep.mubr.bf16.mxu0 0
      %871 = vmatmul.mubr.bf16.gmra.mrb[0].mxu0 %v775
      %v872 = vpop.f32.mrb[0].mxu0
      %v873 = vadd.f32 0.0, %v872
      %v874 = vpop.f32.mrb[0].mxu0
      %v875 = vpop.f32.mrb[0].mxu0
      %v876 = vadd.f32 0.0, %v875
      %v877 = vpop.f32.mrb[0].mxu0
      %878 = vmatprep.mubr.bf16.mxu0 0
      %879 = vmatmul.mubr.bf16.gmra.mrb[0].mxu0 %v776
      %v880 = vpop.f32.mrb[0].mxu0
      %v881 = vadd.f32 0.0, %v880
      %v882 = vpop.f32.mrb[0].mxu0
      %v883 = vpop.f32.mrb[0].mxu0
      %v884 = vadd.f32 0.0, %v883
      %v885 = vpop.f32.mrb[0].mxu0
      %886 = vmatprep.mubr.bf16.mxu0 0
      %887 = vmatmul.mubr.bf16.gmra.mrb[0].mxu0 %v777
      %v888 = vpop.f32.mrb[0].mxu0
      %v889 = vadd.f32 0.0, %v888
      %v890 = vpop.f32.mrb[0].mxu0
      %v891 = vpop.f32.mrb[0].mxu0
      %v892 = vadd.f32 0.0, %v891
      %v893 = vpop.f32.mrb[0].mxu0
      %894 = vdwg.mxu0
      %v896 = vunpack.c.l.b16 %v716
      %v897 = vpack.c.b16 %v766, %v896
      %v898 = vpack.c.b16 %v768, %v767
      %v899 = vpack.c.b16 %v770, %v769
      %v900 = vpack.c.b16 %v772, %v771
      %v921 = vunpack.c.l.b16 %v725
      %v922 = vunpack.c.l.b16 %v726
      %v923 = vunpack.c.l.b16 %v727
      %v924 = vunpack.c.l.b16 %v728
      %v925 = vunpack.c.l.b16 %v729
      %v926 = vunpack.c.l.b16 %v730
      %v927 = vunpack.c.l.b16 %v731
      %v928 = vunpack.c.l.b16 %v732
      %v929 = vunpack.c.l.b16 %v733
      %v930 = vunpack.c.l.b16 %v734
      %v931 = vunpack.c.l.b16 %v735
      %v932 = vunpack.c.l.b16 %v736
      %v933 = vunpack.c.l.b16 %v737
      %v934 = vunpack.c.l.b16 %v738
      %v935 = vunpack.c.l.b16 %v739
      %v936 = vunpack.c.l.b16 %v740
      %v937 = vpack.c.b16 %v922, %v921
      %v938 = vpack.c.b16 %v924, %v923
      %v939 = vpack.c.b16 %v926, %v925
      %v940 = vpack.c.b16 %v928, %v927
      %v941 = vpack.c.b16 %v930, %v929
      %v942 = vpack.c.b16 %v932, %v931
      %v943 = vpack.c.b16 %v934, %v933
      %v944 = vpack.c.b16 %v936, %v935
      %953 = vmatprep.subr.bf16.mxu0 0
      %954 = vmatpush1.bf16.msra.mxu0 %v937
      %955 = vmatprep.subr.bf16.mxu0 0
      %956 = vmatpush1.bf16.msra.mxu0 %v938
      %957 = vmatprep.subr.bf16.mxu0 0
      %958 = vmatpush1.bf16.msra.mxu0 %v939
      %959 = vmatprep.subr.bf16.mxu0 0
      %960 = vmatpush1.bf16.msra.mxu0 %v940
      %961 = vmatprep.subr.bf16.mxu0 0
      %962 = vmatpush1.bf16.msra.mxu0 %v941
      %963 = vmatprep.subr.bf16.mxu0 0
      %964 = vmatpush1.bf16.msra.mxu0 %v942
      %965 = vmatprep.subr.bf16.mxu0 0
      %966 = vmatpush1.bf16.msra.mxu0 %v943
      %967 = vmatprep.subr.bf16.mxu0 0
      %968 = vmatpush1.bf16.msra.mxu0 %v944
      %969 = vmatprep.subr.bf16.mxu0 0
      %970 = vmatpush1.bf16.msra.mxu0 0
      %971 = vmatprep.subr.bf16.mxu0 0
      %972 = vmatpush1.bf16.msra.mxu0 0
      %973 = vmatprep.subr.bf16.mxu0 0
      %974 = vmatpush1.bf16.msra.mxu0 0
      %975 = vmatprep.subr.bf16.mxu0 0
      %976 = vmatpush1.bf16.msra.mxu0 0
      %977 = vmatprep.subr.bf16.mxu0 0
      %978 = vmatpush1.bf16.msra.mxu0 0
      %979 = vmatprep.subr.bf16.mxu0 0
      %980 = vmatpush1.bf16.msra.mxu0 0
      %981 = vmatprep.subr.bf16.mxu0 0
      %982 = vmatpush1.bf16.msra.mxu0 0
      %983 = vmatprep.subr.bf16.mxu0 0
      %984 = vmatpush1.bf16.msra.mxu0 0
      %985 = vmatprep.mubr.bf16.mxu0 0
      %986 = vmatmul.mubr.bf16.gmra.mrb[0].mxu0 %v897
      %v987 = vpop.f32.mrb[0].mxu0
      %v988 = vadd.f32 %v865, %v987
      %v989 = vpop.f32.mrb[0].mxu0
      %v990 = vpop.f32.mrb[0].mxu0
      %v991 = vadd.f32 %v868, %v990
      %v992 = vpop.f32.mrb[0].mxu0
      %993 = vmatprep.mubr.bf16.mxu0 0
      %994 = vmatmul.mubr.bf16.gmra.mrb[0].mxu0 %v898
      %v995 = vpop.f32.mrb[0].mxu0
      %v996 = vadd.f32 %v873, %v995
      %v997 = vpop.f32.mrb[0].mxu0
      %v998 = vpop.f32.mrb[0].mxu0
      %v999 = vadd.f32 %v876, %v998
      %v1000 = vpop.f32.mrb[0].mxu0
      %1001 = vmatprep.mubr.bf16.mxu0 0
      %1002 = vmatmul.mubr.bf16.gmra.mrb[0].mxu0 %v899
      %v1003 = vpop.f32.mrb[0].mxu0
      %v1004 = vadd.f32 %v881, %v1003
      %v1005 = vpop.f32.mrb[0].mxu0
      %v1006 = vpop.f32.mrb[0].mxu0
      %v1007 = vadd.f32 %v884, %v1006
      %v1008 = vpop.f32.mrb[0].mxu0
      %1009 = vmatprep.mubr.bf16.mxu0 0
      %1010 = vmatmul.mubr.bf16.gmra.mrb[0].mxu0 %v900
      %v1011 = vpop.f32.mrb[0].mxu0
      %v1012 = vadd.f32 %v889, %v1011
      %v1013 = vpop.f32.mrb[0].mxu0
      %v1014 = vpop.f32.mrb[0].mxu0
      %v1015 = vadd.f32 %v892, %v1014
      %v1016 = vpop.f32.mrb[0].mxu0
      %1017 = vdwg.mxu0
      %s1018 = scalar_lea.vmem %s3, 384
      %v1019 = vld [vmem:[%s1018] sm:$0xf]
      %v1020 = vld [vmem:[%s1018 + $0x4] sm:$0xf]
      %v1021 = vld [vmem:[%s1018 + $0x8] sm:$0xf]
      %v1022 = vld [vmem:[%s1018 + $0xc] sm:$0xf]
      %v1023 = vld [vmem:[%s1018 + $0x10] sm:$0xf]
      %v1024 = vld [vmem:[%s1018 + $0x14] sm:$0xf]
      %v1025 = vld [vmem:[%s1018 + $0x18] sm:$0xf]
      %v1026 = vld [vmem:[%s1018 + $0x1c] sm:$0xf]
      %v1027 = vld [vmem:[%s1018 + $0x20] sm:$0xf]
      %v1028 = vld [vmem:[%s1018 + $0x24] sm:$0xf]
      %v1029 = vld [vmem:[%s1018 + $0x28] sm:$0xf]
      %v1030 = vld [vmem:[%s1018 + $0x2c] sm:$0xf]
      %v1031 = vld [vmem:[%s1018 + $0x30] sm:$0xf]
      %v1032 = vld [vmem:[%s1018 + $0x34] sm:$0xf]
      %v1033 = vld [vmem:[%s1018 + $0x38] sm:$0xf]
      %v1034 = vld [vmem:[%s1018 + $0x3c] sm:$0xf]
      %v1035 = vpack.c.b16 %v896, %v773
      %v1053 = vunpack.c.l.b16 %v1019
      %v1054 = vunpack.c.l.b16 %v1020
      %v1055 = vunpack.c.l.b16 %v1021
      %v1056 = vunpack.c.l.b16 %v1022
      %v1057 = vunpack.c.l.b16 %v1023
      %v1058 = vunpack.c.l.b16 %v1024
      %v1059 = vunpack.c.l.b16 %v1025
      %v1060 = vunpack.c.l.b16 %v1026
      %v1061 = vunpack.c.l.b16 %v1027
      %v1062 = vunpack.c.l.b16 %v1028
      %v1063 = vunpack.c.l.b16 %v1029
      %v1064 = vunpack.c.l.b16 %v1030
      %v1065 = vunpack.c.l.b16 %v1031
      %v1066 = vunpack.c.l.b16 %v1032
      %v1067 = vunpack.c.l.b16 %v1033
      %v1068 = vunpack.c.l.b16 %v1034
      %v1069 = vpack.c.b16 %v1054, %v1053
      %v1070 = vpack.c.b16 %v1056, %v1055
      %v1071 = vpack.c.b16 %v1058, %v1057
      %v1072 = vpack.c.b16 %v1060, %v1059
      %v1073 = vpack.c.b16 %v1062, %v1061
      %v1074 = vpack.c.b16 %v1064, %v1063
      %v1075 = vpack.c.b16 %v1066, %v1065
      %v1076 = vpack.c.b16 %v1068, %v1067
      %1085 = vmatprep.subr.bf16.mxu0 0
      %1086 = vmatpush1.bf16.msra.mxu0 %v1069
      %1087 = vmatprep.subr.bf16.mxu0 0
      %1088 = vmatpush1.bf16.msra.mxu0 %v1070
      %1089 = vmatprep.subr.bf16.mxu0 0
      %1090 = vmatpush1.bf16.msra.mxu0 %v1071
      %1091 = vmatprep.subr.bf16.mxu0 0
      %1092 = vmatpush1.bf16.msra.mxu0 %v1072
      %1093 = vmatprep.subr.bf16.mxu0 0
      %1094 = vmatpush1.bf16.msra.mxu0 %v1073
      %1095 = vmatprep.subr.bf16.mxu0 0
      %1096 = vmatpush1.bf16.msra.mxu0 %v1074
      %1097 = vmatprep.subr.bf16.mxu0 0
      %1098 = vmatpush1.bf16.msra.mxu0 %v1075
      %1099 = vmatprep.subr.bf16.mxu0 0
      %1100 = vmatpush1.bf16.msra.mxu0 %v1076
      %1101 = vmatprep.subr.bf16.mxu0 0
      %1102 = vmatpush1.bf16.msra.mxu0 0
      %1103 = vmatprep.subr.bf16.mxu0 0
      %1104 = vmatpush1.bf16.msra.mxu0 0
      %1105 = vmatprep.subr.bf16.mxu0 0
      %1106 = vmatpush1.bf16.msra.mxu0 0
      %1107 = vmatprep.subr.bf16.mxu0 0
      %1108 = vmatpush1.bf16.msra.mxu0 0
      %1109 = vmatprep.subr.bf16.mxu0 0
      %1110 = vmatpush1.bf16.msra.mxu0 0
      %1111 = vmatprep.subr.bf16.mxu0 0
      %1112 = vmatpush1.bf16.msra.mxu0 0
      %1113 = vmatprep.subr.bf16.mxu0 0
      %1114 = vmatpush1.bf16.msra.mxu0 0
      %1115 = vmatprep.subr.bf16.mxu0 0
      %1116 = vmatpush1.bf16.msra.mxu0 0
      %1117 = vmatprep.mubr.bf16.mxu0 0
      %1118 = vmatmul.mubr.bf16.gmra.mrb[0].mxu0 %v898
      %v1119 = vpop.f32.mrb[0].mxu0
      %v1120 = vadd.f32 0.0, %v1119
      %v1121 = vpop.f32.mrb[0].mxu0
      %v1122 = vpop.f32.mrb[0].mxu0
      %v1123 = vadd.f32 0.0, %v1122
      %v1124 = vpop.f32.mrb[0].mxu0
      %1125 = vmatprep.mubr.bf16.mxu0 0
      %1126 = vmatmul.mubr.bf16.gmra.mrb[0].mxu0 %v899
      %v1127 = vpop.f32.mrb[0].mxu0
      %v1128 = vadd.f32 0.0, %v1127
      %v1129 = vpop.f32.mrb[0].mxu0
      %v1130 = vpop.f32.mrb[0].mxu0
      %v1131 = vadd.f32 0.0, %v1130
      %v1132 = vpop.f32.mrb[0].mxu0
      %1133 = vmatprep.mubr.bf16.mxu0 0
      %1134 = vmatmul.mubr.bf16.gmra.mrb[0].mxu0 %v900
      %v1135 = vpop.f32.mrb[0].mxu0
      %v1136 = vadd.f32 0.0, %v1135
      %v1137 = vpop.f32.mrb[0].mxu0
      %v1138 = vpop.f32.mrb[0].mxu0
      %v1139 = vadd.f32 0.0, %v1138
      %v1140 = vpop.f32.mrb[0].mxu0
      %1141 = vmatprep.mubr.bf16.mxu0 0
      %1142 = vmatmul.mubr.bf16.gmra.mrb[0].mxu0 %v1035
      %v1143 = vpop.f32.mrb[0].mxu0
      %v1144 = vadd.f32 0.0, %v1143
      %v1145 = vpop.f32.mrb[0].mxu0
      %v1146 = vpop.f32.mrb[0].mxu0
      %v1147 = vadd.f32 0.0, %v1146
      %v1148 = vpop.f32.mrb[0].mxu0
      %1149 = vdwg.mxu0
      %v1150 = vadd.f32 %v988, %v1120
      %v1151 = vadd.f32 %v991, %v1123
      %v1152 = vadd.f32 %v996, %v1128
      %v1153 = vadd.f32 %v999, %v1131
      %v1154 = vadd.f32 %v1004, %v1136
      %v1155 = vadd.f32 %v1007, %v1139
      %v1156 = vadd.f32 %v1012, %v1144
      %v1157 = vadd.f32 %v1015, %v1147
      %v1158 = vunpack.c.h.b16 %v716
      %v1159 = vunpack.c.h.b16 %v717
      %v1160 = vunpack.c.h.b16 %v718
      %v1161 = vunpack.c.h.b16 %v719
      %v1162 = vunpack.c.h.b16 %v720
      %v1163 = vunpack.c.h.b16 %v721
      %v1164 = vunpack.c.h.b16 %v722
      %v1165 = vunpack.c.h.b16 %v723
      %v1166 = vunpack.c.h.b16 %v724
      %v1167 = vpack.c.b16 %v896, %v896
      %v1168 = vpack.c.b16 %v1158, %v1158
      %v1169 = vpack.c.b16 %v766, %v766
      %v1170 = vpack.c.b16 %v1159, %v1159
      %v1171 = vpack.c.b16 %v767, %v767
      %v1172 = vpack.c.b16 %v1160, %v1160
      %v1173 = vpack.c.b16 %v768, %v768
      %v1174 = vpack.c.b16 %v1161, %v1161
      %v1175 = vpack.c.b16 %v769, %v769
      %v1176 = vpack.c.b16 %v1162, %v1162
      %v1177 = vpack.c.b16 %v770, %v770
      %v1178 = vpack.c.b16 %v1163, %v1163
      %v1179 = vpack.c.b16 %v771, %v771
      %v1180 = vpack.c.b16 %v1164, %v1164
      %v1181 = vpack.c.b16 %v772, %v772
      %v1182 = vpack.c.b16 %v1165, %v1165
      %v1183 = vpack.c.b16 %v773, %v773
      %v1184 = vpack.c.b16 %v1166, %v1166
      %vm1185 = vsmask.f32 3328
      %vm1186 = vsmask.f32 7440
      %vm1187 = vmor %vm1185, %vm1186
      %v1189 = vshrl.u32 %v1167, 16
      %v1191 = vrot.slane %v1189, 4
      %v1192 = vshll.u32 %v1167, 16
      %v1194 = vrot.slane %v1192, 5
      %v1195 = vor.u32 %v1191, %v1194
      %v1196 = vrot.slane %v1195, 4
      %v1198 = vshll.u32 %v1168, 16
      %v1200 = vrot.slane %v1198, 5
      %v1201 = vsel %vm1187, %v1196, %v1200
      %v1203 = vshrl.u32 %v1169, 16
      %v1205 = vrot.slane %v1203, 4
      %v1206 = vshll.u32 %v1169, 16
      %v1208 = vrot.slane %v1206, 5
      %v1209 = vor.u32 %v1205, %v1208
      %v1210 = vrot.slane %v1209, 4
      %v1212 = vshll.u32 %v1170, 16
      %v1214 = vrot.slane %v1212, 5
      %v1215 = vsel %vm1187, %v1210, %v1214
      %v1217 = vshrl.u32 %v1171, 16
      %v1219 = vrot.slane %v1217, 4
      %v1220 = vshll.u32 %v1171, 16
      %v1222 = vrot.slane %v1220, 5
      %v1223 = vor.u32 %v1219, %v1222
      %v1224 = vrot.slane %v1223, 4
      %v1226 = vshll.u32 %v1172, 16
      %v1228 = vrot.slane %v1226, 5
      %v1229 = vsel %vm1187, %v1224, %v1228
      %v1231 = vshrl.u32 %v1173, 16
      %v1233 = vrot.slane %v1231, 4
      %v1234 = vshll.u32 %v1173, 16
      %v1236 = vrot.slane %v1234, 5
      %v1237 = vor.u32 %v1233, %v1236
      %v1238 = vrot.slane %v1237, 4
      %v1240 = vshll.u32 %v1174, 16
      %v1242 = vrot.slane %v1240, 5
      %v1243 = vsel %vm1187, %v1238, %v1242
      %v1245 = vshrl.u32 %v1175, 16
      %v1247 = vrot.slane %v1245, 4
      %v1248 = vshll.u32 %v1175, 16
      %v1250 = vrot.slane %v1248, 5
      %v1251 = vor.u32 %v1247, %v1250
      %v1252 = vrot.slane %v1251, 4
      %v1254 = vshll.u32 %v1176, 16
      %v1256 = vrot.slane %v1254, 5
      %v1257 = vsel %vm1187, %v1252, %v1256
      %v1259 = vshrl.u32 %v1177, 16
      %v1261 = vrot.slane %v1259, 4
      %v1262 = vshll.u32 %v1177, 16
      %v1264 = vrot.slane %v1262, 5
      %v1265 = vor.u32 %v1261, %v1264
      %v1266 = vrot.slane %v1265, 4
      %v1268 = vshll.u32 %v1178, 16
      %v1270 = vrot.slane %v1268, 5
      %v1271 = vsel %vm1187, %v1266, %v1270
      %v1273 = vshrl.u32 %v1179, 16
      %v1275 = vrot.slane %v1273, 4
      %v1276 = vshll.u32 %v1179, 16
      %v1278 = vrot.slane %v1276, 5
      %v1279 = vor.u32 %v1275, %v1278
      %v1280 = vrot.slane %v1279, 4
      %v1282 = vshll.u32 %v1180, 16
      %v1284 = vrot.slane %v1282, 5
      %v1285 = vsel %vm1187, %v1280, %v1284
      %v1287 = vshrl.u32 %v1181, 16
      %v1289 = vrot.slane %v1287, 4
      %v1290 = vshll.u32 %v1181, 16
      %v1292 = vrot.slane %v1290, 5
      %v1293 = vor.u32 %v1289, %v1292
      %v1294 = vrot.slane %v1293, 4
      %v1296 = vshll.u32 %v1182, 16
      %v1298 = vrot.slane %v1296, 5
      %v1299 = vsel %vm1187, %v1294, %v1298
      %v1301 = vshrl.u32 %v1183, 16
      %v1303 = vrot.slane %v1301, 4
      %v1304 = vshll.u32 %v1183, 16
      %v1306 = vrot.slane %v1304, 5
      %v1307 = vor.u32 %v1303, %v1306
      %v1308 = vrot.slane %v1307, 4
      %v1310 = vshll.u32 %v1184, 16
      %v1312 = vrot.slane %v1310, 5
      %v1313 = vsel %vm1187, %v1308, %v1312
      %s1314 = scalar_lea.vmem %s3, 64
      %v1315 = vld [vmem:[%s1314] sm:$0xf]
      %v1316 = vld [vmem:[%s1314 + $0x4] sm:$0xf]
      %v1317 = vld [vmem:[%s1314 + $0x8] sm:$0xf]
      %v1318 = vld [vmem:[%s1314 + $0xc] sm:$0xf]
      %v1319 = vld [vmem:[%s1314 + $0x10] sm:$0xf]
      %v1320 = vld [vmem:[%s1314 + $0x14] sm:$0xf]
      %v1321 = vld [vmem:[%s1314 + $0x18] sm:$0xf]
      %v1322 = vld [vmem:[%s1314 + $0x1c] sm:$0xf]
      %v1323 = vld [vmem:[%s1314 + $0x20] sm:$0xf]
      %v1324 = vld [vmem:[%s1314 + $0x24] sm:$0xf]
      %v1325 = vld [vmem:[%s1314 + $0x28] sm:$0xf]
      %v1326 = vld [vmem:[%s1314 + $0x2c] sm:$0xf]
      %v1327 = vld [vmem:[%s1314 + $0x30] sm:$0xf]
      %v1328 = vld [vmem:[%s1314 + $0x34] sm:$0xf]
      %v1329 = vld [vmem:[%s1314 + $0x38] sm:$0xf]
      %v1330 = vld [vmem:[%s1314 + $0x3c] sm:$0xf]
      %v1331 = vunpack.c.l.b16 %v1201
      %v1332 = vunpack.c.l.b16 %v1215
      %v1333 = vunpack.c.l.b16 %v1229
      %v1334 = vunpack.c.l.b16 %v1243
      %v1335 = vunpack.c.l.b16 %v1257
      %v1336 = vunpack.c.l.b16 %v1271
      %v1337 = vunpack.c.l.b16 %v1285
      %v1338 = vunpack.c.l.b16 %v1299
      %v1339 = vpack.c.b16 %v1332, %v1331
      %v1340 = vpack.c.b16 %v1334, %v1333
      %v1341 = vpack.c.b16 %v1336, %v1335
      %v1342 = vpack.c.b16 %v1338, %v1337
      %v1363 = vunpack.c.l.b16 %v1315
      %v1364 = vunpack.c.l.b16 %v1316
      %v1365 = vunpack.c.l.b16 %v1317
      %v1366 = vunpack.c.l.b16 %v1318
      %v1367 = vunpack.c.l.b16 %v1319
      %v1368 = vunpack.c.l.b16 %v1320
      %v1369 = vunpack.c.l.b16 %v1321
      %v1370 = vunpack.c.l.b16 %v1322
      %v1371 = vunpack.c.l.b16 %v1323
      %v1372 = vunpack.c.l.b16 %v1324
      %v1373 = vunpack.c.l.b16 %v1325
      %v1374 = vunpack.c.l.b16 %v1326
      %v1375 = vunpack.c.l.b16 %v1327
      %v1376 = vunpack.c.l.b16 %v1328
      %v1377 = vunpack.c.l.b16 %v1329
      %v1378 = vunpack.c.l.b16 %v1330
      %v1379 = vpack.c.b16 %v1364, %v1363
      %v1380 = vpack.c.b16 %v1366, %v1365
      %v1381 = vpack.c.b16 %v1368, %v1367
      %v1382 = vpack.c.b16 %v1370, %v1369
      %v1383 = vpack.c.b16 %v1372, %v1371
      %v1384 = vpack.c.b16 %v1374, %v1373
      %v1385 = vpack.c.b16 %v1376, %v1375
      %v1386 = vpack.c.b16 %v1378, %v1377
      %1395 = vmatprep.subr.bf16.mxu0 0
      %1396 = vmatpush1.bf16.msra.mxu0 %v1379
      %1397 = vmatprep.subr.bf16.mxu0 0
      %1398 = vmatpush1.bf16.msra.mxu0 %v1380
      %1399 = vmatprep.subr.bf16.mxu0 0
      %1400 = vmatpush1.bf16.msra.mxu0 %v1381
      %1401 = vmatprep.subr.bf16.mxu0 0
      %1402 = vmatpush1.bf16.msra.mxu0 %v1382
      %1403 = vmatprep.subr.bf16.mxu0 0
      %1404 = vmatpush1.bf16.msra.mxu0 %v1383
      %1405 = vmatprep.subr.bf16.mxu0 0
      %1406 = vmatpush1.bf16.msra.mxu0 %v1384
      %1407 = vmatprep.subr.bf16.mxu0 0
      %1408 = vmatpush1.bf16.msra.mxu0 %v1385
      %1409 = vmatprep.subr.bf16.mxu0 0
      %1410 = vmatpush1.bf16.msra.mxu0 %v1386
      %1411 = vmatprep.subr.bf16.mxu0 0
      %1412 = vmatpush1.bf16.msra.mxu0 0
      %1413 = vmatprep.subr.bf16.mxu0 0
      %1414 = vmatpush1.bf16.msra.mxu0 0
      %1415 = vmatprep.subr.bf16.mxu0 0
      %1416 = vmatpush1.bf16.msra.mxu0 0
      %1417 = vmatprep.subr.bf16.mxu0 0
      %1418 = vmatpush1.bf16.msra.mxu0 0
      %1419 = vmatprep.subr.bf16.mxu0 0
      %1420 = vmatpush1.bf16.msra.mxu0 0
      %1421 = vmatprep.subr.bf16.mxu0 0
      %1422 = vmatpush1.bf16.msra.mxu0 0
      %1423 = vmatprep.subr.bf16.mxu0 0
      %1424 = vmatpush1.bf16.msra.mxu0 0
      %1425 = vmatprep.subr.bf16.mxu0 0
      %1426 = vmatpush1.bf16.msra.mxu0 0
      %1427 = vmatprep.mubr.bf16.mxu0 0
      %1428 = vmatmul.mubr.bf16.gmra.mrb[0].mxu0 %v1339
      %v1429 = vpop.f32.mrb[0].mxu0
      %v1430 = vadd.f32 0.0, %v1429
      %v1431 = vpop.f32.mrb[0].mxu0
      %v1432 = vpop.f32.mrb[0].mxu0
      %v1433 = vadd.f32 0.0, %v1432
      %v1434 = vpop.f32.mrb[0].mxu0
      %1435 = vmatprep.mubr.bf16.mxu0 0
      %1436 = vmatmul.mubr.bf16.gmra.mrb[0].mxu0 %v1340
      %v1437 = vpop.f32.mrb[0].mxu0
      %v1438 = vadd.f32 0.0, %v1437
      %v1439 = vpop.f32.mrb[0].mxu0
      %v1440 = vpop.f32.mrb[0].mxu0
      %v1441 = vadd.f32 0.0, %v1440
      %v1442 = vpop.f32.mrb[0].mxu0
      %1443 = vmatprep.mubr.bf16.mxu0 0
      %1444 = vmatmul.mubr.bf16.gmra.mrb[0].mxu0 %v1341
      %v1445 = vpop.f32.mrb[0].mxu0
      %v1446 = vadd.f32 0.0, %v1445
      %v1447 = vpop.f32.mrb[0].mxu0
      %v1448 = vpop.f32.mrb[0].mxu0
      %v1449 = vadd.f32 0.0, %v1448
      %v1450 = vpop.f32.mrb[0].mxu0
      %1451 = vmatprep.mubr.bf16.mxu0 0
      %1452 = vmatmul.mubr.bf16.gmra.mrb[0].mxu0 %v1342
      %v1453 = vpop.f32.mrb[0].mxu0
      %v1454 = vadd.f32 0.0, %v1453
      %v1455 = vpop.f32.mrb[0].mxu0
      %v1456 = vpop.f32.mrb[0].mxu0
      %v1457 = vadd.f32 0.0, %v1456
      %v1458 = vpop.f32.mrb[0].mxu0
      %1459 = vdwg.mxu0
      %v1460 = vadd.f32 %v1150, %v1430
      %v1461 = vadd.f32 %v1151, %v1433
      %v1462 = vadd.f32 %v1152, %v1438
      %v1463 = vadd.f32 %v1153, %v1441
      %v1464 = vadd.f32 %v1154, %v1446
      %v1465 = vadd.f32 %v1155, %v1449
      %v1466 = vadd.f32 %v1156, %v1454
      %v1467 = vadd.f32 %v1157, %v1457
      %s1468 = scalar_lea.vmem %s3, 256
      %v1469 = vld [vmem:[%s1468] sm:$0xf]
      %v1470 = vld [vmem:[%s1468 + $0x4] sm:$0xf]
      %v1471 = vld [vmem:[%s1468 + $0x8] sm:$0xf]
      %v1472 = vld [vmem:[%s1468 + $0xc] sm:$0xf]
      %v1473 = vld [vmem:[%s1468 + $0x10] sm:$0xf]
      %v1474 = vld [vmem:[%s1468 + $0x14] sm:$0xf]
      %v1475 = vld [vmem:[%s1468 + $0x18] sm:$0xf]
      %v1476 = vld [vmem:[%s1468 + $0x1c] sm:$0xf]
      %v1477 = vld [vmem:[%s1468 + $0x20] sm:$0xf]
      %v1478 = vld [vmem:[%s1468 + $0x24] sm:$0xf]
      %v1479 = vld [vmem:[%s1468 + $0x28] sm:$0xf]
      %v1480 = vld [vmem:[%s1468 + $0x2c] sm:$0xf]
      %v1481 = vld [vmem:[%s1468 + $0x30] sm:$0xf]
      %v1482 = vld [vmem:[%s1468 + $0x34] sm:$0xf]
      %v1483 = vld [vmem:[%s1468 + $0x38] sm:$0xf]
      %v1484 = vld [vmem:[%s1468 + $0x3c] sm:$0xf]
      %v1485 = vunpack.c.l.b16 %v1313
      %v1486 = vpack.c.b16 %v1333, %v1332
      %v1487 = vpack.c.b16 %v1335, %v1334
      %v1488 = vpack.c.b16 %v1337, %v1336
      %v1489 = vpack.c.b16 %v1485, %v1338
      %v1510 = vunpack.c.l.b16 %v1469
      %v1511 = vunpack.c.l.b16 %v1470
      %v1512 = vunpack.c.l.b16 %v1471
      %v1513 = vunpack.c.l.b16 %v1472
      %v1514 = vunpack.c.l.b16 %v1473
      %v1515 = vunpack.c.l.b16 %v1474
      %v1516 = vunpack.c.l.b16 %v1475
      %v1517 = vunpack.c.l.b16 %v1476
      %v1518 = vunpack.c.l.b16 %v1477
      %v1519 = vunpack.c.l.b16 %v1478
      %v1520 = vunpack.c.l.b16 %v1479
      %v1521 = vunpack.c.l.b16 %v1480
      %v1522 = vunpack.c.l.b16 %v1481
      %v1523 = vunpack.c.l.b16 %v1482
      %v1524 = vunpack.c.l.b16 %v1483
      %v1525 = vunpack.c.l.b16 %v1484
      %v1526 = vpack.c.b16 %v1511, %v1510
      %v1527 = vpack.c.b16 %v1513, %v1512
      %v1528 = vpack.c.b16 %v1515, %v1514
      %v1529 = vpack.c.b16 %v1517, %v1516
      %v1530 = vpack.c.b16 %v1519, %v1518
      %v1531 = vpack.c.b16 %v1521, %v1520
      %v1532 = vpack.c.b16 %v1523, %v1522
      %v1533 = vpack.c.b16 %v1525, %v1524
      %1542 = vmatprep.subr.bf16.mxu0 0
      %1543 = vmatpush1.bf16.msra.mxu0 %v1526
      %1544 = vmatprep.subr.bf16.mxu0 0
      %1545 = vmatpush1.bf16.msra.mxu0 %v1527
      %1546 = vmatprep.subr.bf16.mxu0 0
      %1547 = vmatpush1.bf16.msra.mxu0 %v1528
      %1548 = vmatprep.subr.bf16.mxu0 0
      %1549 = vmatpush1.bf16.msra.mxu0 %v1529
      %1550 = vmatprep.subr.bf16.mxu0 0
      %1551 = vmatpush1.bf16.msra.mxu0 %v1530
      %1552 = vmatprep.subr.bf16.mxu0 0
      %1553 = vmatpush1.bf16.msra.mxu0 %v1531
      %1554 = vmatprep.subr.bf16.mxu0 0
      %1555 = vmatpush1.bf16.msra.mxu0 %v1532
      %1556 = vmatprep.subr.bf16.mxu0 0
      %1557 = vmatpush1.bf16.msra.mxu0 %v1533
      %1558 = vmatprep.subr.bf16.mxu0 0
      %1559 = vmatpush1.bf16.msra.mxu0 0
      %1560 = vmatprep.subr.bf16.mxu0 0
      %1561 = vmatpush1.bf16.msra.mxu0 0
      %1562 = vmatprep.subr.bf16.mxu0 0
      %1563 = vmatpush1.bf16.msra.mxu0 0
      %1564 = vmatprep.subr.bf16.mxu0 0
      %1565 = vmatpush1.bf16.msra.mxu0 0
      %1566 = vmatprep.subr.bf16.mxu0 0
      %1567 = vmatpush1.bf16.msra.mxu0 0
      %1568 = vmatprep.subr.bf16.mxu0 0
      %1569 = vmatpush1.bf16.msra.mxu0 0
      %1570 = vmatprep.subr.bf16.mxu0 0
      %1571 = vmatpush1.bf16.msra.mxu0 0
      %1572 = vmatprep.subr.bf16.mxu0 0
      %1573 = vmatpush1.bf16.msra.mxu0 0
      %1574 = vmatprep.mubr.bf16.mxu0 0
      %1575 = vmatmul.mubr.bf16.gmra.mrb[0].mxu0 %v1486
      %v1576 = vpop.f32.mrb[0].mxu0
      %v1577 = vadd.f32 0.0, %v1576
      %v1578 = vpop.f32.mrb[0].mxu0
      %v1579 = vpop.f32.mrb[0].mxu0
      %v1580 = vadd.f32 0.0, %v1579
      %v1581 = vpop.f32.mrb[0].mxu0
      %1582 = vmatprep.mubr.bf16.mxu0 0
      %1583 = vmatmul.mubr.bf16.gmra.mrb[0].mxu0 %v1487
      %v1584 = vpop.f32.mrb[0].mxu0
      %v1585 = vadd.f32 0.0, %v1584
      %v1586 = vpop.f32.mrb[0].mxu0
      %v1587 = vpop.f32.mrb[0].mxu0
      %v1588 = vadd.f32 0.0, %v1587
      %v1589 = vpop.f32.mrb[0].mxu0
      %1590 = vmatprep.mubr.bf16.mxu0 0
      %1591 = vmatmul.mubr.bf16.gmra.mrb[0].mxu0 %v1488
      %v1592 = vpop.f32.mrb[0].mxu0
      %v1593 = vadd.f32 0.0, %v1592
      %v1594 = vpop.f32.mrb[0].mxu0
      %v1595 = vpop.f32.mrb[0].mxu0
      %v1596 = vadd.f32 0.0, %v1595
      %v1597 = vpop.f32.mrb[0].mxu0
      %1598 = vmatprep.mubr.bf16.mxu0 0
      %1599 = vmatmul.mubr.bf16.gmra.mrb[0].mxu0 %v1489
      %v1600 = vpop.f32.mrb[0].mxu0
      %v1601 = vadd.f32 0.0, %v1600
      %v1602 = vpop.f32.mrb[0].mxu0
      %v1603 = vpop.f32.mrb[0].mxu0
      %v1604 = vadd.f32 0.0, %v1603
      %v1605 = vpop.f32.mrb[0].mxu0
      %1606 = vdwg.mxu0
      %v1607 = vadd.f32 %v1460, %v1577
      %v1608 = vadd.f32 %v1461, %v1580
      %v1609 = vadd.f32 %v1462, %v1585
      %v1610 = vadd.f32 %v1463, %v1588
      %v1611 = vadd.f32 %v1464, %v1593
      %v1612 = vadd.f32 %v1465, %v1596
      %v1613 = vadd.f32 %v1466, %v1601
      %v1614 = vadd.f32 %v1467, %v1604
      %s1615 = scalar_lea.vmem %s3, 448
      %v1616 = vld [vmem:[%s1615] sm:$0xf]
      %v1617 = vld [vmem:[%s1615 + $0x4] sm:$0xf]
      %v1618 = vld [vmem:[%s1615 + $0x8] sm:$0xf]
      %v1619 = vld [vmem:[%s1615 + $0xc] sm:$0xf]
      %v1620 = vld [vmem:[%s1615 + $0x10] sm:$0xf]
      %v1621 = vld [vmem:[%s1615 + $0x14] sm:$0xf]
      %v1622 = vld [vmem:[%s1615 + $0x18] sm:$0xf]
      %v1623 = vld [vmem:[%s1615 + $0x1c] sm:$0xf]
      %v1624 = vld [vmem:[%s1615 + $0x20] sm:$0xf]
      %v1625 = vld [vmem:[%s1615 + $0x24] sm:$0xf]
      %v1626 = vld [vmem:[%s1615 + $0x28] sm:$0xf]
      %v1627 = vld [vmem:[%s1615 + $0x2c] sm:$0xf]
      %v1628 = vld [vmem:[%s1615 + $0x30] sm:$0xf]
      %v1629 = vld [vmem:[%s1615 + $0x34] sm:$0xf]
      %v1630 = vld [vmem:[%s1615 + $0x38] sm:$0xf]
      %v1631 = vld [vmem:[%s1615 + $0x3c] sm:$0xf]
      %v1632 = vpack.c.b16 %v1331, %v1485
      %v1650 = vunpack.c.l.b16 %v1616
      %v1651 = vunpack.c.l.b16 %v1617
      %v1652 = vunpack.c.l.b16 %v1618
      %v1653 = vunpack.c.l.b16 %v1619
      %v1654 = vunpack.c.l.b16 %v1620
      %v1655 = vunpack.c.l.b16 %v1621
      %v1656 = vunpack.c.l.b16 %v1622
      %v1657 = vunpack.c.l.b16 %v1623
      %v1658 = vunpack.c.l.b16 %v1624
      %v1659 = vunpack.c.l.b16 %v1625
      %v1660 = vunpack.c.l.b16 %v1626
      %v1661 = vunpack.c.l.b16 %v1627
      %v1662 = vunpack.c.l.b16 %v1628
      %v1663 = vunpack.c.l.b16 %v1629
      %v1664 = vunpack.c.l.b16 %v1630
      %v1665 = vunpack.c.l.b16 %v1631
      %v1666 = vpack.c.b16 %v1651, %v1650
      %v1667 = vpack.c.b16 %v1653, %v1652
      %v1668 = vpack.c.b16 %v1655, %v1654
      %v1669 = vpack.c.b16 %v1657, %v1656
      %v1670 = vpack.c.b16 %v1659, %v1658
      %v1671 = vpack.c.b16 %v1661, %v1660
      %v1672 = vpack.c.b16 %v1663, %v1662
      %v1673 = vpack.c.b16 %v1665, %v1664
      %1682 = vmatprep.subr.bf16.mxu0 0
      %1683 = vmatpush1.bf16.msra.mxu0 %v1666
      %1684 = vmatprep.subr.bf16.mxu0 0
      %1685 = vmatpush1.bf16.msra.mxu0 %v1667
      %1686 = vmatprep.subr.bf16.mxu0 0
      %1687 = vmatpush1.bf16.msra.mxu0 %v1668
      %1688 = vmatprep.subr.bf16.mxu0 0
      %1689 = vmatpush1.bf16.msra.mxu0 %v1669
      %1690 = vmatprep.subr.bf16.mxu0 0
      %1691 = vmatpush1.bf16.msra.mxu0 %v1670
      %1692 = vmatprep.subr.bf16.mxu0 0
      %1693 = vmatpush1.bf16.msra.mxu0 %v1671
      %1694 = vmatprep.subr.bf16.mxu0 0
      %1695 = vmatpush1.bf16.msra.mxu0 %v1672
      %1696 = vmatprep.subr.bf16.mxu0 0
      %1697 = vmatpush1.bf16.msra.mxu0 %v1673
      %1698 = vmatprep.subr.bf16.mxu0 0
      %1699 = vmatpush1.bf16.msra.mxu0 0
      %1700 = vmatprep.subr.bf16.mxu0 0
      %1701 = vmatpush1.bf16.msra.mxu0 0
      %1702 = vmatprep.subr.bf16.mxu0 0
      %1703 = vmatpush1.bf16.msra.mxu0 0
      %1704 = vmatprep.subr.bf16.mxu0 0
      %1705 = vmatpush1.bf16.msra.mxu0 0
      %1706 = vmatprep.subr.bf16.mxu0 0
      %1707 = vmatpush1.bf16.msra.mxu0 0
      %1708 = vmatprep.subr.bf16.mxu0 0
      %1709 = vmatpush1.bf16.msra.mxu0 0
      %1710 = vmatprep.subr.bf16.mxu0 0
      %1711 = vmatpush1.bf16.msra.mxu0 0
      %1712 = vmatprep.subr.bf16.mxu0 0
      %1713 = vmatpush1.bf16.msra.mxu0 0
      %1714 = vmatprep.mubr.bf16.mxu0 0
      %1715 = vmatmul.mubr.bf16.gmra.mrb[0].mxu0 %v1340
      %v1716 = vpop.f32.mrb[0].mxu0
      %v1717 = vadd.f32 0.0, %v1716
      %v1718 = vpop.f32.mrb[0].mxu0
      %v1719 = vpop.f32.mrb[0].mxu0
      %v1720 = vadd.f32 0.0, %v1719
      %v1721 = vpop.f32.mrb[0].mxu0
      %1722 = vmatprep.mubr.bf16.mxu0 0
      %1723 = vmatmul.mubr.bf16.gmra.mrb[0].mxu0 %v1341
      %v1724 = vpop.f32.mrb[0].mxu0
      %v1725 = vadd.f32 0.0, %v1724
      %v1726 = vpop.f32.mrb[0].mxu0
      %v1727 = vpop.f32.mrb[0].mxu0
      %v1728 = vadd.f32 0.0, %v1727
      %v1729 = vpop.f32.mrb[0].mxu0
      %1730 = vmatprep.mubr.bf16.mxu0 0
      %1731 = vmatmul.mubr.bf16.gmra.mrb[0].mxu0 %v1342
      %v1732 = vpop.f32.mrb[0].mxu0
      %v1733 = vadd.f32 0.0, %v1732
      %v1734 = vpop.f32.mrb[0].mxu0
      %v1735 = vpop.f32.mrb[0].mxu0
      %v1736 = vadd.f32 0.0, %v1735
      %v1737 = vpop.f32.mrb[0].mxu0
      %1738 = vmatprep.mubr.bf16.mxu0 0
      %1739 = vmatmul.mubr.bf16.gmra.mrb[0].mxu0 %v1632
      %v1740 = vpop.f32.mrb[0].mxu0
      %v1741 = vadd.f32 0.0, %v1740
      %v1742 = vpop.f32.mrb[0].mxu0
      %v1743 = vpop.f32.mrb[0].mxu0
      %v1744 = vadd.f32 0.0, %v1743
      %v1745 = vpop.f32.mrb[0].mxu0
      %1746 = vdwg.mxu0
      %v1747 = vadd.f32 %v1607, %v1717
      %v1748 = vadd.f32 %v1608, %v1720
      %v1749 = vadd.f32 %v1609, %v1725
      %v1750 = vadd.f32 %v1610, %v1728
      %v1751 = vadd.f32 %v1611, %v1733
      %v1752 = vadd.f32 %v1612, %v1736
      %v1753 = vadd.f32 %v1613, %v1741
      %v1754 = vadd.f32 %v1614, %v1744
      %vm1755 = vcmask 1042432
      %vm1756 = vcmask 1046532
      %vm1757 = vmor %vm1755, %vm1756
      %v1758 = vrot.slane %v1167, 5
      %v1759 = vrot.slane %v1758, 4
      %v1760 = vrot.slane %v1168, 5
      %v1761 = vsel %vm1757, %v1759, %v1760
      %v1762 = vrot.slane %v1169, 5
      %v1763 = vrot.slane %v1762, 4
      %v1764 = vrot.slane %v1170, 5
      %v1765 = vsel %vm1757, %v1763, %v1764
      %v1766 = vrot.slane %v1171, 5
      %v1767 = vrot.slane %v1766, 4
      %v1768 = vrot.slane %v1172, 5
      %v1769 = vsel %vm1757, %v1767, %v1768
      %v1770 = vrot.slane %v1173, 5
      %v1771 = vrot.slane %v1770, 4
      %v1772 = vrot.slane %v1174, 5
      %v1773 = vsel %vm1757, %v1771, %v1772
      %v1774 = vrot.slane %v1175, 5
      %v1775 = vrot.slane %v1774, 4
      %v1776 = vrot.slane %v1176, 5
      %v1777 = vsel %vm1757, %v1775, %v1776
      %v1778 = vrot.slane %v1177, 5
      %v1779 = vrot.slane %v1778, 4
      %v1780 = vrot.slane %v1178, 5
      %v1781 = vsel %vm1757, %v1779, %v1780
      %v1782 = vrot.slane %v1179, 5
      %v1783 = vrot.slane %v1782, 4
      %v1784 = vrot.slane %v1180, 5
      %v1785 = vsel %vm1757, %v1783, %v1784
      %v1786 = vrot.slane %v1181, 5
      %v1787 = vrot.slane %v1786, 4
      %v1788 = vrot.slane %v1182, 5
      %v1789 = vsel %vm1757, %v1787, %v1788
      %v1790 = vrot.slane %v1183, 5
      %v1791 = vrot.slane %v1790, 4
      %v1792 = vrot.slane %v1184, 5
      %v1793 = vsel %vm1757, %v1791, %v1792
      %s1794 = scalar_lea.vmem %s3, 128
      %v1795 = vld [vmem:[%s1794] sm:$0xf]
      %v1796 = vld [vmem:[%s1794 + $0x4] sm:$0xf]
      %v1797 = vld [vmem:[%s1794 + $0x8] sm:$0xf]
      %v1798 = vld [vmem:[%s1794 + $0xc] sm:$0xf]
      %v1799 = vld [vmem:[%s1794 + $0x10] sm:$0xf]
      %v1800 = vld [vmem:[%s1794 + $0x14] sm:$0xf]
      %v1801 = vld [vmem:[%s1794 + $0x18] sm:$0xf]
      %v1802 = vld [vmem:[%s1794 + $0x1c] sm:$0xf]
      %v1803 = vld [vmem:[%s1794 + $0x20] sm:$0xf]
      %v1804 = vld [vmem:[%s1794 + $0x24] sm:$0xf]
      %v1805 = vld [vmem:[%s1794 + $0x28] sm:$0xf]
      %v1806 = vld [vmem:[%s1794 + $0x2c] sm:$0xf]
      %v1807 = vld [vmem:[%s1794 + $0x30] sm:$0xf]
      %v1808 = vld [vmem:[%s1794 + $0x34] sm:$0xf]
      %v1809 = vld [vmem:[%s1794 + $0x38] sm:$0xf]
      %v1810 = vld [vmem:[%s1794 + $0x3c] sm:$0xf]
      %v1811 = vunpack.c.l.b16 %v1761
      %v1812 = vunpack.c.l.b16 %v1765
      %v1813 = vunpack.c.l.b16 %v1769
      %v1814 = vunpack.c.l.b16 %v1773
      %v1815 = vunpack.c.l.b16 %v1777
      %v1816 = vunpack.c.l.b16 %v1781
      %v1817 = vunpack.c.l.b16 %v1785
      %v1818 = vunpack.c.l.b16 %v1789
      %v1819 = vpack.c.b16 %v1812, %v1811
      %v1820 = vpack.c.b16 %v1814, %v1813
      %v1821 = vpack.c.b16 %v1816, %v1815
      %v1822 = vpack.c.b16 %v1818, %v1817
      %v1843 = vunpack.c.l.b16 %v1795
      %v1844 = vunpack.c.l.b16 %v1796
      %v1845 = vunpack.c.l.b16 %v1797
      %v1846 = vunpack.c.l.b16 %v1798
      %v1847 = vunpack.c.l.b16 %v1799
      %v1848 = vunpack.c.l.b16 %v1800
      %v1849 = vunpack.c.l.b16 %v1801
      %v1850 = vunpack.c.l.b16 %v1802
      %v1851 = vunpack.c.l.b16 %v1803
      %v1852 = vunpack.c.l.b16 %v1804
      %v1853 = vunpack.c.l.b16 %v1805
      %v1854 = vunpack.c.l.b16 %v1806
      %v1855 = vunpack.c.l.b16 %v1807
      %v1856 = vunpack.c.l.b16 %v1808
      %v1857 = vunpack.c.l.b16 %v1809
      %v1858 = vunpack.c.l.b16 %v1810
      %v1859 = vpack.c.b16 %v1844, %v1843
      %v1860 = vpack.c.b16 %v1846, %v1845
      %v1861 = vpack.c.b16 %v1848, %v1847
      %v1862 = vpack.c.b16 %v1850, %v1849
      %v1863 = vpack.c.b16 %v1852, %v1851
      %v1864 = vpack.c.b16 %v1854, %v1853
      %v1865 = vpack.c.b16 %v1856, %v1855
      %v1866 = vpack.c.b16 %v1858, %v1857
      %1875 = vmatprep.subr.bf16.mxu0 0
      %1876 = vmatpush1.bf16.msra.mxu0 %v1859
      %1877 = vmatprep.subr.bf16.mxu0 0
      %1878 = vmatpush1.bf16.msra.mxu0 %v1860
      %1879 = vmatprep.subr.bf16.mxu0 0
      %1880 = vmatpush1.bf16.msra.mxu0 %v1861
      %1881 = vmatprep.subr.bf16.mxu0 0
      %1882 = vmatpush1.bf16.msra.mxu0 %v1862
      %1883 = vmatprep.subr.bf16.mxu0 0
      %1884 = vmatpush1.bf16.msra.mxu0 %v1863
      %1885 = vmatprep.subr.bf16.mxu0 0
      %1886 = vmatpush1.bf16.msra.mxu0 %v1864
      %1887 = vmatprep.subr.bf16.mxu0 0
      %1888 = vmatpush1.bf16.msra.mxu0 %v1865
      %1889 = vmatprep.subr.bf16.mxu0 0
      %1890 = vmatpush1.bf16.msra.mxu0 %v1866
      %1891 = vmatprep.subr.bf16.mxu0 0
      %1892 = vmatpush1.bf16.msra.mxu0 0
      %1893 = vmatprep.subr.bf16.mxu0 0
      %1894 = vmatpush1.bf16.msra.mxu0 0
      %1895 = vmatprep.subr.bf16.mxu0 0
      %1896 = vmatpush1.bf16.msra.mxu0 0
      %1897 = vmatprep.subr.bf16.mxu0 0
      %1898 = vmatpush1.bf16.msra.mxu0 0
      %1899 = vmatprep.subr.bf16.mxu0 0
      %1900 = vmatpush1.bf16.msra.mxu0 0
      %1901 = vmatprep.subr.bf16.mxu0 0
      %1902 = vmatpush1.bf16.msra.mxu0 0
      %1903 = vmatprep.subr.bf16.mxu0 0
      %1904 = vmatpush1.bf16.msra.mxu0 0
      %1905 = vmatprep.subr.bf16.mxu0 0
      %1906 = vmatpush1.bf16.msra.mxu0 0
      %1907 = vmatprep.mubr.bf16.mxu0 0
      %1908 = vmatmul.mubr.bf16.gmra.mrb[0].mxu0 %v1819
      %v1909 = vpop.f32.mrb[0].mxu0
      %v1910 = vadd.f32 0.0, %v1909
      %v1911 = vpop.f32.mrb[0].mxu0
      %v1912 = vpop.f32.mrb[0].mxu0
      %v1913 = vadd.f32 0.0, %v1912
      %v1914 = vpop.f32.mrb[0].mxu0
      %1915 = vmatprep.mubr.bf16.mxu0 0
      %1916 = vmatmul.mubr.bf16.gmra.mrb[0].mxu0 %v1820
      %v1917 = vpop.f32.mrb[0].mxu0
      %v1918 = vadd.f32 0.0, %v1917
      %v1919 = vpop.f32.mrb[0].mxu0
      %v1920 = vpop.f32.mrb[0].mxu0
      %v1921 = vadd.f32 0.0, %v1920
      %v1922 = vpop.f32.mrb[0].mxu0
      %1923 = vmatprep.mubr.bf16.mxu0 0
      %1924 = vmatmul.mubr.bf16.gmra.mrb[0].mxu0 %v1821
      %v1925 = vpop.f32.mrb[0].mxu0
      %v1926 = vadd.f32 0.0, %v1925
      %v1927 = vpop.f32.mrb[0].mxu0
      %v1928 = vpop.f32.mrb[0].mxu0
      %v1929 = vadd.f32 0.0, %v1928
      %v1930 = vpop.f32.mrb[0].mxu0
      %1931 = vmatprep.mubr.bf16.mxu0 0
      %1932 = vmatmul.mubr.bf16.gmra.mrb[0].mxu0 %v1822
      %v1933 = vpop.f32.mrb[0].mxu0
      %v1934 = vadd.f32 0.0, %v1933
      %v1935 = vpop.f32.mrb[0].mxu0
      %v1936 = vpop.f32.mrb[0].mxu0
      %v1937 = vadd.f32 0.0, %v1936
      %v1938 = vpop.f32.mrb[0].mxu0
      %1939 = vdwg.mxu0
      %v1940 = vadd.f32 %v1747, %v1910
      %v1941 = vadd.f32 %v1748, %v1913
      %v1942 = vadd.f32 %v1749, %v1918
      %v1943 = vadd.f32 %v1750, %v1921
      %v1944 = vadd.f32 %v1751, %v1926
      %v1945 = vadd.f32 %v1752, %v1929
      %v1946 = vadd.f32 %v1753, %v1934
      %v1947 = vadd.f32 %v1754, %v1937
      %s1948 = scalar_lea.vmem %s3, 320
      %v1949 = vld [vmem:[%s1948] sm:$0xf]
      %v1950 = vld [vmem:[%s1948 + $0x4] sm:$0xf]
      %v1951 = vld [vmem:[%s1948 + $0x8] sm:$0xf]
      %v1952 = vld [vmem:[%s1948 + $0xc] sm:$0xf]
      %v1953 = vld [vmem:[%s1948 + $0x10] sm:$0xf]
      %v1954 = vld [vmem:[%s1948 + $0x14] sm:$0xf]
      %v1955 = vld [vmem:[%s1948 + $0x18] sm:$0xf]
      %v1956 = vld [vmem:[%s1948 + $0x1c] sm:$0xf]
      %v1957 = vld [vmem:[%s1948 + $0x20] sm:$0xf]
      %v1958 = vld [vmem:[%s1948 + $0x24] sm:$0xf]
      %v1959 = vld [vmem:[%s1948 + $0x28] sm:$0xf]
      %v1960 = vld [vmem:[%s1948 + $0x2c] sm:$0xf]
      %v1961 = vld [vmem:[%s1948 + $0x30] sm:$0xf]
      %v1962 = vld [vmem:[%s1948 + $0x34] sm:$0xf]
      %v1963 = vld [vmem:[%s1948 + $0x38] sm:$0xf]
      %v1964 = vld [vmem:[%s1948 + $0x3c] sm:$0xf]
      %v1965 = vunpack.c.l.b16 %v1793
      %v1966 = vpack.c.b16 %v1813, %v1812
      %v1967 = vpack.c.b16 %v1815, %v1814
      %v1968 = vpack.c.b16 %v1817, %v1816
      %v1969 = vpack.c.b16 %v1965, %v1818
      %v1990 = vunpack.c.l.b16 %v1949
      %v1991 = vunpack.c.l.b16 %v1950
      %v1992 = vunpack.c.l.b16 %v1951
      %v1993 = vunpack.c.l.b16 %v1952
      %v1994 = vunpack.c.l.b16 %v1953
      %v1995 = vunpack.c.l.b16 %v1954
      %v1996 = vunpack.c.l.b16 %v1955
      %v1997 = vunpack.c.l.b16 %v1956
      %v1998 = vunpack.c.l.b16 %v1957
      %v1999 = vunpack.c.l.b16 %v1958
      %v2000 = vunpack.c.l.b16 %v1959
      %v2001 = vunpack.c.l.b16 %v1960
      %v2002 = vunpack.c.l.b16 %v1961
      %v2003 = vunpack.c.l.b16 %v1962
      %v2004 = vunpack.c.l.b16 %v1963
      %v2005 = vunpack.c.l.b16 %v1964
      %v2006 = vpack.c.b16 %v1991, %v1990
      %v2007 = vpack.c.b16 %v1993, %v1992
      %v2008 = vpack.c.b16 %v1995, %v1994
      %v2009 = vpack.c.b16 %v1997, %v1996
      %v2010 = vpack.c.b16 %v1999, %v1998
      %v2011 = vpack.c.b16 %v2001, %v2000
      %v2012 = vpack.c.b16 %v2003, %v2002
      %v2013 = vpack.c.b16 %v2005, %v2004
      %2022 = vmatprep.subr.bf16.mxu0 0
      %2023 = vmatpush1.bf16.msra.mxu0 %v2006
      %2024 = vmatprep.subr.bf16.mxu0 0
      %2025 = vmatpush1.bf16.msra.mxu0 %v2007
      %2026 = vmatprep.subr.bf16.mxu0 0
      %2027 = vmatpush1.bf16.msra.mxu0 %v2008
      %2028 = vmatprep.subr.bf16.mxu0 0
      %2029 = vmatpush1.bf16.msra.mxu0 %v2009
      %2030 = vmatprep.subr.bf16.mxu0 0
      %2031 = vmatpush1.bf16.msra.mxu0 %v2010
      %2032 = vmatprep.subr.bf16.mxu0 0
      %2033 = vmatpush1.bf16.msra.mxu0 %v2011
      %2034 = vmatprep.subr.bf16.mxu0 0
      %2035 = vmatpush1.bf16.msra.mxu0 %v2012
      %2036 = vmatprep.subr.bf16.mxu0 0
      %2037 = vmatpush1.bf16.msra.mxu0 %v2013
      %2038 = vmatprep.subr.bf16.mxu0 0
      %2039 = vmatpush1.bf16.msra.mxu0 0
      %2040 = vmatprep.subr.bf16.mxu0 0
      %2041 = vmatpush1.bf16.msra.mxu0 0
      %2042 = vmatprep.subr.bf16.mxu0 0
      %2043 = vmatpush1.bf16.msra.mxu0 0
      %2044 = vmatprep.subr.bf16.mxu0 0
      %2045 = vmatpush1.bf16.msra.mxu0 0
      %2046 = vmatprep.subr.bf16.mxu0 0
      %2047 = vmatpush1.bf16.msra.mxu0 0
      %2048 = vmatprep.subr.bf16.mxu0 0
      %2049 = vmatpush1.bf16.msra.mxu0 0
      %2050 = vmatprep.subr.bf16.mxu0 0
      %2051 = vmatpush1.bf16.msra.mxu0 0
      %2052 = vmatprep.subr.bf16.mxu0 0
      %2053 = vmatpush1.bf16.msra.mxu0 0
      %2054 = vmatprep.mubr.bf16.mxu0 0
      %2055 = vmatmul.mubr.bf16.gmra.mrb[0].mxu0 %v1966
      %v2056 = vpop.f32.mrb[0].mxu0
      %v2057 = vadd.f32 0.0, %v2056
      %v2058 = vpop.f32.mrb[0].mxu0
      %v2059 = vpop.f32.mrb[0].mxu0
      %v2060 = vadd.f32 0.0, %v2059
      %v2061 = vpop.f32.mrb[0].mxu0
      %2062 = vmatprep.mubr.bf16.mxu0 0
      %2063 = vmatmul.mubr.bf16.gmra.mrb[0].mxu0 %v1967
      %v2064 = vpop.f32.mrb[0].mxu0
      %v2065 = vadd.f32 0.0, %v2064
      %v2066 = vpop.f32.mrb[0].mxu0
      %v2067 = vpop.f32.mrb[0].mxu0
      %v2068 = vadd.f32 0.0, %v2067
      %v2069 = vpop.f32.mrb[0].mxu0
      %2070 = vmatprep.mubr.bf16.mxu0 0
      %2071 = vmatmul.mubr.bf16.gmra.mrb[0].mxu0 %v1968
      %v2072 = vpop.f32.mrb[0].mxu0
      %v2073 = vadd.f32 0.0, %v2072
      %v2074 = vpop.f32.mrb[0].mxu0
      %v2075 = vpop.f32.mrb[0].mxu0
      %v2076 = vadd.f32 0.0, %v2075
      %v2077 = vpop.f32.mrb[0].mxu0
      %2078 = vmatprep.mubr.bf16.mxu0 0
      %2079 = vmatmul.mubr.bf16.gmra.mrb[0].mxu0 %v1969
      %v2080 = vpop.f32.mrb[0].mxu0
      %v2081 = vadd.f32 0.0, %v2080
      %v2082 = vpop.f32.mrb[0].mxu0
      %v2083 = vpop.f32.mrb[0].mxu0
      %v2084 = vadd.f32 0.0, %v2083
      %v2085 = vpop.f32.mrb[0].mxu0
      %2086 = vdwg.mxu0
      %v2087 = vadd.f32 %v1940, %v2057
      %v2088 = vadd.f32 %v1941, %v2060
      %v2089 = vadd.f32 %v1942, %v2065
      %v2090 = vadd.f32 %v1943, %v2068
      %v2091 = vadd.f32 %v1944, %v2073
      %v2092 = vadd.f32 %v1945, %v2076
      %v2093 = vadd.f32 %v1946, %v2081
      %v2094 = vadd.f32 %v1947, %v2084
      %s2095 = scalar_lea.vmem %s3, 512
      %v2096 = vld [vmem:[%s2095] sm:$0xf]
      %v2097 = vld [vmem:[%s2095 + $0x4] sm:$0xf]
      %v2098 = vld [vmem:[%s2095 + $0x8] sm:$0xf]
      %v2099 = vld [vmem:[%s2095 + $0xc] sm:$0xf]
      %v2100 = vld [vmem:[%s2095 + $0x10] sm:$0xf]
      %v2101 = vld [vmem:[%s2095 + $0x14] sm:$0xf]
      %v2102 = vld [vmem:[%s2095 + $0x18] sm:$0xf]
      %v2103 = vld [vmem:[%s2095 + $0x1c] sm:$0xf]
      %v2104 = vld [vmem:[%s2095 + $0x20] sm:$0xf]
      %v2105 = vld [vmem:[%s2095 + $0x24] sm:$0xf]
      %v2106 = vld [vmem:[%s2095 + $0x28] sm:$0xf]
      %v2107 = vld [vmem:[%s2095 + $0x2c] sm:$0xf]
      %v2108 = vld [vmem:[%s2095 + $0x30] sm:$0xf]
      %v2109 = vld [vmem:[%s2095 + $0x34] sm:$0xf]
      %v2110 = vld [vmem:[%s2095 + $0x38] sm:$0xf]
      %v2111 = vld [vmem:[%s2095 + $0x3c] sm:$0xf]
      %v2112 = vpack.c.b16 %v1811, %v1965
      %v2130 = vunpack.c.l.b16 %v2096
      %v2131 = vunpack.c.l.b16 %v2097
      %v2132 = vunpack.c.l.b16 %v2098
      %v2133 = vunpack.c.l.b16 %v2099
      %v2134 = vunpack.c.l.b16 %v2100
      %v2135 = vunpack.c.l.b16 %v2101
      %v2136 = vunpack.c.l.b16 %v2102
      %v2137 = vunpack.c.l.b16 %v2103
      %v2138 = vunpack.c.l.b16 %v2104
      %v2139 = vunpack.c.l.b16 %v2105
      %v2140 = vunpack.c.l.b16 %v2106
      %v2141 = vunpack.c.l.b16 %v2107
      %v2142 = vunpack.c.l.b16 %v2108
      %v2143 = vunpack.c.l.b16 %v2109
      %v2144 = vunpack.c.l.b16 %v2110
      %v2145 = vunpack.c.l.b16 %v2111
      %v2146 = vpack.c.b16 %v2131, %v2130
      %v2147 = vpack.c.b16 %v2133, %v2132
      %v2148 = vpack.c.b16 %v2135, %v2134
      %v2149 = vpack.c.b16 %v2137, %v2136
      %v2150 = vpack.c.b16 %v2139, %v2138
      %v2151 = vpack.c.b16 %v2141, %v2140
      %v2152 = vpack.c.b16 %v2143, %v2142
      %v2153 = vpack.c.b16 %v2145, %v2144
      %2162 = vmatprep.subr.bf16.mxu0 0
      %2163 = vmatpush1.bf16.msra.mxu0 %v2146
      %2164 = vmatprep.subr.bf16.mxu0 0
      %2165 = vmatpush1.bf16.msra.mxu0 %v2147
      %2166 = vmatprep.subr.bf16.mxu0 0
      %2167 = vmatpush1.bf16.msra.mxu0 %v2148
      %2168 = vmatprep.subr.bf16.mxu0 0
      %2169 = vmatpush1.bf16.msra.mxu0 %v2149
      %2170 = vmatprep.subr.bf16.mxu0 0
      %2171 = vmatpush1.bf16.msra.mxu0 %v2150
      %2172 = vmatprep.subr.bf16.mxu0 0
      %2173 = vmatpush1.bf16.msra.mxu0 %v2151
      %2174 = vmatprep.subr.bf16.mxu0 0
      %2175 = vmatpush1.bf16.msra.mxu0 %v2152
      %2176 = vmatprep.subr.bf16.mxu0 0
      %2177 = vmatpush1.bf16.msra.mxu0 %v2153
      %2178 = vmatprep.subr.bf16.mxu0 0
      %2179 = vmatpush1.bf16.msra.mxu0 0
      %2180 = vmatprep.subr.bf16.mxu0 0
      %2181 = vmatpush1.bf16.msra.mxu0 0
      %2182 = vmatprep.subr.bf16.mxu0 0
      %2183 = vmatpush1.bf16.msra.mxu0 0
      %2184 = vmatprep.subr.bf16.mxu0 0
      %2185 = vmatpush1.bf16.msra.mxu0 0
      %2186 = vmatprep.subr.bf16.mxu0 0
      %2187 = vmatpush1.bf16.msra.mxu0 0
      %2188 = vmatprep.subr.bf16.mxu0 0
      %2189 = vmatpush1.bf16.msra.mxu0 0
      %2190 = vmatprep.subr.bf16.mxu0 0
      %2191 = vmatpush1.bf16.msra.mxu0 0
      %2192 = vmatprep.subr.bf16.mxu0 0
      %2193 = vmatpush1.bf16.msra.mxu0 0
      %2194 = vmatprep.mubr.bf16.mxu0 0
      %2195 = vmatmul.mubr.bf16.gmra.mrb[0].mxu0 %v1820
      %v2196 = vpop.f32.mrb[0].mxu0
      %v2197 = vadd.f32 0.0, %v2196
      %v2198 = vpop.f32.mrb[0].mxu0
      %v2199 = vpop.f32.mrb[0].mxu0
      %v2200 = vadd.f32 0.0, %v2199
      %v2201 = vpop.f32.mrb[0].mxu0
      %2202 = vmatprep.mubr.bf16.mxu0 0
      %2203 = vmatmul.mubr.bf16.gmra.mrb[0].mxu0 %v1821
      %v2204 = vpop.f32.mrb[0].mxu0
      %v2205 = vadd.f32 0.0, %v2204
      %v2206 = vpop.f32.mrb[0].mxu0
      %v2207 = vpop.f32.mrb[0].mxu0
      %v2208 = vadd.f32 0.0, %v2207
      %v2209 = vpop.f32.mrb[0].mxu0
      %2210 = vmatprep.mubr.bf16.mxu0 0
      %2211 = vmatmul.mubr.bf16.gmra.mrb[0].mxu0 %v1822
      %v2212 = vpop.f32.mrb[0].mxu0
      %v2213 = vadd.f32 0.0, %v2212
      %v2214 = vpop.f32.mrb[0].mxu0
      %v2215 = vpop.f32.mrb[0].mxu0
      %v2216 = vadd.f32 0.0, %v2215
      %v2217 = vpop.f32.mrb[0].mxu0
      %2218 = vmatprep.mubr.bf16.mxu0 0
      %2219 = vmatmul.mubr.bf16.gmra.mrb[0].mxu0 %v2112
      %v2220 = vpop.f32.mrb[0].mxu0
      %v2221 = vadd.f32 0.0, %v2220
      %v2222 = vpop.f32.mrb[0].mxu0
      %v2223 = vpop.f32.mrb[0].mxu0
      %v2224 = vadd.f32 0.0, %v2223
      %v2225 = vpop.f32.mrb[0].mxu0
      %2226 = vdwg.mxu0
      %v2227 = vadd.f32 %v2087, %v2197
      %v2228 = vadd.f32 %v2088, %v2200
      %v2229 = vadd.f32 %v2089, %v2205
      %v2230 = vadd.f32 %v2090, %v2208
      %v2231 = vadd.f32 %v2091, %v2213
      %v2232 = vadd.f32 %v2092, %v2216
      %v2233 = vadd.f32 %v2093, %v2221
      %v2234 = vadd.f32 %v2094, %v2224
      %v2236 = vshrl.u32 %v561, 16
      %v2238 = vrot.slane %v2236, 7
      %v2239 = vshll.u32 %v561, 16
      %v2241 = vor.u32 %v2238, %v2239
      %v2243 = vshrl.u32 %v562, 16
      %v2245 = vrot.slane %v2243, 7
      %v2246 = vshll.u32 %v562, 16
      %v2248 = vor.u32 %v2245, %v2246
      %v2250 = vshrl.u32 %v563, 16
      %v2252 = vrot.slane %v2250, 7
      %v2253 = vshll.u32 %v563, 16
      %v2255 = vor.u32 %v2252, %v2253
      %v2257 = vshrl.u32 %v564, 16
      %v2259 = vrot.slane %v2257, 7
      %v2260 = vshll.u32 %v564, 16
      %v2262 = vor.u32 %v2259, %v2260
      %v2264 = vshrl.u32 %v565, 16
      %v2266 = vrot.slane %v2264, 7
      %v2267 = vshll.u32 %v565, 16
      %v2269 = vor.u32 %v2266, %v2267
      %v2271 = vshrl.u32 %v566, 16
      %v2273 = vrot.slane %v2271, 7
      %v2274 = vshll.u32 %v566, 16
      %v2276 = vor.u32 %v2273, %v2274
      %v2278 = vshrl.u32 %v567, 16
      %v2280 = vrot.slane %v2278, 7
      %v2281 = vshll.u32 %v567, 16
      %v2283 = vor.u32 %v2280, %v2281
      %v2285 = vshrl.u32 %v568, 16
      %v2287 = vrot.slane %v2285, 7
      %v2288 = vshll.u32 %v568, 16
      %v2290 = vor.u32 %v2287, %v2288
      %v2299 = vsel %vm703, 0, %v2241
      %v2300 = vsel %vm703, 0, %v2248
      %v2301 = vsel %vm703, 0, %v2255
      %v2302 = vsel %vm703, 0, %v2262
      %v2303 = vsel %vm703, 0, %v2269
      %v2304 = vsel %vm703, 0, %v2276
      %v2305 = vsel %vm703, 0, %v2283
      %v2306 = vsel %vm703, 0, %v2290
      %v2307 = vsel %vm715, %v2299, 0
      %v2308 = vsel %vm715, %v2300, 0
      %v2309 = vsel %vm715, %v2301, 0
      %v2310 = vsel %vm715, %v2302, 0
      %v2311 = vsel %vm715, %v2303, 0
      %v2312 = vsel %vm715, %v2304, 0
      %v2313 = vsel %vm715, %v2305, 0
      %v2314 = vsel %vm715, %v2306, 0
      %s2315 = scalar_lea.vmem %s3, 576
      %v2316 = vld [vmem:[%s2315] sm:$0xf]
      %v2317 = vld [vmem:[%s2315 + $0x4] sm:$0xf]
      %v2318 = vld [vmem:[%s2315 + $0x8] sm:$0xf]
      %v2319 = vld [vmem:[%s2315 + $0xc] sm:$0xf]
      %v2320 = vld [vmem:[%s2315 + $0x10] sm:$0xf]
      %v2321 = vld [vmem:[%s2315 + $0x14] sm:$0xf]
      %v2322 = vld [vmem:[%s2315 + $0x18] sm:$0xf]
      %v2323 = vld [vmem:[%s2315 + $0x1c] sm:$0xf]
      %v2324 = vld [vmem:[%s2315 + $0x20] sm:$0xf]
      %v2325 = vld [vmem:[%s2315 + $0x24] sm:$0xf]
      %v2326 = vld [vmem:[%s2315 + $0x28] sm:$0xf]
      %v2327 = vld [vmem:[%s2315 + $0x2c] sm:$0xf]
      %v2328 = vld [vmem:[%s2315 + $0x30] sm:$0xf]
      %v2329 = vld [vmem:[%s2315 + $0x34] sm:$0xf]
      %v2330 = vld [vmem:[%s2315 + $0x38] sm:$0xf]
      %v2331 = vld [vmem:[%s2315 + $0x3c] sm:$0xf]
      %v2339 = vunpack.c.l.b16 %v2307
      %v2340 = vunpack.c.l.b16 %v2308
      %v2341 = vunpack.c.l.b16 %v2309
      %v2342 = vunpack.c.l.b16 %v2310
      %v2343 = vunpack.c.l.b16 %v2311
      %v2344 = vunpack.c.l.b16 %v2312
      %v2345 = vunpack.c.l.b16 %v2313
      %v2346 = vpack.c.b16 %v2339, %v896
      %v2347 = vpack.c.b16 %v2341, %v2340
      %v2348 = vpack.c.b16 %v2343, %v2342
      %v2349 = vpack.c.b16 %v2345, %v2344
      %v2370 = vunpack.c.l.b16 %v2316
      %v2371 = vunpack.c.l.b16 %v2317
      %v2372 = vunpack.c.l.b16 %v2318
      %v2373 = vunpack.c.l.b16 %v2319
      %v2374 = vunpack.c.l.b16 %v2320
      %v2375 = vunpack.c.l.b16 %v2321
      %v2376 = vunpack.c.l.b16 %v2322
      %v2377 = vunpack.c.l.b16 %v2323
      %v2378 = vunpack.c.l.b16 %v2324
      %v2379 = vunpack.c.l.b16 %v2325
      %v2380 = vunpack.c.l.b16 %v2326
      %v2381 = vunpack.c.l.b16 %v2327
      %v2382 = vunpack.c.l.b16 %v2328
      %v2383 = vunpack.c.l.b16 %v2329
      %v2384 = vunpack.c.l.b16 %v2330
      %v2385 = vunpack.c.l.b16 %v2331
      %v2386 = vpack.c.b16 %v2371, %v2370
      %v2387 = vpack.c.b16 %v2373, %v2372
      %v2388 = vpack.c.b16 %v2375, %v2374
      %v2389 = vpack.c.b16 %v2377, %v2376
      %v2390 = vpack.c.b16 %v2379, %v2378
      %v2391 = vpack.c.b16 %v2381, %v2380
      %v2392 = vpack.c.b16 %v2383, %v2382
      %v2393 = vpack.c.b16 %v2385, %v2384
      %2402 = vmatprep.subr.bf16.mxu0 0
      %2403 = vmatpush1.bf16.msra.mxu0 %v2386
      %2404 = vmatprep.subr.bf16.mxu0 0
      %2405 = vmatpush1.bf16.msra.mxu0 %v2387
      %2406 = vmatprep.subr.bf16.mxu0 0
      %2407 = vmatpush1.bf16.msra.mxu0 %v2388
      %2408 = vmatprep.subr.bf16.mxu0 0
      %2409 = vmatpush1.bf16.msra.mxu0 %v2389
      %2410 = vmatprep.subr.bf16.mxu0 0
      %2411 = vmatpush1.bf16.msra.mxu0 %v2390
      %2412 = vmatprep.subr.bf16.mxu0 0
      %2413 = vmatpush1.bf16.msra.mxu0 %v2391
      %2414 = vmatprep.subr.bf16.mxu0 0
      %2415 = vmatpush1.bf16.msra.mxu0 %v2392
      %2416 = vmatprep.subr.bf16.mxu0 0
      %2417 = vmatpush1.bf16.msra.mxu0 %v2393
      %2418 = vmatprep.subr.bf16.mxu0 0
      %2419 = vmatpush1.bf16.msra.mxu0 0
      %2420 = vmatprep.subr.bf16.mxu0 0
      %2421 = vmatpush1.bf16.msra.mxu0 0
      %2422 = vmatprep.subr.bf16.mxu0 0
      %2423 = vmatpush1.bf16.msra.mxu0 0
      %2424 = vmatprep.subr.bf16.mxu0 0
      %2425 = vmatpush1.bf16.msra.mxu0 0
      %2426 = vmatprep.subr.bf16.mxu0 0
      %2427 = vmatpush1.bf16.msra.mxu0 0
      %2428 = vmatprep.subr.bf16.mxu0 0
      %2429 = vmatpush1.bf16.msra.mxu0 0
      %2430 = vmatprep.subr.bf16.mxu0 0
      %2431 = vmatpush1.bf16.msra.mxu0 0
      %2432 = vmatprep.subr.bf16.mxu0 0
      %2433 = vmatpush1.bf16.msra.mxu0 0
      %2434 = vmatprep.mubr.bf16.mxu0 0
      %2435 = vmatmul.mubr.bf16.gmra.mrb[0].mxu0 %v2346
      %v2436 = vpop.f32.mrb[0].mxu0
      %v2437 = vadd.f32 0.0, %v2436
      %v2438 = vpop.f32.mrb[0].mxu0
      %v2439 = vpop.f32.mrb[0].mxu0
      %v2440 = vadd.f32 0.0, %v2439
      %v2441 = vpop.f32.mrb[0].mxu0
      %2442 = vmatprep.mubr.bf16.mxu0 0
      %2443 = vmatmul.mubr.bf16.gmra.mrb[0].mxu0 %v2347
      %v2444 = vpop.f32.mrb[0].mxu0
      %v2445 = vadd.f32 0.0, %v2444
      %v2446 = vpop.f32.mrb[0].mxu0
      %v2447 = vpop.f32.mrb[0].mxu0
      %v2448 = vadd.f32 0.0, %v2447
      %v2449 = vpop.f32.mrb[0].mxu0
      %2450 = vmatprep.mubr.bf16.mxu0 0
      %2451 = vmatmul.mubr.bf16.gmra.mrb[0].mxu0 %v2348
      %v2452 = vpop.f32.mrb[0].mxu0
      %v2453 = vadd.f32 0.0, %v2452
      %v2454 = vpop.f32.mrb[0].mxu0
      %v2455 = vpop.f32.mrb[0].mxu0
      %v2456 = vadd.f32 0.0, %v2455
      %v2457 = vpop.f32.mrb[0].mxu0
      %2458 = vmatprep.mubr.bf16.mxu0 0
      %2459 = vmatmul.mubr.bf16.gmra.mrb[0].mxu0 %v2349
      %v2460 = vpop.f32.mrb[0].mxu0
      %v2461 = vadd.f32 0.0, %v2460
      %v2462 = vpop.f32.mrb[0].mxu0
      %v2463 = vpop.f32.mrb[0].mxu0
      %v2464 = vadd.f32 0.0, %v2463
      %v2465 = vpop.f32.mrb[0].mxu0
      %2466 = vdwg.mxu0
      %v2467 = vadd.f32 %v2227, %v2437
      %v2468 = vadd.f32 %v2228, %v2440
      %v2469 = vadd.f32 %v2229, %v2445
      %v2470 = vadd.f32 %v2230, %v2448
      %v2471 = vadd.f32 %v2231, %v2453
      %v2472 = vadd.f32 %v2232, %v2456
      %v2473 = vadd.f32 %v2233, %v2461
      %v2474 = vadd.f32 %v2234, %v2464
      %s2475 = scalar_lea.vmem %s3, 768
      %v2476 = vld [vmem:[%s2475] sm:$0xf]
      %v2477 = vld [vmem:[%s2475 + $0x4] sm:$0xf]
      %v2478 = vld [vmem:[%s2475 + $0x8] sm:$0xf]
      %v2479 = vld [vmem:[%s2475 + $0xc] sm:$0xf]
      %v2480 = vld [vmem:[%s2475 + $0x10] sm:$0xf]
      %v2481 = vld [vmem:[%s2475 + $0x14] sm:$0xf]
      %v2482 = vld [vmem:[%s2475 + $0x18] sm:$0xf]
      %v2483 = vld [vmem:[%s2475 + $0x1c] sm:$0xf]
      %v2484 = vld [vmem:[%s2475 + $0x20] sm:$0xf]
      %v2485 = vld [vmem:[%s2475 + $0x24] sm:$0xf]
      %v2486 = vld [vmem:[%s2475 + $0x28] sm:$0xf]
      %v2487 = vld [vmem:[%s2475 + $0x2c] sm:$0xf]
      %v2488 = vld [vmem:[%s2475 + $0x30] sm:$0xf]
      %v2489 = vld [vmem:[%s2475 + $0x34] sm:$0xf]
      %v2490 = vld [vmem:[%s2475 + $0x38] sm:$0xf]
      %v2491 = vld [vmem:[%s2475 + $0x3c] sm:$0xf]
      %v2493 = vunpack.c.l.b16 %v2314
      %v2494 = vpack.c.b16 %v2340, %v2339
      %v2495 = vpack.c.b16 %v2342, %v2341
      %v2496 = vpack.c.b16 %v2344, %v2343
      %v2497 = vpack.c.b16 %v2493, %v2345
      %v2518 = vunpack.c.l.b16 %v2476
      %v2519 = vunpack.c.l.b16 %v2477
      %v2520 = vunpack.c.l.b16 %v2478
      %v2521 = vunpack.c.l.b16 %v2479
      %v2522 = vunpack.c.l.b16 %v2480
      %v2523 = vunpack.c.l.b16 %v2481
      %v2524 = vunpack.c.l.b16 %v2482
      %v2525 = vunpack.c.l.b16 %v2483
      %v2526 = vunpack.c.l.b16 %v2484
      %v2527 = vunpack.c.l.b16 %v2485
      %v2528 = vunpack.c.l.b16 %v2486
      %v2529 = vunpack.c.l.b16 %v2487
      %v2530 = vunpack.c.l.b16 %v2488
      %v2531 = vunpack.c.l.b16 %v2489
      %v2532 = vunpack.c.l.b16 %v2490
      %v2533 = vunpack.c.l.b16 %v2491
      %v2534 = vpack.c.b16 %v2519, %v2518
      %v2535 = vpack.c.b16 %v2521, %v2520
      %v2536 = vpack.c.b16 %v2523, %v2522
      %v2537 = vpack.c.b16 %v2525, %v2524
      %v2538 = vpack.c.b16 %v2527, %v2526
      %v2539 = vpack.c.b16 %v2529, %v2528
      %v2540 = vpack.c.b16 %v2531, %v2530
      %v2541 = vpack.c.b16 %v2533, %v2532
      %2550 = vmatprep.subr.bf16.mxu0 0
      %2551 = vmatpush1.bf16.msra.mxu0 %v2534
      %2552 = vmatprep.subr.bf16.mxu0 0
      %2553 = vmatpush1.bf16.msra.mxu0 %v2535
      %2554 = vmatprep.subr.bf16.mxu0 0
      %2555 = vmatpush1.bf16.msra.mxu0 %v2536
      %2556 = vmatprep.subr.bf16.mxu0 0
      %2557 = vmatpush1.bf16.msra.mxu0 %v2537
      %2558 = vmatprep.subr.bf16.mxu0 0
      %2559 = vmatpush1.bf16.msra.mxu0 %v2538
      %2560 = vmatprep.subr.bf16.mxu0 0
      %2561 = vmatpush1.bf16.msra.mxu0 %v2539
      %2562 = vmatprep.subr.bf16.mxu0 0
      %2563 = vmatpush1.bf16.msra.mxu0 %v2540
      %2564 = vmatprep.subr.bf16.mxu0 0
      %2565 = vmatpush1.bf16.msra.mxu0 %v2541
      %2566 = vmatprep.subr.bf16.mxu0 0
      %2567 = vmatpush1.bf16.msra.mxu0 0
      %2568 = vmatprep.subr.bf16.mxu0 0
      %2569 = vmatpush1.bf16.msra.mxu0 0
      %2570 = vmatprep.subr.bf16.mxu0 0
      %2571 = vmatpush1.bf16.msra.mxu0 0
      %2572 = vmatprep.subr.bf16.mxu0 0
      %2573 = vmatpush1.bf16.msra.mxu0 0
      %2574 = vmatprep.subr.bf16.mxu0 0
      %2575 = vmatpush1.bf16.msra.mxu0 0
      %2576 = vmatprep.subr.bf16.mxu0 0
      %2577 = vmatpush1.bf16.msra.mxu0 0
      %2578 = vmatprep.subr.bf16.mxu0 0
      %2579 = vmatpush1.bf16.msra.mxu0 0
      %2580 = vmatprep.subr.bf16.mxu0 0
      %2581 = vmatpush1.bf16.msra.mxu0 0
      %2582 = vmatprep.mubr.bf16.mxu0 0
      %2583 = vmatmul.mubr.bf16.gmra.mrb[0].mxu0 %v2494
      %v2584 = vpop.f32.mrb[0].mxu0
      %v2585 = vadd.f32 0.0, %v2584
      %v2586 = vpop.f32.mrb[0].mxu0
      %v2587 = vpop.f32.mrb[0].mxu0
      %v2588 = vadd.f32 0.0, %v2587
      %v2589 = vpop.f32.mrb[0].mxu0
      %2590 = vmatprep.mubr.bf16.mxu0 0
      %2591 = vmatmul.mubr.bf16.gmra.mrb[0].mxu0 %v2495
      %v2592 = vpop.f32.mrb[0].mxu0
      %v2593 = vadd.f32 0.0, %v2592
      %v2594 = vpop.f32.mrb[0].mxu0
      %v2595 = vpop.f32.mrb[0].mxu0
      %v2596 = vadd.f32 0.0, %v2595
      %v2597 = vpop.f32.mrb[0].mxu0
      %2598 = vmatprep.mubr.bf16.mxu0 0
      %2599 = vmatmul.mubr.bf16.gmra.mrb[0].mxu0 %v2496
      %v2600 = vpop.f32.mrb[0].mxu0
      %v2601 = vadd.f32 0.0, %v2600
      %v2602 = vpop.f32.mrb[0].mxu0
      %v2603 = vpop.f32.mrb[0].mxu0
      %v2604 = vadd.f32 0.0, %v2603
      %v2605 = vpop.f32.mrb[0].mxu0
      %2606 = vmatprep.mubr.bf16.mxu0 0
      %2607 = vmatmul.mubr.bf16.gmra.mrb[0].mxu0 %v2497
      %v2608 = vpop.f32.mrb[0].mxu0
      %v2609 = vadd.f32 0.0, %v2608
      %v2610 = vpop.f32.mrb[0].mxu0
      %v2611 = vpop.f32.mrb[0].mxu0
      %v2612 = vadd.f32 0.0, %v2611
      %v2613 = vpop.f32.mrb[0].mxu0
      %2614 = vdwg.mxu0
      %v2615 = vadd.f32 %v2467, %v2585
      %v2616 = vadd.f32 %v2468, %v2588
      %v2617 = vadd.f32 %v2469, %v2593
      %v2618 = vadd.f32 %v2470, %v2596
      %v2619 = vadd.f32 %v2471, %v2601
      %v2620 = vadd.f32 %v2472, %v2604
      %v2621 = vadd.f32 %v2473, %v2609
      %v2622 = vadd.f32 %v2474, %v2612
      %s2623 = scalar_lea.vmem %s3, 960
      %v2624 = vld [vmem:[%s2623] sm:$0xf]
      %v2625 = vld [vmem:[%s2623 + $0x4] sm:$0xf]
      %v2626 = vld [vmem:[%s2623 + $0x8] sm:$0xf]
      %v2627 = vld [vmem:[%s2623 + $0xc] sm:$0xf]
      %v2628 = vld [vmem:[%s2623 + $0x10] sm:$0xf]
      %v2629 = vld [vmem:[%s2623 + $0x14] sm:$0xf]
      %v2630 = vld [vmem:[%s2623 + $0x18] sm:$0xf]
      %v2631 = vld [vmem:[%s2623 + $0x1c] sm:$0xf]
      %v2632 = vld [vmem:[%s2623 + $0x20] sm:$0xf]
      %v2633 = vld [vmem:[%s2623 + $0x24] sm:$0xf]
      %v2634 = vld [vmem:[%s2623 + $0x28] sm:$0xf]
      %v2635 = vld [vmem:[%s2623 + $0x2c] sm:$0xf]
      %v2636 = vld [vmem:[%s2623 + $0x30] sm:$0xf]
      %v2637 = vld [vmem:[%s2623 + $0x34] sm:$0xf]
      %v2638 = vld [vmem:[%s2623 + $0x38] sm:$0xf]
      %v2639 = vld [vmem:[%s2623 + $0x3c] sm:$0xf]
      %v2640 = vpack.c.b16 %v896, %v2493
      %v2658 = vunpack.c.l.b16 %v2624
      %v2659 = vunpack.c.l.b16 %v2625
      %v2660 = vunpack.c.l.b16 %v2626
      %v2661 = vunpack.c.l.b16 %v2627
      %v2662 = vunpack.c.l.b16 %v2628
      %v2663 = vunpack.c.l.b16 %v2629
      %v2664 = vunpack.c.l.b16 %v2630
      %v2665 = vunpack.c.l.b16 %v2631
      %v2666 = vunpack.c.l.b16 %v2632
      %v2667 = vunpack.c.l.b16 %v2633
      %v2668 = vunpack.c.l.b16 %v2634
      %v2669 = vunpack.c.l.b16 %v2635
      %v2670 = vunpack.c.l.b16 %v2636
      %v2671 = vunpack.c.l.b16 %v2637
      %v2672 = vunpack.c.l.b16 %v2638
      %v2673 = vunpack.c.l.b16 %v2639
      %v2674 = vpack.c.b16 %v2659, %v2658
      %v2675 = vpack.c.b16 %v2661, %v2660
      %v2676 = vpack.c.b16 %v2663, %v2662
      %v2677 = vpack.c.b16 %v2665, %v2664
      %v2678 = vpack.c.b16 %v2667, %v2666
      %v2679 = vpack.c.b16 %v2669, %v2668
      %v2680 = vpack.c.b16 %v2671, %v2670
      %v2681 = vpack.c.b16 %v2673, %v2672
      %2690 = vmatprep.subr.bf16.mxu0 0
      %2691 = vmatpush1.bf16.msra.mxu0 %v2674
      %2692 = vmatprep.subr.bf16.mxu0 0
      %2693 = vmatpush1.bf16.msra.mxu0 %v2675
      %2694 = vmatprep.subr.bf16.mxu0 0
      %2695 = vmatpush1.bf16.msra.mxu0 %v2676
      %2696 = vmatprep.subr.bf16.mxu0 0
      %2697 = vmatpush1.bf16.msra.mxu0 %v2677
      %2698 = vmatprep.subr.bf16.mxu0 0
      %2699 = vmatpush1.bf16.msra.mxu0 %v2678
      %2700 = vmatprep.subr.bf16.mxu0 0
      %2701 = vmatpush1.bf16.msra.mxu0 %v2679
      %2702 = vmatprep.subr.bf16.mxu0 0
      %2703 = vmatpush1.bf16.msra.mxu0 %v2680
      %2704 = vmatprep.subr.bf16.mxu0 0
      %2705 = vmatpush1.bf16.msra.mxu0 %v2681
      %2706 = vmatprep.subr.bf16.mxu0 0
      %2707 = vmatpush1.bf16.msra.mxu0 0
      %2708 = vmatprep.subr.bf16.mxu0 0
      %2709 = vmatpush1.bf16.msra.mxu0 0
      %2710 = vmatprep.subr.bf16.mxu0 0
      %2711 = vmatpush1.bf16.msra.mxu0 0
      %2712 = vmatprep.subr.bf16.mxu0 0
      %2713 = vmatpush1.bf16.msra.mxu0 0
      %2714 = vmatprep.subr.bf16.mxu0 0
      %2715 = vmatpush1.bf16.msra.mxu0 0
      %2716 = vmatprep.subr.bf16.mxu0 0
      %2717 = vmatpush1.bf16.msra.mxu0 0
      %2718 = vmatprep.subr.bf16.mxu0 0
      %2719 = vmatpush1.bf16.msra.mxu0 0
      %2720 = vmatprep.subr.bf16.mxu0 0
      %2721 = vmatpush1.bf16.msra.mxu0 0
      %2722 = vmatprep.mubr.bf16.mxu0 0
      %2723 = vmatmul.mubr.bf16.gmra.mrb[0].mxu0 %v2347
      %v2724 = vpop.f32.mrb[0].mxu0
      %v2725 = vadd.f32 0.0, %v2724
      %v2726 = vpop.f32.mrb[0].mxu0
      %v2727 = vpop.f32.mrb[0].mxu0
      %v2728 = vadd.f32 0.0, %v2727
      %v2729 = vpop.f32.mrb[0].mxu0
      %2730 = vmatprep.mubr.bf16.mxu0 0
      %2731 = vmatmul.mubr.bf16.gmra.mrb[0].mxu0 %v2348
      %v2732 = vpop.f32.mrb[0].mxu0
      %v2733 = vadd.f32 0.0, %v2732
      %v2734 = vpop.f32.mrb[0].mxu0
      %v2735 = vpop.f32.mrb[0].mxu0
      %v2736 = vadd.f32 0.0, %v2735
      %v2737 = vpop.f32.mrb[0].mxu0
      %2738 = vmatprep.mubr.bf16.mxu0 0
      %2739 = vmatmul.mubr.bf16.gmra.mrb[0].mxu0 %v2349
      %v2740 = vpop.f32.mrb[0].mxu0
      %v2741 = vadd.f32 0.0, %v2740
      %v2742 = vpop.f32.mrb[0].mxu0
      %v2743 = vpop.f32.mrb[0].mxu0
      %v2744 = vadd.f32 0.0, %v2743
      %v2745 = vpop.f32.mrb[0].mxu0
      %2746 = vmatprep.mubr.bf16.mxu0 0
      %2747 = vmatmul.mubr.bf16.gmra.mrb[0].mxu0 %v2640
      %v2748 = vpop.f32.mrb[0].mxu0
      %v2749 = vadd.f32 0.0, %v2748
      %v2750 = vpop.f32.mrb[0].mxu0
      %v2751 = vpop.f32.mrb[0].mxu0
      %v2752 = vadd.f32 0.0, %v2751
      %v2753 = vpop.f32.mrb[0].mxu0
      %2754 = vdwg.mxu0
      %v2755 = vadd.f32 %v2615, %v2725
      %v2756 = vadd.f32 %v2616, %v2728
      %v2757 = vadd.f32 %v2617, %v2733
      %v2758 = vadd.f32 %v2618, %v2736
      %v2759 = vadd.f32 %v2619, %v2741
      %v2760 = vadd.f32 %v2620, %v2744
      %v2761 = vadd.f32 %v2621, %v2749
      %v2762 = vadd.f32 %v2622, %v2752
      %v2763 = vunpack.c.h.b16 %v2307
      %v2764 = vunpack.c.h.b16 %v2308
      %v2765 = vunpack.c.h.b16 %v2309
      %v2766 = vunpack.c.h.b16 %v2310
      %v2767 = vunpack.c.h.b16 %v2311
      %v2768 = vunpack.c.h.b16 %v2312
      %v2769 = vunpack.c.h.b16 %v2313
      %v2770 = vunpack.c.h.b16 %v2314
      %v2771 = vpack.c.b16 %v2339, %v2339
      %v2772 = vpack.c.b16 %v2763, %v2763
      %v2773 = vpack.c.b16 %v2340, %v2340
      %v2774 = vpack.c.b16 %v2764, %v2764
      %v2775 = vpack.c.b16 %v2341, %v2341
      %v2776 = vpack.c.b16 %v2765, %v2765
      %v2777 = vpack.c.b16 %v2342, %v2342
      %v2778 = vpack.c.b16 %v2766, %v2766
      %v2779 = vpack.c.b16 %v2343, %v2343
      %v2780 = vpack.c.b16 %v2767, %v2767
      %v2781 = vpack.c.b16 %v2344, %v2344
      %v2782 = vpack.c.b16 %v2768, %v2768
      %v2783 = vpack.c.b16 %v2345, %v2345
      %v2784 = vpack.c.b16 %v2769, %v2769
      %v2785 = vpack.c.b16 %v2493, %v2493
      %v2786 = vpack.c.b16 %v2770, %v2770
      %v2788 = vshrl.u32 %v2771, 16
      %v2790 = vrot.slane %v2788, 4
      %v2791 = vshll.u32 %v2771, 16
      %v2793 = vrot.slane %v2791, 5
      %v2794 = vor.u32 %v2790, %v2793
      %v2795 = vrot.slane %v2794, 4
      %v2797 = vshll.u32 %v2772, 16
      %v2799 = vrot.slane %v2797, 5
      %v2800 = vsel %vm1187, %v2795, %v2799
      %v2802 = vshrl.u32 %v2773, 16
      %v2804 = vrot.slane %v2802, 4
      %v2805 = vshll.u32 %v2773, 16
      %v2807 = vrot.slane %v2805, 5
      %v2808 = vor.u32 %v2804, %v2807
      %v2809 = vrot.slane %v2808, 4
      %v2811 = vshll.u32 %v2774, 16
      %v2813 = vrot.slane %v2811, 5
      %v2814 = vsel %vm1187, %v2809, %v2813
      %v2816 = vshrl.u32 %v2775, 16
      %v2818 = vrot.slane %v2816, 4
      %v2819 = vshll.u32 %v2775, 16
      %v2821 = vrot.slane %v2819, 5
      %v2822 = vor.u32 %v2818, %v2821
      %v2823 = vrot.slane %v2822, 4
      %v2825 = vshll.u32 %v2776, 16
      %v2827 = vrot.slane %v2825, 5
      %v2828 = vsel %vm1187, %v2823, %v2827
      %v2830 = vshrl.u32 %v2777, 16
      %v2832 = vrot.slane %v2830, 4
      %v2833 = vshll.u32 %v2777, 16
      %v2835 = vrot.slane %v2833, 5
      %v2836 = vor.u32 %v2832, %v2835
      %v2837 = vrot.slane %v2836, 4
      %v2839 = vshll.u32 %v2778, 16
      %v2841 = vrot.slane %v2839, 5
      %v2842 = vsel %vm1187, %v2837, %v2841
      %v2844 = vshrl.u32 %v2779, 16
      %v2846 = vrot.slane %v2844, 4
      %v2847 = vshll.u32 %v2779, 16
      %v2849 = vrot.slane %v2847, 5
      %v2850 = vor.u32 %v2846, %v2849
      %v2851 = vrot.slane %v2850, 4
      %v2853 = vshll.u32 %v2780, 16
      %v2855 = vrot.slane %v2853, 5
      %v2856 = vsel %vm1187, %v2851, %v2855
      %v2858 = vshrl.u32 %v2781, 16
      %v2860 = vrot.slane %v2858, 4
      %v2861 = vshll.u32 %v2781, 16
      %v2863 = vrot.slane %v2861, 5
      %v2864 = vor.u32 %v2860, %v2863
      %v2865 = vrot.slane %v2864, 4
      %v2867 = vshll.u32 %v2782, 16
      %v2869 = vrot.slane %v2867, 5
      %v2870 = vsel %vm1187, %v2865, %v2869
      %v2872 = vshrl.u32 %v2783, 16
      %v2874 = vrot.slane %v2872, 4
      %v2875 = vshll.u32 %v2783, 16
      %v2877 = vrot.slane %v2875, 5
      %v2878 = vor.u32 %v2874, %v2877
      %v2879 = vrot.slane %v2878, 4
      %v2881 = vshll.u32 %v2784, 16
      %v2883 = vrot.slane %v2881, 5
      %v2884 = vsel %vm1187, %v2879, %v2883
      %v2886 = vshrl.u32 %v2785, 16
      %v2888 = vrot.slane %v2886, 4
      %v2889 = vshll.u32 %v2785, 16
      %v2891 = vrot.slane %v2889, 5
      %v2892 = vor.u32 %v2888, %v2891
      %v2893 = vrot.slane %v2892, 4
      %v2895 = vshll.u32 %v2786, 16
      %v2897 = vrot.slane %v2895, 5
      %v2898 = vsel %vm1187, %v2893, %v2897
      %s2899 = scalar_lea.vmem %s3, 640
      %v2900 = vld [vmem:[%s2899] sm:$0xf]
      %v2901 = vld [vmem:[%s2899 + $0x4] sm:$0xf]
      %v2902 = vld [vmem:[%s2899 + $0x8] sm:$0xf]
      %v2903 = vld [vmem:[%s2899 + $0xc] sm:$0xf]
      %v2904 = vld [vmem:[%s2899 + $0x10] sm:$0xf]
      %v2905 = vld [vmem:[%s2899 + $0x14] sm:$0xf]
      %v2906 = vld [vmem:[%s2899 + $0x18] sm:$0xf]
      %v2907 = vld [vmem:[%s2899 + $0x1c] sm:$0xf]
      %v2908 = vld [vmem:[%s2899 + $0x20] sm:$0xf]
      %v2909 = vld [vmem:[%s2899 + $0x24] sm:$0xf]
      %v2910 = vld [vmem:[%s2899 + $0x28] sm:$0xf]
      %v2911 = vld [vmem:[%s2899 + $0x2c] sm:$0xf]
      %v2912 = vld [vmem:[%s2899 + $0x30] sm:$0xf]
      %v2913 = vld [vmem:[%s2899 + $0x34] sm:$0xf]
      %v2914 = vld [vmem:[%s2899 + $0x38] sm:$0xf]
      %v2915 = vld [vmem:[%s2899 + $0x3c] sm:$0xf]
      %v2916 = vunpack.c.l.b16 %v2800
      %v2917 = vunpack.c.l.b16 %v2814
      %v2918 = vunpack.c.l.b16 %v2828
      %v2919 = vunpack.c.l.b16 %v2842
      %v2920 = vunpack.c.l.b16 %v2856
      %v2921 = vunpack.c.l.b16 %v2870
      %v2922 = vunpack.c.l.b16 %v2884
      %v2923 = vpack.c.b16 %v2916, %v1331
      %v2924 = vpack.c.b16 %v2918, %v2917
      %v2925 = vpack.c.b16 %v2920, %v2919
      %v2926 = vpack.c.b16 %v2922, %v2921
      %v2947 = vunpack.c.l.b16 %v2900
      %v2948 = vunpack.c.l.b16 %v2901
      %v2949 = vunpack.c.l.b16 %v2902
      %v2950 = vunpack.c.l.b16 %v2903
      %v2951 = vunpack.c.l.b16 %v2904
      %v2952 = vunpack.c.l.b16 %v2905
      %v2953 = vunpack.c.l.b16 %v2906
      %v2954 = vunpack.c.l.b16 %v2907
      %v2955 = vunpack.c.l.b16 %v2908
      %v2956 = vunpack.c.l.b16 %v2909
      %v2957 = vunpack.c.l.b16 %v2910
      %v2958 = vunpack.c.l.b16 %v2911
      %v2959 = vunpack.c.l.b16 %v2912
      %v2960 = vunpack.c.l.b16 %v2913
      %v2961 = vunpack.c.l.b16 %v2914
      %v2962 = vunpack.c.l.b16 %v2915
      %v2963 = vpack.c.b16 %v2948, %v2947
      %v2964 = vpack.c.b16 %v2950, %v2949
      %v2965 = vpack.c.b16 %v2952, %v2951
      %v2966 = vpack.c.b16 %v2954, %v2953
      %v2967 = vpack.c.b16 %v2956, %v2955
      %v2968 = vpack.c.b16 %v2958, %v2957
      %v2969 = vpack.c.b16 %v2960, %v2959
      %v2970 = vpack.c.b16 %v2962, %v2961
      %2979 = vmatprep.subr.bf16.mxu0 0
      %2980 = vmatpush1.bf16.msra.mxu0 %v2963
      %2981 = vmatprep.subr.bf16.mxu0 0
      %2982 = vmatpush1.bf16.msra.mxu0 %v2964
      %2983 = vmatprep.subr.bf16.mxu0 0
      %2984 = vmatpush1.bf16.msra.mxu0 %v2965
      %2985 = vmatprep.subr.bf16.mxu0 0
      %2986 = vmatpush1.bf16.msra.mxu0 %v2966
      %2987 = vmatprep.subr.bf16.mxu0 0
      %2988 = vmatpush1.bf16.msra.mxu0 %v2967
      %2989 = vmatprep.subr.bf16.mxu0 0
      %2990 = vmatpush1.bf16.msra.mxu0 %v2968
      %2991 = vmatprep.subr.bf16.mxu0 0
      %2992 = vmatpush1.bf16.msra.mxu0 %v2969
      %2993 = vmatprep.subr.bf16.mxu0 0
      %2994 = vmatpush1.bf16.msra.mxu0 %v2970
      %2995 = vmatprep.subr.bf16.mxu0 0
      %2996 = vmatpush1.bf16.msra.mxu0 0
      %2997 = vmatprep.subr.bf16.mxu0 0
      %2998 = vmatpush1.bf16.msra.mxu0 0
      %2999 = vmatprep.subr.bf16.mxu0 0
      %3000 = vmatpush1.bf16.msra.mxu0 0
      %3001 = vmatprep.subr.bf16.mxu0 0
      %3002 = vmatpush1.bf16.msra.mxu0 0
      %3003 = vmatprep.subr.bf16.mxu0 0
      %3004 = vmatpush1.bf16.msra.mxu0 0
      %3005 = vmatprep.subr.bf16.mxu0 0
      %3006 = vmatpush1.bf16.msra.mxu0 0
      %3007 = vmatprep.subr.bf16.mxu0 0
      %3008 = vmatpush1.bf16.msra.mxu0 0
      %3009 = vmatprep.subr.bf16.mxu0 0
      %3010 = vmatpush1.bf16.msra.mxu0 0
      %3011 = vmatprep.mubr.bf16.mxu0 0
      %3012 = vmatmul.mubr.bf16.gmra.mrb[0].mxu0 %v2923
      %v3013 = vpop.f32.mrb[0].mxu0
      %v3014 = vadd.f32 0.0, %v3013
      %v3015 = vpop.f32.mrb[0].mxu0
      %v3016 = vpop.f32.mrb[0].mxu0
      %v3017 = vadd.f32 0.0, %v3016
      %v3018 = vpop.f32.mrb[0].mxu0
      %3019 = vmatprep.mubr.bf16.mxu0 0
      %3020 = vmatmul.mubr.bf16.gmra.mrb[0].mxu0 %v2924
      %v3021 = vpop.f32.mrb[0].mxu0
      %v3022 = vadd.f32 0.0, %v3021
      %v3023 = vpop.f32.mrb[0].mxu0
      %v3024 = vpop.f32.mrb[0].mxu0
      %v3025 = vadd.f32 0.0, %v3024
      %v3026 = vpop.f32.mrb[0].mxu0
      %3027 = vmatprep.mubr.bf16.mxu0 0
      %3028 = vmatmul.mubr.bf16.gmra.mrb[0].mxu0 %v2925
      %v3029 = vpop.f32.mrb[0].mxu0
      %v3030 = vadd.f32 0.0, %v3029
      %v3031 = vpop.f32.mrb[0].mxu0
      %v3032 = vpop.f32.mrb[0].mxu0
      %v3033 = vadd.f32 0.0, %v3032
      %v3034 = vpop.f32.mrb[0].mxu0
      %3035 = vmatprep.mubr.bf16.mxu0 0
      %3036 = vmatmul.mubr.bf16.gmra.mrb[0].mxu0 %v2926
      %v3037 = vpop.f32.mrb[0].mxu0
      %v3038 = vadd.f32 0.0, %v3037
      %v3039 = vpop.f32.mrb[0].mxu0
      %v3040 = vpop.f32.mrb[0].mxu0
      %v3041 = vadd.f32 0.0, %v3040
      %v3042 = vpop.f32.mrb[0].mxu0
      %3043 = vdwg.mxu0
      %v3044 = vadd.f32 %v2755, %v3014
      %v3045 = vadd.f32 %v2756, %v3017
      %v3046 = vadd.f32 %v2757, %v3022
      %v3047 = vadd.f32 %v2758, %v3025
      %v3048 = vadd.f32 %v2759, %v3030
      %v3049 = vadd.f32 %v2760, %v3033
      %v3050 = vadd.f32 %v2761, %v3038
      %v3051 = vadd.f32 %v2762, %v3041
      %s3052 = scalar_lea.vmem %s3, 832
      %v3053 = vld [vmem:[%s3052] sm:$0xf]
      %v3054 = vld [vmem:[%s3052 + $0x4] sm:$0xf]
      %v3055 = vld [vmem:[%s3052 + $0x8] sm:$0xf]
      %v3056 = vld [vmem:[%s3052 + $0xc] sm:$0xf]
      %v3057 = vld [vmem:[%s3052 + $0x10] sm:$0xf]
      %v3058 = vld [vmem:[%s3052 + $0x14] sm:$0xf]
      %v3059 = vld [vmem:[%s3052 + $0x18] sm:$0xf]
      %v3060 = vld [vmem:[%s3052 + $0x1c] sm:$0xf]
      %v3061 = vld [vmem:[%s3052 + $0x20] sm:$0xf]
      %v3062 = vld [vmem:[%s3052 + $0x24] sm:$0xf]
      %v3063 = vld [vmem:[%s3052 + $0x28] sm:$0xf]
      %v3064 = vld [vmem:[%s3052 + $0x2c] sm:$0xf]
      %v3065 = vld [vmem:[%s3052 + $0x30] sm:$0xf]
      %v3066 = vld [vmem:[%s3052 + $0x34] sm:$0xf]
      %v3067 = vld [vmem:[%s3052 + $0x38] sm:$0xf]
      %v3068 = vld [vmem:[%s3052 + $0x3c] sm:$0xf]
      %v3069 = vunpack.c.l.b16 %v2898
      %v3070 = vpack.c.b16 %v2917, %v2916
      %v3071 = vpack.c.b16 %v2919, %v2918
      %v3072 = vpack.c.b16 %v2921, %v2920
      %v3073 = vpack.c.b16 %v3069, %v2922
      %v3094 = vunpack.c.l.b16 %v3053
      %v3095 = vunpack.c.l.b16 %v3054
      %v3096 = vunpack.c.l.b16 %v3055
      %v3097 = vunpack.c.l.b16 %v3056
      %v3098 = vunpack.c.l.b16 %v3057
      %v3099 = vunpack.c.l.b16 %v3058
      %v3100 = vunpack.c.l.b16 %v3059
      %v3101 = vunpack.c.l.b16 %v3060
      %v3102 = vunpack.c.l.b16 %v3061
      %v3103 = vunpack.c.l.b16 %v3062
      %v3104 = vunpack.c.l.b16 %v3063
      %v3105 = vunpack.c.l.b16 %v3064
      %v3106 = vunpack.c.l.b16 %v3065
      %v3107 = vunpack.c.l.b16 %v3066
      %v3108 = vunpack.c.l.b16 %v3067
      %v3109 = vunpack.c.l.b16 %v3068
      %v3110 = vpack.c.b16 %v3095, %v3094
      %v3111 = vpack.c.b16 %v3097, %v3096
      %v3112 = vpack.c.b16 %v3099, %v3098
      %v3113 = vpack.c.b16 %v3101, %v3100
      %v3114 = vpack.c.b16 %v3103, %v3102
      %v3115 = vpack.c.b16 %v3105, %v3104
      %v3116 = vpack.c.b16 %v3107, %v3106
      %v3117 = vpack.c.b16 %v3109, %v3108
      %3126 = vmatprep.subr.bf16.mxu0 0
      %3127 = vmatpush1.bf16.msra.mxu0 %v3110
      %3128 = vmatprep.subr.bf16.mxu0 0
      %3129 = vmatpush1.bf16.msra.mxu0 %v3111
      %3130 = vmatprep.subr.bf16.mxu0 0
      %3131 = vmatpush1.bf16.msra.mxu0 %v3112
      %3132 = vmatprep.subr.bf16.mxu0 0
      %3133 = vmatpush1.bf16.msra.mxu0 %v3113
      %3134 = vmatprep.subr.bf16.mxu0 0
      %3135 = vmatpush1.bf16.msra.mxu0 %v3114
      %3136 = vmatprep.subr.bf16.mxu0 0
      %3137 = vmatpush1.bf16.msra.mxu0 %v3115
      %3138 = vmatprep.subr.bf16.mxu0 0
      %3139 = vmatpush1.bf16.msra.mxu0 %v3116
      %3140 = vmatprep.subr.bf16.mxu0 0
      %3141 = vmatpush1.bf16.msra.mxu0 %v3117
      %3142 = vmatprep.subr.bf16.mxu0 0
      %3143 = vmatpush1.bf16.msra.mxu0 0
      %3144 = vmatprep.subr.bf16.mxu0 0
      %3145 = vmatpush1.bf16.msra.mxu0 0
      %3146 = vmatprep.subr.bf16.mxu0 0
      %3147 = vmatpush1.bf16.msra.mxu0 0
      %3148 = vmatprep.subr.bf16.mxu0 0
      %3149 = vmatpush1.bf16.msra.mxu0 0
      %3150 = vmatprep.subr.bf16.mxu0 0
      %3151 = vmatpush1.bf16.msra.mxu0 0
      %3152 = vmatprep.subr.bf16.mxu0 0
      %3153 = vmatpush1.bf16.msra.mxu0 0
      %3154 = vmatprep.subr.bf16.mxu0 0
      %3155 = vmatpush1.bf16.msra.mxu0 0
      %3156 = vmatprep.subr.bf16.mxu0 0
      %3157 = vmatpush1.bf16.msra.mxu0 0
      %3158 = vmatprep.mubr.bf16.mxu0 0
      %3159 = vmatmul.mubr.bf16.gmra.mrb[0].mxu0 %v3070
      %v3160 = vpop.f32.mrb[0].mxu0
      %v3161 = vadd.f32 0.0, %v3160
      %v3162 = vpop.f32.mrb[0].mxu0
      %v3163 = vpop.f32.mrb[0].mxu0
      %v3164 = vadd.f32 0.0, %v3163
      %v3165 = vpop.f32.mrb[0].mxu0
      %3166 = vmatprep.mubr.bf16.mxu0 0
      %3167 = vmatmul.mubr.bf16.gmra.mrb[0].mxu0 %v3071
      %v3168 = vpop.f32.mrb[0].mxu0
      %v3169 = vadd.f32 0.0, %v3168
      %v3170 = vpop.f32.mrb[0].mxu0
      %v3171 = vpop.f32.mrb[0].mxu0
      %v3172 = vadd.f32 0.0, %v3171
      %v3173 = vpop.f32.mrb[0].mxu0
      %3174 = vmatprep.mubr.bf16.mxu0 0
      %3175 = vmatmul.mubr.bf16.gmra.mrb[0].mxu0 %v3072
      %v3176 = vpop.f32.mrb[0].mxu0
      %v3177 = vadd.f32 0.0, %v3176
      %v3178 = vpop.f32.mrb[0].mxu0
      %v3179 = vpop.f32.mrb[0].mxu0
      %v3180 = vadd.f32 0.0, %v3179
      %v3181 = vpop.f32.mrb[0].mxu0
      %3182 = vmatprep.mubr.bf16.mxu0 0
      %3183 = vmatmul.mubr.bf16.gmra.mrb[0].mxu0 %v3073
      %v3184 = vpop.f32.mrb[0].mxu0
      %v3185 = vadd.f32 0.0, %v3184
      %v3186 = vpop.f32.mrb[0].mxu0
      %v3187 = vpop.f32.mrb[0].mxu0
      %v3188 = vadd.f32 0.0, %v3187
      %v3189 = vpop.f32.mrb[0].mxu0
      %3190 = vdwg.mxu0
      %v3191 = vadd.f32 %v3044, %v3161
      %v3192 = vadd.f32 %v3045, %v3164
      %v3193 = vadd.f32 %v3046, %v3169
      %v3194 = vadd.f32 %v3047, %v3172
      %v3195 = vadd.f32 %v3048, %v3177
      %v3196 = vadd.f32 %v3049, %v3180
      %v3197 = vadd.f32 %v3050, %v3185
      %v3198 = vadd.f32 %v3051, %v3188
      %s3199 = scalar_lea.vmem %s3, 1024
      %v3200 = vld [vmem:[%s3199] sm:$0xf]
      %v3201 = vld [vmem:[%s3199 + $0x4] sm:$0xf]
      %v3202 = vld [vmem:[%s3199 + $0x8] sm:$0xf]
      %v3203 = vld [vmem:[%s3199 + $0xc] sm:$0xf]
      %v3204 = vld [vmem:[%s3199 + $0x10] sm:$0xf]
      %v3205 = vld [vmem:[%s3199 + $0x14] sm:$0xf]
      %v3206 = vld [vmem:[%s3199 + $0x18] sm:$0xf]
      %v3207 = vld [vmem:[%s3199 + $0x1c] sm:$0xf]
      %v3208 = vld [vmem:[%s3199 + $0x20] sm:$0xf]
      %v3209 = vld [vmem:[%s3199 + $0x24] sm:$0xf]
      %v3210 = vld [vmem:[%s3199 + $0x28] sm:$0xf]
      %v3211 = vld [vmem:[%s3199 + $0x2c] sm:$0xf]
      %v3212 = vld [vmem:[%s3199 + $0x30] sm:$0xf]
      %v3213 = vld [vmem:[%s3199 + $0x34] sm:$0xf]
      %v3214 = vld [vmem:[%s3199 + $0x38] sm:$0xf]
      %v3215 = vld [vmem:[%s3199 + $0x3c] sm:$0xf]
      %v3216 = vpack.c.b16 %v1331, %v3069
      %v3234 = vunpack.c.l.b16 %v3200
      %v3235 = vunpack.c.l.b16 %v3201
      %v3236 = vunpack.c.l.b16 %v3202
      %v3237 = vunpack.c.l.b16 %v3203
      %v3238 = vunpack.c.l.b16 %v3204
      %v3239 = vunpack.c.l.b16 %v3205
      %v3240 = vunpack.c.l.b16 %v3206
      %v3241 = vunpack.c.l.b16 %v3207
      %v3242 = vunpack.c.l.b16 %v3208
      %v3243 = vunpack.c.l.b16 %v3209
      %v3244 = vunpack.c.l.b16 %v3210
      %v3245 = vunpack.c.l.b16 %v3211
      %v3246 = vunpack.c.l.b16 %v3212
      %v3247 = vunpack.c.l.b16 %v3213
      %v3248 = vunpack.c.l.b16 %v3214
      %v3249 = vunpack.c.l.b16 %v3215
      %v3250 = vpack.c.b16 %v3235, %v3234
      %v3251 = vpack.c.b16 %v3237, %v3236
      %v3252 = vpack.c.b16 %v3239, %v3238
      %v3253 = vpack.c.b16 %v3241, %v3240
      %v3254 = vpack.c.b16 %v3243, %v3242
      %v3255 = vpack.c.b16 %v3245, %v3244
      %v3256 = vpack.c.b16 %v3247, %v3246
      %v3257 = vpack.c.b16 %v3249, %v3248
      %3266 = vmatprep.subr.bf16.mxu0 0
      %3267 = vmatpush1.bf16.msra.mxu0 %v3250
      %3268 = vmatprep.subr.bf16.mxu0 0
      %3269 = vmatpush1.bf16.msra.mxu0 %v3251
      %3270 = vmatprep.subr.bf16.mxu0 0
      %3271 = vmatpush1.bf16.msra.mxu0 %v3252
      %3272 = vmatprep.subr.bf16.mxu0 0
      %3273 = vmatpush1.bf16.msra.mxu0 %v3253
      %3274 = vmatprep.subr.bf16.mxu0 0
      %3275 = vmatpush1.bf16.msra.mxu0 %v3254
      %3276 = vmatprep.subr.bf16.mxu0 0
      %3277 = vmatpush1.bf16.msra.mxu0 %v3255
      %3278 = vmatprep.subr.bf16.mxu0 0
      %3279 = vmatpush1.bf16.msra.mxu0 %v3256
      %3280 = vmatprep.subr.bf16.mxu0 0
      %3281 = vmatpush1.bf16.msra.mxu0 %v3257
      %3282 = vmatprep.subr.bf16.mxu0 0
      %3283 = vmatpush1.bf16.msra.mxu0 0
      %3284 = vmatprep.subr.bf16.mxu0 0
      %3285 = vmatpush1.bf16.msra.mxu0 0
      %3286 = vmatprep.subr.bf16.mxu0 0
      %3287 = vmatpush1.bf16.msra.mxu0 0
      %3288 = vmatprep.subr.bf16.mxu0 0
      %3289 = vmatpush1.bf16.msra.mxu0 0
      %3290 = vmatprep.subr.bf16.mxu0 0
      %3291 = vmatpush1.bf16.msra.mxu0 0
      %3292 = vmatprep.subr.bf16.mxu0 0
      %3293 = vmatpush1.bf16.msra.mxu0 0
      %3294 = vmatprep.subr.bf16.mxu0 0
      %3295 = vmatpush1.bf16.msra.mxu0 0
      %3296 = vmatprep.subr.bf16.mxu0 0
      %3297 = vmatpush1.bf16.msra.mxu0 0
      %3298 = vmatprep.mubr.bf16.mxu0 0
      %3299 = vmatmul.mubr.bf16.gmra.mrb[0].mxu0 %v2924
      %v3300 = vpop.f32.mrb[0].mxu0
      %v3301 = vadd.f32 0.0, %v3300
      %v3302 = vpop.f32.mrb[0].mxu0
      %v3303 = vpop.f32.mrb[0].mxu0
      %v3304 = vadd.f32 0.0, %v3303
      %v3305 = vpop.f32.mrb[0].mxu0
      %3306 = vmatprep.mubr.bf16.mxu0 0
      %3307 = vmatmul.mubr.bf16.gmra.mrb[0].mxu0 %v2925
      %v3308 = vpop.f32.mrb[0].mxu0
      %v3309 = vadd.f32 0.0, %v3308
      %v3310 = vpop.f32.mrb[0].mxu0
      %v3311 = vpop.f32.mrb[0].mxu0
      %v3312 = vadd.f32 0.0, %v3311
      %v3313 = vpop.f32.mrb[0].mxu0
      %3314 = vmatprep.mubr.bf16.mxu0 0
      %3315 = vmatmul.mubr.bf16.gmra.mrb[0].mxu0 %v2926
      %v3316 = vpop.f32.mrb[0].mxu0
      %v3317 = vadd.f32 0.0, %v3316
      %v3318 = vpop.f32.mrb[0].mxu0
      %v3319 = vpop.f32.mrb[0].mxu0
      %v3320 = vadd.f32 0.0, %v3319
      %v3321 = vpop.f32.mrb[0].mxu0
      %3322 = vmatprep.mubr.bf16.mxu0 0
      %3323 = vmatmul.mubr.bf16.gmra.mrb[0].mxu0 %v3216
      %v3324 = vpop.f32.mrb[0].mxu0
      %v3325 = vadd.f32 0.0, %v3324
      %v3326 = vpop.f32.mrb[0].mxu0
      %v3327 = vpop.f32.mrb[0].mxu0
      %v3328 = vadd.f32 0.0, %v3327
      %v3329 = vpop.f32.mrb[0].mxu0
      %3330 = vdwg.mxu0
      %v3331 = vadd.f32 %v3191, %v3301
      %v3332 = vadd.f32 %v3192, %v3304
      %v3333 = vadd.f32 %v3193, %v3309
      %v3334 = vadd.f32 %v3194, %v3312
      %v3335 = vadd.f32 %v3195, %v3317
      %v3336 = vadd.f32 %v3196, %v3320
      %v3337 = vadd.f32 %v3197, %v3325
      %v3338 = vadd.f32 %v3198, %v3328
      %v3339 = vrot.slane %v2771, 5
      %v3340 = vrot.slane %v3339, 4
      %v3341 = vrot.slane %v2772, 5
      %v3342 = vsel %vm1757, %v3340, %v3341
      %v3343 = vrot.slane %v2773, 5
      %v3344 = vrot.slane %v3343, 4
      %v3345 = vrot.slane %v2774, 5
      %v3346 = vsel %vm1757, %v3344, %v3345
      %v3347 = vrot.slane %v2775, 5
      %v3348 = vrot.slane %v3347, 4
      %v3349 = vrot.slane %v2776, 5
      %v3350 = vsel %vm1757, %v3348, %v3349
      %v3351 = vrot.slane %v2777, 5
      %v3352 = vrot.slane %v3351, 4
      %v3353 = vrot.slane %v2778, 5
      %v3354 = vsel %vm1757, %v3352, %v3353
      %v3355 = vrot.slane %v2779, 5
      %v3356 = vrot.slane %v3355, 4
      %v3357 = vrot.slane %v2780, 5
      %v3358 = vsel %vm1757, %v3356, %v3357
      %v3359 = vrot.slane %v2781, 5
      %v3360 = vrot.slane %v3359, 4
      %v3361 = vrot.slane %v2782, 5
      %v3362 = vsel %vm1757, %v3360, %v3361
      %v3363 = vrot.slane %v2783, 5
      %v3364 = vrot.slane %v3363, 4
      %v3365 = vrot.slane %v2784, 5
      %v3366 = vsel %vm1757, %v3364, %v3365
      %v3367 = vrot.slane %v2785, 5
      %v3368 = vrot.slane %v3367, 4
      %v3369 = vrot.slane %v2786, 5
      %v3370 = vsel %vm1757, %v3368, %v3369
      %s3371 = scalar_lea.vmem %s3, 704
      %v3372 = vld [vmem:[%s3371] sm:$0xf]
      %v3373 = vld [vmem:[%s3371 + $0x4] sm:$0xf]
      %v3374 = vld [vmem:[%s3371 + $0x8] sm:$0xf]
      %v3375 = vld [vmem:[%s3371 + $0xc] sm:$0xf]
      %v3376 = vld [vmem:[%s3371 + $0x10] sm:$0xf]
      %v3377 = vld [vmem:[%s3371 + $0x14] sm:$0xf]
      %v3378 = vld [vmem:[%s3371 + $0x18] sm:$0xf]
      %v3379 = vld [vmem:[%s3371 + $0x1c] sm:$0xf]
      %v3380 = vld [vmem:[%s3371 + $0x20] sm:$0xf]
      %v3381 = vld [vmem:[%s3371 + $0x24] sm:$0xf]
      %v3382 = vld [vmem:[%s3371 + $0x28] sm:$0xf]
      %v3383 = vld [vmem:[%s3371 + $0x2c] sm:$0xf]
      %v3384 = vld [vmem:[%s3371 + $0x30] sm:$0xf]
      %v3385 = vld [vmem:[%s3371 + $0x34] sm:$0xf]
      %v3386 = vld [vmem:[%s3371 + $0x38] sm:$0xf]
      %v3387 = vld [vmem:[%s3371 + $0x3c] sm:$0xf]
      %v3388 = vunpack.c.l.b16 %v3342
      %v3389 = vunpack.c.l.b16 %v3346
      %v3390 = vunpack.c.l.b16 %v3350
      %v3391 = vunpack.c.l.b16 %v3354
      %v3392 = vunpack.c.l.b16 %v3358
      %v3393 = vunpack.c.l.b16 %v3362
      %v3394 = vunpack.c.l.b16 %v3366
      %v3395 = vpack.c.b16 %v3388, %v1811
      %v3396 = vpack.c.b16 %v3390, %v3389
      %v3397 = vpack.c.b16 %v3392, %v3391
      %v3398 = vpack.c.b16 %v3394, %v3393
      %v3419 = vunpack.c.l.b16 %v3372
      %v3420 = vunpack.c.l.b16 %v3373
      %v3421 = vunpack.c.l.b16 %v3374
      %v3422 = vunpack.c.l.b16 %v3375
      %v3423 = vunpack.c.l.b16 %v3376
      %v3424 = vunpack.c.l.b16 %v3377
      %v3425 = vunpack.c.l.b16 %v3378
      %v3426 = vunpack.c.l.b16 %v3379
      %v3427 = vunpack.c.l.b16 %v3380
      %v3428 = vunpack.c.l.b16 %v3381
      %v3429 = vunpack.c.l.b16 %v3382
      %v3430 = vunpack.c.l.b16 %v3383
      %v3431 = vunpack.c.l.b16 %v3384
      %v3432 = vunpack.c.l.b16 %v3385
      %v3433 = vunpack.c.l.b16 %v3386
      %v3434 = vunpack.c.l.b16 %v3387
      %v3435 = vpack.c.b16 %v3420, %v3419
      %v3436 = vpack.c.b16 %v3422, %v3421
      %v3437 = vpack.c.b16 %v3424, %v3423
      %v3438 = vpack.c.b16 %v3426, %v3425
      %v3439 = vpack.c.b16 %v3428, %v3427
      %v3440 = vpack.c.b16 %v3430, %v3429
      %v3441 = vpack.c.b16 %v3432, %v3431
      %v3442 = vpack.c.b16 %v3434, %v3433
      %3451 = vmatprep.subr.bf16.mxu0 0
      %3452 = vmatpush1.bf16.msra.mxu0 %v3435
      %3453 = vmatprep.subr.bf16.mxu0 0
      %3454 = vmatpush1.bf16.msra.mxu0 %v3436
      %3455 = vmatprep.subr.bf16.mxu0 0
      %3456 = vmatpush1.bf16.msra.mxu0 %v3437
      %3457 = vmatprep.subr.bf16.mxu0 0
      %3458 = vmatpush1.bf16.msra.mxu0 %v3438
      %3459 = vmatprep.subr.bf16.mxu0 0
      %3460 = vmatpush1.bf16.msra.mxu0 %v3439
      %3461 = vmatprep.subr.bf16.mxu0 0
      %3462 = vmatpush1.bf16.msra.mxu0 %v3440
      %3463 = vmatprep.subr.bf16.mxu0 0
      %3464 = vmatpush1.bf16.msra.mxu0 %v3441
      %3465 = vmatprep.subr.bf16.mxu0 0
      %3466 = vmatpush1.bf16.msra.mxu0 %v3442
      %3467 = vmatprep.subr.bf16.mxu0 0
      %3468 = vmatpush1.bf16.msra.mxu0 0
      %3469 = vmatprep.subr.bf16.mxu0 0
      %3470 = vmatpush1.bf16.msra.mxu0 0
      %3471 = vmatprep.subr.bf16.mxu0 0
      %3472 = vmatpush1.bf16.msra.mxu0 0
      %3473 = vmatprep.subr.bf16.mxu0 0
      %3474 = vmatpush1.bf16.msra.mxu0 0
      %3475 = vmatprep.subr.bf16.mxu0 0
      %3476 = vmatpush1.bf16.msra.mxu0 0
      %3477 = vmatprep.subr.bf16.mxu0 0
      %3478 = vmatpush1.bf16.msra.mxu0 0
      %3479 = vmatprep.subr.bf16.mxu0 0
      %3480 = vmatpush1.bf16.msra.mxu0 0
      %3481 = vmatprep.subr.bf16.mxu0 0
      %3482 = vmatpush1.bf16.msra.mxu0 0
      %3483 = vmatprep.mubr.bf16.mxu0 0
      %3484 = vmatmul.mubr.bf16.gmra.mrb[0].mxu0 %v3395
      %v3485 = vpop.f32.mrb[0].mxu0
      %v3486 = vadd.f32 0.0, %v3485
      %v3487 = vpop.f32.mrb[0].mxu0
      %v3488 = vpop.f32.mrb[0].mxu0
      %v3489 = vadd.f32 0.0, %v3488
      %v3490 = vpop.f32.mrb[0].mxu0
      %3491 = vmatprep.mubr.bf16.mxu0 0
      %3492 = vmatmul.mubr.bf16.gmra.mrb[0].mxu0 %v3396
      %v3493 = vpop.f32.mrb[0].mxu0
      %v3494 = vadd.f32 0.0, %v3493
      %v3495 = vpop.f32.mrb[0].mxu0
      %v3496 = vpop.f32.mrb[0].mxu0
      %v3497 = vadd.f32 0.0, %v3496
      %v3498 = vpop.f32.mrb[0].mxu0
      %3499 = vmatprep.mubr.bf16.mxu0 0
      %3500 = vmatmul.mubr.bf16.gmra.mrb[0].mxu0 %v3397
      %v3501 = vpop.f32.mrb[0].mxu0
      %v3502 = vadd.f32 0.0, %v3501
      %v3503 = vpop.f32.mrb[0].mxu0
      %v3504 = vpop.f32.mrb[0].mxu0
      %v3505 = vadd.f32 0.0, %v3504
      %v3506 = vpop.f32.mrb[0].mxu0
      %3507 = vmatprep.mubr.bf16.mxu0 0
      %3508 = vmatmul.mubr.bf16.gmra.mrb[0].mxu0 %v3398
      %v3509 = vpop.f32.mrb[0].mxu0
      %v3510 = vadd.f32 0.0, %v3509
      %v3511 = vpop.f32.mrb[0].mxu0
      %v3512 = vpop.f32.mrb[0].mxu0
      %v3513 = vadd.f32 0.0, %v3512
      %v3514 = vpop.f32.mrb[0].mxu0
      %3515 = vdwg.mxu0
      %v3516 = vadd.f32 %v3331, %v3486
      %v3517 = vadd.f32 %v3332, %v3489
      %v3518 = vadd.f32 %v3333, %v3494
      %v3519 = vadd.f32 %v3334, %v3497
      %v3520 = vadd.f32 %v3335, %v3502
      %v3521 = vadd.f32 %v3336, %v3505
      %v3522 = vadd.f32 %v3337, %v3510
      %v3523 = vadd.f32 %v3338, %v3513
      %s3524 = scalar_lea.vmem %s3, 896
      %v3525 = vld [vmem:[%s3524] sm:$0xf]
      %v3526 = vld [vmem:[%s3524 + $0x4] sm:$0xf]
      %v3527 = vld [vmem:[%s3524 + $0x8] sm:$0xf]
      %v3528 = vld [vmem:[%s3524 + $0xc] sm:$0xf]
      %v3529 = vld [vmem:[%s3524 + $0x10] sm:$0xf]
      %v3530 = vld [vmem:[%s3524 + $0x14] sm:$0xf]
      %v3531 = vld [vmem:[%s3524 + $0x18] sm:$0xf]
      %v3532 = vld [vmem:[%s3524 + $0x1c] sm:$0xf]
      %v3533 = vld [vmem:[%s3524 + $0x20] sm:$0xf]
      %v3534 = vld [vmem:[%s3524 + $0x24] sm:$0xf]
      %v3535 = vld [vmem:[%s3524 + $0x28] sm:$0xf]
      %v3536 = vld [vmem:[%s3524 + $0x2c] sm:$0xf]
      %v3537 = vld [vmem:[%s3524 + $0x30] sm:$0xf]
      %v3538 = vld [vmem:[%s3524 + $0x34] sm:$0xf]
      %v3539 = vld [vmem:[%s3524 + $0x38] sm:$0xf]
      %v3540 = vld [vmem:[%s3524 + $0x3c] sm:$0xf]
      %v3541 = vunpack.c.l.b16 %v3370
      %v3542 = vpack.c.b16 %v3389, %v3388
      %v3543 = vpack.c.b16 %v3391, %v3390
      %v3544 = vpack.c.b16 %v3393, %v3392
      %v3545 = vpack.c.b16 %v3541, %v3394
      %v3566 = vunpack.c.l.b16 %v3525
      %v3567 = vunpack.c.l.b16 %v3526
      %v3568 = vunpack.c.l.b16 %v3527
      %v3569 = vunpack.c.l.b16 %v3528
      %v3570 = vunpack.c.l.b16 %v3529
      %v3571 = vunpack.c.l.b16 %v3530
      %v3572 = vunpack.c.l.b16 %v3531
      %v3573 = vunpack.c.l.b16 %v3532
      %v3574 = vunpack.c.l.b16 %v3533
      %v3575 = vunpack.c.l.b16 %v3534
      %v3576 = vunpack.c.l.b16 %v3535
      %v3577 = vunpack.c.l.b16 %v3536
      %v3578 = vunpack.c.l.b16 %v3537
      %v3579 = vunpack.c.l.b16 %v3538
      %v3580 = vunpack.c.l.b16 %v3539
      %v3581 = vunpack.c.l.b16 %v3540
      %v3582 = vpack.c.b16 %v3567, %v3566
      %v3583 = vpack.c.b16 %v3569, %v3568
      %v3584 = vpack.c.b16 %v3571, %v3570
      %v3585 = vpack.c.b16 %v3573, %v3572
      %v3586 = vpack.c.b16 %v3575, %v3574
      %v3587 = vpack.c.b16 %v3577, %v3576
      %v3588 = vpack.c.b16 %v3579, %v3578
      %v3589 = vpack.c.b16 %v3581, %v3580
      %3598 = vmatprep.subr.bf16.mxu0 0
      %3599 = vmatpush1.bf16.msra.mxu0 %v3582
      %3600 = vmatprep.subr.bf16.mxu0 0
      %3601 = vmatpush1.bf16.msra.mxu0 %v3583
      %3602 = vmatprep.subr.bf16.mxu0 0
      %3603 = vmatpush1.bf16.msra.mxu0 %v3584
      %3604 = vmatprep.subr.bf16.mxu0 0
      %3605 = vmatpush1.bf16.msra.mxu0 %v3585
      %3606 = vmatprep.subr.bf16.mxu0 0
      %3607 = vmatpush1.bf16.msra.mxu0 %v3586
      %3608 = vmatprep.subr.bf16.mxu0 0
      %3609 = vmatpush1.bf16.msra.mxu0 %v3587
      %3610 = vmatprep.subr.bf16.mxu0 0
      %3611 = vmatpush1.bf16.msra.mxu0 %v3588
      %3612 = vmatprep.subr.bf16.mxu0 0
      %3613 = vmatpush1.bf16.msra.mxu0 %v3589
      %3614 = vmatprep.subr.bf16.mxu0 0
      %3615 = vmatpush1.bf16.msra.mxu0 0
      %3616 = vmatprep.subr.bf16.mxu0 0
      %3617 = vmatpush1.bf16.msra.mxu0 0
      %3618 = vmatprep.subr.bf16.mxu0 0
      %3619 = vmatpush1.bf16.msra.mxu0 0
      %3620 = vmatprep.subr.bf16.mxu0 0
      %3621 = vmatpush1.bf16.msra.mxu0 0
      %3622 = vmatprep.subr.bf16.mxu0 0
      %3623 = vmatpush1.bf16.msra.mxu0 0
      %3624 = vmatprep.subr.bf16.mxu0 0
      %3625 = vmatpush1.bf16.msra.mxu0 0
      %3626 = vmatprep.subr.bf16.mxu0 0
      %3627 = vmatpush1.bf16.msra.mxu0 0
      %3628 = vmatprep.subr.bf16.mxu0 0
      %3629 = vmatpush1.bf16.msra.mxu0 0
      %3630 = vmatprep.mubr.bf16.mxu0 0
      %3631 = vmatmul.mubr.bf16.gmra.mrb[0].mxu0 %v3542
      %v3632 = vpop.f32.mrb[0].mxu0
      %v3633 = vadd.f32 0.0, %v3632
      %v3634 = vpop.f32.mrb[0].mxu0
      %v3635 = vpop.f32.mrb[0].mxu0
      %v3636 = vadd.f32 0.0, %v3635
      %v3637 = vpop.f32.mrb[0].mxu0
      %3638 = vmatprep.mubr.bf16.mxu0 0
      %3639 = vmatmul.mubr.bf16.gmra.mrb[0].mxu0 %v3543
      %v3640 = vpop.f32.mrb[0].mxu0
      %v3641 = vadd.f32 0.0, %v3640
      %v3642 = vpop.f32.mrb[0].mxu0
      %v3643 = vpop.f32.mrb[0].mxu0
      %v3644 = vadd.f32 0.0, %v3643
      %v3645 = vpop.f32.mrb[0].mxu0
      %3646 = vmatprep.mubr.bf16.mxu0 0
      %3647 = vmatmul.mubr.bf16.gmra.mrb[0].mxu0 %v3544
      %v3648 = vpop.f32.mrb[0].mxu0
      %v3649 = vadd.f32 0.0, %v3648
      %v3650 = vpop.f32.mrb[0].mxu0
      %v3651 = vpop.f32.mrb[0].mxu0
      %v3652 = vadd.f32 0.0, %v3651
      %v3653 = vpop.f32.mrb[0].mxu0
      %3654 = vmatprep.mubr.bf16.mxu0 0
      %3655 = vmatmul.mubr.bf16.gmra.mrb[0].mxu0 %v3545
      %v3656 = vpop.f32.mrb[0].mxu0
      %v3657 = vadd.f32 0.0, %v3656
      %v3658 = vpop.f32.mrb[0].mxu0
      %v3659 = vpop.f32.mrb[0].mxu0
      %v3660 = vadd.f32 0.0, %v3659
      %v3661 = vpop.f32.mrb[0].mxu0
      %3662 = vdwg.mxu0
      %v3663 = vadd.f32 %v3516, %v3633
      %v3664 = vadd.f32 %v3517, %v3636
      %v3665 = vadd.f32 %v3518, %v3641
      %v3666 = vadd.f32 %v3519, %v3644
      %v3667 = vadd.f32 %v3520, %v3649
      %v3668 = vadd.f32 %v3521, %v3652
      %v3669 = vadd.f32 %v3522, %v3657
      %v3670 = vadd.f32 %v3523, %v3660
      %s3671 = scalar_lea.vmem %s3, 1088
      %v3672 = vld [vmem:[%s3671] sm:$0xf]
      %v3673 = vld [vmem:[%s3671 + $0x4] sm:$0xf]
      %v3674 = vld [vmem:[%s3671 + $0x8] sm:$0xf]
      %v3675 = vld [vmem:[%s3671 + $0xc] sm:$0xf]
      %v3676 = vld [vmem:[%s3671 + $0x10] sm:$0xf]
      %v3677 = vld [vmem:[%s3671 + $0x14] sm:$0xf]
      %v3678 = vld [vmem:[%s3671 + $0x18] sm:$0xf]
      %v3679 = vld [vmem:[%s3671 + $0x1c] sm:$0xf]
      %v3680 = vld [vmem:[%s3671 + $0x20] sm:$0xf]
      %v3681 = vld [vmem:[%s3671 + $0x24] sm:$0xf]
      %v3682 = vld [vmem:[%s3671 + $0x28] sm:$0xf]
      %v3683 = vld [vmem:[%s3671 + $0x2c] sm:$0xf]
      %v3684 = vld [vmem:[%s3671 + $0x30] sm:$0xf]
      %v3685 = vld [vmem:[%s3671 + $0x34] sm:$0xf]
      %v3686 = vld [vmem:[%s3671 + $0x38] sm:$0xf]
      %v3687 = vld [vmem:[%s3671 + $0x3c] sm:$0xf]
      %v3688 = vpack.c.b16 %v1811, %v3541
      %v3706 = vunpack.c.l.b16 %v3672
      %v3707 = vunpack.c.l.b16 %v3673
      %v3708 = vunpack.c.l.b16 %v3674
      %v3709 = vunpack.c.l.b16 %v3675
      %v3710 = vunpack.c.l.b16 %v3676
      %v3711 = vunpack.c.l.b16 %v3677
      %v3712 = vunpack.c.l.b16 %v3678
      %v3713 = vunpack.c.l.b16 %v3679
      %v3714 = vunpack.c.l.b16 %v3680
      %v3715 = vunpack.c.l.b16 %v3681
      %v3716 = vunpack.c.l.b16 %v3682
      %v3717 = vunpack.c.l.b16 %v3683
      %v3718 = vunpack.c.l.b16 %v3684
      %v3719 = vunpack.c.l.b16 %v3685
      %v3720 = vunpack.c.l.b16 %v3686
      %v3721 = vunpack.c.l.b16 %v3687
      %v3722 = vpack.c.b16 %v3707, %v3706
      %v3723 = vpack.c.b16 %v3709, %v3708
      %v3724 = vpack.c.b16 %v3711, %v3710
      %v3725 = vpack.c.b16 %v3713, %v3712
      %v3726 = vpack.c.b16 %v3715, %v3714
      %v3727 = vpack.c.b16 %v3717, %v3716
      %v3728 = vpack.c.b16 %v3719, %v3718
      %v3729 = vpack.c.b16 %v3721, %v3720
      %3738 = vmatprep.subr.bf16.mxu0 0
      %3739 = vmatpush1.bf16.msra.mxu0 %v3722
      %3740 = vmatprep.subr.bf16.mxu0 0
      %3741 = vmatpush1.bf16.msra.mxu0 %v3723
      %3742 = vmatprep.subr.bf16.mxu0 0
      %3743 = vmatpush1.bf16.msra.mxu0 %v3724
      %3744 = vmatprep.subr.bf16.mxu0 0
      %3745 = vmatpush1.bf16.msra.mxu0 %v3725
      %3746 = vmatprep.subr.bf16.mxu0 0
      %3747 = vmatpush1.bf16.msra.mxu0 %v3726
      %3748 = vmatprep.subr.bf16.mxu0 0
      %3749 = vmatpush1.bf16.msra.mxu0 %v3727
      %3750 = vmatprep.subr.bf16.mxu0 0
      %3751 = vmatpush1.bf16.msra.mxu0 %v3728
      %3752 = vmatprep.subr.bf16.mxu0 0
      %3753 = vmatpush1.bf16.msra.mxu0 %v3729
      %3754 = vmatprep.subr.bf16.mxu0 0
      %3755 = vmatpush1.bf16.msra.mxu0 0
      %3756 = vmatprep.subr.bf16.mxu0 0
      %3757 = vmatpush1.bf16.msra.mxu0 0
      %3758 = vmatprep.subr.bf16.mxu0 0
      %3759 = vmatpush1.bf16.msra.mxu0 0
      %3760 = vmatprep.subr.bf16.mxu0 0
      %3761 = vmatpush1.bf16.msra.mxu0 0
      %3762 = vmatprep.subr.bf16.mxu0 0
      %3763 = vmatpush1.bf16.msra.mxu0 0
      %3764 = vmatprep.subr.bf16.mxu0 0
      %3765 = vmatpush1.bf16.msra.mxu0 0
      %3766 = vmatprep.subr.bf16.mxu0 0
      %3767 = vmatpush1.bf16.msra.mxu0 0
      %3768 = vmatprep.subr.bf16.mxu0 0
      %3769 = vmatpush1.bf16.msra.mxu0 0
      %3770 = vmatprep.mubr.bf16.mxu0 0
      %3771 = vmatmul.mubr.bf16.gmra.mrb[0].mxu0 %v3396
      %v3772 = vpop.f32.mrb[0].mxu0
      %v3773 = vadd.f32 0.0, %v3772
      %v3774 = vpop.f32.mrb[0].mxu0
      %v3775 = vpop.f32.mrb[0].mxu0
      %v3776 = vadd.f32 0.0, %v3775
      %v3777 = vpop.f32.mrb[0].mxu0
      %3778 = vmatprep.mubr.bf16.mxu0 0
      %3779 = vmatmul.mubr.bf16.gmra.mrb[0].mxu0 %v3397
      %v3780 = vpop.f32.mrb[0].mxu0
      %v3781 = vadd.f32 0.0, %v3780
      %v3782 = vpop.f32.mrb[0].mxu0
      %v3783 = vpop.f32.mrb[0].mxu0
      %v3784 = vadd.f32 0.0, %v3783
      %v3785 = vpop.f32.mrb[0].mxu0
      %3786 = vmatprep.mubr.bf16.mxu0 0
      %3787 = vmatmul.mubr.bf16.gmra.mrb[0].mxu0 %v3398
      %v3788 = vpop.f32.mrb[0].mxu0
      %v3789 = vadd.f32 0.0, %v3788
      %v3790 = vpop.f32.mrb[0].mxu0
      %v3791 = vpop.f32.mrb[0].mxu0
      %v3792 = vadd.f32 0.0, %v3791
      %v3793 = vpop.f32.mrb[0].mxu0
      %3794 = vmatprep.mubr.bf16.mxu0 0
      %3795 = vmatmul.mubr.bf16.gmra.mrb[0].mxu0 %v3688
      %v3796 = vpop.f32.mrb[0].mxu0
      %v3797 = vadd.f32 0.0, %v3796
      %v3798 = vpop.f32.mrb[0].mxu0
      %v3799 = vpop.f32.mrb[0].mxu0
      %v3800 = vadd.f32 0.0, %v3799
      %v3801 = vpop.f32.mrb[0].mxu0
      %3802 = vdwg.mxu0
      %v3803 = vadd.f32 %v3663, %v3773
      %v3804 = vadd.f32 %v3664, %v3776
      %v3805 = vadd.f32 %v3665, %v3781
      %v3806 = vadd.f32 %v3666, %v3784
      %v3807 = vadd.f32 %v3667, %v3789
      %v3808 = vadd.f32 %v3668, %v3792
      %v3809 = vadd.f32 %v3669, %v3797
      %v3810 = vadd.f32 %v3670, %v3800
      %v3812 = vshrl.u32 %v621, 16
      %v3814 = vrot.slane %v3812, 7
      %v3815 = vshll.u32 %v621, 16
      %v3817 = vor.u32 %v3814, %v3815
      %v3819 = vshrl.u32 %v622, 16
      %v3821 = vrot.slane %v3819, 7
      %v3822 = vshll.u32 %v622, 16
      %v3824 = vor.u32 %v3821, %v3822
      %v3826 = vshrl.u32 %v623, 16
      %v3828 = vrot.slane %v3826, 7
      %v3829 = vshll.u32 %v623, 16
      %v3831 = vor.u32 %v3828, %v3829
      %v3833 = vshrl.u32 %v624, 16
      %v3835 = vrot.slane %v3833, 7
      %v3836 = vshll.u32 %v624, 16
      %v3838 = vor.u32 %v3835, %v3836
      %v3840 = vshrl.u32 %v625, 16
      %v3842 = vrot.slane %v3840, 7
      %v3843 = vshll.u32 %v625, 16
      %v3845 = vor.u32 %v3842, %v3843
      %v3847 = vshrl.u32 %v626, 16
      %v3849 = vrot.slane %v3847, 7
      %v3850 = vshll.u32 %v626, 16
      %v3852 = vor.u32 %v3849, %v3850
      %v3854 = vshrl.u32 %v627, 16
      %v3856 = vrot.slane %v3854, 7
      %v3857 = vshll.u32 %v627, 16
      %v3859 = vor.u32 %v3856, %v3857
      %v3861 = vshrl.u32 %v628, 16
      %v3863 = vrot.slane %v3861, 7
      %v3864 = vshll.u32 %v628, 16
      %v3866 = vor.u32 %v3863, %v3864
      %v3875 = vsel %vm703, 0, %v3817
      %v3876 = vsel %vm703, 0, %v3824
      %v3877 = vsel %vm703, 0, %v3831
      %v3878 = vsel %vm703, 0, %v3838
      %v3879 = vsel %vm703, 0, %v3845
      %v3880 = vsel %vm703, 0, %v3852
      %v3881 = vsel %vm703, 0, %v3859
      %v3882 = vsel %vm703, 0, %v3866
      %v3883 = vsel %vm715, %v3875, 0
      %v3884 = vsel %vm715, %v3876, 0
      %v3885 = vsel %vm715, %v3877, 0
      %v3886 = vsel %vm715, %v3878, 0
      %v3887 = vsel %vm715, %v3879, 0
      %v3888 = vsel %vm715, %v3880, 0
      %v3889 = vsel %vm715, %v3881, 0
      %v3890 = vsel %vm715, %v3882, 0
      %s3891 = scalar_lea.vmem %s3, 1152
      %v3892 = vld [vmem:[%s3891] sm:$0xf]
      %v3893 = vld [vmem:[%s3891 + $0x4] sm:$0xf]
      %v3894 = vld [vmem:[%s3891 + $0x8] sm:$0xf]
      %v3895 = vld [vmem:[%s3891 + $0xc] sm:$0xf]
      %v3896 = vld [vmem:[%s3891 + $0x10] sm:$0xf]
      %v3897 = vld [vmem:[%s3891 + $0x14] sm:$0xf]
      %v3898 = vld [vmem:[%s3891 + $0x18] sm:$0xf]
      %v3899 = vld [vmem:[%s3891 + $0x1c] sm:$0xf]
      %v3900 = vld [vmem:[%s3891 + $0x20] sm:$0xf]
      %v3901 = vld [vmem:[%s3891 + $0x24] sm:$0xf]
      %v3902 = vld [vmem:[%s3891 + $0x28] sm:$0xf]
      %v3903 = vld [vmem:[%s3891 + $0x2c] sm:$0xf]
      %v3904 = vld [vmem:[%s3891 + $0x30] sm:$0xf]
      %v3905 = vld [vmem:[%s3891 + $0x34] sm:$0xf]
      %v3906 = vld [vmem:[%s3891 + $0x38] sm:$0xf]
      %v3907 = vld [vmem:[%s3891 + $0x3c] sm:$0xf]
      %v3915 = vunpack.c.l.b16 %v3883
      %v3916 = vunpack.c.l.b16 %v3884
      %v3917 = vunpack.c.l.b16 %v3885
      %v3918 = vunpack.c.l.b16 %v3886
      %v3919 = vunpack.c.l.b16 %v3887
      %v3920 = vunpack.c.l.b16 %v3888
      %v3921 = vunpack.c.l.b16 %v3889
      %v3922 = vpack.c.b16 %v3915, %v896
      %v3923 = vpack.c.b16 %v3917, %v3916
      %v3924 = vpack.c.b16 %v3919, %v3918
      %v3925 = vpack.c.b16 %v3921, %v3920
      %v3946 = vunpack.c.l.b16 %v3892
      %v3947 = vunpack.c.l.b16 %v3893
      %v3948 = vunpack.c.l.b16 %v3894
      %v3949 = vunpack.c.l.b16 %v3895
      %v3950 = vunpack.c.l.b16 %v3896
      %v3951 = vunpack.c.l.b16 %v3897
      %v3952 = vunpack.c.l.b16 %v3898
      %v3953 = vunpack.c.l.b16 %v3899
      %v3954 = vunpack.c.l.b16 %v3900
      %v3955 = vunpack.c.l.b16 %v3901
      %v3956 = vunpack.c.l.b16 %v3902
      %v3957 = vunpack.c.l.b16 %v3903
      %v3958 = vunpack.c.l.b16 %v3904
      %v3959 = vunpack.c.l.b16 %v3905
      %v3960 = vunpack.c.l.b16 %v3906
      %v3961 = vunpack.c.l.b16 %v3907
      %v3962 = vpack.c.b16 %v3947, %v3946
      %v3963 = vpack.c.b16 %v3949, %v3948
      %v3964 = vpack.c.b16 %v3951, %v3950
      %v3965 = vpack.c.b16 %v3953, %v3952
      %v3966 = vpack.c.b16 %v3955, %v3954
      %v3967 = vpack.c.b16 %v3957, %v3956
      %v3968 = vpack.c.b16 %v3959, %v3958
      %v3969 = vpack.c.b16 %v3961, %v3960
      %3978 = vmatprep.subr.bf16.mxu0 0
      %3979 = vmatpush1.bf16.msra.mxu0 %v3962
      %3980 = vmatprep.subr.bf16.mxu0 0
      %3981 = vmatpush1.bf16.msra.mxu0 %v3963
      %3982 = vmatprep.subr.bf16.mxu0 0
      %3983 = vmatpush1.bf16.msra.mxu0 %v3964
      %3984 = vmatprep.subr.bf16.mxu0 0
      %3985 = vmatpush1.bf16.msra.mxu0 %v3965
      %3986 = vmatprep.subr.bf16.mxu0 0
      %3987 = vmatpush1.bf16.msra.mxu0 %v3966
      %3988 = vmatprep.subr.bf16.mxu0 0
      %3989 = vmatpush1.bf16.msra.mxu0 %v3967
      %3990 = vmatprep.subr.bf16.mxu0 0
      %3991 = vmatpush1.bf16.msra.mxu0 %v3968
      %3992 = vmatprep.subr.bf16.mxu0 0
      %3993 = vmatpush1.bf16.msra.mxu0 %v3969
      %3994 = vmatprep.subr.bf16.mxu0 0
      %3995 = vmatpush1.bf16.msra.mxu0 0
      %3996 = vmatprep.subr.bf16.mxu0 0
      %3997 = vmatpush1.bf16.msra.mxu0 0
      %3998 = vmatprep.subr.bf16.mxu0 0
      %3999 = vmatpush1.bf16.msra.mxu0 0
      %4000 = vmatprep.subr.bf16.mxu0 0
      %4001 = vmatpush1.bf16.msra.mxu0 0
      %4002 = vmatprep.subr.bf16.mxu0 0
      %4003 = vmatpush1.bf16.msra.mxu0 0
      %4004 = vmatprep.subr.bf16.mxu0 0
      %4005 = vmatpush1.bf16.msra.mxu0 0
      %4006 = vmatprep.subr.bf16.mxu0 0
      %4007 = vmatpush1.bf16.msra.mxu0 0
      %4008 = vmatprep.subr.bf16.mxu0 0
      %4009 = vmatpush1.bf16.msra.mxu0 0
      %4010 = vmatprep.mubr.bf16.mxu0 0
      %4011 = vmatmul.mubr.bf16.gmra.mrb[0].mxu0 %v3922
      %v4012 = vpop.f32.mrb[0].mxu0
      %v4013 = vadd.f32 0.0, %v4012
      %v4014 = vpop.f32.mrb[0].mxu0
      %v4015 = vpop.f32.mrb[0].mxu0
      %v4016 = vadd.f32 0.0, %v4015
      %v4017 = vpop.f32.mrb[0].mxu0
      %4018 = vmatprep.mubr.bf16.mxu0 0
      %4019 = vmatmul.mubr.bf16.gmra.mrb[0].mxu0 %v3923
      %v4020 = vpop.f32.mrb[0].mxu0
      %v4021 = vadd.f32 0.0, %v4020
      %v4022 = vpop.f32.mrb[0].mxu0
      %v4023 = vpop.f32.mrb[0].mxu0
      %v4024 = vadd.f32 0.0, %v4023
      %v4025 = vpop.f32.mrb[0].mxu0
      %4026 = vmatprep.mubr.bf16.mxu0 0
      %4027 = vmatmul.mubr.bf16.gmra.mrb[0].mxu0 %v3924
      %v4028 = vpop.f32.mrb[0].mxu0
      %v4029 = vadd.f32 0.0, %v4028
      %v4030 = vpop.f32.mrb[0].mxu0
      %v4031 = vpop.f32.mrb[0].mxu0
      %v4032 = vadd.f32 0.0, %v4031
      %v4033 = vpop.f32.mrb[0].mxu0
      %4034 = vmatprep.mubr.bf16.mxu0 0
      %4035 = vmatmul.mubr.bf16.gmra.mrb[0].mxu0 %v3925
      %v4036 = vpop.f32.mrb[0].mxu0
      %v4037 = vadd.f32 0.0, %v4036
      %v4038 = vpop.f32.mrb[0].mxu0
      %v4039 = vpop.f32.mrb[0].mxu0
      %v4040 = vadd.f32 0.0, %v4039
      %v4041 = vpop.f32.mrb[0].mxu0
      %4042 = vdwg.mxu0
      %v4043 = vadd.f32 %v3803, %v4013
      %v4044 = vadd.f32 %v3804, %v4016
      %v4045 = vadd.f32 %v3805, %v4021
      %v4046 = vadd.f32 %v3806, %v4024
      %v4047 = vadd.f32 %v3807, %v4029
      %v4048 = vadd.f32 %v3808, %v4032
      %v4049 = vadd.f32 %v3809, %v4037
      %v4050 = vadd.f32 %v3810, %v4040
      %s4051 = scalar_lea.vmem %s3, 1344
      %v4052 = vld [vmem:[%s4051] sm:$0xf]
      %v4053 = vld [vmem:[%s4051 + $0x4] sm:$0xf]
      %v4054 = vld [vmem:[%s4051 + $0x8] sm:$0xf]
      %v4055 = vld [vmem:[%s4051 + $0xc] sm:$0xf]
      %v4056 = vld [vmem:[%s4051 + $0x10] sm:$0xf]
      %v4057 = vld [vmem:[%s4051 + $0x14] sm:$0xf]
      %v4058 = vld [vmem:[%s4051 + $0x18] sm:$0xf]
      %v4059 = vld [vmem:[%s4051 + $0x1c] sm:$0xf]
      %v4060 = vld [vmem:[%s4051 + $0x20] sm:$0xf]
      %v4061 = vld [vmem:[%s4051 + $0x24] sm:$0xf]
      %v4062 = vld [vmem:[%s4051 + $0x28] sm:$0xf]
      %v4063 = vld [vmem:[%s4051 + $0x2c] sm:$0xf]
      %v4064 = vld [vmem:[%s4051 + $0x30] sm:$0xf]
      %v4065 = vld [vmem:[%s4051 + $0x34] sm:$0xf]
      %v4066 = vld [vmem:[%s4051 + $0x38] sm:$0xf]
      %v4067 = vld [vmem:[%s4051 + $0x3c] sm:$0xf]
      %v4069 = vunpack.c.l.b16 %v3890
      %v4070 = vpack.c.b16 %v3916, %v3915
      %v4071 = vpack.c.b16 %v3918, %v3917
      %v4072 = vpack.c.b16 %v3920, %v3919
      %v4073 = vpack.c.b16 %v4069, %v3921
      %v4094 = vunpack.c.l.b16 %v4052
      %v4095 = vunpack.c.l.b16 %v4053
      %v4096 = vunpack.c.l.b16 %v4054
      %v4097 = vunpack.c.l.b16 %v4055
      %v4098 = vunpack.c.l.b16 %v4056
      %v4099 = vunpack.c.l.b16 %v4057
      %v4100 = vunpack.c.l.b16 %v4058
      %v4101 = vunpack.c.l.b16 %v4059
      %v4102 = vunpack.c.l.b16 %v4060
      %v4103 = vunpack.c.l.b16 %v4061
      %v4104 = vunpack.c.l.b16 %v4062
      %v4105 = vunpack.c.l.b16 %v4063
      %v4106 = vunpack.c.l.b16 %v4064
      %v4107 = vunpack.c.l.b16 %v4065
      %v4108 = vunpack.c.l.b16 %v4066
      %v4109 = vunpack.c.l.b16 %v4067
      %v4110 = vpack.c.b16 %v4095, %v4094
      %v4111 = vpack.c.b16 %v4097, %v4096
      %v4112 = vpack.c.b16 %v4099, %v4098
      %v4113 = vpack.c.b16 %v4101, %v4100
      %v4114 = vpack.c.b16 %v4103, %v4102
      %v4115 = vpack.c.b16 %v4105, %v4104
      %v4116 = vpack.c.b16 %v4107, %v4106
      %v4117 = vpack.c.b16 %v4109, %v4108
      %4126 = vmatprep.subr.bf16.mxu0 0
      %4127 = vmatpush1.bf16.msra.mxu0 %v4110
      %4128 = vmatprep.subr.bf16.mxu0 0
      %4129 = vmatpush1.bf16.msra.mxu0 %v4111
      %4130 = vmatprep.subr.bf16.mxu0 0
      %4131 = vmatpush1.bf16.msra.mxu0 %v4112
      %4132 = vmatprep.subr.bf16.mxu0 0
      %4133 = vmatpush1.bf16.msra.mxu0 %v4113
      %4134 = vmatprep.subr.bf16.mxu0 0
      %4135 = vmatpush1.bf16.msra.mxu0 %v4114
      %4136 = vmatprep.subr.bf16.mxu0 0
      %4137 = vmatpush1.bf16.msra.mxu0 %v4115
      %4138 = vmatprep.subr.bf16.mxu0 0
      %4139 = vmatpush1.bf16.msra.mxu0 %v4116
      %4140 = vmatprep.subr.bf16.mxu0 0
      %4141 = vmatpush1.bf16.msra.mxu0 %v4117
      %4142 = vmatprep.subr.bf16.mxu0 0
      %4143 = vmatpush1.bf16.msra.mxu0 0
      %4144 = vmatprep.subr.bf16.mxu0 0
      %4145 = vmatpush1.bf16.msra.mxu0 0
      %4146 = vmatprep.subr.bf16.mxu0 0
      %4147 = vmatpush1.bf16.msra.mxu0 0
      %4148 = vmatprep.subr.bf16.mxu0 0
      %4149 = vmatpush1.bf16.msra.mxu0 0
      %4150 = vmatprep.subr.bf16.mxu0 0
      %4151 = vmatpush1.bf16.msra.mxu0 0
      %4152 = vmatprep.subr.bf16.mxu0 0
      %4153 = vmatpush1.bf16.msra.mxu0 0
      %4154 = vmatprep.subr.bf16.mxu0 0
      %4155 = vmatpush1.bf16.msra.mxu0 0
      %4156 = vmatprep.subr.bf16.mxu0 0
      %4157 = vmatpush1.bf16.msra.mxu0 0
      %4158 = vmatprep.mubr.bf16.mxu0 0
      %4159 = vmatmul.mubr.bf16.gmra.mrb[0].mxu0 %v4070
      %v4160 = vpop.f32.mrb[0].mxu0
      %v4161 = vadd.f32 0.0, %v4160
      %v4162 = vpop.f32.mrb[0].mxu0
      %v4163 = vpop.f32.mrb[0].mxu0
      %v4164 = vadd.f32 0.0, %v4163
      %v4165 = vpop.f32.mrb[0].mxu0
      %4166 = vmatprep.mubr.bf16.mxu0 0
      %4167 = vmatmul.mubr.bf16.gmra.mrb[0].mxu0 %v4071
      %v4168 = vpop.f32.mrb[0].mxu0
      %v4169 = vadd.f32 0.0, %v4168
      %v4170 = vpop.f32.mrb[0].mxu0
      %v4171 = vpop.f32.mrb[0].mxu0
      %v4172 = vadd.f32 0.0, %v4171
      %v4173 = vpop.f32.mrb[0].mxu0
      %4174 = vmatprep.mubr.bf16.mxu0 0
      %4175 = vmatmul.mubr.bf16.gmra.mrb[0].mxu0 %v4072
      %v4176 = vpop.f32.mrb[0].mxu0
      %v4177 = vadd.f32 0.0, %v4176
      %v4178 = vpop.f32.mrb[0].mxu0
      %v4179 = vpop.f32.mrb[0].mxu0
      %v4180 = vadd.f32 0.0, %v4179
      %v4181 = vpop.f32.mrb[0].mxu0
      %4182 = vmatprep.mubr.bf16.mxu0 0
      %4183 = vmatmul.mubr.bf16.gmra.mrb[0].mxu0 %v4073
      %v4184 = vpop.f32.mrb[0].mxu0
      %v4185 = vadd.f32 0.0, %v4184
      %v4186 = vpop.f32.mrb[0].mxu0
      %v4187 = vpop.f32.mrb[0].mxu0
      %v4188 = vadd.f32 0.0, %v4187
      %v4189 = vpop.f32.mrb[0].mxu0
      %4190 = vdwg.mxu0
      %v4191 = vadd.f32 %v4043, %v4161
      %v4192 = vadd.f32 %v4044, %v4164
      %v4193 = vadd.f32 %v4045, %v4169
      %v4194 = vadd.f32 %v4046, %v4172
      %v4195 = vadd.f32 %v4047, %v4177
      %v4196 = vadd.f32 %v4048, %v4180
      %v4197 = vadd.f32 %v4049, %v4185
      %v4198 = vadd.f32 %v4050, %v4188
      %s4199 = scalar_lea.vmem %s3, 1536
      %v4200 = vld [vmem:[%s4199] sm:$0xf]
      %v4201 = vld [vmem:[%s4199 + $0x4] sm:$0xf]
      %v4202 = vld [vmem:[%s4199 + $0x8] sm:$0xf]
      %v4203 = vld [vmem:[%s4199 + $0xc] sm:$0xf]
      %v4204 = vld [vmem:[%s4199 + $0x10] sm:$0xf]
      %v4205 = vld [vmem:[%s4199 + $0x14] sm:$0xf]
      %v4206 = vld [vmem:[%s4199 + $0x18] sm:$0xf]
      %v4207 = vld [vmem:[%s4199 + $0x1c] sm:$0xf]
      %v4208 = vld [vmem:[%s4199 + $0x20] sm:$0xf]
      %v4209 = vld [vmem:[%s4199 + $0x24] sm:$0xf]
      %v4210 = vld [vmem:[%s4199 + $0x28] sm:$0xf]
      %v4211 = vld [vmem:[%s4199 + $0x2c] sm:$0xf]
      %v4212 = vld [vmem:[%s4199 + $0x30] sm:$0xf]
      %v4213 = vld [vmem:[%s4199 + $0x34] sm:$0xf]
      %v4214 = vld [vmem:[%s4199 + $0x38] sm:$0xf]
      %v4215 = vld [vmem:[%s4199 + $0x3c] sm:$0xf]
      %v4216 = vpack.c.b16 %v896, %v4069
      %v4234 = vunpack.c.l.b16 %v4200
      %v4235 = vunpack.c.l.b16 %v4201
      %v4236 = vunpack.c.l.b16 %v4202
      %v4237 = vunpack.c.l.b16 %v4203
      %v4238 = vunpack.c.l.b16 %v4204
      %v4239 = vunpack.c.l.b16 %v4205
      %v4240 = vunpack.c.l.b16 %v4206
      %v4241 = vunpack.c.l.b16 %v4207
      %v4242 = vunpack.c.l.b16 %v4208
      %v4243 = vunpack.c.l.b16 %v4209
      %v4244 = vunpack.c.l.b16 %v4210
      %v4245 = vunpack.c.l.b16 %v4211
      %v4246 = vunpack.c.l.b16 %v4212
      %v4247 = vunpack.c.l.b16 %v4213
      %v4248 = vunpack.c.l.b16 %v4214
      %v4249 = vunpack.c.l.b16 %v4215
      %v4250 = vpack.c.b16 %v4235, %v4234
      %v4251 = vpack.c.b16 %v4237, %v4236
      %v4252 = vpack.c.b16 %v4239, %v4238
      %v4253 = vpack.c.b16 %v4241, %v4240
      %v4254 = vpack.c.b16 %v4243, %v4242
      %v4255 = vpack.c.b16 %v4245, %v4244
      %v4256 = vpack.c.b16 %v4247, %v4246
      %v4257 = vpack.c.b16 %v4249, %v4248
      %4266 = vmatprep.subr.bf16.mxu0 0
      %4267 = vmatpush1.bf16.msra.mxu0 %v4250
      %4268 = vmatprep.subr.bf16.mxu0 0
      %4269 = vmatpush1.bf16.msra.mxu0 %v4251
      %4270 = vmatprep.subr.bf16.mxu0 0
      %4271 = vmatpush1.bf16.msra.mxu0 %v4252
      %4272 = vmatprep.subr.bf16.mxu0 0
      %4273 = vmatpush1.bf16.msra.mxu0 %v4253
      %4274 = vmatprep.subr.bf16.mxu0 0
      %4275 = vmatpush1.bf16.msra.mxu0 %v4254
      %4276 = vmatprep.subr.bf16.mxu0 0
      %4277 = vmatpush1.bf16.msra.mxu0 %v4255
      %4278 = vmatprep.subr.bf16.mxu0 0
      %4279 = vmatpush1.bf16.msra.mxu0 %v4256
      %4280 = vmatprep.subr.bf16.mxu0 0
      %4281 = vmatpush1.bf16.msra.mxu0 %v4257
      %4282 = vmatprep.subr.bf16.mxu0 0
      %4283 = vmatpush1.bf16.msra.mxu0 0
      %4284 = vmatprep.subr.bf16.mxu0 0
      %4285 = vmatpush1.bf16.msra.mxu0 0
      %4286 = vmatprep.subr.bf16.mxu0 0
      %4287 = vmatpush1.bf16.msra.mxu0 0
      %4288 = vmatprep.subr.bf16.mxu0 0
      %4289 = vmatpush1.bf16.msra.mxu0 0
      %4290 = vmatprep.subr.bf16.mxu0 0
      %4291 = vmatpush1.bf16.msra.mxu0 0
      %4292 = vmatprep.subr.bf16.mxu0 0
      %4293 = vmatpush1.bf16.msra.mxu0 0
      %4294 = vmatprep.subr.bf16.mxu0 0
      %4295 = vmatpush1.bf16.msra.mxu0 0
      %4296 = vmatprep.subr.bf16.mxu0 0
      %4297 = vmatpush1.bf16.msra.mxu0 0
      %4298 = vmatprep.mubr.bf16.mxu0 0
      %4299 = vmatmul.mubr.bf16.gmra.mrb[0].mxu0 %v3923
      %v4300 = vpop.f32.mrb[0].mxu0
      %v4301 = vadd.f32 0.0, %v4300
      %v4302 = vpop.f32.mrb[0].mxu0
      %v4303 = vpop.f32.mrb[0].mxu0
      %v4304 = vadd.f32 0.0, %v4303
      %v4305 = vpop.f32.mrb[0].mxu0
      %4306 = vmatprep.mubr.bf16.mxu0 0
      %4307 = vmatmul.mubr.bf16.gmra.mrb[0].mxu0 %v3924
      %v4308 = vpop.f32.mrb[0].mxu0
      %v4309 = vadd.f32 0.0, %v4308
      %v4310 = vpop.f32.mrb[0].mxu0
      %v4311 = vpop.f32.mrb[0].mxu0
      %v4312 = vadd.f32 0.0, %v4311
      %v4313 = vpop.f32.mrb[0].mxu0
      %4314 = vmatprep.mubr.bf16.mxu0 0
      %4315 = vmatmul.mubr.bf16.gmra.mrb[0].mxu0 %v3925
      %v4316 = vpop.f32.mrb[0].mxu0
      %v4317 = vadd.f32 0.0, %v4316
      %v4318 = vpop.f32.mrb[0].mxu0
      %v4319 = vpop.f32.mrb[0].mxu0
      %v4320 = vadd.f32 0.0, %v4319
      %v4321 = vpop.f32.mrb[0].mxu0
      %4322 = vmatprep.mubr.bf16.mxu0 0
      %4323 = vmatmul.mubr.bf16.gmra.mrb[0].mxu0 %v4216
      %v4324 = vpop.f32.mrb[0].mxu0
      %v4325 = vadd.f32 0.0, %v4324
      %v4326 = vpop.f32.mrb[0].mxu0
      %v4327 = vpop.f32.mrb[0].mxu0
      %v4328 = vadd.f32 0.0, %v4327
      %v4329 = vpop.f32.mrb[0].mxu0
      %4330 = vdwg.mxu0
      %v4331 = vadd.f32 %v4191, %v4301
      %v4332 = vadd.f32 %v4192, %v4304
      %v4333 = vadd.f32 %v4193, %v4309
      %v4334 = vadd.f32 %v4194, %v4312
      %v4335 = vadd.f32 %v4195, %v4317
      %v4336 = vadd.f32 %v4196, %v4320
      %v4337 = vadd.f32 %v4197, %v4325
      %v4338 = vadd.f32 %v4198, %v4328
      %v4339 = vunpack.c.h.b16 %v3883
      %v4340 = vunpack.c.h.b16 %v3884
      %v4341 = vunpack.c.h.b16 %v3885
      %v4342 = vunpack.c.h.b16 %v3886
      %v4343 = vunpack.c.h.b16 %v3887
      %v4344 = vunpack.c.h.b16 %v3888
      %v4345 = vunpack.c.h.b16 %v3889
      %v4346 = vunpack.c.h.b16 %v3890
      %v4347 = vpack.c.b16 %v3915, %v3915
      %v4348 = vpack.c.b16 %v4339, %v4339
      %v4349 = vpack.c.b16 %v3916, %v3916
      %v4350 = vpack.c.b16 %v4340, %v4340
      %v4351 = vpack.c.b16 %v3917, %v3917
      %v4352 = vpack.c.b16 %v4341, %v4341
      %v4353 = vpack.c.b16 %v3918, %v3918
      %v4354 = vpack.c.b16 %v4342, %v4342
      %v4355 = vpack.c.b16 %v3919, %v3919
      %v4356 = vpack.c.b16 %v4343, %v4343
      %v4357 = vpack.c.b16 %v3920, %v3920
      %v4358 = vpack.c.b16 %v4344, %v4344
      %v4359 = vpack.c.b16 %v3921, %v3921
      %v4360 = vpack.c.b16 %v4345, %v4345
      %v4361 = vpack.c.b16 %v4069, %v4069
      %v4362 = vpack.c.b16 %v4346, %v4346
      %v4364 = vshrl.u32 %v4347, 16
      %v4366 = vrot.slane %v4364, 4
      %v4367 = vshll.u32 %v4347, 16
      %v4369 = vrot.slane %v4367, 5
      %v4370 = vor.u32 %v4366, %v4369
      %v4371 = vrot.slane %v4370, 4
      %v4373 = vshll.u32 %v4348, 16
      %v4375 = vrot.slane %v4373, 5
      %v4376 = vsel %vm1187, %v4371, %v4375
      %v4378 = vshrl.u32 %v4349, 16
      %v4380 = vrot.slane %v4378, 4
      %v4381 = vshll.u32 %v4349, 16
      %v4383 = vrot.slane %v4381, 5
      %v4384 = vor.u32 %v4380, %v4383
      %v4385 = vrot.slane %v4384, 4
      %v4387 = vshll.u32 %v4350, 16
      %v4389 = vrot.slane %v4387, 5
      %v4390 = vsel %vm1187, %v4385, %v4389
      %v4392 = vshrl.u32 %v4351, 16
      %v4394 = vrot.slane %v4392, 4
      %v4395 = vshll.u32 %v4351, 16
      %v4397 = vrot.slane %v4395, 5
      %v4398 = vor.u32 %v4394, %v4397
      %v4399 = vrot.slane %v4398, 4
      %v4401 = vshll.u32 %v4352, 16
      %v4403 = vrot.slane %v4401, 5
      %v4404 = vsel %vm1187, %v4399, %v4403
      %v4406 = vshrl.u32 %v4353, 16
      %v4408 = vrot.slane %v4406, 4
      %v4409 = vshll.u32 %v4353, 16
      %v4411 = vrot.slane %v4409, 5
      %v4412 = vor.u32 %v4408, %v4411
      %v4413 = vrot.slane %v4412, 4
      %v4415 = vshll.u32 %v4354, 16
      %v4417 = vrot.slane %v4415, 5
      %v4418 = vsel %vm1187, %v4413, %v4417
      %v4420 = vshrl.u32 %v4355, 16
      %v4422 = vrot.slane %v4420, 4
      %v4423 = vshll.u32 %v4355, 16
      %v4425 = vrot.slane %v4423, 5
      %v4426 = vor.u32 %v4422, %v4425
      %v4427 = vrot.slane %v4426, 4
      %v4429 = vshll.u32 %v4356, 16
      %v4431 = vrot.slane %v4429, 5
      %v4432 = vsel %vm1187, %v4427, %v4431
      %v4434 = vshrl.u32 %v4357, 16
      %v4436 = vrot.slane %v4434, 4
      %v4437 = vshll.u32 %v4357, 16
      %v4439 = vrot.slane %v4437, 5
      %v4440 = vor.u32 %v4436, %v4439
      %v4441 = vrot.slane %v4440, 4
      %v4443 = vshll.u32 %v4358, 16
      %v4445 = vrot.slane %v4443, 5
      %v4446 = vsel %vm1187, %v4441, %v4445
      %v4448 = vshrl.u32 %v4359, 16
      %v4450 = vrot.slane %v4448, 4
      %v4451 = vshll.u32 %v4359, 16
      %v4453 = vrot.slane %v4451, 5
      %v4454 = vor.u32 %v4450, %v4453
      %v4455 = vrot.slane %v4454, 4
      %v4457 = vshll.u32 %v4360, 16
      %v4459 = vrot.slane %v4457, 5
      %v4460 = vsel %vm1187, %v4455, %v4459
      %v4462 = vshrl.u32 %v4361, 16
      %v4464 = vrot.slane %v4462, 4
      %v4465 = vshll.u32 %v4361, 16
      %v4467 = vrot.slane %v4465, 5
      %v4468 = vor.u32 %v4464, %v4467
      %v4469 = vrot.slane %v4468, 4
      %v4471 = vshll.u32 %v4362, 16
      %v4473 = vrot.slane %v4471, 5
      %v4474 = vsel %vm1187, %v4469, %v4473
      %s4475 = scalar_lea.vmem %s3, 1216
      %v4476 = vld [vmem:[%s4475] sm:$0xf]
      %v4477 = vld [vmem:[%s4475 + $0x4] sm:$0xf]
      %v4478 = vld [vmem:[%s4475 + $0x8] sm:$0xf]
      %v4479 = vld [vmem:[%s4475 + $0xc] sm:$0xf]
      %v4480 = vld [vmem:[%s4475 + $0x10] sm:$0xf]
      %v4481 = vld [vmem:[%s4475 + $0x14] sm:$0xf]
      %v4482 = vld [vmem:[%s4475 + $0x18] sm:$0xf]
      %v4483 = vld [vmem:[%s4475 + $0x1c] sm:$0xf]
      %v4484 = vld [vmem:[%s4475 + $0x20] sm:$0xf]
      %v4485 = vld [vmem:[%s4475 + $0x24] sm:$0xf]
      %v4486 = vld [vmem:[%s4475 + $0x28] sm:$0xf]
      %v4487 = vld [vmem:[%s4475 + $0x2c] sm:$0xf]
      %v4488 = vld [vmem:[%s4475 + $0x30] sm:$0xf]
      %v4489 = vld [vmem:[%s4475 + $0x34] sm:$0xf]
      %v4490 = vld [vmem:[%s4475 + $0x38] sm:$0xf]
      %v4491 = vld [vmem:[%s4475 + $0x3c] sm:$0xf]
      %v4492 = vunpack.c.l.b16 %v4376
      %v4493 = vunpack.c.l.b16 %v4390
      %v4494 = vunpack.c.l.b16 %v4404
      %v4495 = vunpack.c.l.b16 %v4418
      %v4496 = vunpack.c.l.b16 %v4432
      %v4497 = vunpack.c.l.b16 %v4446
      %v4498 = vunpack.c.l.b16 %v4460
      %v4499 = vpack.c.b16 %v4492, %v1331
      %v4500 = vpack.c.b16 %v4494, %v4493
      %v4501 = vpack.c.b16 %v4496, %v4495
      %v4502 = vpack.c.b16 %v4498, %v4497
      %v4523 = vunpack.c.l.b16 %v4476
      %v4524 = vunpack.c.l.b16 %v4477
      %v4525 = vunpack.c.l.b16 %v4478
      %v4526 = vunpack.c.l.b16 %v4479
      %v4527 = vunpack.c.l.b16 %v4480
      %v4528 = vunpack.c.l.b16 %v4481
      %v4529 = vunpack.c.l.b16 %v4482
      %v4530 = vunpack.c.l.b16 %v4483
      %v4531 = vunpack.c.l.b16 %v4484
      %v4532 = vunpack.c.l.b16 %v4485
      %v4533 = vunpack.c.l.b16 %v4486
      %v4534 = vunpack.c.l.b16 %v4487
      %v4535 = vunpack.c.l.b16 %v4488
      %v4536 = vunpack.c.l.b16 %v4489
      %v4537 = vunpack.c.l.b16 %v4490
      %v4538 = vunpack.c.l.b16 %v4491
      %v4539 = vpack.c.b16 %v4524, %v4523
      %v4540 = vpack.c.b16 %v4526, %v4525
      %v4541 = vpack.c.b16 %v4528, %v4527
      %v4542 = vpack.c.b16 %v4530, %v4529
      %v4543 = vpack.c.b16 %v4532, %v4531
      %v4544 = vpack.c.b16 %v4534, %v4533
      %v4545 = vpack.c.b16 %v4536, %v4535
      %v4546 = vpack.c.b16 %v4538, %v4537
      %4555 = vmatprep.subr.bf16.mxu0 0
      %4556 = vmatpush1.bf16.msra.mxu0 %v4539
      %4557 = vmatprep.subr.bf16.mxu0 0
      %4558 = vmatpush1.bf16.msra.mxu0 %v4540
      %4559 = vmatprep.subr.bf16.mxu0 0
      %4560 = vmatpush1.bf16.msra.mxu0 %v4541
      %4561 = vmatprep.subr.bf16.mxu0 0
      %4562 = vmatpush1.bf16.msra.mxu0 %v4542
      %4563 = vmatprep.subr.bf16.mxu0 0
      %4564 = vmatpush1.bf16.msra.mxu0 %v4543
      %4565 = vmatprep.subr.bf16.mxu0 0
      %4566 = vmatpush1.bf16.msra.mxu0 %v4544
      %4567 = vmatprep.subr.bf16.mxu0 0
      %4568 = vmatpush1.bf16.msra.mxu0 %v4545
      %4569 = vmatprep.subr.bf16.mxu0 0
      %4570 = vmatpush1.bf16.msra.mxu0 %v4546
      %4571 = vmatprep.subr.bf16.mxu0 0
      %4572 = vmatpush1.bf16.msra.mxu0 0
      %4573 = vmatprep.subr.bf16.mxu0 0
      %4574 = vmatpush1.bf16.msra.mxu0 0
      %4575 = vmatprep.subr.bf16.mxu0 0
      %4576 = vmatpush1.bf16.msra.mxu0 0
      %4577 = vmatprep.subr.bf16.mxu0 0
      %4578 = vmatpush1.bf16.msra.mxu0 0
      %4579 = vmatprep.subr.bf16.mxu0 0
      %4580 = vmatpush1.bf16.msra.mxu0 0
      %4581 = vmatprep.subr.bf16.mxu0 0
      %4582 = vmatpush1.bf16.msra.mxu0 0
      %4583 = vmatprep.subr.bf16.mxu0 0
      %4584 = vmatpush1.bf16.msra.mxu0 0
      %4585 = vmatprep.subr.bf16.mxu0 0
      %4586 = vmatpush1.bf16.msra.mxu0 0
      %4587 = vmatprep.mubr.bf16.mxu0 0
      %4588 = vmatmul.mubr.bf16.gmra.mrb[0].mxu0 %v4499
      %v4589 = vpop.f32.mrb[0].mxu0
      %v4590 = vadd.f32 0.0, %v4589
      %v4591 = vpop.f32.mrb[0].mxu0
      %v4592 = vpop.f32.mrb[0].mxu0
      %v4593 = vadd.f32 0.0, %v4592
      %v4594 = vpop.f32.mrb[0].mxu0
      %4595 = vmatprep.mubr.bf16.mxu0 0
      %4596 = vmatmul.mubr.bf16.gmra.mrb[0].mxu0 %v4500
      %v4597 = vpop.f32.mrb[0].mxu0
      %v4598 = vadd.f32 0.0, %v4597
      %v4599 = vpop.f32.mrb[0].mxu0
      %v4600 = vpop.f32.mrb[0].mxu0
      %v4601 = vadd.f32 0.0, %v4600
      %v4602 = vpop.f32.mrb[0].mxu0
      %4603 = vmatprep.mubr.bf16.mxu0 0
      %4604 = vmatmul.mubr.bf16.gmra.mrb[0].mxu0 %v4501
      %v4605 = vpop.f32.mrb[0].mxu0
      %v4606 = vadd.f32 0.0, %v4605
      %v4607 = vpop.f32.mrb[0].mxu0
      %v4608 = vpop.f32.mrb[0].mxu0
      %v4609 = vadd.f32 0.0, %v4608
      %v4610 = vpop.f32.mrb[0].mxu0
      %4611 = vmatprep.mubr.bf16.mxu0 0
      %4612 = vmatmul.mubr.bf16.gmra.mrb[0].mxu0 %v4502
      %v4613 = vpop.f32.mrb[0].mxu0
      %v4614 = vadd.f32 0.0, %v4613
      %v4615 = vpop.f32.mrb[0].mxu0
      %v4616 = vpop.f32.mrb[0].mxu0
      %v4617 = vadd.f32 0.0, %v4616
      %v4618 = vpop.f32.mrb[0].mxu0
      %4619 = vdwg.mxu0
      %v4620 = vadd.f32 %v4331, %v4590
      %v4621 = vadd.f32 %v4332, %v4593
      %v4622 = vadd.f32 %v4333, %v4598
      %v4623 = vadd.f32 %v4334, %v4601
      %v4624 = vadd.f32 %v4335, %v4606
      %v4625 = vadd.f32 %v4336, %v4609
      %v4626 = vadd.f32 %v4337, %v4614
      %v4627 = vadd.f32 %v4338, %v4617
      %s4628 = scalar_lea.vmem %s3, 1408
      %v4629 = vld [vmem:[%s4628] sm:$0xf]
      %v4630 = vld [vmem:[%s4628 + $0x4] sm:$0xf]
      %v4631 = vld [vmem:[%s4628 + $0x8] sm:$0xf]
      %v4632 = vld [vmem:[%s4628 + $0xc] sm:$0xf]
      %v4633 = vld [vmem:[%s4628 + $0x10] sm:$0xf]
      %v4634 = vld [vmem:[%s4628 + $0x14] sm:$0xf]
      %v4635 = vld [vmem:[%s4628 + $0x18] sm:$0xf]
      %v4636 = vld [vmem:[%s4628 + $0x1c] sm:$0xf]
      %v4637 = vld [vmem:[%s4628 + $0x20] sm:$0xf]
      %v4638 = vld [vmem:[%s4628 + $0x24] sm:$0xf]
      %v4639 = vld [vmem:[%s4628 + $0x28] sm:$0xf]
      %v4640 = vld [vmem:[%s4628 + $0x2c] sm:$0xf]
      %v4641 = vld [vmem:[%s4628 + $0x30] sm:$0xf]
      %v4642 = vld [vmem:[%s4628 + $0x34] sm:$0xf]
      %v4643 = vld [vmem:[%s4628 + $0x38] sm:$0xf]
      %v4644 = vld [vmem:[%s4628 + $0x3c] sm:$0xf]
      %v4645 = vunpack.c.l.b16 %v4474
      %v4646 = vpack.c.b16 %v4493, %v4492
      %v4647 = vpack.c.b16 %v4495, %v4494
      %v4648 = vpack.c.b16 %v4497, %v4496
      %v4649 = vpack.c.b16 %v4645, %v4498
      %v4670 = vunpack.c.l.b16 %v4629
      %v4671 = vunpack.c.l.b16 %v4630
      %v4672 = vunpack.c.l.b16 %v4631
      %v4673 = vunpack.c.l.b16 %v4632
      %v4674 = vunpack.c.l.b16 %v4633
      %v4675 = vunpack.c.l.b16 %v4634
      %v4676 = vunpack.c.l.b16 %v4635
      %v4677 = vunpack.c.l.b16 %v4636
      %v4678 = vunpack.c.l.b16 %v4637
      %v4679 = vunpack.c.l.b16 %v4638
      %v4680 = vunpack.c.l.b16 %v4639
      %v4681 = vunpack.c.l.b16 %v4640
      %v4682 = vunpack.c.l.b16 %v4641
      %v4683 = vunpack.c.l.b16 %v4642
      %v4684 = vunpack.c.l.b16 %v4643
      %v4685 = vunpack.c.l.b16 %v4644
      %v4686 = vpack.c.b16 %v4671, %v4670
      %v4687 = vpack.c.b16 %v4673, %v4672
      %v4688 = vpack.c.b16 %v4675, %v4674
      %v4689 = vpack.c.b16 %v4677, %v4676
      %v4690 = vpack.c.b16 %v4679, %v4678
      %v4691 = vpack.c.b16 %v4681, %v4680
      %v4692 = vpack.c.b16 %v4683, %v4682
      %v4693 = vpack.c.b16 %v4685, %v4684
      %4702 = vmatprep.subr.bf16.mxu0 0
      %4703 = vmatpush1.bf16.msra.mxu0 %v4686
      %4704 = vmatprep.subr.bf16.mxu0 0
      %4705 = vmatpush1.bf16.msra.mxu0 %v4687
      %4706 = vmatprep.subr.bf16.mxu0 0
      %4707 = vmatpush1.bf16.msra.mxu0 %v4688
      %4708 = vmatprep.subr.bf16.mxu0 0
      %4709 = vmatpush1.bf16.msra.mxu0 %v4689
      %4710 = vmatprep.subr.bf16.mxu0 0
      %4711 = vmatpush1.bf16.msra.mxu0 %v4690
      %4712 = vmatprep.subr.bf16.mxu0 0
      %4713 = vmatpush1.bf16.msra.mxu0 %v4691
      %4714 = vmatprep.subr.bf16.mxu0 0
      %4715 = vmatpush1.bf16.msra.mxu0 %v4692
      %4716 = vmatprep.subr.bf16.mxu0 0
      %4717 = vmatpush1.bf16.msra.mxu0 %v4693
      %4718 = vmatprep.subr.bf16.mxu0 0
      %4719 = vmatpush1.bf16.msra.mxu0 0
      %4720 = vmatprep.subr.bf16.mxu0 0
      %4721 = vmatpush1.bf16.msra.mxu0 0
      %4722 = vmatprep.subr.bf16.mxu0 0
      %4723 = vmatpush1.bf16.msra.mxu0 0
      %4724 = vmatprep.subr.bf16.mxu0 0
      %4725 = vmatpush1.bf16.msra.mxu0 0
      %4726 = vmatprep.subr.bf16.mxu0 0
      %4727 = vmatpush1.bf16.msra.mxu0 0
      %4728 = vmatprep.subr.bf16.mxu0 0
      %4729 = vmatpush1.bf16.msra.mxu0 0
      %4730 = vmatprep.subr.bf16.mxu0 0
      %4731 = vmatpush1.bf16.msra.mxu0 0
      %4732 = vmatprep.subr.bf16.mxu0 0
      %4733 = vmatpush1.bf16.msra.mxu0 0
      %4734 = vmatprep.mubr.bf16.mxu0 0
      %4735 = vmatmul.mubr.bf16.gmra.mrb[0].mxu0 %v4646
      %v4736 = vpop.f32.mrb[0].mxu0
      %v4737 = vadd.f32 0.0, %v4736
      %v4738 = vpop.f32.mrb[0].mxu0
      %v4739 = vpop.f32.mrb[0].mxu0
      %v4740 = vadd.f32 0.0, %v4739
      %v4741 = vpop.f32.mrb[0].mxu0
      %4742 = vmatprep.mubr.bf16.mxu0 0
      %4743 = vmatmul.mubr.bf16.gmra.mrb[0].mxu0 %v4647
      %v4744 = vpop.f32.mrb[0].mxu0
      %v4745 = vadd.f32 0.0, %v4744
      %v4746 = vpop.f32.mrb[0].mxu0
      %v4747 = vpop.f32.mrb[0].mxu0
      %v4748 = vadd.f32 0.0, %v4747
      %v4749 = vpop.f32.mrb[0].mxu0
      %4750 = vmatprep.mubr.bf16.mxu0 0
      %4751 = vmatmul.mubr.bf16.gmra.mrb[0].mxu0 %v4648
      %v4752 = vpop.f32.mrb[0].mxu0
      %v4753 = vadd.f32 0.0, %v4752
      %v4754 = vpop.f32.mrb[0].mxu0
      %v4755 = vpop.f32.mrb[0].mxu0
      %v4756 = vadd.f32 0.0, %v4755
      %v4757 = vpop.f32.mrb[0].mxu0
      %4758 = vmatprep.mubr.bf16.mxu0 0
      %4759 = vmatmul.mubr.bf16.gmra.mrb[0].mxu0 %v4649
      %v4760 = vpop.f32.mrb[0].mxu0
      %v4761 = vadd.f32 0.0, %v4760
      %v4762 = vpop.f32.mrb[0].mxu0
      %v4763 = vpop.f32.mrb[0].mxu0
      %v4764 = vadd.f32 0.0, %v4763
      %v4765 = vpop.f32.mrb[0].mxu0
      %4766 = vdwg.mxu0
      %v4767 = vadd.f32 %v4620, %v4737
      %v4768 = vadd.f32 %v4621, %v4740
      %v4769 = vadd.f32 %v4622, %v4745
      %v4770 = vadd.f32 %v4623, %v4748
      %v4771 = vadd.f32 %v4624, %v4753
      %v4772 = vadd.f32 %v4625, %v4756
      %v4773 = vadd.f32 %v4626, %v4761
      %v4774 = vadd.f32 %v4627, %v4764
      %s4775 = scalar_lea.vmem %s3, 1600
      %v4776 = vld [vmem:[%s4775] sm:$0xf]
      %v4777 = vld [vmem:[%s4775 + $0x4] sm:$0xf]
      %v4778 = vld [vmem:[%s4775 + $0x8] sm:$0xf]
      %v4779 = vld [vmem:[%s4775 + $0xc] sm:$0xf]
      %v4780 = vld [vmem:[%s4775 + $0x10] sm:$0xf]
      %v4781 = vld [vmem:[%s4775 + $0x14] sm:$0xf]
      %v4782 = vld [vmem:[%s4775 + $0x18] sm:$0xf]
      %v4783 = vld [vmem:[%s4775 + $0x1c] sm:$0xf]
      %v4784 = vld [vmem:[%s4775 + $0x20] sm:$0xf]
      %v4785 = vld [vmem:[%s4775 + $0x24] sm:$0xf]
      %v4786 = vld [vmem:[%s4775 + $0x28] sm:$0xf]
      %v4787 = vld [vmem:[%s4775 + $0x2c] sm:$0xf]
      %v4788 = vld [vmem:[%s4775 + $0x30] sm:$0xf]
      %v4789 = vld [vmem:[%s4775 + $0x34] sm:$0xf]
      %v4790 = vld [vmem:[%s4775 + $0x38] sm:$0xf]
      %v4791 = vld [vmem:[%s4775 + $0x3c] sm:$0xf]
      %v4792 = vpack.c.b16 %v1331, %v4645
      %v4810 = vunpack.c.l.b16 %v4776
      %v4811 = vunpack.c.l.b16 %v4777
      %v4812 = vunpack.c.l.b16 %v4778
      %v4813 = vunpack.c.l.b16 %v4779
      %v4814 = vunpack.c.l.b16 %v4780
      %v4815 = vunpack.c.l.b16 %v4781
      %v4816 = vunpack.c.l.b16 %v4782
      %v4817 = vunpack.c.l.b16 %v4783
      %v4818 = vunpack.c.l.b16 %v4784
      %v4819 = vunpack.c.l.b16 %v4785
      %v4820 = vunpack.c.l.b16 %v4786
      %v4821 = vunpack.c.l.b16 %v4787
      %v4822 = vunpack.c.l.b16 %v4788
      %v4823 = vunpack.c.l.b16 %v4789
      %v4824 = vunpack.c.l.b16 %v4790
      %v4825 = vunpack.c.l.b16 %v4791
      %v4826 = vpack.c.b16 %v4811, %v4810
      %v4827 = vpack.c.b16 %v4813, %v4812
      %v4828 = vpack.c.b16 %v4815, %v4814
      %v4829 = vpack.c.b16 %v4817, %v4816
      %v4830 = vpack.c.b16 %v4819, %v4818
      %v4831 = vpack.c.b16 %v4821, %v4820
      %v4832 = vpack.c.b16 %v4823, %v4822
      %v4833 = vpack.c.b16 %v4825, %v4824
      %4842 = vmatprep.subr.bf16.mxu0 0
      %4843 = vmatpush1.bf16.msra.mxu0 %v4826
      %4844 = vmatprep.subr.bf16.mxu0 0
      %4845 = vmatpush1.bf16.msra.mxu0 %v4827
      %4846 = vmatprep.subr.bf16.mxu0 0
      %4847 = vmatpush1.bf16.msra.mxu0 %v4828
      %4848 = vmatprep.subr.bf16.mxu0 0
      %4849 = vmatpush1.bf16.msra.mxu0 %v4829
      %4850 = vmatprep.subr.bf16.mxu0 0
      %4851 = vmatpush1.bf16.msra.mxu0 %v4830
      %4852 = vmatprep.subr.bf16.mxu0 0
      %4853 = vmatpush1.bf16.msra.mxu0 %v4831
      %4854 = vmatprep.subr.bf16.mxu0 0
      %4855 = vmatpush1.bf16.msra.mxu0 %v4832
      %4856 = vmatprep.subr.bf16.mxu0 0
      %4857 = vmatpush1.bf16.msra.mxu0 %v4833
      %4858 = vmatprep.subr.bf16.mxu0 0
      %4859 = vmatpush1.bf16.msra.mxu0 0
      %4860 = vmatprep.subr.bf16.mxu0 0
      %4861 = vmatpush1.bf16.msra.mxu0 0
      %4862 = vmatprep.subr.bf16.mxu0 0
      %4863 = vmatpush1.bf16.msra.mxu0 0
      %4864 = vmatprep.subr.bf16.mxu0 0
      %4865 = vmatpush1.bf16.msra.mxu0 0
      %4866 = vmatprep.subr.bf16.mxu0 0
      %4867 = vmatpush1.bf16.msra.mxu0 0
      %4868 = vmatprep.subr.bf16.mxu0 0
      %4869 = vmatpush1.bf16.msra.mxu0 0
      %4870 = vmatprep.subr.bf16.mxu0 0
      %4871 = vmatpush1.bf16.msra.mxu0 0
      %4872 = vmatprep.subr.bf16.mxu0 0
      %4873 = vmatpush1.bf16.msra.mxu0 0
      %4874 = vmatprep.mubr.bf16.mxu0 0
      %4875 = vmatmul.mubr.bf16.gmra.mrb[0].mxu0 %v4500
      %v4876 = vpop.f32.mrb[0].mxu0
      %v4877 = vadd.f32 0.0, %v4876
      %v4878 = vpop.f32.mrb[0].mxu0
      %v4879 = vpop.f32.mrb[0].mxu0
      %v4880 = vadd.f32 0.0, %v4879
      %v4881 = vpop.f32.mrb[0].mxu0
      %4882 = vmatprep.mubr.bf16.mxu0 0
      %4883 = vmatmul.mubr.bf16.gmra.mrb[0].mxu0 %v4501
      %v4884 = vpop.f32.mrb[0].mxu0
      %v4885 = vadd.f32 0.0, %v4884
      %v4886 = vpop.f32.mrb[0].mxu0
      %v4887 = vpop.f32.mrb[0].mxu0
      %v4888 = vadd.f32 0.0, %v4887
      %v4889 = vpop.f32.mrb[0].mxu0
      %4890 = vmatprep.mubr.bf16.mxu0 0
      %4891 = vmatmul.mubr.bf16.gmra.mrb[0].mxu0 %v4502
      %v4892 = vpop.f32.mrb[0].mxu0
      %v4893 = vadd.f32 0.0, %v4892
      %v4894 = vpop.f32.mrb[0].mxu0
      %v4895 = vpop.f32.mrb[0].mxu0
      %v4896 = vadd.f32 0.0, %v4895
      %v4897 = vpop.f32.mrb[0].mxu0
      %4898 = vmatprep.mubr.bf16.mxu0 0
      %4899 = vmatmul.mubr.bf16.gmra.mrb[0].mxu0 %v4792
      %v4900 = vpop.f32.mrb[0].mxu0
      %v4901 = vadd.f32 0.0, %v4900
      %v4902 = vpop.f32.mrb[0].mxu0
      %v4903 = vpop.f32.mrb[0].mxu0
      %v4904 = vadd.f32 0.0, %v4903
      %v4905 = vpop.f32.mrb[0].mxu0
      %4906 = vdwg.mxu0
      %v4907 = vadd.f32 %v4767, %v4877
      %v4908 = vadd.f32 %v4768, %v4880
      %v4909 = vadd.f32 %v4769, %v4885
      %v4910 = vadd.f32 %v4770, %v4888
      %v4911 = vadd.f32 %v4771, %v4893
      %v4912 = vadd.f32 %v4772, %v4896
      %v4913 = vadd.f32 %v4773, %v4901
      %v4914 = vadd.f32 %v4774, %v4904
      %v4915 = vrot.slane %v4347, 5
      %v4916 = vrot.slane %v4915, 4
      %v4917 = vrot.slane %v4348, 5
      %v4918 = vsel %vm1757, %v4916, %v4917
      %v4919 = vrot.slane %v4349, 5
      %v4920 = vrot.slane %v4919, 4
      %v4921 = vrot.slane %v4350, 5
      %v4922 = vsel %vm1757, %v4920, %v4921
      %v4923 = vrot.slane %v4351, 5
      %v4924 = vrot.slane %v4923, 4
      %v4925 = vrot.slane %v4352, 5
      %v4926 = vsel %vm1757, %v4924, %v4925
      %v4927 = vrot.slane %v4353, 5
      %v4928 = vrot.slane %v4927, 4
      %v4929 = vrot.slane %v4354, 5
      %v4930 = vsel %vm1757, %v4928, %v4929
      %v4931 = vrot.slane %v4355, 5
      %v4932 = vrot.slane %v4931, 4
      %v4933 = vrot.slane %v4356, 5
      %v4934 = vsel %vm1757, %v4932, %v4933
      %v4935 = vrot.slane %v4357, 5
      %v4936 = vrot.slane %v4935, 4
      %v4937 = vrot.slane %v4358, 5
      %v4938 = vsel %vm1757, %v4936, %v4937
      %v4939 = vrot.slane %v4359, 5
      %v4940 = vrot.slane %v4939, 4
      %v4941 = vrot.slane %v4360, 5
      %v4942 = vsel %vm1757, %v4940, %v4941
      %v4943 = vrot.slane %v4361, 5
      %v4944 = vrot.slane %v4943, 4
      %v4945 = vrot.slane %v4362, 5
      %v4946 = vsel %vm1757, %v4944, %v4945
      %s4947 = scalar_lea.vmem %s3, 1280
      %v4948 = vld [vmem:[%s4947] sm:$0xf]
      %v4949 = vld [vmem:[%s4947 + $0x4] sm:$0xf]
      %v4950 = vld [vmem:[%s4947 + $0x8] sm:$0xf]
      %v4951 = vld [vmem:[%s4947 + $0xc] sm:$0xf]
      %v4952 = vld [vmem:[%s4947 + $0x10] sm:$0xf]
      %v4953 = vld [vmem:[%s4947 + $0x14] sm:$0xf]
      %v4954 = vld [vmem:[%s4947 + $0x18] sm:$0xf]
      %v4955 = vld [vmem:[%s4947 + $0x1c] sm:$0xf]
      %v4956 = vld [vmem:[%s4947 + $0x20] sm:$0xf]
      %v4957 = vld [vmem:[%s4947 + $0x24] sm:$0xf]
      %v4958 = vld [vmem:[%s4947 + $0x28] sm:$0xf]
      %v4959 = vld [vmem:[%s4947 + $0x2c] sm:$0xf]
      %v4960 = vld [vmem:[%s4947 + $0x30] sm:$0xf]
      %v4961 = vld [vmem:[%s4947 + $0x34] sm:$0xf]
      %v4962 = vld [vmem:[%s4947 + $0x38] sm:$0xf]
      %v4963 = vld [vmem:[%s4947 + $0x3c] sm:$0xf]
      %v4964 = vunpack.c.l.b16 %v4918
      %v4965 = vunpack.c.l.b16 %v4922
      %v4966 = vunpack.c.l.b16 %v4926
      %v4967 = vunpack.c.l.b16 %v4930
      %v4968 = vunpack.c.l.b16 %v4934
      %v4969 = vunpack.c.l.b16 %v4938
      %v4970 = vunpack.c.l.b16 %v4942
      %v4971 = vpack.c.b16 %v4964, %v1811
      %v4972 = vpack.c.b16 %v4966, %v4965
      %v4973 = vpack.c.b16 %v4968, %v4967
      %v4974 = vpack.c.b16 %v4970, %v4969
      %v4995 = vunpack.c.l.b16 %v4948
      %v4996 = vunpack.c.l.b16 %v4949
      %v4997 = vunpack.c.l.b16 %v4950
      %v4998 = vunpack.c.l.b16 %v4951
      %v4999 = vunpack.c.l.b16 %v4952
      %v5000 = vunpack.c.l.b16 %v4953
      %v5001 = vunpack.c.l.b16 %v4954
      %v5002 = vunpack.c.l.b16 %v4955
      %v5003 = vunpack.c.l.b16 %v4956
      %v5004 = vunpack.c.l.b16 %v4957
      %v5005 = vunpack.c.l.b16 %v4958
      %v5006 = vunpack.c.l.b16 %v4959
      %v5007 = vunpack.c.l.b16 %v4960
      %v5008 = vunpack.c.l.b16 %v4961
      %v5009 = vunpack.c.l.b16 %v4962
      %v5010 = vunpack.c.l.b16 %v4963
      %v5011 = vpack.c.b16 %v4996, %v4995
      %v5012 = vpack.c.b16 %v4998, %v4997
      %v5013 = vpack.c.b16 %v5000, %v4999
      %v5014 = vpack.c.b16 %v5002, %v5001
      %v5015 = vpack.c.b16 %v5004, %v5003
      %v5016 = vpack.c.b16 %v5006, %v5005
      %v5017 = vpack.c.b16 %v5008, %v5007
      %v5018 = vpack.c.b16 %v5010, %v5009
      %5027 = vmatprep.subr.bf16.mxu0 0
      %5028 = vmatpush1.bf16.msra.mxu0 %v5011
      %5029 = vmatprep.subr.bf16.mxu0 0
      %5030 = vmatpush1.bf16.msra.mxu0 %v5012
      %5031 = vmatprep.subr.bf16.mxu0 0
      %5032 = vmatpush1.bf16.msra.mxu0 %v5013
      %5033 = vmatprep.subr.bf16.mxu0 0
      %5034 = vmatpush1.bf16.msra.mxu0 %v5014
      %5035 = vmatprep.subr.bf16.mxu0 0
      %5036 = vmatpush1.bf16.msra.mxu0 %v5015
      %5037 = vmatprep.subr.bf16.mxu0 0
      %5038 = vmatpush1.bf16.msra.mxu0 %v5016
      %5039 = vmatprep.subr.bf16.mxu0 0
      %5040 = vmatpush1.bf16.msra.mxu0 %v5017
      %5041 = vmatprep.subr.bf16.mxu0 0
      %5042 = vmatpush1.bf16.msra.mxu0 %v5018
      %5043 = vmatprep.subr.bf16.mxu0 0
      %5044 = vmatpush1.bf16.msra.mxu0 0
      %5045 = vmatprep.subr.bf16.mxu0 0
      %5046 = vmatpush1.bf16.msra.mxu0 0
      %5047 = vmatprep.subr.bf16.mxu0 0
      %5048 = vmatpush1.bf16.msra.mxu0 0
      %5049 = vmatprep.subr.bf16.mxu0 0
      %5050 = vmatpush1.bf16.msra.mxu0 0
      %5051 = vmatprep.subr.bf16.mxu0 0
      %5052 = vmatpush1.bf16.msra.mxu0 0
      %5053 = vmatprep.subr.bf16.mxu0 0
      %5054 = vmatpush1.bf16.msra.mxu0 0
      %5055 = vmatprep.subr.bf16.mxu0 0
      %5056 = vmatpush1.bf16.msra.mxu0 0
      %5057 = vmatprep.subr.bf16.mxu0 0
      %5058 = vmatpush1.bf16.msra.mxu0 0
      %5059 = vmatprep.mubr.bf16.mxu0 0
      %5060 = vmatmul.mubr.bf16.gmra.mrb[0].mxu0 %v4971
      %v5061 = vpop.f32.mrb[0].mxu0
      %v5062 = vadd.f32 0.0, %v5061
      %v5063 = vpop.f32.mrb[0].mxu0
      %v5064 = vpop.f32.mrb[0].mxu0
      %v5065 = vadd.f32 0.0, %v5064
      %v5066 = vpop.f32.mrb[0].mxu0
      %5067 = vmatprep.mubr.bf16.mxu0 0
      %5068 = vmatmul.mubr.bf16.gmra.mrb[0].mxu0 %v4972
      %v5069 = vpop.f32.mrb[0].mxu0
      %v5070 = vadd.f32 0.0, %v5069
      %v5071 = vpop.f32.mrb[0].mxu0
      %v5072 = vpop.f32.mrb[0].mxu0
      %v5073 = vadd.f32 0.0, %v5072
      %v5074 = vpop.f32.mrb[0].mxu0
      %5075 = vmatprep.mubr.bf16.mxu0 0
      %5076 = vmatmul.mubr.bf16.gmra.mrb[0].mxu0 %v4973
      %v5077 = vpop.f32.mrb[0].mxu0
      %v5078 = vadd.f32 0.0, %v5077
      %v5079 = vpop.f32.mrb[0].mxu0
      %v5080 = vpop.f32.mrb[0].mxu0
      %v5081 = vadd.f32 0.0, %v5080
      %v5082 = vpop.f32.mrb[0].mxu0
      %5083 = vmatprep.mubr.bf16.mxu0 0
      %5084 = vmatmul.mubr.bf16.gmra.mrb[0].mxu0 %v4974
      %v5085 = vpop.f32.mrb[0].mxu0
      %v5086 = vadd.f32 0.0, %v5085
      %v5087 = vpop.f32.mrb[0].mxu0
      %v5088 = vpop.f32.mrb[0].mxu0
      %v5089 = vadd.f32 0.0, %v5088
      %v5090 = vpop.f32.mrb[0].mxu0
      %5091 = vdwg.mxu0
      %v5092 = vadd.f32 %v4907, %v5062
      %v5093 = vadd.f32 %v4908, %v5065
      %v5094 = vadd.f32 %v4909, %v5070
      %v5095 = vadd.f32 %v4910, %v5073
      %v5096 = vadd.f32 %v4911, %v5078
      %v5097 = vadd.f32 %v4912, %v5081
      %v5098 = vadd.f32 %v4913, %v5086
      %v5099 = vadd.f32 %v4914, %v5089
      %s5100 = scalar_lea.vmem %s3, 1472
      %v5101 = vld [vmem:[%s5100] sm:$0xf]
      %v5102 = vld [vmem:[%s5100 + $0x4] sm:$0xf]
      %v5103 = vld [vmem:[%s5100 + $0x8] sm:$0xf]
      %v5104 = vld [vmem:[%s5100 + $0xc] sm:$0xf]
      %v5105 = vld [vmem:[%s5100 + $0x10] sm:$0xf]
      %v5106 = vld [vmem:[%s5100 + $0x14] sm:$0xf]
      %v5107 = vld [vmem:[%s5100 + $0x18] sm:$0xf]
      %v5108 = vld [vmem:[%s5100 + $0x1c] sm:$0xf]
      %v5109 = vld [vmem:[%s5100 + $0x20] sm:$0xf]
      %v5110 = vld [vmem:[%s5100 + $0x24] sm:$0xf]
      %v5111 = vld [vmem:[%s5100 + $0x28] sm:$0xf]
      %v5112 = vld [vmem:[%s5100 + $0x2c] sm:$0xf]
      %v5113 = vld [vmem:[%s5100 + $0x30] sm:$0xf]
      %v5114 = vld [vmem:[%s5100 + $0x34] sm:$0xf]
      %v5115 = vld [vmem:[%s5100 + $0x38] sm:$0xf]
      %v5116 = vld [vmem:[%s5100 + $0x3c] sm:$0xf]
      %v5117 = vunpack.c.l.b16 %v4946
      %v5118 = vpack.c.b16 %v4965, %v4964
      %v5119 = vpack.c.b16 %v4967, %v4966
      %v5120 = vpack.c.b16 %v4969, %v4968
      %v5121 = vpack.c.b16 %v5117, %v4970
      %v5142 = vunpack.c.l.b16 %v5101
      %v5143 = vunpack.c.l.b16 %v5102
      %v5144 = vunpack.c.l.b16 %v5103
      %v5145 = vunpack.c.l.b16 %v5104
      %v5146 = vunpack.c.l.b16 %v5105
      %v5147 = vunpack.c.l.b16 %v5106
      %v5148 = vunpack.c.l.b16 %v5107
      %v5149 = vunpack.c.l.b16 %v5108
      %v5150 = vunpack.c.l.b16 %v5109
      %v5151 = vunpack.c.l.b16 %v5110
      %v5152 = vunpack.c.l.b16 %v5111
      %v5153 = vunpack.c.l.b16 %v5112
      %v5154 = vunpack.c.l.b16 %v5113
      %v5155 = vunpack.c.l.b16 %v5114
      %v5156 = vunpack.c.l.b16 %v5115
      %v5157 = vunpack.c.l.b16 %v5116
      %v5158 = vpack.c.b16 %v5143, %v5142
      %v5159 = vpack.c.b16 %v5145, %v5144
      %v5160 = vpack.c.b16 %v5147, %v5146
      %v5161 = vpack.c.b16 %v5149, %v5148
      %v5162 = vpack.c.b16 %v5151, %v5150
      %v5163 = vpack.c.b16 %v5153, %v5152
      %v5164 = vpack.c.b16 %v5155, %v5154
      %v5165 = vpack.c.b16 %v5157, %v5156
      %5174 = vmatprep.subr.bf16.mxu0 0
      %5175 = vmatpush1.bf16.msra.mxu0 %v5158
      %5176 = vmatprep.subr.bf16.mxu0 0
      %5177 = vmatpush1.bf16.msra.mxu0 %v5159
      %5178 = vmatprep.subr.bf16.mxu0 0
      %5179 = vmatpush1.bf16.msra.mxu0 %v5160
      %5180 = vmatprep.subr.bf16.mxu0 0
      %5181 = vmatpush1.bf16.msra.mxu0 %v5161
      %5182 = vmatprep.subr.bf16.mxu0 0
      %5183 = vmatpush1.bf16.msra.mxu0 %v5162
      %5184 = vmatprep.subr.bf16.mxu0 0
      %5185 = vmatpush1.bf16.msra.mxu0 %v5163
      %5186 = vmatprep.subr.bf16.mxu0 0
      %5187 = vmatpush1.bf16.msra.mxu0 %v5164
      %5188 = vmatprep.subr.bf16.mxu0 0
      %5189 = vmatpush1.bf16.msra.mxu0 %v5165
      %5190 = vmatprep.subr.bf16.mxu0 0
      %5191 = vmatpush1.bf16.msra.mxu0 0
      %5192 = vmatprep.subr.bf16.mxu0 0
      %5193 = vmatpush1.bf16.msra.mxu0 0
      %5194 = vmatprep.subr.bf16.mxu0 0
      %5195 = vmatpush1.bf16.msra.mxu0 0
      %5196 = vmatprep.subr.bf16.mxu0 0
      %5197 = vmatpush1.bf16.msra.mxu0 0
      %5198 = vmatprep.subr.bf16.mxu0 0
      %5199 = vmatpush1.bf16.msra.mxu0 0
      %5200 = vmatprep.subr.bf16.mxu0 0
      %5201 = vmatpush1.bf16.msra.mxu0 0
      %5202 = vmatprep.subr.bf16.mxu0 0
      %5203 = vmatpush1.bf16.msra.mxu0 0
      %5204 = vmatprep.subr.bf16.mxu0 0
      %5205 = vmatpush1.bf16.msra.mxu0 0
      %5206 = vmatprep.mubr.bf16.mxu0 0
      %5207 = vmatmul.mubr.bf16.gmra.mrb[0].mxu0 %v5118
      %v5208 = vpop.f32.mrb[0].mxu0
      %v5209 = vadd.f32 0.0, %v5208
      %v5210 = vpop.f32.mrb[0].mxu0
      %v5211 = vpop.f32.mrb[0].mxu0
      %v5212 = vadd.f32 0.0, %v5211
      %v5213 = vpop.f32.mrb[0].mxu0
      %5214 = vmatprep.mubr.bf16.mxu0 0
      %5215 = vmatmul.mubr.bf16.gmra.mrb[0].mxu0 %v5119
      %v5216 = vpop.f32.mrb[0].mxu0
      %v5217 = vadd.f32 0.0, %v5216
      %v5218 = vpop.f32.mrb[0].mxu0
      %v5219 = vpop.f32.mrb[0].mxu0
      %v5220 = vadd.f32 0.0, %v5219
      %v5221 = vpop.f32.mrb[0].mxu0
      %5222 = vmatprep.mubr.bf16.mxu0 0
      %5223 = vmatmul.mubr.bf16.gmra.mrb[0].mxu0 %v5120
      %v5224 = vpop.f32.mrb[0].mxu0
      %v5225 = vadd.f32 0.0, %v5224
      %v5226 = vpop.f32.mrb[0].mxu0
      %v5227 = vpop.f32.mrb[0].mxu0
      %v5228 = vadd.f32 0.0, %v5227
      %v5229 = vpop.f32.mrb[0].mxu0
      %5230 = vmatprep.mubr.bf16.mxu0 0
      %5231 = vmatmul.mubr.bf16.gmra.mrb[0].mxu0 %v5121
      %v5232 = vpop.f32.mrb[0].mxu0
      %v5233 = vadd.f32 0.0, %v5232
      %v5234 = vpop.f32.mrb[0].mxu0
      %v5235 = vpop.f32.mrb[0].mxu0
      %v5236 = vadd.f32 0.0, %v5235
      %v5237 = vpop.f32.mrb[0].mxu0
      %5238 = vdwg.mxu0
      %v5239 = vadd.f32 %v5092, %v5209
      %v5240 = vadd.f32 %v5093, %v5212
      %v5241 = vadd.f32 %v5094, %v5217
      %v5242 = vadd.f32 %v5095, %v5220
      %v5243 = vadd.f32 %v5096, %v5225
      %v5244 = vadd.f32 %v5097, %v5228
      %v5245 = vadd.f32 %v5098, %v5233
      %v5246 = vadd.f32 %v5099, %v5236
      %s5247 = scalar_lea.vmem %s3, 1664
      %v5248 = vld [vmem:[%s5247] sm:$0xf]
      %v5249 = vld [vmem:[%s5247 + $0x4] sm:$0xf]
      %v5250 = vld [vmem:[%s5247 + $0x8] sm:$0xf]
      %v5251 = vld [vmem:[%s5247 + $0xc] sm:$0xf]
      %v5252 = vld [vmem:[%s5247 + $0x10] sm:$0xf]
      %v5253 = vld [vmem:[%s5247 + $0x14] sm:$0xf]
      %v5254 = vld [vmem:[%s5247 + $0x18] sm:$0xf]
      %v5255 = vld [vmem:[%s5247 + $0x1c] sm:$0xf]
      %v5256 = vld [vmem:[%s5247 + $0x20] sm:$0xf]
      %v5257 = vld [vmem:[%s5247 + $0x24] sm:$0xf]
      %v5258 = vld [vmem:[%s5247 + $0x28] sm:$0xf]
      %v5259 = vld [vmem:[%s5247 + $0x2c] sm:$0xf]
      %v5260 = vld [vmem:[%s5247 + $0x30] sm:$0xf]
      %v5261 = vld [vmem:[%s5247 + $0x34] sm:$0xf]
      %v5262 = vld [vmem:[%s5247 + $0x38] sm:$0xf]
      %v5263 = vld [vmem:[%s5247 + $0x3c] sm:$0xf]
      %v5264 = vpack.c.b16 %v1811, %v5117
      %v5282 = vunpack.c.l.b16 %v5248
      %v5283 = vunpack.c.l.b16 %v5249
      %v5284 = vunpack.c.l.b16 %v5250
      %v5285 = vunpack.c.l.b16 %v5251
      %v5286 = vunpack.c.l.b16 %v5252
      %v5287 = vunpack.c.l.b16 %v5253
      %v5288 = vunpack.c.l.b16 %v5254
      %v5289 = vunpack.c.l.b16 %v5255
      %v5290 = vunpack.c.l.b16 %v5256
      %v5291 = vunpack.c.l.b16 %v5257
      %v5292 = vunpack.c.l.b16 %v5258
      %v5293 = vunpack.c.l.b16 %v5259
      %v5294 = vunpack.c.l.b16 %v5260
      %v5295 = vunpack.c.l.b16 %v5261
      %v5296 = vunpack.c.l.b16 %v5262
      %v5297 = vunpack.c.l.b16 %v5263
      %v5298 = vpack.c.b16 %v5283, %v5282
      %v5299 = vpack.c.b16 %v5285, %v5284
      %v5300 = vpack.c.b16 %v5287, %v5286
      %v5301 = vpack.c.b16 %v5289, %v5288
      %v5302 = vpack.c.b16 %v5291, %v5290
      %v5303 = vpack.c.b16 %v5293, %v5292
      %v5304 = vpack.c.b16 %v5295, %v5294
      %v5305 = vpack.c.b16 %v5297, %v5296
      %5314 = vmatprep.subr.bf16.mxu0 0
      %5315 = vmatpush1.bf16.msra.mxu0 %v5298
      %5316 = vmatprep.subr.bf16.mxu0 0
      %5317 = vmatpush1.bf16.msra.mxu0 %v5299
      %5318 = vmatprep.subr.bf16.mxu0 0
      %5319 = vmatpush1.bf16.msra.mxu0 %v5300
      %5320 = vmatprep.subr.bf16.mxu0 0
      %5321 = vmatpush1.bf16.msra.mxu0 %v5301
      %5322 = vmatprep.subr.bf16.mxu0 0
      %5323 = vmatpush1.bf16.msra.mxu0 %v5302
      %5324 = vmatprep.subr.bf16.mxu0 0
      %5325 = vmatpush1.bf16.msra.mxu0 %v5303
      %5326 = vmatprep.subr.bf16.mxu0 0
      %5327 = vmatpush1.bf16.msra.mxu0 %v5304
      %5328 = vmatprep.subr.bf16.mxu0 0
      %5329 = vmatpush1.bf16.msra.mxu0 %v5305
      %5330 = vmatprep.subr.bf16.mxu0 0
      %5331 = vmatpush1.bf16.msra.mxu0 0
      %5332 = vmatprep.subr.bf16.mxu0 0
      %5333 = vmatpush1.bf16.msra.mxu0 0
      %5334 = vmatprep.subr.bf16.mxu0 0
      %5335 = vmatpush1.bf16.msra.mxu0 0
      %5336 = vmatprep.subr.bf16.mxu0 0
      %5337 = vmatpush1.bf16.msra.mxu0 0
      %5338 = vmatprep.subr.bf16.mxu0 0
      %5339 = vmatpush1.bf16.msra.mxu0 0
      %5340 = vmatprep.subr.bf16.mxu0 0
      %5341 = vmatpush1.bf16.msra.mxu0 0
      %5342 = vmatprep.subr.bf16.mxu0 0
      %5343 = vmatpush1.bf16.msra.mxu0 0
      %5344 = vmatprep.subr.bf16.mxu0 0
      %5345 = vmatpush1.bf16.msra.mxu0 0
      %5346 = vmatprep.mubr.bf16.mxu0 0
      %5347 = vmatmul.mubr.bf16.gmra.mrb[0].mxu0 %v4972
      %v5348 = vpop.f32.mrb[0].mxu0
      %v5349 = vadd.f32 0.0, %v5348
      %v5350 = vpop.f32.mrb[0].mxu0
      %v5351 = vpop.f32.mrb[0].mxu0
      %v5352 = vadd.f32 0.0, %v5351
      %v5353 = vpop.f32.mrb[0].mxu0
      %5354 = vmatprep.mubr.bf16.mxu0 0
      %5355 = vmatmul.mubr.bf16.gmra.mrb[0].mxu0 %v4973
      %v5356 = vpop.f32.mrb[0].mxu0
      %v5357 = vadd.f32 0.0, %v5356
      %v5358 = vpop.f32.mrb[0].mxu0
      %v5359 = vpop.f32.mrb[0].mxu0
      %v5360 = vadd.f32 0.0, %v5359
      %v5361 = vpop.f32.mrb[0].mxu0
      %5362 = vmatprep.mubr.bf16.mxu0 0
      %5363 = vmatmul.mubr.bf16.gmra.mrb[0].mxu0 %v4974
      %v5364 = vpop.f32.mrb[0].mxu0
      %v5365 = vadd.f32 0.0, %v5364
      %v5366 = vpop.f32.mrb[0].mxu0
      %v5367 = vpop.f32.mrb[0].mxu0
      %v5368 = vadd.f32 0.0, %v5367
      %v5369 = vpop.f32.mrb[0].mxu0
      %5370 = vmatprep.mubr.bf16.mxu0 0
      %5371 = vmatmul.mubr.bf16.gmra.mrb[0].mxu0 %v5264
      %v5372 = vpop.f32.mrb[0].mxu0
      %v5373 = vadd.f32 0.0, %v5372
      %v5374 = vpop.f32.mrb[0].mxu0
      %v5375 = vpop.f32.mrb[0].mxu0
      %v5376 = vadd.f32 0.0, %v5375
      %v5377 = vpop.f32.mrb[0].mxu0
      %5378 = vdwg.mxu0
      %v5379 = vadd.f32 %v5239, %v5349
      %v5380 = vadd.f32 %v5240, %v5352
      %v5381 = vadd.f32 %v5241, %v5357
      %v5382 = vadd.f32 %v5242, %v5360
      %v5383 = vadd.f32 %v5243, %v5365
      %v5384 = vadd.f32 %v5244, %v5368
      %v5385 = vadd.f32 %v5245, %v5373
      %v5386 = vadd.f32 %v5246, %v5376
      %v5387 = vadd.f32 %v5379, %v5380
      %v5388 = vadd.f32 %v5387, %v5381
      %v5389 = vadd.f32 %v5388, %v5382
      %v5390 = vadd.f32 %v5389, %v5383
      %v5391 = vadd.f32 %v5390, %v5384
      %v5392 = vadd.f32 %v5391, %v5385
      %v5393 = vadd.f32 %v5392, %v5386
      %v5394 = vrot.slane %v5393, 4
      %v5395 = vadd.f32 %v5393, %v5394
      %v5396 = vrot.slane %v5395, 2
      %v5397 = vadd.f32 %v5395, %v5396
      %v5398 = vrot.slane %v5397, 1
      %v5399 = vadd.f32 %v5397, %v5398
      %v5400 = vmul.f32 %v5379, %v5379
      %v5401 = vmul.f32 %v5380, %v5380
      %v5402 = vmul.f32 %v5381, %v5381
      %v5403 = vmul.f32 %v5382, %v5382
      %v5404 = vmul.f32 %v5383, %v5383
      %v5405 = vmul.f32 %v5384, %v5384
      %v5406 = vmul.f32 %v5385, %v5385
      %v5407 = vmul.f32 %v5386, %v5386
      %v5408 = vadd.f32 %v5400, %v5401
      %v5409 = vadd.f32 %v5408, %v5402
      %v5410 = vadd.f32 %v5409, %v5403
      %v5411 = vadd.f32 %v5410, %v5404
      %v5412 = vadd.f32 %v5411, %v5405
      %v5413 = vadd.f32 %v5412, %v5406
      %v5414 = vadd.f32 %v5413, %v5407
      %v5415 = vrot.slane %v5414, 4
      %v5416 = vadd.f32 %v5414, %v5415
      %v5417 = vrot.slane %v5416, 2
      %v5418 = vadd.f32 %v5416, %v5417
      %v5419 = vrot.slane %v5418, 1
      %v5420 = vadd.f32 %v5418, %v5419
      %vm5421 = vcmask 1040384
      %v5422 = vsel %vm5421, %v5399, %v5420
      %5423 = vst [vmem:[%s445] sm:$0x3] %v5422
      %v5424 = vpack.c.bf16 %v5379, %v5379
      %v5425 = vpack.c.bf16 %v5380, %v5380
      %v5426 = vpack.c.bf16 %v5381, %v5381
      %v5427 = vpack.c.bf16 %v5382, %v5382
      %v5428 = vpack.c.bf16 %v5383, %v5383
      %v5429 = vpack.c.bf16 %v5384, %v5384
      %v5430 = vpack.c.bf16 %v5385, %v5385
      %v5431 = vpack.c.bf16 %v5386, %v5386
      %5432 = vst [vmem:[%s437] sm:$0xf] %v5424
      %5433 = vst [vmem:[%s437 + $0x4] sm:$0xf] %v5425
      %5434 = vst [vmem:[%s437 + $0x8] sm:$0xf] %v5426
      %5435 = vst [vmem:[%s437 + $0xc] sm:$0xf] %v5427
      %5436 = vst [vmem:[%s437 + $0x10] sm:$0xf] %v5428
      %5437 = vst [vmem:[%s437 + $0x14] sm:$0xf] %v5429
      %5438 = vst [vmem:[%s437 + $0x18] sm:$0xf] %v5430
      %5439 = vst [vmem:[%s437 + $0x1c] sm:$0xf] %v5431
      %p5440 = scmp.lt.s32.totalorder %s23, 1
      %s5441 = scalar_select %p5440, %s23, 1
      %p5442 = scmp.lt.s32.totalorder %s24, 7
      %s5443 = scalar_select %p5442, %s24, 7
      %s5444 = smul.addr %s5443, 8
      %s5445 = smul.addr %s5441, 64
      %s5446 = sadd.s32 %s5444, %s5445
      %s5447 = smul.addr %s5446, 4
      %s5448 = scalar_lea.vmem %s6, %s5447
      %p5449 = scmp.lt.s32.totalorder %s23, 1
      %s5450 = scalar_select %p5449, %s23, 1
      %p5451 = scmp.lt.s32.totalorder %s24, 7
      %s5452 = scalar_select %p5451, %s24, 7
      %s5453 = smul.addr %s5450, 8
      %s5454 = sadd.s32 %s5452, %s5453
      %s5455 = smul.addr %s5454, 2
      %s5456 = scalar_lea.vmem %s7, %s5455
      // Predicated region
      $region45: #{decoder3d_forward.4} parent=43 // pred_check
        %p5457 = pneg %p210
      $region46: #{decoder3d_forward.4} parent=43 // pred_check_branch
        %5459 = sbr.rel (%p5457) target = $region48
      $region47: #{decoder3d_forward.4} parent=43 // pred_region
        _
      $region48: #{decoder3d_forward.4} parent=43 // pred_fallthru
        _
      // Predicated region
      $region49: #{decoder3d_forward.4} parent=43 // pred_check
        %p5460 = pneg %p238
      $region50: #{decoder3d_forward.4} parent=43 // pred_check_branch
        %5462 = sbr.rel (%p5460) target = $region52
      $region51: #{decoder3d_forward.4} parent=43 // pred_region
        _
      $region52: #{decoder3d_forward.4} parent=43 // pred_fallthru
        _
    $region44: #{decoder3d_forward.4} parent=5 // pred_fallthru
      _
    %p5463 = scmp.le.s32.totalorder 2, %s14
    // Predicated region
    $region53: #{decoder3d_forward.4} parent=5 // pred_check
      %p5464 = pneg %p5463
    $region54: #{decoder3d_forward.4} parent=5 // pred_check_branch
      %5466 = sbr.rel (%p5464) target = $region56
    $region55: #{decoder3d_forward.4} parent=5 // pred_region
      %s5467 = ssub.s32 %s14, 2
      // Predicated region
      $region57: #{decoder3d_forward.4} parent=55 // pred_check
        %p5468 = pneg %p216
      $region58: #{decoder3d_forward.4} parent=55 // pred_check_branch
        %5470 = sbr.rel (%p5468) target = $region60
      $region59: #{decoder3d_forward.4} parent=55 // pred_region
        %p5471 = scmp.lt.s32.totalorder %s25, 1
        %s5472 = scalar_select %p5471, %s25, 1
        %p5473 = scmp.lt.s32.totalorder %s26, 7
        %s5474 = scalar_select %p5473, %s26, 7
        %s5475 = smul.addr %s5474, 8
        %s5476 = smul.addr %s5472, 64
        %s5477 = sadd.s32 %s5475, %s5476
        %s5478 = smul.addr %s5477, 4
        %s5479 = scalar_lea.vmem %s6, %s5478
      $region60: #{decoder3d_forward.4} parent=55 // pred_fallthru
        _
      // Predicated region
      $region61: #{decoder3d_forward.4} parent=55 // pred_check
        %p5480 = pneg %p244
      $region62: #{decoder3d_forward.4} parent=55 // pred_check_branch
        %5482 = sbr.rel (%p5480) target = $region64
      $region63: #{decoder3d_forward.4} parent=55 // pred_region
        %p5483 = scmp.lt.s32.totalorder %s25, 1
        %s5484 = scalar_select %p5483, %s25, 1
        %p5485 = scmp.lt.s32.totalorder %s26, 7
        %s5486 = scalar_select %p5485, %s26, 7
        %s5487 = smul.addr %s5484, 8
        %s5488 = sadd.s32 %s5486, %s5487
        %s5489 = smul.addr %s5488, 2
        %s5490 = scalar_lea.vmem %s7, %s5489
      $region64: #{decoder3d_forward.4} parent=55 // pred_fallthru
        _
    $region56: #{decoder3d_forward.4} parent=5 // pred_fallthru
      _
  $region6: #{decoder3d_forward.4} parent=0 // loop_footer
    %s18 = sadd.s32 1, %s14
  $region7: #{decoder3d_forward.4} parent=0 // loop_footer_branch
    %13 = sbr.rel target = $region3
  $region8: #{decoder3d_forward.4} parent=0 // loop_exit
    _

</llo_original>
